<compile_context>
chip_gen: v5e
topology: v5e:2x2
jax: 0.10.0
libtpu: 0.0.40
codegen_flags: <defaults>
</compile_context>

<pallas_src>
import functools

import numpy as np
import jax
import jax.numpy as jnp
from jax.experimental import pallas as pl
from jax.experimental.pallas import tpu as pltpu

DEPTH = 6          # InitCG depth
NCH = 8            # InitCG hidden channels
TAPS3 = [(ty, tx) for ty in (-1, 0, 1) for tx in (-1, 0, 1)]
TAPS5 = [(ty, tx) for ty in (-2, -1, 0, 1, 2) for tx in (-2, -1, 0, 1, 2)]


# ----------------------------------------------------------------------------
# Fused kernel: full MetaInvL forward for one batch element per grid step.
# ----------------------------------------------------------------------------

def _meta_invl_kernel(laam_ref, sino_ref, x_ref, mask_ref, cm_ref, wwm_ref,
                      muwtm_ref, atm_ref, dnw0_ref, dnwr_ref, dnb_ref,
                      dna_ref, db_ref, uk0_ref, patch_ref, *, img_h, img_w,
                      depth, cg_iters):
    P = img_h * img_w
    f32 = jnp.float32

    def shift(u, ty, tx):
        # shifted[p] = u[p + ty*img_w + tx]; wrapped lanes are always masked
        # out by the (precomputed) boundary masks / folded tap weights.
        off = ty * img_w + tx
        return u if off == 0 else pltpu.roll(u, (-off) % P, axis=1)

    laam = laam_ref[0]
    x1 = x_ref[0]                      # (1, P)
    sino1 = sino_ref[0]                # (1, P)
    masks = mask_ref[...]              # (9, P)   boundary masks (3x3 taps)
    cm = cm_ref[...]                   # (25, P)  (A^T A + miu W^T W) * masks
    wwm = wwm_ref[...]                 # (18, P)  W taps * masks (2 out ch)
    muwtm = muwtm_ref[...]             # (18, P)  miu * W^T taps * masks
    atm = atm_ref[...]                 # (9, P)   A^T (BwAt surrogate) * masks

    # ---- taps of x: one roll per tap, shared by W(x) and DnCNN layer 0 ------
    wu0 = None
    wu1 = None
    l0_rows = []
    for k, (ty, tx) in enumerate(TAPS3):
        sh = shift(x1, ty, tx)
        l0_rows.append(sh * masks[k:k + 1, :])         # layer-0 im2col row
        t0 = wwm[k:k + 1, :] * sh                       # mask folded in already
        t1 = wwm[9 + k:10 + k, :] * sh
        wu0 = t0 if wu0 is None else wu0 + t0
        wu1 = t1 if wu1 is None else wu1 + t1

    # ---- rhs = BwAt(sino) + miu * Wt(softthresh(W x)) -----------------------
    dnz0 = jnp.maximum(wu0 - laam, 0.0) - jnp.maximum(-wu0 - laam, 0.0)
    dnz1 = jnp.maximum(wu1 - laam, 0.0) - jnp.maximum(-wu1 - laam, 0.0)
    rhs = None
    for k, (ty, tx) in enumerate(TAPS3):
        t = (muwtm[k:k + 1, :] * shift(dnz0, ty, tx)
             + muwtm[9 + k:10 + k, :] * shift(dnz1, ty, tx)
             + atm[k:k + 1, :] * shift(sino1, ty, tx))
        rhs = t if rhs is None else rhs + t

    # ---- uk0 = x + DnCNN(x)  (depth convs, PReLU on all but the last) -------
    patches0 = jnp.concatenate(
        l0_rows + [jnp.zeros((16 - len(TAPS3), P), f32)], axis=0)   # (16, P)
    h = jnp.dot(dnw0_ref[...], patches0,
                preferred_element_type=f32) + dnb_ref[0]
    h = jnp.where(h >= 0.0, h, dna_ref[0] * h)
    for i in range(1, depth):
        # aligned 8-row stores into the persistent (72, P) patch scratch
        for k, (ty, tx) in enumerate(TAPS3):
            patch_ref[pl.ds(8 * k, 8), :] = shift(h, ty, tx) * masks[k:k + 1, :]
        y = jnp.dot(dnwr_ref[i - 1], patch_ref[...],
                    preferred_element_type=f32) + dnb_ref[i]
        if i < depth - 1:
            y = jnp.where(y >= 0.0, y, dna_ref[i] * y)
        h = y
    uk0 = x1 + h[0:1, :]
    uk0_ref[0] = uk0

    # ---- CG on the precomposed normal operator M = A^T A + miu W^T W --------
    def Mop(u):                                        # (1,P) -> (1,P)
        acc = None
        for k, (ty, tx) in enumerate(TAPS5):
            t = cm[k:k + 1, :] * shift(u, ty, tx)
            acc = t if acc is None else acc + t
        return acc

    # NOTE: like the PyTorch reference, no epsilon guard on the denominators.
    xk = uk0
    r = Mop(uk0) - rhs
    p = -r
    rTr = jnp.sum(r * r, keepdims=True)                # (1,1), carried
    for _ in range(cg_iters):
        Mp = Mop(p)
        alphak = rTr / jnp.sum(p * Mp, keepdims=True)  # == pATAp + miu*pWtWp
        xk = xk + alphak * p
        r = r + alphak * Mp
        rTr_new = jnp.sum(r * r, keepdims=True)
        p = -r + (rTr_new / rTr) * p
        rTr = rTr_new
    Mp = Mop(p)                                        # final half-step
    alphak = rTr / jnp.sum(p * Mp, keepdims=True)
    db_ref[0] = xk + alphak * p


# ----------------------------------------------------------------------------
# Host-side precompute: boundary masks, tap weights, composite 5x5 operator.
# ----------------------------------------------------------------------------

def _boundary_masks(H, W, radius):
    P = H * W
    row = np.arange(P) // W
    col = np.arange(P) % W
    taps = [(ty, tx) for ty in range(-radius, radius + 1)
            for tx in range(-radius, radius + 1)]
    ms = [((row + ty >= 0) & (row + ty < H) & (col + tx >= 0) & (col + tx < W))
          .astype(np.float32) for ty, tx in taps]
    return np.stack(ms)                                 # (T, P)


def _autocorr5(f):
    """5x5 stencil of (adjoint o forward) for a 3x3 cross-correlation kernel:
    ac[dy+2, dx+2] = sum_k f[k] * f[k + d]."""
    ac = np.zeros((5, 5), np.float64)
    for dy in range(-2, 3):
        for dx in range(-2, 3):
            s = 0.0
            for ky in range(3):
                for kx in range(3):
                    jy, jx = ky + dy, kx + dx
                    if 0 <= jy < 3 and 0 <= jx < 3:
                        s += f[ky, kx] * f[jy, jx]
            ac[dy + 2, dx + 2] = s
    return ac


def _adj_taps(w):
    """Adjoint of a stride-1 pad-1 conv2d: flip spatially, swap in/out chans.
    Returns (Cin, Cout, 9) with tap k = (ty+1)*3 + (tx+1)."""
    wf = w[:, :, ::-1, ::-1]
    wa = np.transpose(wf, (1, 0, 2, 3))
    return wa.reshape(wa.shape[0], wa.shape[1], 9)


class CgModuleJax:
    """Synthetic CT surrogate: W = symmetric second-difference sparsifier
    (1->2 ch), A = normalized blur (1->1 ch), exact adjoints, BwAt := A^T."""

    def __init__(self):
        wh = np.array([[0., 0., 0.], [1., -2., 1.], [0., 0., 0.]], np.float64) * 0.5
        wv = np.array([[0., 1., 0.], [0., -2., 0.], [0., 1., 0.]], np.float64) * 0.5
        self.w_weight = np.stack([wh, wv])[:, None]      # (2, 1, 3, 3)
        a = np.array([[1., 2., 1.], [2., 4., 2.], [1., 2., 1.]], np.float64) / 16.0
        self.a_weight = a[None, None]                    # (1, 1, 3, 3)

    def packed_tap_constants(self, H, W, miu):
        """Every mask / tap-weight constant the fused kernel needs; miu is
        folded in here so the kernel only carries laam as a runtime scalar."""
        masks9 = _boundary_masks(H, W, 1)                # (9, P)
        masks25 = _boundary_masks(H, W, 2)               # (25, P)

        # 5x5 composite normal operator  M = A^T A + miu * W^T W
        m5 = _autocorr5(self.a_weight[0, 0])
        for c in range(self.w_weight.shape[0]):
            m5 = m5 + miu * _autocorr5(self.w_weight[c, 0])
        cmask = m5.reshape(25, 1) * masks25              # (25, P)

        # forward W taps (x) masks, per output channel
        wtaps = self.w_weight.reshape(2, 9)
        wwm = np.concatenate([wtaps[c].reshape(9, 1) * masks9 for c in (0, 1)])

        # miu * W^T taps (x) masks, per input channel of dnz
        adjw = _adj_taps(self.w_weight)                  # (1, 2, 9)
        muwtm = np.concatenate(
            [miu * adjw[0, c].reshape(9, 1) * masks9 for c in (0, 1)])

        # A^T (BwAt surrogate) taps (x) masks
        adja = _adj_taps(self.a_weight)                  # (1, 1, 9)
        atm = adja[0, 0].reshape(9, 1) * masks9          # (9, P)

        to = lambda v: jnp.asarray(v, jnp.float32)
        return to(masks9), to(cmask), to(wwm), to(muwtm), to(atm)


# ----------------------------------------------------------------------------
# InitCG (light DnCNN) parameters — depth=6, n_channels=8, PReLU(init=0.025)
# ----------------------------------------------------------------------------

def init_dncnn_params(key, depth=DEPTH, n_channels=NCH):
    params = []
    keys = jax.random.split(key, depth)
    for i in range(depth):
        cin = 1 if i == 0 else n_channels
        cout = 1 if i == depth - 1 else n_channels
        w = jax.random.normal(keys[i], (cout, cin, 3, 3), jnp.float32) * 0.05
        b = jnp.zeros((cout,), jnp.float32)
        alpha = None if i == depth - 1 else jnp.full((cout,), 0.025, jnp.float32)
        params.append((w, b, alpha))
    return params


def pack_dncnn_params(params):
    """Layer 0 -> (8,16) matching the (9 taps + 7 zero rows) patch layout;
    layers 1..L-1 -> (8,72) with column (ky*3+kx)*8 + cin, rows padded to 8."""
    w0, _, _ = params[0]
    dnw0 = jnp.concatenate(
        [jnp.asarray(w0, jnp.float32).reshape(NCH, 9),
         jnp.zeros((NCH, 7), jnp.float32)], axis=1)                  # (8, 16)
    ws = []
    for (w, _, _) in params[1:]:
        cout = w.shape[0]
        wp = jnp.zeros((NCH, NCH, 3, 3), jnp.float32).at[:cout].set(w)
        ws.append(jnp.transpose(wp, (0, 2, 3, 1)).reshape(NCH, 9 * NCH))
    dnwr = jnp.stack(ws)                                             # (5, 8, 72)
    bs, aas = [], []
    for (w, b, alpha) in params:
        cout = w.shape[0]
        bs.append(jnp.zeros((NCH,), jnp.float32).at[:cout].set(b).reshape(NCH, 1))
        if alpha is not None:
            aas.append(jnp.asarray(alpha, jnp.float32).reshape(NCH, 1))
    return dnw0, dnwr, jnp.stack(bs), jnp.stack(aas)   # (8,16),(5,8,72),(6,8,1),(5,8,1)


# ----------------------------------------------------------------------------
# MetaInvL forward (single fused pallas_call, grid over the batch)
# ----------------------------------------------------------------------------

def meta_invl_forward(cg, cnn_params, sino, x, laam, miu, cg_iters=5):
    N, cx, H, W = x.shape
    assert cx == 1 and sino.shape == x.shape
    P = H * W
    depth = len(cnn_params)

    x1 = x.reshape(N, 1, P).astype(jnp.float32)
    s1 = sino.reshape(N, 1, P).astype(jnp.float32)

    masks9, cmask, wwm, muwtm, atm = cg.packed_tap_constants(H, W, float(miu))
    dnw0, dnwr, dnb, dna = pack_dncnn_params(cnn_params)
    laam_arr = jnp.array([laam], jnp.float32)

    kernel = functools.partial(_meta_invl_kernel, img_h=H, img_w=W,
                               depth=depth, cg_iters=cg_iters)

    db, uk0 = pl.pallas_call(
        kernel,
        out_shape=(jax.ShapeDtypeStruct((N, 1, P), jnp.float32),
                   jax.ShapeDtypeStruct((N, 1, P), jnp.float32)),
        grid=(N,),
        in_specs=[
            pl.BlockSpec(memory_space=pltpu.MemorySpace.SMEM),        # [laam]
            pl.BlockSpec((1, 1, P), lambda n: (n, 0, 0)),             # sino
            pl.BlockSpec((1, 1, P), lambda n: (n, 0, 0)),             # x
            pl.BlockSpec((9, P), lambda n: (0, 0)),                   # masks
            pl.BlockSpec((25, P), lambda n: (0, 0)),                  # M 5x5
            pl.BlockSpec((18, P), lambda n: (0, 0)),                  # W taps
            pl.BlockSpec((18, P), lambda n: (0, 0)),                  # miu*Wt
            pl.BlockSpec((9, P), lambda n: (0, 0)),                   # At taps
            pl.BlockSpec((NCH, 16), lambda n: (0, 0)),                # DnCNN L0
            pl.BlockSpec((depth - 1, NCH, 9 * NCH), lambda n: (0, 0, 0)),
            pl.BlockSpec((depth, NCH, 1), lambda n: (0, 0, 0)),       # biases
            pl.BlockSpec((depth - 1, NCH, 1), lambda n: (0, 0, 0)),   # PReLU
        ],
        out_specs=(pl.BlockSpec((1, 1, P), lambda n: (n, 0, 0)),      # db
                   pl.BlockSpec((1, 1, P), lambda n: (n, 0, 0))),     # uk0
        scratch_shapes=[pltpu.VMEM((9 * NCH, P), jnp.float32)],       # im2col
        compiler_params=pltpu.CompilerParams(dimension_semantics=("parallel",)),
    )(laam_arr, s1, x1, masks9, cmask, wwm, muwtm, atm, dnw0, dnwr, dnb, dna)

    return db.reshape(N, 1, H, W), uk0.reshape(N, 1, H, W)


# ----------------------------------------------------------------------------
# Main
# ----------------------------------------------------------------------------

if __name__ == "__main__":
    key = jax.random.PRNGKey(0)
    k_x, k_sino, k_cnn = jax.random.split(key, 3)

    N, H, W = 2, 16, 16
    x = jax.random.normal(k_x, (N, 1, H, W), jnp.float32)
    sino = jax.random.normal(k_sino, (N, 1, H, W), jnp.float32)
    laam = 0.01
    miu = 0.05

    cnn_params = init_dncnn_params(k_cnn, depth=DEPTH, n_channels=NCH)
    cg = CgModuleJax()

    db, uk0 = meta_invl_forward(cg, cnn_params, sino, x, laam, miu, cg_iters=5)
    jax.block_until_ready((db, uk0))
    assert db.shape == (N, 1, H, W) and uk0.shape == (N, 1, H, W)
    assert bool(jnp.all(jnp.isfinite(db))) and bool(jnp.all(jnp.isfinite(uk0)))
    print("KERNEL_OK")
</pallas_src>

<mosaic_0001>
module attributes {stable_mosaic.version = 11 : i64} {
  func.func @_meta_invl_kernel(%arg0: i32, %arg1: memref<1xf32, #tpu.memory_space<smem>>, %arg2: memref<1x1x256xf32, #tpu.memory_space<vmem>>, %arg3: memref<1x1x256xf32, #tpu.memory_space<vmem>>, %arg4: memref<9x256xf32, #tpu.memory_space<vmem>>, %arg5: memref<25x256xf32, #tpu.memory_space<vmem>>, %arg6: memref<18x256xf32, #tpu.memory_space<vmem>>, %arg7: memref<18x256xf32, #tpu.memory_space<vmem>>, %arg8: memref<9x256xf32, #tpu.memory_space<vmem>>, %arg9: memref<8x16xf32, #tpu.memory_space<vmem>>, %arg10: memref<5x8x72xf32, #tpu.memory_space<vmem>>, %arg11: memref<6x8x1xf32, #tpu.memory_space<vmem>>, %arg12: memref<5x8x1xf32, #tpu.memory_space<vmem>>, %arg13: memref<1x1x256xf32, #tpu.memory_space<vmem>>, %arg14: memref<1x1x256xf32, #tpu.memory_space<vmem>>, %arg15: memref<72x256xf32, #tpu.memory_space<vmem>>) attributes {dimension_semantics = [#tpu.dimension_semantics<parallel>], iteration_bounds = array<i64: 2>, scalar_prefetch = 0 : i64, scratch_operands = 1 : i64, tpu.core_type = #tpu.core_type<tc>, window_params = [{transform_indices = @transform_0, window_bounds = array<i64: 1>}, {transform_indices = @transform_1, window_bounds = array<i64: 1, 1, 256>}, {transform_indices = @transform_2, window_bounds = array<i64: 1, 1, 256>}, {pipeline_mode = #tpu.pipeline_mode<synchronous>, transform_indices = @transform_3, window_bounds = array<i64: 9, 256>}, {pipeline_mode = #tpu.pipeline_mode<synchronous>, transform_indices = @transform_4, window_bounds = array<i64: 25, 256>}, {pipeline_mode = #tpu.pipeline_mode<synchronous>, transform_indices = @transform_5, window_bounds = array<i64: 18, 256>}, {pipeline_mode = #tpu.pipeline_mode<synchronous>, transform_indices = @transform_6, window_bounds = array<i64: 18, 256>}, {pipeline_mode = #tpu.pipeline_mode<synchronous>, transform_indices = @transform_7, window_bounds = array<i64: 9, 256>}, {pipeline_mode = #tpu.pipeline_mode<synchronous>, transform_indices = @transform_8, window_bounds = array<i64: 8, 16>}, {pipeline_mode = #tpu.pipeline_mode<synchronous>, transform_indices = @transform_9, window_bounds = array<i64: 5, 8, 72>}, {pipeline_mode = #tpu.pipeline_mode<synchronous>, transform_indices = @transform_10, window_bounds = array<i64: 6, 8, 1>}, {pipeline_mode = #tpu.pipeline_mode<synchronous>, transform_indices = @transform_11, window_bounds = array<i64: 5, 8, 1>}, {transform_indices = @transform_12, window_bounds = array<i64: 1, 1, 256>}, {transform_indices = @transform_13, window_bounds = array<i64: 1, 1, 256>}]} {
    %c0 = arith.constant 0 : index
    %0 = memref.load %arg1[%c0] : memref<1xf32, #tpu.memory_space<smem>>
    %c0_0 = arith.constant 0 : index
    %c0_1 = arith.constant 0 : index
    %c0_2 = arith.constant 0 : index
    %1 = vector.load %arg3[%c0_0, %c0_1, %c0_2] : memref<1x1x256xf32, #tpu.memory_space<vmem>>, vector<1x1x256xf32>
    %2 = vector.shape_cast %1 : vector<1x1x256xf32> to vector<1x256xf32>
    %c0_3 = arith.constant 0 : index
    %c0_4 = arith.constant 0 : index
    %c0_5 = arith.constant 0 : index
    %3 = vector.load %arg2[%c0_3, %c0_4, %c0_5] : memref<1x1x256xf32, #tpu.memory_space<vmem>>, vector<1x1x256xf32>
    %4 = vector.shape_cast %3 : vector<1x1x256xf32> to vector<1x256xf32>
    %c0_6 = arith.constant 0 : index
    %c0_7 = arith.constant 0 : index
    %5 = vector.load %arg4[%c0_6, %c0_7] : memref<9x256xf32, #tpu.memory_space<vmem>>, vector<9x256xf32>
    %c0_8 = arith.constant 0 : index
    %c0_9 = arith.constant 0 : index
    %6 = vector.load %arg5[%c0_8, %c0_9] : memref<25x256xf32, #tpu.memory_space<vmem>>, vector<25x256xf32>
    %c0_10 = arith.constant 0 : index
    %c0_11 = arith.constant 0 : index
    %7 = vector.load %arg6[%c0_10, %c0_11] : memref<18x256xf32, #tpu.memory_space<vmem>>, vector<18x256xf32>
    %c0_12 = arith.constant 0 : index
    %c0_13 = arith.constant 0 : index
    %8 = vector.load %arg7[%c0_12, %c0_13] : memref<18x256xf32, #tpu.memory_space<vmem>>, vector<18x256xf32>
    %c0_14 = arith.constant 0 : index
    %c0_15 = arith.constant 0 : index
    %9 = vector.load %arg8[%c0_14, %c0_15] : memref<9x256xf32, #tpu.memory_space<vmem>>, vector<9x256xf32>
    %c17_i32 = arith.constant 17 : i32
    %10 = tpu.dynamic_rotate %2 by %c17_i32 dim 1 : vector<1x256xf32>, i32 -> vector<1x256xf32>
    %11 = vector.extract_strided_slice %5 {offsets = [0, 0], sizes = [1, 256], strides = [1, 1]} : vector<9x256xf32> to vector<1x256xf32>
    %12 = arith.mulf %10, %11 : vector<1x256xf32>
    %13 = vector.extract_strided_slice %7 {offsets = [0, 0], sizes = [1, 256], strides = [1, 1]} : vector<18x256xf32> to vector<1x256xf32>
    %14 = arith.mulf %13, %10 : vector<1x256xf32>
    %15 = vector.extract_strided_slice %7 {offsets = [9, 0], sizes = [1, 256], strides = [1, 1]} : vector<18x256xf32> to vector<1x256xf32>
    %16 = arith.mulf %15, %10 : vector<1x256xf32>
    %c16_i32 = arith.constant 16 : i32
    %17 = tpu.dynamic_rotate %2 by %c16_i32 dim 1 : vector<1x256xf32>, i32 -> vector<1x256xf32>
    %18 = vector.extract_strided_slice %5 {offsets = [1, 0], sizes = [1, 256], strides = [1, 1]} : vector<9x256xf32> to vector<1x256xf32>
    %19 = arith.mulf %17, %18 : vector<1x256xf32>
    %20 = vector.extract_strided_slice %7 {offsets = [1, 0], sizes = [1, 256], strides = [1, 1]} : vector<18x256xf32> to vector<1x256xf32>
    %21 = arith.mulf %20, %17 : vector<1x256xf32>
    %22 = vector.extract_strided_slice %7 {offsets = [10, 0], sizes = [1, 256], strides = [1, 1]} : vector<18x256xf32> to vector<1x256xf32>
    %23 = arith.mulf %22, %17 : vector<1x256xf32>
    %24 = arith.addf %14, %21 : vector<1x256xf32>
    %25 = arith.addf %16, %23 : vector<1x256xf32>
    %c15_i32 = arith.constant 15 : i32
    %26 = tpu.dynamic_rotate %2 by %c15_i32 dim 1 : vector<1x256xf32>, i32 -> vector<1x256xf32>
    %27 = vector.extract_strided_slice %5 {offsets = [2, 0], sizes = [1, 256], strides = [1, 1]} : vector<9x256xf32> to vector<1x256xf32>
    %28 = arith.mulf %26, %27 : vector<1x256xf32>
    %29 = vector.extract_strided_slice %7 {offsets = [2, 0], sizes = [1, 256], strides = [1, 1]} : vector<18x256xf32> to vector<1x256xf32>
    %30 = arith.mulf %29, %26 : vector<1x256xf32>
    %31 = vector.extract_strided_slice %7 {offsets = [11, 0], sizes = [1, 256], strides = [1, 1]} : vector<18x256xf32> to vector<1x256xf32>
    %32 = arith.mulf %31, %26 : vector<1x256xf32>
    %33 = arith.addf %24, %30 : vector<1x256xf32>
    %34 = arith.addf %25, %32 : vector<1x256xf32>
    %c1_i32 = arith.constant 1 : i32
    %35 = tpu.dynamic_rotate %2 by %c1_i32 dim 1 : vector<1x256xf32>, i32 -> vector<1x256xf32>
    %36 = vector.extract_strided_slice %5 {offsets = [3, 0], sizes = [1, 256], strides = [1, 1]} : vector<9x256xf32> to vector<1x256xf32>
    %37 = arith.mulf %35, %36 : vector<1x256xf32>
    %38 = vector.extract_strided_slice %7 {offsets = [3, 0], sizes = [1, 256], strides = [1, 1]} : vector<18x256xf32> to vector<1x256xf32>
    %39 = arith.mulf %38, %35 : vector<1x256xf32>
    %40 = vector.extract_strided_slice %7 {offsets = [12, 0], sizes = [1, 256], strides = [1, 1]} : vector<18x256xf32> to vector<1x256xf32>
    %41 = arith.mulf %40, %35 : vector<1x256xf32>
    %42 = arith.addf %33, %39 : vector<1x256xf32>
    %43 = arith.addf %34, %41 : vector<1x256xf32>
    %44 = vector.extract_strided_slice %5 {offsets = [4, 0], sizes = [1, 256], strides = [1, 1]} : vector<9x256xf32> to vector<1x256xf32>
    %45 = arith.mulf %2, %44 : vector<1x256xf32>
    %46 = vector.extract_strided_slice %7 {offsets = [4, 0], sizes = [1, 256], strides = [1, 1]} : vector<18x256xf32> to vector<1x256xf32>
    %47 = arith.mulf %46, %2 : vector<1x256xf32>
    %48 = vector.extract_strided_slice %7 {offsets = [13, 0], sizes = [1, 256], strides = [1, 1]} : vector<18x256xf32> to vector<1x256xf32>
    %49 = arith.mulf %48, %2 : vector<1x256xf32>
    %50 = arith.addf %42, %47 : vector<1x256xf32>
    %51 = arith.addf %43, %49 : vector<1x256xf32>
    %c255_i32 = arith.constant 255 : i32
    %52 = tpu.dynamic_rotate %2 by %c255_i32 dim 1 : vector<1x256xf32>, i32 -> vector<1x256xf32>
    %53 = vector.extract_strided_slice %5 {offsets = [5, 0], sizes = [1, 256], strides = [1, 1]} : vector<9x256xf32> to vector<1x256xf32>
    %54 = arith.mulf %52, %53 : vector<1x256xf32>
    %55 = vector.extract_strided_slice %7 {offsets = [5, 0], sizes = [1, 256], strides = [1, 1]} : vector<18x256xf32> to vector<1x256xf32>
    %56 = arith.mulf %55, %52 : vector<1x256xf32>
    %57 = vector.extract_strided_slice %7 {offsets = [14, 0], sizes = [1, 256], strides = [1, 1]} : vector<18x256xf32> to vector<1x256xf32>
    %58 = arith.mulf %57, %52 : vector<1x256xf32>
    %59 = arith.addf %50, %56 : vector<1x256xf32>
    %60 = arith.addf %51, %58 : vector<1x256xf32>
    %c241_i32 = arith.constant 241 : i32
    %61 = tpu.dynamic_rotate %2 by %c241_i32 dim 1 : vector<1x256xf32>, i32 -> vector<1x256xf32>
    %62 = vector.extract_strided_slice %5 {offsets = [6, 0], sizes = [1, 256], strides = [1, 1]} : vector<9x256xf32> to vector<1x256xf32>
    %63 = arith.mulf %61, %62 : vector<1x256xf32>
    %64 = vector.extract_strided_slice %7 {offsets = [6, 0], sizes = [1, 256], strides = [1, 1]} : vector<18x256xf32> to vector<1x256xf32>
    %65 = arith.mulf %64, %61 : vector<1x256xf32>
    %66 = vector.extract_strided_slice %7 {offsets = [15, 0], sizes = [1, 256], strides = [1, 1]} : vector<18x256xf32> to vector<1x256xf32>
    %67 = arith.mulf %66, %61 : vector<1x256xf32>
    %68 = arith.addf %59, %65 : vector<1x256xf32>
    %69 = arith.addf %60, %67 : vector<1x256xf32>
    %c240_i32 = arith.constant 240 : i32
    %70 = tpu.dynamic_rotate %2 by %c240_i32 dim 1 : vector<1x256xf32>, i32 -> vector<1x256xf32>
    %71 = vector.extract_strided_slice %5 {offsets = [7, 0], sizes = [1, 256], strides = [1, 1]} : vector<9x256xf32> to vector<1x256xf32>
    %72 = arith.mulf %70, %71 : vector<1x256xf32>
    %73 = vector.extract_strided_slice %7 {offsets = [7, 0], sizes = [1, 256], strides = [1, 1]} : vector<18x256xf32> to vector<1x256xf32>
    %74 = arith.mulf %73, %70 : vector<1x256xf32>
    %75 = vector.extract_strided_slice %7 {offsets = [16, 0], sizes = [1, 256], strides = [1, 1]} : vector<18x256xf32> to vector<1x256xf32>
    %76 = arith.mulf %75, %70 : vector<1x256xf32>
    %77 = arith.addf %68, %74 : vector<1x256xf32>
    %78 = arith.addf %69, %76 : vector<1x256xf32>
    %c239_i32 = arith.constant 239 : i32
    %79 = tpu.dynamic_rotate %2 by %c239_i32 dim 1 : vector<1x256xf32>, i32 -> vector<1x256xf32>
    %80 = vector.extract_strided_slice %5 {offsets = [8, 0], sizes = [1, 256], strides = [1, 1]} : vector<9x256xf32> to vector<1x256xf32>
    %81 = arith.mulf %79, %80 : vector<1x256xf32>
    %82 = vector.extract_strided_slice %7 {offsets = [8, 0], sizes = [1, 256], strides = [1, 1]} : vector<18x256xf32> to vector<1x256xf32>
    %83 = arith.mulf %82, %79 : vector<1x256xf32>
    %84 = vector.extract_strided_slice %7 {offsets = [17, 0], sizes = [1, 256], strides = [1, 1]} : vector<18x256xf32> to vector<1x256xf32>
    %85 = arith.mulf %84, %79 : vector<1x256xf32>
    %86 = arith.addf %77, %83 : vector<1x256xf32>
    %87 = arith.addf %78, %85 : vector<1x256xf32>
    %88 = vector.broadcast %0 : f32 to vector<1x256xf32>
    %89 = arith.subf %86, %88 : vector<1x256xf32>
    %cst = arith.constant 0.000000e+00 : f32
    %90 = vector.broadcast %cst : f32 to vector<1x256xf32>
    %91 = arith.maximumf %89, %90 : vector<1x256xf32>
    %cst_16 = arith.constant 0.000000e+00 : f32
    %92 = vector.broadcast %cst_16 : f32 to vector<1x256xf32>
    %93 = arith.subf %92, %86 : vector<1x256xf32>
    %94 = vector.broadcast %0 : f32 to vector<1x256xf32>
    %95 = arith.subf %93, %94 : vector<1x256xf32>
    %cst_17 = arith.constant 0.000000e+00 : f32
    %96 = vector.broadcast %cst_17 : f32 to vector<1x256xf32>
    %97 = arith.maximumf %95, %96 : vector<1x256xf32>
    %98 = arith.subf %91, %97 : vector<1x256xf32>
    %99 = vector.broadcast %0 : f32 to vector<1x256xf32>
    %100 = arith.subf %87, %99 : vector<1x256xf32>
    %cst_18 = arith.constant 0.000000e+00 : f32
    %101 = vector.broadcast %cst_18 : f32 to vector<1x256xf32>
    %102 = arith.maximumf %100, %101 : vector<1x256xf32>
    %cst_19 = arith.constant 0.000000e+00 : f32
    %103 = vector.broadcast %cst_19 : f32 to vector<1x256xf32>
    %104 = arith.subf %103, %87 : vector<1x256xf32>
    %105 = vector.broadcast %0 : f32 to vector<1x256xf32>
    %106 = arith.subf %104, %105 : vector<1x256xf32>
    %cst_20 = arith.constant 0.000000e+00 : f32
    %107 = vector.broadcast %cst_20 : f32 to vector<1x256xf32>
    %108 = arith.maximumf %106, %107 : vector<1x256xf32>
    %109 = arith.subf %102, %108 : vector<1x256xf32>
    %110 = vector.extract_strided_slice %8 {offsets = [0, 0], sizes = [1, 256], strides = [1, 1]} : vector<18x256xf32> to vector<1x256xf32>
    %c17_i32_21 = arith.constant 17 : i32
    %111 = tpu.dynamic_rotate %98 by %c17_i32_21 dim 1 : vector<1x256xf32>, i32 -> vector<1x256xf32>
    %112 = arith.mulf %110, %111 : vector<1x256xf32>
    %113 = vector.extract_strided_slice %8 {offsets = [9, 0], sizes = [1, 256], strides = [1, 1]} : vector<18x256xf32> to vector<1x256xf32>
    %c17_i32_22 = arith.constant 17 : i32
    %114 = tpu.dynamic_rotate %109 by %c17_i32_22 dim 1 : vector<1x256xf32>, i32 -> vector<1x256xf32>
    %115 = arith.mulf %113, %114 : vector<1x256xf32>
    %116 = arith.addf %112, %115 : vector<1x256xf32>
    %117 = vector.extract_strided_slice %9 {offsets = [0, 0], sizes = [1, 256], strides = [1, 1]} : vector<9x256xf32> to vector<1x256xf32>
    %c17_i32_23 = arith.constant 17 : i32
    %118 = tpu.dynamic_rotate %4 by %c17_i32_23 dim 1 : vector<1x256xf32>, i32 -> vector<1x256xf32>
    %119 = arith.mulf %117, %118 : vector<1x256xf32>
    %120 = arith.addf %116, %119 : vector<1x256xf32>
    %121 = vector.extract_strided_slice %8 {offsets = [1, 0], sizes = [1, 256], strides = [1, 1]} : vector<18x256xf32> to vector<1x256xf32>
    %c16_i32_24 = arith.constant 16 : i32
    %122 = tpu.dynamic_rotate %98 by %c16_i32_24 dim 1 : vector<1x256xf32>, i32 -> vector<1x256xf32>
    %123 = arith.mulf %121, %122 : vector<1x256xf32>
    %124 = vector.extract_strided_slice %8 {offsets = [10, 0], sizes = [1, 256], strides = [1, 1]} : vector<18x256xf32> to vector<1x256xf32>
    %c16_i32_25 = arith.constant 16 : i32
    %125 = tpu.dynamic_rotate %109 by %c16_i32_25 dim 1 : vector<1x256xf32>, i32 -> vector<1x256xf32>
    %126 = arith.mulf %124, %125 : vector<1x256xf32>
    %127 = arith.addf %123, %126 : vector<1x256xf32>
    %128 = vector.extract_strided_slice %9 {offsets = [1, 0], sizes = [1, 256], strides = [1, 1]} : vector<9x256xf32> to vector<1x256xf32>
    %c16_i32_26 = arith.constant 16 : i32
    %129 = tpu.dynamic_rotate %4 by %c16_i32_26 dim 1 : vector<1x256xf32>, i32 -> vector<1x256xf32>
    %130 = arith.mulf %128, %129 : vector<1x256xf32>
    %131 = arith.addf %127, %130 : vector<1x256xf32>
    %132 = arith.addf %120, %131 : vector<1x256xf32>
    %133 = vector.extract_strided_slice %8 {offsets = [2, 0], sizes = [1, 256], strides = [1, 1]} : vector<18x256xf32> to vector<1x256xf32>
    %c15_i32_27 = arith.constant 15 : i32
    %134 = tpu.dynamic_rotate %98 by %c15_i32_27 dim 1 : vector<1x256xf32>, i32 -> vector<1x256xf32>
    %135 = arith.mulf %133, %134 : vector<1x256xf32>
    %136 = vector.extract_strided_slice %8 {offsets = [11, 0], sizes = [1, 256], strides = [1, 1]} : vector<18x256xf32> to vector<1x256xf32>
    %c15_i32_28 = arith.constant 15 : i32
    %137 = tpu.dynamic_rotate %109 by %c15_i32_28 dim 1 : vector<1x256xf32>, i32 -> vector<1x256xf32>
    %138 = arith.mulf %136, %137 : vector<1x256xf32>
    %139 = arith.addf %135, %138 : vector<1x256xf32>
    %140 = vector.extract_strided_slice %9 {offsets = [2, 0], sizes = [1, 256], strides = [1, 1]} : vector<9x256xf32> to vector<1x256xf32>
    %c15_i32_29 = arith.constant 15 : i32
    %141 = tpu.dynamic_rotate %4 by %c15_i32_29 dim 1 : vector<1x256xf32>, i32 -> vector<1x256xf32>
    %142 = arith.mulf %140, %141 : vector<1x256xf32>
    %143 = arith.addf %139, %142 : vector<1x256xf32>
    %144 = arith.addf %132, %143 : vector<1x256xf32>
    %145 = vector.extract_strided_slice %8 {offsets = [3, 0], sizes = [1, 256], strides = [1, 1]} : vector<18x256xf32> to vector<1x256xf32>
    %c1_i32_30 = arith.constant 1 : i32
    %146 = tpu.dynamic_rotate %98 by %c1_i32_30 dim 1 : vector<1x256xf32>, i32 -> vector<1x256xf32>
    %147 = arith.mulf %145, %146 : vector<1x256xf32>
    %148 = vector.extract_strided_slice %8 {offsets = [12, 0], sizes = [1, 256], strides = [1, 1]} : vector<18x256xf32> to vector<1x256xf32>
    %c1_i32_31 = arith.constant 1 : i32
    %149 = tpu.dynamic_rotate %109 by %c1_i32_31 dim 1 : vector<1x256xf32>, i32 -> vector<1x256xf32>
    %150 = arith.mulf %148, %149 : vector<1x256xf32>
    %151 = arith.addf %147, %150 : vector<1x256xf32>
    %152 = vector.extract_strided_slice %9 {offsets = [3, 0], sizes = [1, 256], strides = [1, 1]} : vector<9x256xf32> to vector<1x256xf32>
    %c1_i32_32 = arith.constant 1 : i32
    %153 = tpu.dynamic_rotate %4 by %c1_i32_32 dim 1 : vector<1x256xf32>, i32 -> vector<1x256xf32>
    %154 = arith.mulf %152, %153 : vector<1x256xf32>
    %155 = arith.addf %151, %154 : vector<1x256xf32>
    %156 = arith.addf %144, %155 : vector<1x256xf32>
    %157 = vector.extract_strided_slice %8 {offsets = [4, 0], sizes = [1, 256], strides = [1, 1]} : vector<18x256xf32> to vector<1x256xf32>
    %158 = arith.mulf %157, %98 : vector<1x256xf32>
    %159 = vector.extract_strided_slice %8 {offsets = [13, 0], sizes = [1, 256], strides = [1, 1]} : vector<18x256xf32> to vector<1x256xf32>
    %160 = arith.mulf %159, %109 : vector<1x256xf32>
    %161 = arith.addf %158, %160 : vector<1x256xf32>
    %162 = vector.extract_strided_slice %9 {offsets = [4, 0], sizes = [1, 256], strides = [1, 1]} : vector<9x256xf32> to vector<1x256xf32>
    %163 = arith.mulf %162, %4 : vector<1x256xf32>
    %164 = arith.addf %161, %163 : vector<1x256xf32>
    %165 = arith.addf %156, %164 : vector<1x256xf32>
    %166 = vector.extract_strided_slice %8 {offsets = [5, 0], sizes = [1, 256], strides = [1, 1]} : vector<18x256xf32> to vector<1x256xf32>
    %c255_i32_33 = arith.constant 255 : i32
    %167 = tpu.dynamic_rotate %98 by %c255_i32_33 dim 1 : vector<1x256xf32>, i32 -> vector<1x256xf32>
    %168 = arith.mulf %166, %167 : vector<1x256xf32>
    %169 = vector.extract_strided_slice %8 {offsets = [14, 0], sizes = [1, 256], strides = [1, 1]} : vector<18x256xf32> to vector<1x256xf32>
    %c255_i32_34 = arith.constant 255 : i32
    %170 = tpu.dynamic_rotate %109 by %c255_i32_34 dim 1 : vector<1x256xf32>, i32 -> vector<1x256xf32>
    %171 = arith.mulf %169, %170 : vector<1x256xf32>
    %172 = arith.addf %168, %171 : vector<1x256xf32>
    %173 = vector.extract_strided_slice %9 {offsets = [5, 0], sizes = [1, 256], strides = [1, 1]} : vector<9x256xf32> to vector<1x256xf32>
    %c255_i32_35 = arith.constant 255 : i32
    %174 = tpu.dynamic_rotate %4 by %c255_i32_35 dim 1 : vector<1x256xf32>, i32 -> vector<1x256xf32>
    %175 = arith.mulf %173, %174 : vector<1x256xf32>
    %176 = arith.addf %172, %175 : vector<1x256xf32>
    %177 = arith.addf %165, %176 : vector<1x256xf32>
    %178 = vector.extract_strided_slice %8 {offsets = [6, 0], sizes = [1, 256], strides = [1, 1]} : vector<18x256xf32> to vector<1x256xf32>
    %c241_i32_36 = arith.constant 241 : i32
    %179 = tpu.dynamic_rotate %98 by %c241_i32_36 dim 1 : vector<1x256xf32>, i32 -> vector<1x256xf32>
    %180 = arith.mulf %178, %179 : vector<1x256xf32>
    %181 = vector.extract_strided_slice %8 {offsets = [15, 0], sizes = [1, 256], strides = [1, 1]} : vector<18x256xf32> to vector<1x256xf32>
    %c241_i32_37 = arith.constant 241 : i32
    %182 = tpu.dynamic_rotate %109 by %c241_i32_37 dim 1 : vector<1x256xf32>, i32 -> vector<1x256xf32>
    %183 = arith.mulf %181, %182 : vector<1x256xf32>
    %184 = arith.addf %180, %183 : vector<1x256xf32>
    %185 = vector.extract_strided_slice %9 {offsets = [6, 0], sizes = [1, 256], strides = [1, 1]} : vector<9x256xf32> to vector<1x256xf32>
    %c241_i32_38 = arith.constant 241 : i32
    %186 = tpu.dynamic_rotate %4 by %c241_i32_38 dim 1 : vector<1x256xf32>, i32 -> vector<1x256xf32>
    %187 = arith.mulf %185, %186 : vector<1x256xf32>
    %188 = arith.addf %184, %187 : vector<1x256xf32>
    %189 = arith.addf %177, %188 : vector<1x256xf32>
    %190 = vector.extract_strided_slice %8 {offsets = [7, 0], sizes = [1, 256], strides = [1, 1]} : vector<18x256xf32> to vector<1x256xf32>
    %c240_i32_39 = arith.constant 240 : i32
    %191 = tpu.dynamic_rotate %98 by %c240_i32_39 dim 1 : vector<1x256xf32>, i32 -> vector<1x256xf32>
    %192 = arith.mulf %190, %191 : vector<1x256xf32>
    %193 = vector.extract_strided_slice %8 {offsets = [16, 0], sizes = [1, 256], strides = [1, 1]} : vector<18x256xf32> to vector<1x256xf32>
    %c240_i32_40 = arith.constant 240 : i32
    %194 = tpu.dynamic_rotate %109 by %c240_i32_40 dim 1 : vector<1x256xf32>, i32 -> vector<1x256xf32>
    %195 = arith.mulf %193, %194 : vector<1x256xf32>
    %196 = arith.addf %192, %195 : vector<1x256xf32>
    %197 = vector.extract_strided_slice %9 {offsets = [7, 0], sizes = [1, 256], strides = [1, 1]} : vector<9x256xf32> to vector<1x256xf32>
    %c240_i32_41 = arith.constant 240 : i32
    %198 = tpu.dynamic_rotate %4 by %c240_i32_41 dim 1 : vector<1x256xf32>, i32 -> vector<1x256xf32>
    %199 = arith.mulf %197, %198 : vector<1x256xf32>
    %200 = arith.addf %196, %199 : vector<1x256xf32>
    %201 = arith.addf %189, %200 : vector<1x256xf32>
    %202 = vector.extract_strided_slice %8 {offsets = [8, 0], sizes = [1, 256], strides = [1, 1]} : vector<18x256xf32> to vector<1x256xf32>
    %c239_i32_42 = arith.constant 239 : i32
    %203 = tpu.dynamic_rotate %98 by %c239_i32_42 dim 1 : vector<1x256xf32>, i32 -> vector<1x256xf32>
    %204 = arith.mulf %202, %203 : vector<1x256xf32>
    %205 = vector.extract_strided_slice %8 {offsets = [17, 0], sizes = [1, 256], strides = [1, 1]} : vector<18x256xf32> to vector<1x256xf32>
    %c239_i32_43 = arith.constant 239 : i32
    %206 = tpu.dynamic_rotate %109 by %c239_i32_43 dim 1 : vector<1x256xf32>, i32 -> vector<1x256xf32>
    %207 = arith.mulf %205, %206 : vector<1x256xf32>
    %208 = arith.addf %204, %207 : vector<1x256xf32>
    %209 = vector.extract_strided_slice %9 {offsets = [8, 0], sizes = [1, 256], strides = [1, 1]} : vector<9x256xf32> to vector<1x256xf32>
    %c239_i32_44 = arith.constant 239 : i32
    %210 = tpu.dynamic_rotate %4 by %c239_i32_44 dim 1 : vector<1x256xf32>, i32 -> vector<1x256xf32>
    %211 = arith.mulf %209, %210 : vector<1x256xf32>
    %212 = arith.addf %208, %211 : vector<1x256xf32>
    %213 = arith.addf %201, %212 : vector<1x256xf32>
    %cst_45 = arith.constant 0.000000e+00 : f32
    %214 = vector.broadcast %cst_45 : f32 to vector<7x256xf32>
    %215 = tpu.concatenate %12, %19, %28, %37, %45, %54, %63, %72, %81, %214 in 0 : vector<1x256xf32>, vector<1x256xf32>, vector<1x256xf32>, vector<1x256xf32>, vector<1x256xf32>, vector<1x256xf32>, vector<1x256xf32>, vector<1x256xf32>, vector<1x256xf32>, vector<7x256xf32> -> vector<16x256xf32>
    %c0_46 = arith.constant 0 : index
    %c0_47 = arith.constant 0 : index
    %216 = vector.load %arg9[%c0_46, %c0_47] : memref<8x16xf32, #tpu.memory_space<vmem>>, vector<8x16xf32>
    %cst_48 = arith.constant dense<0.000000e+00> : vector<8x256xf32>
    %217 = tpu.matmul %216, %215, %cst_48 {dimension_numbers = #tpu.dot_dimension_numbers<[1], [0], [0], [1], [0, 0, 1, 1], [], []>} : vector<8x16xf32>, vector<16x256xf32>, vector<8x256xf32> -> vector<8x256xf32>
    %c0_49 = arith.constant 0 : index
    %c0_50 = arith.constant 0 : index
    %c0_51 = arith.constant 0 : index
    %218 = vector.load %arg11[%c0_49, %c0_50, %c0_51] : memref<6x8x1xf32, #tpu.memory_space<vmem>>, vector<1x8x1xf32>
    %219 = vector.shape_cast %218 : vector<1x8x1xf32> to vector<8x1xf32>
    %220 = vector.broadcast %219 : vector<8x1xf32> to vector<8x256xf32>
    %221 = arith.addf %217, %220 : vector<8x256xf32>
    %cst_52 = arith.constant 0.000000e+00 : f32
    %222 = vector.broadcast %cst_52 : f32 to vector<8x256xf32>
    %223 = arith.cmpf oge, %221, %222 : vector<8x256xf32>
    %c0_53 = arith.constant 0 : index
    %c0_54 = arith.constant 0 : index
    %c0_55 = arith.constant 0 : index
    %224 = vector.load %arg12[%c0_53, %c0_54, %c0_55] : memref<5x8x1xf32, #tpu.memory_space<vmem>>, vector<1x8x1xf32>
    %225 = vector.shape_cast %224 : vector<1x8x1xf32> to vector<8x1xf32>
    %226 = vector.broadcast %225 : vector<8x1xf32> to vector<8x256xf32>
    %227 = arith.mulf %226, %221 : vector<8x256xf32>
    %228 = arith.select %223, %221, %227 : vector<8x256xi1>, vector<8x256xf32>
    %c17_i32_56 = arith.constant 17 : i32
    %229 = tpu.dynamic_rotate %228 by %c17_i32_56 dim 1 : vector<8x256xf32>, i32 -> vector<8x256xf32>
    %230 = vector.extract_strided_slice %5 {offsets = [0, 0], sizes = [1, 256], strides = [1, 1]} : vector<9x256xf32> to vector<1x256xf32>
    %231 = vector.broadcast %230 : vector<1x256xf32> to vector<8x256xf32>
    %232 = arith.mulf %229, %231 : vector<8x256xf32>
    %c0_57 = arith.constant 0 : index
    %c0_58 = arith.constant 0 : index
    %233 = vector.load %arg15[%c0_57, %c0_58] : memref<72x256xf32, #tpu.memory_space<vmem>>, vector<8x256xf32>
    tpu.vector_store %arg15[%c0_57, %c0_58], %232 {strides = array<i32>} : memref<72x256xf32, #tpu.memory_space<vmem>>, vector<8x256xf32>,
    %c16_i32_59 = arith.constant 16 : i32
    %234 = tpu.dynamic_rotate %228 by %c16_i32_59 dim 1 : vector<8x256xf32>, i32 -> vector<8x256xf32>
    %235 = vector.extract_strided_slice %5 {offsets = [1, 0], sizes = [1, 256], strides = [1, 1]} : vector<9x256xf32> to vector<1x256xf32>
    %236 = vector.broadcast %235 : vector<1x256xf32> to vector<8x256xf32>
    %237 = arith.mulf %234, %236 : vector<8x256xf32>
    %c8 = arith.constant 8 : index
    %c0_60 = arith.constant 0 : index
    %238 = vector.load %arg15[%c8, %c0_60] : memref<72x256xf32, #tpu.memory_space<vmem>>, vector<8x256xf32>
    tpu.vector_store %arg15[%c8, %c0_60], %237 {strides = array<i32>} : memref<72x256xf32, #tpu.memory_space<vmem>>, vector<8x256xf32>,
    %c15_i32_61 = arith.constant 15 : i32
    %239 = tpu.dynamic_rotate %228 by %c15_i32_61 dim 1 : vector<8x256xf32>, i32 -> vector<8x256xf32>
    %240 = vector.extract_strided_slice %5 {offsets = [2, 0], sizes = [1, 256], strides = [1, 1]} : vector<9x256xf32> to vector<1x256xf32>
    %241 = vector.broadcast %240 : vector<1x256xf32> to vector<8x256xf32>
    %242 = arith.mulf %239, %241 : vector<8x256xf32>
    %c16 = arith.constant 16 : index
    %c0_62 = arith.constant 0 : index
    %243 = vector.load %arg15[%c16, %c0_62] : memref<72x256xf32, #tpu.memory_space<vmem>>, vector<8x256xf32>
    tpu.vector_store %arg15[%c16, %c0_62], %242 {strides = array<i32>} : memref<72x256xf32, #tpu.memory_space<vmem>>, vector<8x256xf32>,
    %c1_i32_63 = arith.constant 1 : i32
    %244 = tpu.dynamic_rotate %228 by %c1_i32_63 dim 1 : vector<8x256xf32>, i32 -> vector<8x256xf32>
    %245 = vector.extract_strided_slice %5 {offsets = [3, 0], sizes = [1, 256], strides = [1, 1]} : vector<9x256xf32> to vector<1x256xf32>
    %246 = vector.broadcast %245 : vector<1x256xf32> to vector<8x256xf32>
    %247 = arith.mulf %244, %246 : vector<8x256xf32>
    %c24 = arith.constant 24 : index
    %c0_64 = arith.constant 0 : index
    %248 = vector.load %arg15[%c24, %c0_64] : memref<72x256xf32, #tpu.memory_space<vmem>>, vector<8x256xf32>
    tpu.vector_store %arg15[%c24, %c0_64], %247 {strides = array<i32>} : memref<72x256xf32, #tpu.memory_space<vmem>>, vector<8x256xf32>,
    %249 = vector.extract_strided_slice %5 {offsets = [4, 0], sizes = [1, 256], strides = [1, 1]} : vector<9x256xf32> to vector<1x256xf32>
    %250 = vector.broadcast %249 : vector<1x256xf32> to vector<8x256xf32>
    %251 = arith.mulf %228, %250 : vector<8x256xf32>
    %c32 = arith.constant 32 : index
    %c0_65 = arith.constant 0 : index
    %252 = vector.load %arg15[%c32, %c0_65] : memref<72x256xf32, #tpu.memory_space<vmem>>, vector<8x256xf32>
    tpu.vector_store %arg15[%c32, %c0_65], %251 {strides = array<i32>} : memref<72x256xf32, #tpu.memory_space<vmem>>, vector<8x256xf32>,
    %c255_i32_66 = arith.constant 255 : i32
    %253 = tpu.dynamic_rotate %228 by %c255_i32_66 dim 1 : vector<8x256xf32>, i32 -> vector<8x256xf32>
    %254 = vector.extract_strided_slice %5 {offsets = [5, 0], sizes = [1, 256], strides = [1, 1]} : vector<9x256xf32> to vector<1x256xf32>
    %255 = vector.broadcast %254 : vector<1x256xf32> to vector<8x256xf32>
    %256 = arith.mulf %253, %255 : vector<8x256xf32>
    %c40 = arith.constant 40 : index
    %c0_67 = arith.constant 0 : index
    %257 = vector.load %arg15[%c40, %c0_67] : memref<72x256xf32, #tpu.memory_space<vmem>>, vector<8x256xf32>
    tpu.vector_store %arg15[%c40, %c0_67], %256 {strides = array<i32>} : memref<72x256xf32, #tpu.memory_space<vmem>>, vector<8x256xf32>,
    %c241_i32_68 = arith.constant 241 : i32
    %258 = tpu.dynamic_rotate %228 by %c241_i32_68 dim 1 : vector<8x256xf32>, i32 -> vector<8x256xf32>
    %259 = vector.extract_strided_slice %5 {offsets = [6, 0], sizes = [1, 256], strides = [1, 1]} : vector<9x256xf32> to vector<1x256xf32>
    %260 = vector.broadcast %259 : vector<1x256xf32> to vector<8x256xf32>
    %261 = arith.mulf %258, %260 : vector<8x256xf32>
    %c48 = arith.constant 48 : index
    %c0_69 = arith.constant 0 : index
    %262 = vector.load %arg15[%c48, %c0_69] : memref<72x256xf32, #tpu.memory_space<vmem>>, vector<8x256xf32>
    tpu.vector_store %arg15[%c48, %c0_69], %261 {strides = array<i32>} : memref<72x256xf32, #tpu.memory_space<vmem>>, vector<8x256xf32>,
    %c240_i32_70 = arith.constant 240 : i32
    %263 = tpu.dynamic_rotate %228 by %c240_i32_70 dim 1 : vector<8x256xf32>, i32 -> vector<8x256xf32>
    %264 = vector.extract_strided_slice %5 {offsets = [7, 0], sizes = [1, 256], strides = [1, 1]} : vector<9x256xf32> to vector<1x256xf32>
    %265 = vector.broadcast %264 : vector<1x256xf32> to vector<8x256xf32>
    %266 = arith.mulf %263, %265 : vector<8x256xf32>
    %c56 = arith.constant 56 : index
    %c0_71 = arith.constant 0 : index
    %267 = vector.load %arg15[%c56, %c0_71] : memref<72x256xf32, #tpu.memory_space<vmem>>, vector<8x256xf32>
    tpu.vector_store %arg15[%c56, %c0_71], %266 {strides = array<i32>} : memref<72x256xf32, #tpu.memory_space<vmem>>, vector<8x256xf32>,
    %c239_i32_72 = arith.constant 239 : i32
    %268 = tpu.dynamic_rotate %228 by %c239_i32_72 dim 1 : vector<8x256xf32>, i32 -> vector<8x256xf32>
    %269 = vector.extract_strided_slice %5 {offsets = [8, 0], sizes = [1, 256], strides = [1, 1]} : vector<9x256xf32> to vector<1x256xf32>
    %270 = vector.broadcast %269 : vector<1x256xf32> to vector<8x256xf32>
    %271 = arith.mulf %268, %270 : vector<8x256xf32>
    %c64 = arith.constant 64 : index
    %c0_73 = arith.constant 0 : index
    %272 = vector.load %arg15[%c64, %c0_73] : memref<72x256xf32, #tpu.memory_space<vmem>>, vector<8x256xf32>
    tpu.vector_store %arg15[%c64, %c0_73], %271 {strides = array<i32>} : memref<72x256xf32, #tpu.memory_space<vmem>>, vector<8x256xf32>,
    %c0_74 = arith.constant 0 : index
    %c0_75 = arith.constant 0 : index
    %c0_76 = arith.constant 0 : index
    %273 = vector.load %arg10[%c0_74, %c0_75, %c0_76] : memref<5x8x72xf32, #tpu.memory_space<vmem>>, vector<1x8x72xf32>
    %274 = vector.shape_cast %273 : vector<1x8x72xf32> to vector<8x72xf32>
    %c0_77 = arith.constant 0 : index
    %c0_78 = arith.constant 0 : index
    %275 = vector.load %arg15[%c0_77, %c0_78] : memref<72x256xf32, #tpu.memory_space<vmem>>, vector<72x256xf32>
    %cst_79 = arith.constant dense<0.000000e+00> : vector<8x256xf32>
    %276 = tpu.matmul %274, %275, %cst_79 {dimension_numbers = #tpu.dot_dimension_numbers<[1], [0], [0], [1], [0, 0, 1, 1], [], []>} : vector<8x72xf32>, vector<72x256xf32>, vector<8x256xf32> -> vector<8x256xf32>
    %c1 = arith.constant 1 : index
    %c0_80 = arith.constant 0 : index
    %c0_81 = arith.constant 0 : index
    %277 = vector.load %arg11[%c1, %c0_80, %c0_81] : memref<6x8x1xf32, #tpu.memory_space<vmem>>, vector<1x8x1xf32>
    %278 = vector.shape_cast %277 : vector<1x8x1xf32> to vector<8x1xf32>
    %279 = vector.broadcast %278 : vector<8x1xf32> to vector<8x256xf32>
    %280 = arith.addf %276, %279 : vector<8x256xf32>
    %cst_82 = arith.constant 0.000000e+00 : f32
    %281 = vector.broadcast %cst_82 : f32 to vector<8x256xf32>
    %282 = arith.cmpf oge, %280, %281 : vector<8x256xf32>
    %c1_83 = arith.constant 1 : index
    %c0_84 = arith.constant 0 : index
    %c0_85 = arith.constant 0 : index
    %283 = vector.load %arg12[%c1_83, %c0_84, %c0_85] : memref<5x8x1xf32, #tpu.memory_space<vmem>>, vector<1x8x1xf32>
    %284 = vector.shape_cast %283 : vector<1x8x1xf32> to vector<8x1xf32>
    %285 = vector.broadcast %284 : vector<8x1xf32> to vector<8x256xf32>
    %286 = arith.mulf %285, %280 : vector<8x256xf32>
    %287 = arith.select %282, %280, %286 : vector<8x256xi1>, vector<8x256xf32>
    %c17_i32_86 = arith.constant 17 : i32
    %288 = tpu.dynamic_rotate %287 by %c17_i32_86 dim 1 : vector<8x256xf32>, i32 -> vector<8x256xf32>
    %289 = vector.extract_strided_slice %5 {offsets = [0, 0], sizes = [1, 256], strides = [1, 1]} : vector<9x256xf32> to vector<1x256xf32>
    %290 = vector.broadcast %289 : vector<1x256xf32> to vector<8x256xf32>
    %291 = arith.mulf %288, %290 : vector<8x256xf32>
    %c0_87 = arith.constant 0 : index
    %c0_88 = arith.constant 0 : index
    %292 = vector.load %arg15[%c0_87, %c0_88] : memref<72x256xf32, #tpu.memory_space<vmem>>, vector<8x256xf32>
    tpu.vector_store %arg15[%c0_87, %c0_88], %291 {strides = array<i32>} : memref<72x256xf32, #tpu.memory_space<vmem>>, vector<8x256xf32>,
    %c16_i32_89 = arith.constant 16 : i32
    %293 = tpu.dynamic_rotate %287 by %c16_i32_89 dim 1 : vector<8x256xf32>, i32 -> vector<8x256xf32>
    %294 = vector.extract_strided_slice %5 {offsets = [1, 0], sizes = [1, 256], strides = [1, 1]} : vector<9x256xf32> to vector<1x256xf32>
    %295 = vector.broadcast %294 : vector<1x256xf32> to vector<8x256xf32>
    %296 = arith.mulf %293, %295 : vector<8x256xf32>
    %c8_90 = arith.constant 8 : index
    %c0_91 = arith.constant 0 : index
    %297 = vector.load %arg15[%c8_90, %c0_91] : memref<72x256xf32, #tpu.memory_space<vmem>>, vector<8x256xf32>
    tpu.vector_store %arg15[%c8_90, %c0_91], %296 {strides = array<i32>} : memref<72x256xf32, #tpu.memory_space<vmem>>, vector<8x256xf32>,
    %c15_i32_92 = arith.constant 15 : i32
    %298 = tpu.dynamic_rotate %287 by %c15_i32_92 dim 1 : vector<8x256xf32>, i32 -> vector<8x256xf32>
    %299 = vector.extract_strided_slice %5 {offsets = [2, 0], sizes = [1, 256], strides = [1, 1]} : vector<9x256xf32> to vector<1x256xf32>
    %300 = vector.broadcast %299 : vector<1x256xf32> to vector<8x256xf32>
    %301 = arith.mulf %298, %300 : vector<8x256xf32>
    %c16_93 = arith.constant 16 : index
    %c0_94 = arith.constant 0 : index
    %302 = vector.load %arg15[%c16_93, %c0_94] : memref<72x256xf32, #tpu.memory_space<vmem>>, vector<8x256xf32>
    tpu.vector_store %arg15[%c16_93, %c0_94], %301 {strides = array<i32>} : memref<72x256xf32, #tpu.memory_space<vmem>>, vector<8x256xf32>,
    %c1_i32_95 = arith.constant 1 : i32
    %303 = tpu.dynamic_rotate %287 by %c1_i32_95 dim 1 : vector<8x256xf32>, i32 -> vector<8x256xf32>
    %304 = vector.extract_strided_slice %5 {offsets = [3, 0], sizes = [1, 256], strides = [1, 1]} : vector<9x256xf32> to vector<1x256xf32>
    %305 = vector.broadcast %304 : vector<1x256xf32> to vector<8x256xf32>
    %306 = arith.mulf %303, %305 : vector<8x256xf32>
    %c24_96 = arith.constant 24 : index
    %c0_97 = arith.constant 0 : index
    %307 = vector.load %arg15[%c24_96, %c0_97] : memref<72x256xf32, #tpu.memory_space<vmem>>, vector<8x256xf32>
    tpu.vector_store %arg15[%c24_96, %c0_97], %306 {strides = array<i32>} : memref<72x256xf32, #tpu.memory_space<vmem>>, vector<8x256xf32>,
    %308 = vector.extract_strided_slice %5 {offsets = [4, 0], sizes = [1, 256], strides = [1, 1]} : vector<9x256xf32> to vector<1x256xf32>
    %309 = vector.broadcast %308 : vector<1x256xf32> to vector<8x256xf32>
    %310 = arith.mulf %287, %309 : vector<8x256xf32>
    %c32_98 = arith.constant 32 : index
    %c0_99 = arith.constant 0 : index
    %311 = vector.load %arg15[%c32_98, %c0_99] : memref<72x256xf32, #tpu.memory_space<vmem>>, vector<8x256xf32>
    tpu.vector_store %arg15[%c32_98, %c0_99], %310 {strides = array<i32>} : memref<72x256xf32, #tpu.memory_space<vmem>>, vector<8x256xf32>,
    %c255_i32_100 = arith.constant 255 : i32
    %312 = tpu.dynamic_rotate %287 by %c255_i32_100 dim 1 : vector<8x256xf32>, i32 -> vector<8x256xf32>
    %313 = vector.extract_strided_slice %5 {offsets = [5, 0], sizes = [1, 256], strides = [1, 1]} : vector<9x256xf32> to vector<1x256xf32>
    %314 = vector.broadcast %313 : vector<1x256xf32> to vector<8x256xf32>
    %315 = arith.mulf %312, %314 : vector<8x256xf32>
    %c40_101 = arith.constant 40 : index
    %c0_102 = arith.constant 0 : index
    %316 = vector.load %arg15[%c40_101, %c0_102] : memref<72x256xf32, #tpu.memory_space<vmem>>, vector<8x256xf32>
    tpu.vector_store %arg15[%c40_101, %c0_102], %315 {strides = array<i32>} : memref<72x256xf32, #tpu.memory_space<vmem>>, vector<8x256xf32>,
    %c241_i32_103 = arith.constant 241 : i32
    %317 = tpu.dynamic_rotate %287 by %c241_i32_103 dim 1 : vector<8x256xf32>, i32 -> vector<8x256xf32>
    %318 = vector.extract_strided_slice %5 {offsets = [6, 0], sizes = [1, 256], strides = [1, 1]} : vector<9x256xf32> to vector<1x256xf32>
    %319 = vector.broadcast %318 : vector<1x256xf32> to vector<8x256xf32>
    %320 = arith.mulf %317, %319 : vector<8x256xf32>
    %c48_104 = arith.constant 48 : index
    %c0_105 = arith.constant 0 : index
    %321 = vector.load %arg15[%c48_104, %c0_105] : memref<72x256xf32, #tpu.memory_space<vmem>>, vector<8x256xf32>
    tpu.vector_store %arg15[%c48_104, %c0_105], %320 {strides = array<i32>} : memref<72x256xf32, #tpu.memory_space<vmem>>, vector<8x256xf32>,
    %c240_i32_106 = arith.constant 240 : i32
    %322 = tpu.dynamic_rotate %287 by %c240_i32_106 dim 1 : vector<8x256xf32>, i32 -> vector<8x256xf32>
    %323 = vector.extract_strided_slice %5 {offsets = [7, 0], sizes = [1, 256], strides = [1, 1]} : vector<9x256xf32> to vector<1x256xf32>
    %324 = vector.broadcast %323 : vector<1x256xf32> to vector<8x256xf32>
    %325 = arith.mulf %322, %324 : vector<8x256xf32>
    %c56_107 = arith.constant 56 : index
    %c0_108 = arith.constant 0 : index
    %326 = vector.load %arg15[%c56_107, %c0_108] : memref<72x256xf32, #tpu.memory_space<vmem>>, vector<8x256xf32>
    tpu.vector_store %arg15[%c56_107, %c0_108], %325 {strides = array<i32>} : memref<72x256xf32, #tpu.memory_space<vmem>>, vector<8x256xf32>,
    %c239_i32_109 = arith.constant 239 : i32
    %327 = tpu.dynamic_rotate %287 by %c239_i32_109 dim 1 : vector<8x256xf32>, i32 -> vector<8x256xf32>
    %328 = vector.extract_strided_slice %5 {offsets = [8, 0], sizes = [1, 256], strides = [1, 1]} : vector<9x256xf32> to vector<1x256xf32>
    %329 = vector.broadcast %328 : vector<1x256xf32> to vector<8x256xf32>
    %330 = arith.mulf %327, %329 : vector<8x256xf32>
    %c64_110 = arith.constant 64 : index
    %c0_111 = arith.constant 0 : index
    %331 = vector.load %arg15[%c64_110, %c0_111] : memref<72x256xf32, #tpu.memory_space<vmem>>, vector<8x256xf32>
    tpu.vector_store %arg15[%c64_110, %c0_111], %330 {strides = array<i32>} : memref<72x256xf32, #tpu.memory_space<vmem>>, vector<8x256xf32>,
    %c1_112 = arith.constant 1 : index
    %c0_113 = arith.constant 0 : index
    %c0_114 = arith.constant 0 : index
    %332 = vector.load %arg10[%c1_112, %c0_113, %c0_114] : memref<5x8x72xf32, #tpu.memory_space<vmem>>, vector<1x8x72xf32>
    %333 = vector.shape_cast %332 : vector<1x8x72xf32> to vector<8x72xf32>
    %c0_115 = arith.constant 0 : index
    %c0_116 = arith.constant 0 : index
    %334 = vector.load %arg15[%c0_115, %c0_116] : memref<72x256xf32, #tpu.memory_space<vmem>>, vector<72x256xf32>
    %cst_117 = arith.constant dense<0.000000e+00> : vector<8x256xf32>
    %335 = tpu.matmul %333, %334, %cst_117 {dimension_numbers = #tpu.dot_dimension_numbers<[1], [0], [0], [1], [0, 0, 1, 1], [], []>} : vector<8x72xf32>, vector<72x256xf32>, vector<8x256xf32> -> vector<8x256xf32>
    %c2 = arith.constant 2 : index
    %c0_118 = arith.constant 0 : index
    %c0_119 = arith.constant 0 : index
    %336 = vector.load %arg11[%c2, %c0_118, %c0_119] : memref<6x8x1xf32, #tpu.memory_space<vmem>>, vector<1x8x1xf32>
    %337 = vector.shape_cast %336 : vector<1x8x1xf32> to vector<8x1xf32>
    %338 = vector.broadcast %337 : vector<8x1xf32> to vector<8x256xf32>
    %339 = arith.addf %335, %338 : vector<8x256xf32>
    %cst_120 = arith.constant 0.000000e+00 : f32
    %340 = vector.broadcast %cst_120 : f32 to vector<8x256xf32>
    %341 = arith.cmpf oge, %339, %340 : vector<8x256xf32>
    %c2_121 = arith.constant 2 : index
    %c0_122 = arith.constant 0 : index
    %c0_123 = arith.constant 0 : index
    %342 = vector.load %arg12[%c2_121, %c0_122, %c0_123] : memref<5x8x1xf32, #tpu.memory_space<vmem>>, vector<1x8x1xf32>
    %343 = vector.shape_cast %342 : vector<1x8x1xf32> to vector<8x1xf32>
    %344 = vector.broadcast %343 : vector<8x1xf32> to vector<8x256xf32>
    %345 = arith.mulf %344, %339 : vector<8x256xf32>
    %346 = arith.select %341, %339, %345 : vector<8x256xi1>, vector<8x256xf32>
    %c17_i32_124 = arith.constant 17 : i32
    %347 = tpu.dynamic_rotate %346 by %c17_i32_124 dim 1 : vector<8x256xf32>, i32 -> vector<8x256xf32>
    %348 = vector.extract_strided_slice %5 {offsets = [0, 0], sizes = [1, 256], strides = [1, 1]} : vector<9x256xf32> to vector<1x256xf32>
    %349 = vector.broadcast %348 : vector<1x256xf32> to vector<8x256xf32>
    %350 = arith.mulf %347, %349 : vector<8x256xf32>
    %c0_125 = arith.constant 0 : index
    %c0_126 = arith.constant 0 : index
    %351 = vector.load %arg15[%c0_125, %c0_126] : memref<72x256xf32, #tpu.memory_space<vmem>>, vector<8x256xf32>
    tpu.vector_store %arg15[%c0_125, %c0_126], %350 {strides = array<i32>} : memref<72x256xf32, #tpu.memory_space<vmem>>, vector<8x256xf32>,
    %c16_i32_127 = arith.constant 16 : i32
    %352 = tpu.dynamic_rotate %346 by %c16_i32_127 dim 1 : vector<8x256xf32>, i32 -> vector<8x256xf32>
    %353 = vector.extract_strided_slice %5 {offsets = [1, 0], sizes = [1, 256], strides = [1, 1]} : vector<9x256xf32> to vector<1x256xf32>
    %354 = vector.broadcast %353 : vector<1x256xf32> to vector<8x256xf32>
    %355 = arith.mulf %352, %354 : vector<8x256xf32>
    %c8_128 = arith.constant 8 : index
    %c0_129 = arith.constant 0 : index
    %356 = vector.load %arg15[%c8_128, %c0_129] : memref<72x256xf32, #tpu.memory_space<vmem>>, vector<8x256xf32>
    tpu.vector_store %arg15[%c8_128, %c0_129], %355 {strides = array<i32>} : memref<72x256xf32, #tpu.memory_space<vmem>>, vector<8x256xf32>,
    %c15_i32_130 = arith.constant 15 : i32
    %357 = tpu.dynamic_rotate %346 by %c15_i32_130 dim 1 : vector<8x256xf32>, i32 -> vector<8x256xf32>
    %358 = vector.extract_strided_slice %5 {offsets = [2, 0], sizes = [1, 256], strides = [1, 1]} : vector<9x256xf32> to vector<1x256xf32>
    %359 = vector.broadcast %358 : vector<1x256xf32> to vector<8x256xf32>
    %360 = arith.mulf %357, %359 : vector<8x256xf32>
    %c16_131 = arith.constant 16 : index
    %c0_132 = arith.constant 0 : index
    %361 = vector.load %arg15[%c16_131, %c0_132] : memref<72x256xf32, #tpu.memory_space<vmem>>, vector<8x256xf32>
    tpu.vector_store %arg15[%c16_131, %c0_132], %360 {strides = array<i32>} : memref<72x256xf32, #tpu.memory_space<vmem>>, vector<8x256xf32>,
    %c1_i32_133 = arith.constant 1 : i32
    %362 = tpu.dynamic_rotate %346 by %c1_i32_133 dim 1 : vector<8x256xf32>, i32 -> vector<8x256xf32>
    %363 = vector.extract_strided_slice %5 {offsets = [3, 0], sizes = [1, 256], strides = [1, 1]} : vector<9x256xf32> to vector<1x256xf32>
    %364 = vector.broadcast %363 : vector<1x256xf32> to vector<8x256xf32>
    %365 = arith.mulf %362, %364 : vector<8x256xf32>
    %c24_134 = arith.constant 24 : index
    %c0_135 = arith.constant 0 : index
    %366 = vector.load %arg15[%c24_134, %c0_135] : memref<72x256xf32, #tpu.memory_space<vmem>>, vector<8x256xf32>
    tpu.vector_store %arg15[%c24_134, %c0_135], %365 {strides = array<i32>} : memref<72x256xf32, #tpu.memory_space<vmem>>, vector<8x256xf32>,
    %367 = vector.extract_strided_slice %5 {offsets = [4, 0], sizes = [1, 256], strides = [1, 1]} : vector<9x256xf32> to vector<1x256xf32>
    %368 = vector.broadcast %367 : vector<1x256xf32> to vector<8x256xf32>
    %369 = arith.mulf %346, %368 : vector<8x256xf32>
    %c32_136 = arith.constant 32 : index
    %c0_137 = arith.constant 0 : index
    %370 = vector.load %arg15[%c32_136, %c0_137] : memref<72x256xf32, #tpu.memory_space<vmem>>, vector<8x256xf32>
    tpu.vector_store %arg15[%c32_136, %c0_137], %369 {strides = array<i32>} : memref<72x256xf32, #tpu.memory_space<vmem>>, vector<8x256xf32>,
    %c255_i32_138 = arith.constant 255 : i32
    %371 = tpu.dynamic_rotate %346 by %c255_i32_138 dim 1 : vector<8x256xf32>, i32 -> vector<8x256xf32>
    %372 = vector.extract_strided_slice %5 {offsets = [5, 0], sizes = [1, 256], strides = [1, 1]} : vector<9x256xf32> to vector<1x256xf32>
    %373 = vector.broadcast %372 : vector<1x256xf32> to vector<8x256xf32>
    %374 = arith.mulf %371, %373 : vector<8x256xf32>
    %c40_139 = arith.constant 40 : index
    %c0_140 = arith.constant 0 : index
    %375 = vector.load %arg15[%c40_139, %c0_140] : memref<72x256xf32, #tpu.memory_space<vmem>>, vector<8x256xf32>
    tpu.vector_store %arg15[%c40_139, %c0_140], %374 {strides = array<i32>} : memref<72x256xf32, #tpu.memory_space<vmem>>, vector<8x256xf32>,
    %c241_i32_141 = arith.constant 241 : i32
    %376 = tpu.dynamic_rotate %346 by %c241_i32_141 dim 1 : vector<8x256xf32>, i32 -> vector<8x256xf32>
    %377 = vector.extract_strided_slice %5 {offsets = [6, 0], sizes = [1, 256], strides = [1, 1]} : vector<9x256xf32> to vector<1x256xf32>
    %378 = vector.broadcast %377 : vector<1x256xf32> to vector<8x256xf32>
    %379 = arith.mulf %376, %378 : vector<8x256xf32>
    %c48_142 = arith.constant 48 : index
    %c0_143 = arith.constant 0 : index
    %380 = vector.load %arg15[%c48_142, %c0_143] : memref<72x256xf32, #tpu.memory_space<vmem>>, vector<8x256xf32>
    tpu.vector_store %arg15[%c48_142, %c0_143], %379 {strides = array<i32>} : memref<72x256xf32, #tpu.memory_space<vmem>>, vector<8x256xf32>,
    %c240_i32_144 = arith.constant 240 : i32
    %381 = tpu.dynamic_rotate %346 by %c240_i32_144 dim 1 : vector<8x256xf32>, i32 -> vector<8x256xf32>
    %382 = vector.extract_strided_slice %5 {offsets = [7, 0], sizes = [1, 256], strides = [1, 1]} : vector<9x256xf32> to vector<1x256xf32>
    %383 = vector.broadcast %382 : vector<1x256xf32> to vector<8x256xf32>
    %384 = arith.mulf %381, %383 : vector<8x256xf32>
    %c56_145 = arith.constant 56 : index
    %c0_146 = arith.constant 0 : index
    %385 = vector.load %arg15[%c56_145, %c0_146] : memref<72x256xf32, #tpu.memory_space<vmem>>, vector<8x256xf32>
    tpu.vector_store %arg15[%c56_145, %c0_146], %384 {strides = array<i32>} : memref<72x256xf32, #tpu.memory_space<vmem>>, vector<8x256xf32>,
    %c239_i32_147 = arith.constant 239 : i32
    %386 = tpu.dynamic_rotate %346 by %c239_i32_147 dim 1 : vector<8x256xf32>, i32 -> vector<8x256xf32>
    %387 = vector.extract_strided_slice %5 {offsets = [8, 0], sizes = [1, 256], strides = [1, 1]} : vector<9x256xf32> to vector<1x256xf32>
    %388 = vector.broadcast %387 : vector<1x256xf32> to vector<8x256xf32>
    %389 = arith.mulf %386, %388 : vector<8x256xf32>
    %c64_148 = arith.constant 64 : index
    %c0_149 = arith.constant 0 : index
    %390 = vector.load %arg15[%c64_148, %c0_149] : memref<72x256xf32, #tpu.memory_space<vmem>>, vector<8x256xf32>
    tpu.vector_store %arg15[%c64_148, %c0_149], %389 {strides = array<i32>} : memref<72x256xf32, #tpu.memory_space<vmem>>, vector<8x256xf32>,
    %c2_150 = arith.constant 2 : index
    %c0_151 = arith.constant 0 : index
    %c0_152 = arith.constant 0 : index
    %391 = vector.load %arg10[%c2_150, %c0_151, %c0_152] : memref<5x8x72xf32, #tpu.memory_space<vmem>>, vector<1x8x72xf32>
    %392 = vector.shape_cast %391 : vector<1x8x72xf32> to vector<8x72xf32>
    %c0_153 = arith.constant 0 : index
    %c0_154 = arith.constant 0 : index
    %393 = vector.load %arg15[%c0_153, %c0_154] : memref<72x256xf32, #tpu.memory_space<vmem>>, vector<72x256xf32>
    %cst_155 = arith.constant dense<0.000000e+00> : vector<8x256xf32>
    %394 = tpu.matmul %392, %393, %cst_155 {dimension_numbers = #tpu.dot_dimension_numbers<[1], [0], [0], [1], [0, 0, 1, 1], [], []>} : vector<8x72xf32>, vector<72x256xf32>, vector<8x256xf32> -> vector<8x256xf32>
    %c3 = arith.constant 3 : index
    %c0_156 = arith.constant 0 : index
    %c0_157 = arith.constant 0 : index
    %395 = vector.load %arg11[%c3, %c0_156, %c0_157] : memref<6x8x1xf32, #tpu.memory_space<vmem>>, vector<1x8x1xf32>
    %396 = vector.shape_cast %395 : vector<1x8x1xf32> to vector<8x1xf32>
    %397 = vector.broadcast %396 : vector<8x1xf32> to vector<8x256xf32>
    %398 = arith.addf %394, %397 : vector<8x256xf32>
    %cst_158 = arith.constant 0.000000e+00 : f32
    %399 = vector.broadcast %cst_158 : f32 to vector<8x256xf32>
    %400 = arith.cmpf oge, %398, %399 : vector<8x256xf32>
    %c3_159 = arith.constant 3 : index
    %c0_160 = arith.constant 0 : index
    %c0_161 = arith.constant 0 : index
    %401 = vector.load %arg12[%c3_159, %c0_160, %c0_161] : memref<5x8x1xf32, #tpu.memory_space<vmem>>, vector<1x8x1xf32>
    %402 = vector.shape_cast %401 : vector<1x8x1xf32> to vector<8x1xf32>
    %403 = vector.broadcast %402 : vector<8x1xf32> to vector<8x256xf32>
    %404 = arith.mulf %403, %398 : vector<8x256xf32>
    %405 = arith.select %400, %398, %404 : vector<8x256xi1>, vector<8x256xf32>
    %c17_i32_162 = arith.constant 17 : i32
    %406 = tpu.dynamic_rotate %405 by %c17_i32_162 dim 1 : vector<8x256xf32>, i32 -> vector<8x256xf32>
    %407 = vector.extract_strided_slice %5 {offsets = [0, 0], sizes = [1, 256], strides = [1, 1]} : vector<9x256xf32> to vector<1x256xf32>
    %408 = vector.broadcast %407 : vector<1x256xf32> to vector<8x256xf32>
    %409 = arith.mulf %406, %408 : vector<8x256xf32>
    %c0_163 = arith.constant 0 : index
    %c0_164 = arith.constant 0 : index
    %410 = vector.load %arg15[%c0_163, %c0_164] : memref<72x256xf32, #tpu.memory_space<vmem>>, vector<8x256xf32>
    tpu.vector_store %arg15[%c0_163, %c0_164], %409 {strides = array<i32>} : memref<72x256xf32, #tpu.memory_space<vmem>>, vector<8x256xf32>,
    %c16_i32_165 = arith.constant 16 : i32
    %411 = tpu.dynamic_rotate %405 by %c16_i32_165 dim 1 : vector<8x256xf32>, i32 -> vector<8x256xf32>
    %412 = vector.extract_strided_slice %5 {offsets = [1, 0], sizes = [1, 256], strides = [1, 1]} : vector<9x256xf32> to vector<1x256xf32>
    %413 = vector.broadcast %412 : vector<1x256xf32> to vector<8x256xf32>
    %414 = arith.mulf %411, %413 : vector<8x256xf32>
    %c8_166 = arith.constant 8 : index
    %c0_167 = arith.constant 0 : index
    %415 = vector.load %arg15[%c8_166, %c0_167] : memref<72x256xf32, #tpu.memory_space<vmem>>, vector<8x256xf32>
    tpu.vector_store %arg15[%c8_166, %c0_167], %414 {strides = array<i32>} : memref<72x256xf32, #tpu.memory_space<vmem>>, vector<8x256xf32>,
    %c15_i32_168 = arith.constant 15 : i32
    %416 = tpu.dynamic_rotate %405 by %c15_i32_168 dim 1 : vector<8x256xf32>, i32 -> vector<8x256xf32>
    %417 = vector.extract_strided_slice %5 {offsets = [2, 0], sizes = [1, 256], strides = [1, 1]} : vector<9x256xf32> to vector<1x256xf32>
    %418 = vector.broadcast %417 : vector<1x256xf32> to vector<8x256xf32>
    %419 = arith.mulf %416, %418 : vector<8x256xf32>
    %c16_169 = arith.constant 16 : index
    %c0_170 = arith.constant 0 : index
    %420 = vector.load %arg15[%c16_169, %c0_170] : memref<72x256xf32, #tpu.memory_space<vmem>>, vector<8x256xf32>
    tpu.vector_store %arg15[%c16_169, %c0_170], %419 {strides = array<i32>} : memref<72x256xf32, #tpu.memory_space<vmem>>, vector<8x256xf32>,
    %c1_i32_171 = arith.constant 1 : i32
    %421 = tpu.dynamic_rotate %405 by %c1_i32_171 dim 1 : vector<8x256xf32>, i32 -> vector<8x256xf32>
    %422 = vector.extract_strided_slice %5 {offsets = [3, 0], sizes = [1, 256], strides = [1, 1]} : vector<9x256xf32> to vector<1x256xf32>
    %423 = vector.broadcast %422 : vector<1x256xf32> to vector<8x256xf32>
    %424 = arith.mulf %421, %423 : vector<8x256xf32>
    %c24_172 = arith.constant 24 : index
    %c0_173 = arith.constant 0 : index
    %425 = vector.load %arg15[%c24_172, %c0_173] : memref<72x256xf32, #tpu.memory_space<vmem>>, vector<8x256xf32>
    tpu.vector_store %arg15[%c24_172, %c0_173], %424 {strides = array<i32>} : memref<72x256xf32, #tpu.memory_space<vmem>>, vector<8x256xf32>,
    %426 = vector.extract_strided_slice %5 {offsets = [4, 0], sizes = [1, 256], strides = [1, 1]} : vector<9x256xf32> to vector<1x256xf32>
    %427 = vector.broadcast %426 : vector<1x256xf32> to vector<8x256xf32>
    %428 = arith.mulf %405, %427 : vector<8x256xf32>
    %c32_174 = arith.constant 32 : index
    %c0_175 = arith.constant 0 : index
    %429 = vector.load %arg15[%c32_174, %c0_175] : memref<72x256xf32, #tpu.memory_space<vmem>>, vector<8x256xf32>
    tpu.vector_store %arg15[%c32_174, %c0_175], %428 {strides = array<i32>} : memref<72x256xf32, #tpu.memory_space<vmem>>, vector<8x256xf32>,
    %c255_i32_176 = arith.constant 255 : i32
    %430 = tpu.dynamic_rotate %405 by %c255_i32_176 dim 1 : vector<8x256xf32>, i32 -> vector<8x256xf32>
    %431 = vector.extract_strided_slice %5 {offsets = [5, 0], sizes = [1, 256], strides = [1, 1]} : vector<9x256xf32> to vector<1x256xf32>
    %432 = vector.broadcast %431 : vector<1x256xf32> to vector<8x256xf32>
    %433 = arith.mulf %430, %432 : vector<8x256xf32>
    %c40_177 = arith.constant 40 : index
    %c0_178 = arith.constant 0 : index
    %434 = vector.load %arg15[%c40_177, %c0_178] : memref<72x256xf32, #tpu.memory_space<vmem>>, vector<8x256xf32>
    tpu.vector_store %arg15[%c40_177, %c0_178], %433 {strides = array<i32>} : memref<72x256xf32, #tpu.memory_space<vmem>>, vector<8x256xf32>,
    %c241_i32_179 = arith.constant 241 : i32
    %435 = tpu.dynamic_rotate %405 by %c241_i32_179 dim 1 : vector<8x256xf32>, i32 -> vector<8x256xf32>
    %436 = vector.extract_strided_slice %5 {offsets = [6, 0], sizes = [1, 256], strides = [1, 1]} : vector<9x256xf32> to vector<1x256xf32>
    %437 = vector.broadcast %436 : vector<1x256xf32> to vector<8x256xf32>
    %438 = arith.mulf %435, %437 : vector<8x256xf32>
    %c48_180 = arith.constant 48 : index
    %c0_181 = arith.constant 0 : index
    %439 = vector.load %arg15[%c48_180, %c0_181] : memref<72x256xf32, #tpu.memory_space<vmem>>, vector<8x256xf32>
    tpu.vector_store %arg15[%c48_180, %c0_181], %438 {strides = array<i32>} : memref<72x256xf32, #tpu.memory_space<vmem>>, vector<8x256xf32>,
    %c240_i32_182 = arith.constant 240 : i32
    %440 = tpu.dynamic_rotate %405 by %c240_i32_182 dim 1 : vector<8x256xf32>, i32 -> vector<8x256xf32>
    %441 = vector.extract_strided_slice %5 {offsets = [7, 0], sizes = [1, 256], strides = [1, 1]} : vector<9x256xf32> to vector<1x256xf32>
    %442 = vector.broadcast %441 : vector<1x256xf32> to vector<8x256xf32>
    %443 = arith.mulf %440, %442 : vector<8x256xf32>
    %c56_183 = arith.constant 56 : index
    %c0_184 = arith.constant 0 : index
    %444 = vector.load %arg15[%c56_183, %c0_184] : memref<72x256xf32, #tpu.memory_space<vmem>>, vector<8x256xf32>
    tpu.vector_store %arg15[%c56_183, %c0_184], %443 {strides = array<i32>} : memref<72x256xf32, #tpu.memory_space<vmem>>, vector<8x256xf32>,
    %c239_i32_185 = arith.constant 239 : i32
    %445 = tpu.dynamic_rotate %405 by %c239_i32_185 dim 1 : vector<8x256xf32>, i32 -> vector<8x256xf32>
    %446 = vector.extract_strided_slice %5 {offsets = [8, 0], sizes = [1, 256], strides = [1, 1]} : vector<9x256xf32> to vector<1x256xf32>
    %447 = vector.broadcast %446 : vector<1x256xf32> to vector<8x256xf32>
    %448 = arith.mulf %445, %447 : vector<8x256xf32>
    %c64_186 = arith.constant 64 : index
    %c0_187 = arith.constant 0 : index
    %449 = vector.load %arg15[%c64_186, %c0_187] : memref<72x256xf32, #tpu.memory_space<vmem>>, vector<8x256xf32>
    tpu.vector_store %arg15[%c64_186, %c0_187], %448 {strides = array<i32>} : memref<72x256xf32, #tpu.memory_space<vmem>>, vector<8x256xf32>,
    %c3_188 = arith.constant 3 : index
    %c0_189 = arith.constant 0 : index
    %c0_190 = arith.constant 0 : index
    %450 = vector.load %arg10[%c3_188, %c0_189, %c0_190] : memref<5x8x72xf32, #tpu.memory_space<vmem>>, vector<1x8x72xf32>
    %451 = vector.shape_cast %450 : vector<1x8x72xf32> to vector<8x72xf32>
    %c0_191 = arith.constant 0 : index
    %c0_192 = arith.constant 0 : index
    %452 = vector.load %arg15[%c0_191, %c0_192] : memref<72x256xf32, #tpu.memory_space<vmem>>, vector<72x256xf32>
    %cst_193 = arith.constant dense<0.000000e+00> : vector<8x256xf32>
    %453 = tpu.matmul %451, %452, %cst_193 {dimension_numbers = #tpu.dot_dimension_numbers<[1], [0], [0], [1], [0, 0, 1, 1], [], []>} : vector<8x72xf32>, vector<72x256xf32>, vector<8x256xf32> -> vector<8x256xf32>
    %c4 = arith.constant 4 : index
    %c0_194 = arith.constant 0 : index
    %c0_195 = arith.constant 0 : index
    %454 = vector.load %arg11[%c4, %c0_194, %c0_195] : memref<6x8x1xf32, #tpu.memory_space<vmem>>, vector<1x8x1xf32>
    %455 = vector.shape_cast %454 : vector<1x8x1xf32> to vector<8x1xf32>
    %456 = vector.broadcast %455 : vector<8x1xf32> to vector<8x256xf32>
    %457 = arith.addf %453, %456 : vector<8x256xf32>
    %cst_196 = arith.constant 0.000000e+00 : f32
    %458 = vector.broadcast %cst_196 : f32 to vector<8x256xf32>
    %459 = arith.cmpf oge, %457, %458 : vector<8x256xf32>
    %c4_197 = arith.constant 4 : index
    %c0_198 = arith.constant 0 : index
    %c0_199 = arith.constant 0 : index
    %460 = vector.load %arg12[%c4_197, %c0_198, %c0_199] : memref<5x8x1xf32, #tpu.memory_space<vmem>>, vector<1x8x1xf32>
    %461 = vector.shape_cast %460 : vector<1x8x1xf32> to vector<8x1xf32>
    %462 = vector.broadcast %461 : vector<8x1xf32> to vector<8x256xf32>
    %463 = arith.mulf %462, %457 : vector<8x256xf32>
    %464 = arith.select %459, %457, %463 : vector<8x256xi1>, vector<8x256xf32>
    %c17_i32_200 = arith.constant 17 : i32
    %465 = tpu.dynamic_rotate %464 by %c17_i32_200 dim 1 : vector<8x256xf32>, i32 -> vector<8x256xf32>
    %466 = vector.extract_strided_slice %5 {offsets = [0, 0], sizes = [1, 256], strides = [1, 1]} : vector<9x256xf32> to vector<1x256xf32>
    %467 = vector.broadcast %466 : vector<1x256xf32> to vector<8x256xf32>
    %468 = arith.mulf %465, %467 : vector<8x256xf32>
    %c0_201 = arith.constant 0 : index
    %c0_202 = arith.constant 0 : index
    %469 = vector.load %arg15[%c0_201, %c0_202] : memref<72x256xf32, #tpu.memory_space<vmem>>, vector<8x256xf32>
    tpu.vector_store %arg15[%c0_201, %c0_202], %468 {strides = array<i32>} : memref<72x256xf32, #tpu.memory_space<vmem>>, vector<8x256xf32>,
    %c16_i32_203 = arith.constant 16 : i32
    %470 = tpu.dynamic_rotate %464 by %c16_i32_203 dim 1 : vector<8x256xf32>, i32 -> vector<8x256xf32>
    %471 = vector.extract_strided_slice %5 {offsets = [1, 0], sizes = [1, 256], strides = [1, 1]} : vector<9x256xf32> to vector<1x256xf32>
    %472 = vector.broadcast %471 : vector<1x256xf32> to vector<8x256xf32>
    %473 = arith.mulf %470, %472 : vector<8x256xf32>
    %c8_204 = arith.constant 8 : index
    %c0_205 = arith.constant 0 : index
    %474 = vector.load %arg15[%c8_204, %c0_205] : memref<72x256xf32, #tpu.memory_space<vmem>>, vector<8x256xf32>
    tpu.vector_store %arg15[%c8_204, %c0_205], %473 {strides = array<i32>} : memref<72x256xf32, #tpu.memory_space<vmem>>, vector<8x256xf32>,
    %c15_i32_206 = arith.constant 15 : i32
    %475 = tpu.dynamic_rotate %464 by %c15_i32_206 dim 1 : vector<8x256xf32>, i32 -> vector<8x256xf32>
    %476 = vector.extract_strided_slice %5 {offsets = [2, 0], sizes = [1, 256], strides = [1, 1]} : vector<9x256xf32> to vector<1x256xf32>
    %477 = vector.broadcast %476 : vector<1x256xf32> to vector<8x256xf32>
    %478 = arith.mulf %475, %477 : vector<8x256xf32>
    %c16_207 = arith.constant 16 : index
    %c0_208 = arith.constant 0 : index
    %479 = vector.load %arg15[%c16_207, %c0_208] : memref<72x256xf32, #tpu.memory_space<vmem>>, vector<8x256xf32>
    tpu.vector_store %arg15[%c16_207, %c0_208], %478 {strides = array<i32>} : memref<72x256xf32, #tpu.memory_space<vmem>>, vector<8x256xf32>,
    %c1_i32_209 = arith.constant 1 : i32
    %480 = tpu.dynamic_rotate %464 by %c1_i32_209 dim 1 : vector<8x256xf32>, i32 -> vector<8x256xf32>
    %481 = vector.extract_strided_slice %5 {offsets = [3, 0], sizes = [1, 256], strides = [1, 1]} : vector<9x256xf32> to vector<1x256xf32>
    %482 = vector.broadcast %481 : vector<1x256xf32> to vector<8x256xf32>
    %483 = arith.mulf %480, %482 : vector<8x256xf32>
    %c24_210 = arith.constant 24 : index
    %c0_211 = arith.constant 0 : index
    %484 = vector.load %arg15[%c24_210, %c0_211] : memref<72x256xf32, #tpu.memory_space<vmem>>, vector<8x256xf32>
    tpu.vector_store %arg15[%c24_210, %c0_211], %483 {strides = array<i32>} : memref<72x256xf32, #tpu.memory_space<vmem>>, vector<8x256xf32>,
    %485 = vector.extract_strided_slice %5 {offsets = [4, 0], sizes = [1, 256], strides = [1, 1]} : vector<9x256xf32> to vector<1x256xf32>
    %486 = vector.broadcast %485 : vector<1x256xf32> to vector<8x256xf32>
    %487 = arith.mulf %464, %486 : vector<8x256xf32>
    %c32_212 = arith.constant 32 : index
    %c0_213 = arith.constant 0 : index
    %488 = vector.load %arg15[%c32_212, %c0_213] : memref<72x256xf32, #tpu.memory_space<vmem>>, vector<8x256xf32>
    tpu.vector_store %arg15[%c32_212, %c0_213], %487 {strides = array<i32>} : memref<72x256xf32, #tpu.memory_space<vmem>>, vector<8x256xf32>,
    %c255_i32_214 = arith.constant 255 : i32
    %489 = tpu.dynamic_rotate %464 by %c255_i32_214 dim 1 : vector<8x256xf32>, i32 -> vector<8x256xf32>
    %490 = vector.extract_strided_slice %5 {offsets = [5, 0], sizes = [1, 256], strides = [1, 1]} : vector<9x256xf32> to vector<1x256xf32>
    %491 = vector.broadcast %490 : vector<1x256xf32> to vector<8x256xf32>
    %492 = arith.mulf %489, %491 : vector<8x256xf32>
    %c40_215 = arith.constant 40 : index
    %c0_216 = arith.constant 0 : index
    %493 = vector.load %arg15[%c40_215, %c0_216] : memref<72x256xf32, #tpu.memory_space<vmem>>, vector<8x256xf32>
    tpu.vector_store %arg15[%c40_215, %c0_216], %492 {strides = array<i32>} : memref<72x256xf32, #tpu.memory_space<vmem>>, vector<8x256xf32>,
    %c241_i32_217 = arith.constant 241 : i32
    %494 = tpu.dynamic_rotate %464 by %c241_i32_217 dim 1 : vector<8x256xf32>, i32 -> vector<8x256xf32>
    %495 = vector.extract_strided_slice %5 {offsets = [6, 0], sizes = [1, 256], strides = [1, 1]} : vector<9x256xf32> to vector<1x256xf32>
    %496 = vector.broadcast %495 : vector<1x256xf32> to vector<8x256xf32>
    %497 = arith.mulf %494, %496 : vector<8x256xf32>
    %c48_218 = arith.constant 48 : index
    %c0_219 = arith.constant 0 : index
    %498 = vector.load %arg15[%c48_218, %c0_219] : memref<72x256xf32, #tpu.memory_space<vmem>>, vector<8x256xf32>
    tpu.vector_store %arg15[%c48_218, %c0_219], %497 {strides = array<i32>} : memref<72x256xf32, #tpu.memory_space<vmem>>, vector<8x256xf32>,
    %c240_i32_220 = arith.constant 240 : i32
    %499 = tpu.dynamic_rotate %464 by %c240_i32_220 dim 1 : vector<8x256xf32>, i32 -> vector<8x256xf32>
    %500 = vector.extract_strided_slice %5 {offsets = [7, 0], sizes = [1, 256], strides = [1, 1]} : vector<9x256xf32> to vector<1x256xf32>
    %501 = vector.broadcast %500 : vector<1x256xf32> to vector<8x256xf32>
    %502 = arith.mulf %499, %501 : vector<8x256xf32>
    %c56_221 = arith.constant 56 : index
    %c0_222 = arith.constant 0 : index
    %503 = vector.load %arg15[%c56_221, %c0_222] : memref<72x256xf32, #tpu.memory_space<vmem>>, vector<8x256xf32>
    tpu.vector_store %arg15[%c56_221, %c0_222], %502 {strides = array<i32>} : memref<72x256xf32, #tpu.memory_space<vmem>>, vector<8x256xf32>,
    %c239_i32_223 = arith.constant 239 : i32
    %504 = tpu.dynamic_rotate %464 by %c239_i32_223 dim 1 : vector<8x256xf32>, i32 -> vector<8x256xf32>
    %505 = vector.extract_strided_slice %5 {offsets = [8, 0], sizes = [1, 256], strides = [1, 1]} : vector<9x256xf32> to vector<1x256xf32>
    %506 = vector.broadcast %505 : vector<1x256xf32> to vector<8x256xf32>
    %507 = arith.mulf %504, %506 : vector<8x256xf32>
    %c64_224 = arith.constant 64 : index
    %c0_225 = arith.constant 0 : index
    %508 = vector.load %arg15[%c64_224, %c0_225] : memref<72x256xf32, #tpu.memory_space<vmem>>, vector<8x256xf32>
    tpu.vector_store %arg15[%c64_224, %c0_225], %507 {strides = array<i32>} : memref<72x256xf32, #tpu.memory_space<vmem>>, vector<8x256xf32>,
    %c4_226 = arith.constant 4 : index
    %c0_227 = arith.constant 0 : index
    %c0_228 = arith.constant 0 : index
    %509 = vector.load %arg10[%c4_226, %c0_227, %c0_228] : memref<5x8x72xf32, #tpu.memory_space<vmem>>, vector<1x8x72xf32>
    %510 = vector.shape_cast %509 : vector<1x8x72xf32> to vector<8x72xf32>
    %c0_229 = arith.constant 0 : index
    %c0_230 = arith.constant 0 : index
    %511 = vector.load %arg15[%c0_229, %c0_230] : memref<72x256xf32, #tpu.memory_space<vmem>>, vector<72x256xf32>
    %cst_231 = arith.constant dense<0.000000e+00> : vector<8x256xf32>
    %512 = tpu.matmul %510, %511, %cst_231 {dimension_numbers = #tpu.dot_dimension_numbers<[1], [0], [0], [1], [0, 0, 1, 1], [], []>} : vector<8x72xf32>, vector<72x256xf32>, vector<8x256xf32> -> vector<8x256xf32>
    %c5 = arith.constant 5 : index
    %c0_232 = arith.constant 0 : index
    %c0_233 = arith.constant 0 : index
    %513 = vector.load %arg11[%c5, %c0_232, %c0_233] : memref<6x8x1xf32, #tpu.memory_space<vmem>>, vector<1x8x1xf32>
    %514 = vector.shape_cast %513 : vector<1x8x1xf32> to vector<8x1xf32>
    %515 = vector.broadcast %514 : vector<8x1xf32> to vector<8x256xf32>
    %516 = arith.addf %512, %515 : vector<8x256xf32>
    %517 = vector.extract_strided_slice %516 {offsets = [0, 0], sizes = [1, 256], strides = [1, 1]} : vector<8x256xf32> to vector<1x256xf32>
    %518 = arith.addf %2, %517 : vector<1x256xf32>
    %c0_234 = arith.constant 0 : index
    %c0_235 = arith.constant 0 : index
    %c0_236 = arith.constant 0 : index
    %519 = vector.load %arg14[%c0_234, %c0_235, %c0_236] : memref<1x1x256xf32, #tpu.memory_space<vmem>>, vector<1x1x256xf32>
    %520 = vector.shape_cast %519 : vector<1x1x256xf32> to vector<1x256xf32>
    %521 = vector.shape_cast %518 : vector<1x256xf32> to vector<1x1x256xf32>
    tpu.vector_store %arg14[%c0_234, %c0_235, %c0_236], %521 {strides = array<i32>} : memref<1x1x256xf32, #tpu.memory_space<vmem>>, vector<1x1x256xf32>,
    %522 = vector.extract_strided_slice %6 {offsets = [0, 0], sizes = [1, 256], strides = [1, 1]} : vector<25x256xf32> to vector<1x256xf32>
    %c34_i32 = arith.constant 34 : i32
    %523 = tpu.dynamic_rotate %518 by %c34_i32 dim 1 : vector<1x256xf32>, i32 -> vector<1x256xf32>
    %524 = arith.mulf %522, %523 : vector<1x256xf32>
    %525 = vector.extract_strided_slice %6 {offsets = [1, 0], sizes = [1, 256], strides = [1, 1]} : vector<25x256xf32> to vector<1x256xf32>
    %c33_i32 = arith.constant 33 : i32
    %526 = tpu.dynamic_rotate %518 by %c33_i32 dim 1 : vector<1x256xf32>, i32 -> vector<1x256xf32>
    %527 = arith.mulf %525, %526 : vector<1x256xf32>
    %528 = arith.addf %524, %527 : vector<1x256xf32>
    %529 = vector.extract_strided_slice %6 {offsets = [2, 0], sizes = [1, 256], strides = [1, 1]} : vector<25x256xf32> to vector<1x256xf32>
    %c32_i32 = arith.constant 32 : i32
    %530 = tpu.dynamic_rotate %518 by %c32_i32 dim 1 : vector<1x256xf32>, i32 -> vector<1x256xf32>
    %531 = arith.mulf %529, %530 : vector<1x256xf32>
    %532 = arith.addf %528, %531 : vector<1x256xf32>
    %533 = vector.extract_strided_slice %6 {offsets = [3, 0], sizes = [1, 256], strides = [1, 1]} : vector<25x256xf32> to vector<1x256xf32>
    %c31_i32 = arith.constant 31 : i32
    %534 = tpu.dynamic_rotate %518 by %c31_i32 dim 1 : vector<1x256xf32>, i32 -> vector<1x256xf32>
    %535 = arith.mulf %533, %534 : vector<1x256xf32>
    %536 = arith.addf %532, %535 : vector<1x256xf32>
    %537 = vector.extract_strided_slice %6 {offsets = [4, 0], sizes = [1, 256], strides = [1, 1]} : vector<25x256xf32> to vector<1x256xf32>
    %c30_i32 = arith.constant 30 : i32
    %538 = tpu.dynamic_rotate %518 by %c30_i32 dim 1 : vector<1x256xf32>, i32 -> vector<1x256xf32>
    %539 = arith.mulf %537, %538 : vector<1x256xf32>
    %540 = arith.addf %536, %539 : vector<1x256xf32>
    %541 = vector.extract_strided_slice %6 {offsets = [5, 0], sizes = [1, 256], strides = [1, 1]} : vector<25x256xf32> to vector<1x256xf32>
    %c18_i32 = arith.constant 18 : i32
    %542 = tpu.dynamic_rotate %518 by %c18_i32 dim 1 : vector<1x256xf32>, i32 -> vector<1x256xf32>
    %543 = arith.mulf %541, %542 : vector<1x256xf32>
    %544 = arith.addf %540, %543 : vector<1x256xf32>
    %545 = vector.extract_strided_slice %6 {offsets = [6, 0], sizes = [1, 256], strides = [1, 1]} : vector<25x256xf32> to vector<1x256xf32>
    %c17_i32_237 = arith.constant 17 : i32
    %546 = tpu.dynamic_rotate %518 by %c17_i32_237 dim 1 : vector<1x256xf32>, i32 -> vector<1x256xf32>
    %547 = arith.mulf %545, %546 : vector<1x256xf32>
    %548 = arith.addf %544, %547 : vector<1x256xf32>
    %549 = vector.extract_strided_slice %6 {offsets = [7, 0], sizes = [1, 256], strides = [1, 1]} : vector<25x256xf32> to vector<1x256xf32>
    %c16_i32_238 = arith.constant 16 : i32
    %550 = tpu.dynamic_rotate %518 by %c16_i32_238 dim 1 : vector<1x256xf32>, i32 -> vector<1x256xf32>
    %551 = arith.mulf %549, %550 : vector<1x256xf32>
    %552 = arith.addf %548, %551 : vector<1x256xf32>
    %553 = vector.extract_strided_slice %6 {offsets = [8, 0], sizes = [1, 256], strides = [1, 1]} : vector<25x256xf32> to vector<1x256xf32>
    %c15_i32_239 = arith.constant 15 : i32
    %554 = tpu.dynamic_rotate %518 by %c15_i32_239 dim 1 : vector<1x256xf32>, i32 -> vector<1x256xf32>
    %555 = arith.mulf %553, %554 : vector<1x256xf32>
    %556 = arith.addf %552, %555 : vector<1x256xf32>
    %557 = vector.extract_strided_slice %6 {offsets = [9, 0], sizes = [1, 256], strides = [1, 1]} : vector<25x256xf32> to vector<1x256xf32>
    %c14_i32 = arith.constant 14 : i32
    %558 = tpu.dynamic_rotate %518 by %c14_i32 dim 1 : vector<1x256xf32>, i32 -> vector<1x256xf32>
    %559 = arith.mulf %557, %558 : vector<1x256xf32>
    %560 = arith.addf %556, %559 : vector<1x256xf32>
    %561 = vector.extract_strided_slice %6 {offsets = [10, 0], sizes = [1, 256], strides = [1, 1]} : vector<25x256xf32> to vector<1x256xf32>
    %c2_i32 = arith.constant 2 : i32
    %562 = tpu.dynamic_rotate %518 by %c2_i32 dim 1 : vector<1x256xf32>, i32 -> vector<1x256xf32>
    %563 = arith.mulf %561, %562 : vector<1x256xf32>
    %564 = arith.addf %560, %563 : vector<1x256xf32>
    %565 = vector.extract_strided_slice %6 {offsets = [11, 0], sizes = [1, 256], strides = [1, 1]} : vector<25x256xf32> to vector<1x256xf32>
    %c1_i32_240 = arith.constant 1 : i32
    %566 = tpu.dynamic_rotate %518 by %c1_i32_240 dim 1 : vector<1x256xf32>, i32 -> vector<1x256xf32>
    %567 = arith.mulf %565, %566 : vector<1x256xf32>
    %568 = arith.addf %564, %567 : vector<1x256xf32>
    %569 = vector.extract_strided_slice %6 {offsets = [12, 0], sizes = [1, 256], strides = [1, 1]} : vector<25x256xf32> to vector<1x256xf32>
    %570 = arith.mulf %569, %518 : vector<1x256xf32>
    %571 = arith.addf %568, %570 : vector<1x256xf32>
    %572 = vector.extract_strided_slice %6 {offsets = [13, 0], sizes = [1, 256], strides = [1, 1]} : vector<25x256xf32> to vector<1x256xf32>
    %c255_i32_241 = arith.constant 255 : i32
    %573 = tpu.dynamic_rotate %518 by %c255_i32_241 dim 1 : vector<1x256xf32>, i32 -> vector<1x256xf32>
    %574 = arith.mulf %572, %573 : vector<1x256xf32>
    %575 = arith.addf %571, %574 : vector<1x256xf32>
    %576 = vector.extract_strided_slice %6 {offsets = [14, 0], sizes = [1, 256], strides = [1, 1]} : vector<25x256xf32> to vector<1x256xf32>
    %c254_i32 = arith.constant 254 : i32
    %577 = tpu.dynamic_rotate %518 by %c254_i32 dim 1 : vector<1x256xf32>, i32 -> vector<1x256xf32>
    %578 = arith.mulf %576, %577 : vector<1x256xf32>
    %579 = arith.addf %575, %578 : vector<1x256xf32>
    %580 = vector.extract_strided_slice %6 {offsets = [15, 0], sizes = [1, 256], strides = [1, 1]} : vector<25x256xf32> to vector<1x256xf32>
    %c242_i32 = arith.constant 242 : i32
    %581 = tpu.dynamic_rotate %518 by %c242_i32 dim 1 : vector<1x256xf32>, i32 -> vector<1x256xf32>
    %582 = arith.mulf %580, %581 : vector<1x256xf32>
    %583 = arith.addf %579, %582 : vector<1x256xf32>
    %584 = vector.extract_strided_slice %6 {offsets = [16, 0], sizes = [1, 256], strides = [1, 1]} : vector<25x256xf32> to vector<1x256xf32>
    %c241_i32_242 = arith.constant 241 : i32
    %585 = tpu.dynamic_rotate %518 by %c241_i32_242 dim 1 : vector<1x256xf32>, i32 -> vector<1x256xf32>
    %586 = arith.mulf %584, %585 : vector<1x256xf32>
    %587 = arith.addf %583, %586 : vector<1x256xf32>
    %588 = vector.extract_strided_slice %6 {offsets = [17, 0], sizes = [1, 256], strides = [1, 1]} : vector<25x256xf32> to vector<1x256xf32>
    %c240_i32_243 = arith.constant 240 : i32
    %589 = tpu.dynamic_rotate %518 by %c240_i32_243 dim 1 : vector<1x256xf32>, i32 -> vector<1x256xf32>
    %590 = arith.mulf %588, %589 : vector<1x256xf32>
    %591 = arith.addf %587, %590 : vector<1x256xf32>
    %592 = vector.extract_strided_slice %6 {offsets = [18, 0], sizes = [1, 256], strides = [1, 1]} : vector<25x256xf32> to vector<1x256xf32>
    %c239_i32_244 = arith.constant 239 : i32
    %593 = tpu.dynamic_rotate %518 by %c239_i32_244 dim 1 : vector<1x256xf32>, i32 -> vector<1x256xf32>
    %594 = arith.mulf %592, %593 : vector<1x256xf32>
    %595 = arith.addf %591, %594 : vector<1x256xf32>
    %596 = vector.extract_strided_slice %6 {offsets = [19, 0], sizes = [1, 256], strides = [1, 1]} : vector<25x256xf32> to vector<1x256xf32>
    %c238_i32 = arith.constant 238 : i32
    %597 = tpu.dynamic_rotate %518 by %c238_i32 dim 1 : vector<1x256xf32>, i32 -> vector<1x256xf32>
    %598 = arith.mulf %596, %597 : vector<1x256xf32>
    %599 = arith.addf %595, %598 : vector<1x256xf32>
    %600 = vector.extract_strided_slice %6 {offsets = [20, 0], sizes = [1, 256], strides = [1, 1]} : vector<25x256xf32> to vector<1x256xf32>
    %c226_i32 = arith.constant 226 : i32
    %601 = tpu.dynamic_rotate %518 by %c226_i32 dim 1 : vector<1x256xf32>, i32 -> vector<1x256xf32>
    %602 = arith.mulf %600, %601 : vector<1x256xf32>
    %603 = arith.addf %599, %602 : vector<1x256xf32>
    %604 = vector.extract_strided_slice %6 {offsets = [21, 0], sizes = [1, 256], strides = [1, 1]} : vector<25x256xf32> to vector<1x256xf32>
    %c225_i32 = arith.constant 225 : i32
    %605 = tpu.dynamic_rotate %518 by %c225_i32 dim 1 : vector<1x256xf32>, i32 -> vector<1x256xf32>
    %606 = arith.mulf %604, %605 : vector<1x256xf32>
    %607 = arith.addf %603, %606 : vector<1x256xf32>
    %608 = vector.extract_strided_slice %6 {offsets = [22, 0], sizes = [1, 256], strides = [1, 1]} : vector<25x256xf32> to vector<1x256xf32>
    %c224_i32 = arith.constant 224 : i32
    %609 = tpu.dynamic_rotate %518 by %c224_i32 dim 1 : vector<1x256xf32>, i32 -> vector<1x256xf32>
    %610 = arith.mulf %608, %609 : vector<1x256xf32>
    %611 = arith.addf %607, %610 : vector<1x256xf32>
    %612 = vector.extract_strided_slice %6 {offsets = [23, 0], sizes = [1, 256], strides = [1, 1]} : vector<25x256xf32> to vector<1x256xf32>
    %c223_i32 = arith.constant 223 : i32
    %613 = tpu.dynamic_rotate %518 by %c223_i32 dim 1 : vector<1x256xf32>, i32 -> vector<1x256xf32>
    %614 = arith.mulf %612, %613 : vector<1x256xf32>
    %615 = arith.addf %611, %614 : vector<1x256xf32>
    %616 = vector.extract_strided_slice %6 {offsets = [24, 0], sizes = [1, 256], strides = [1, 1]} : vector<25x256xf32> to vector<1x256xf32>
    %c222_i32 = arith.constant 222 : i32
    %617 = tpu.dynamic_rotate %518 by %c222_i32 dim 1 : vector<1x256xf32>, i32 -> vector<1x256xf32>
    %618 = arith.mulf %616, %617 : vector<1x256xf32>
    %619 = arith.addf %615, %618 : vector<1x256xf32>
    %620 = arith.subf %619, %213 : vector<1x256xf32>
    %cst_245 = arith.constant 0.000000e+00 : f32
    %621 = vector.broadcast %cst_245 : f32 to vector<1x256xf32>
    %622 = arith.subf %621, %620 : vector<1x256xf32>
    %623 = arith.mulf %620, %620 : vector<1x256xf32>
    %624 = vector.shape_cast %623 : vector<1x256xf32> to vector<1x1x256xf32>
    %cst_246 = arith.constant dense<0.000000e+00> : vector<1xf32>
    %625 = vector.multi_reduction <add>, %624, %cst_246 [1, 2] : vector<1x1x256xf32> to vector<1xf32>
    %626 = vector.shape_cast %625 : vector<1xf32> to vector<1x1x1xf32>
    %627 = vector.extract %626[0, 0, 0] : f32 from vector<1x1x1xf32>
    %628 = vector.broadcast %627 : f32 to vector<1x1xf32>
    %629 = vector.extract_strided_slice %6 {offsets = [0, 0], sizes = [1, 256], strides = [1, 1]} : vector<25x256xf32> to vector<1x256xf32>
    %c34_i32_247 = arith.constant 34 : i32
    %630 = tpu.dynamic_rotate %622 by %c34_i32_247 dim 1 : vector<1x256xf32>, i32 -> vector<1x256xf32>
    %631 = arith.mulf %629, %630 : vector<1x256xf32>
    %632 = vector.extract_strided_slice %6 {offsets = [1, 0], sizes = [1, 256], strides = [1, 1]} : vector<25x256xf32> to vector<1x256xf32>
    %c33_i32_248 = arith.constant 33 : i32
    %633 = tpu.dynamic_rotate %622 by %c33_i32_248 dim 1 : vector<1x256xf32>, i32 -> vector<1x256xf32>
    %634 = arith.mulf %632, %633 : vector<1x256xf32>
    %635 = arith.addf %631, %634 : vector<1x256xf32>
    %636 = vector.extract_strided_slice %6 {offsets = [2, 0], sizes = [1, 256], strides = [1, 1]} : vector<25x256xf32> to vector<1x256xf32>
    %c32_i32_249 = arith.constant 32 : i32
    %637 = tpu.dynamic_rotate %622 by %c32_i32_249 dim 1 : vector<1x256xf32>, i32 -> vector<1x256xf32>
    %638 = arith.mulf %636, %637 : vector<1x256xf32>
    %639 = arith.addf %635, %638 : vector<1x256xf32>
    %640 = vector.extract_strided_slice %6 {offsets = [3, 0], sizes = [1, 256], strides = [1, 1]} : vector<25x256xf32> to vector<1x256xf32>
    %c31_i32_250 = arith.constant 31 : i32
    %641 = tpu.dynamic_rotate %622 by %c31_i32_250 dim 1 : vector<1x256xf32>, i32 -> vector<1x256xf32>
    %642 = arith.mulf %640, %641 : vector<1x256xf32>
    %643 = arith.addf %639, %642 : vector<1x256xf32>
    %644 = vector.extract_strided_slice %6 {offsets = [4, 0], sizes = [1, 256], strides = [1, 1]} : vector<25x256xf32> to vector<1x256xf32>
    %c30_i32_251 = arith.constant 30 : i32
    %645 = tpu.dynamic_rotate %622 by %c30_i32_251 dim 1 : vector<1x256xf32>, i32 -> vector<1x256xf32>
    %646 = arith.mulf %644, %645 : vector<1x256xf32>
    %647 = arith.addf %643, %646 : vector<1x256xf32>
    %648 = vector.extract_strided_slice %6 {offsets = [5, 0], sizes = [1, 256], strides = [1, 1]} : vector<25x256xf32> to vector<1x256xf32>
    %c18_i32_252 = arith.constant 18 : i32
    %649 = tpu.dynamic_rotate %622 by %c18_i32_252 dim 1 : vector<1x256xf32>, i32 -> vector<1x256xf32>
    %650 = arith.mulf %648, %649 : vector<1x256xf32>
    %651 = arith.addf %647, %650 : vector<1x256xf32>
    %652 = vector.extract_strided_slice %6 {offsets = [6, 0], sizes = [1, 256], strides = [1, 1]} : vector<25x256xf32> to vector<1x256xf32>
    %c17_i32_253 = arith.constant 17 : i32
    %653 = tpu.dynamic_rotate %622 by %c17_i32_253 dim 1 : vector<1x256xf32>, i32 -> vector<1x256xf32>
    %654 = arith.mulf %652, %653 : vector<1x256xf32>
    %655 = arith.addf %651, %654 : vector<1x256xf32>
    %656 = vector.extract_strided_slice %6 {offsets = [7, 0], sizes = [1, 256], strides = [1, 1]} : vector<25x256xf32> to vector<1x256xf32>
    %c16_i32_254 = arith.constant 16 : i32
    %657 = tpu.dynamic_rotate %622 by %c16_i32_254 dim 1 : vector<1x256xf32>, i32 -> vector<1x256xf32>
    %658 = arith.mulf %656, %657 : vector<1x256xf32>
    %659 = arith.addf %655, %658 : vector<1x256xf32>
    %660 = vector.extract_strided_slice %6 {offsets = [8, 0], sizes = [1, 256], strides = [1, 1]} : vector<25x256xf32> to vector<1x256xf32>
    %c15_i32_255 = arith.constant 15 : i32
    %661 = tpu.dynamic_rotate %622 by %c15_i32_255 dim 1 : vector<1x256xf32>, i32 -> vector<1x256xf32>
    %662 = arith.mulf %660, %661 : vector<1x256xf32>
    %663 = arith.addf %659, %662 : vector<1x256xf32>
    %664 = vector.extract_strided_slice %6 {offsets = [9, 0], sizes = [1, 256], strides = [1, 1]} : vector<25x256xf32> to vector<1x256xf32>
    %c14_i32_256 = arith.constant 14 : i32
    %665 = tpu.dynamic_rotate %622 by %c14_i32_256 dim 1 : vector<1x256xf32>, i32 -> vector<1x256xf32>
    %666 = arith.mulf %664, %665 : vector<1x256xf32>
    %667 = arith.addf %663, %666 : vector<1x256xf32>
    %668 = vector.extract_strided_slice %6 {offsets = [10, 0], sizes = [1, 256], strides = [1, 1]} : vector<25x256xf32> to vector<1x256xf32>
    %c2_i32_257 = arith.constant 2 : i32
    %669 = tpu.dynamic_rotate %622 by %c2_i32_257 dim 1 : vector<1x256xf32>, i32 -> vector<1x256xf32>
    %670 = arith.mulf %668, %669 : vector<1x256xf32>
    %671 = arith.addf %667, %670 : vector<1x256xf32>
    %672 = vector.extract_strided_slice %6 {offsets = [11, 0], sizes = [1, 256], strides = [1, 1]} : vector<25x256xf32> to vector<1x256xf32>
    %c1_i32_258 = arith.constant 1 : i32
    %673 = tpu.dynamic_rotate %622 by %c1_i32_258 dim 1 : vector<1x256xf32>, i32 -> vector<1x256xf32>
    %674 = arith.mulf %672, %673 : vector<1x256xf32>
    %675 = arith.addf %671, %674 : vector<1x256xf32>
    %676 = vector.extract_strided_slice %6 {offsets = [12, 0], sizes = [1, 256], strides = [1, 1]} : vector<25x256xf32> to vector<1x256xf32>
    %677 = arith.mulf %676, %622 : vector<1x256xf32>
    %678 = arith.addf %675, %677 : vector<1x256xf32>
    %679 = vector.extract_strided_slice %6 {offsets = [13, 0], sizes = [1, 256], strides = [1, 1]} : vector<25x256xf32> to vector<1x256xf32>
    %c255_i32_259 = arith.constant 255 : i32
    %680 = tpu.dynamic_rotate %622 by %c255_i32_259 dim 1 : vector<1x256xf32>, i32 -> vector<1x256xf32>
    %681 = arith.mulf %679, %680 : vector<1x256xf32>
    %682 = arith.addf %678, %681 : vector<1x256xf32>
    %683 = vector.extract_strided_slice %6 {offsets = [14, 0], sizes = [1, 256], strides = [1, 1]} : vector<25x256xf32> to vector<1x256xf32>
    %c254_i32_260 = arith.constant 254 : i32
    %684 = tpu.dynamic_rotate %622 by %c254_i32_260 dim 1 : vector<1x256xf32>, i32 -> vector<1x256xf32>
    %685 = arith.mulf %683, %684 : vector<1x256xf32>
    %686 = arith.addf %682, %685 : vector<1x256xf32>
    %687 = vector.extract_strided_slice %6 {offsets = [15, 0], sizes = [1, 256], strides = [1, 1]} : vector<25x256xf32> to vector<1x256xf32>
    %c242_i32_261 = arith.constant 242 : i32
    %688 = tpu.dynamic_rotate %622 by %c242_i32_261 dim 1 : vector<1x256xf32>, i32 -> vector<1x256xf32>
    %689 = arith.mulf %687, %688 : vector<1x256xf32>
    %690 = arith.addf %686, %689 : vector<1x256xf32>
    %691 = vector.extract_strided_slice %6 {offsets = [16, 0], sizes = [1, 256], strides = [1, 1]} : vector<25x256xf32> to vector<1x256xf32>
    %c241_i32_262 = arith.constant 241 : i32
    %692 = tpu.dynamic_rotate %622 by %c241_i32_262 dim 1 : vector<1x256xf32>, i32 -> vector<1x256xf32>
    %693 = arith.mulf %691, %692 : vector<1x256xf32>
    %694 = arith.addf %690, %693 : vector<1x256xf32>
    %695 = vector.extract_strided_slice %6 {offsets = [17, 0], sizes = [1, 256], strides = [1, 1]} : vector<25x256xf32> to vector<1x256xf32>
    %c240_i32_263 = arith.constant 240 : i32
    %696 = tpu.dynamic_rotate %622 by %c240_i32_263 dim 1 : vector<1x256xf32>, i32 -> vector<1x256xf32>
    %697 = arith.mulf %695, %696 : vector<1x256xf32>
    %698 = arith.addf %694, %697 : vector<1x256xf32>
    %699 = vector.extract_strided_slice %6 {offsets = [18, 0], sizes = [1, 256], strides = [1, 1]} : vector<25x256xf32> to vector<1x256xf32>
    %c239_i32_264 = arith.constant 239 : i32
    %700 = tpu.dynamic_rotate %622 by %c239_i32_264 dim 1 : vector<1x256xf32>, i32 -> vector<1x256xf32>
    %701 = arith.mulf %699, %700 : vector<1x256xf32>
    %702 = arith.addf %698, %701 : vector<1x256xf32>
    %703 = vector.extract_strided_slice %6 {offsets = [19, 0], sizes = [1, 256], strides = [1, 1]} : vector<25x256xf32> to vector<1x256xf32>
    %c238_i32_265 = arith.constant 238 : i32
    %704 = tpu.dynamic_rotate %622 by %c238_i32_265 dim 1 : vector<1x256xf32>, i32 -> vector<1x256xf32>
    %705 = arith.mulf %703, %704 : vector<1x256xf32>
    %706 = arith.addf %702, %705 : vector<1x256xf32>
    %707 = vector.extract_strided_slice %6 {offsets = [20, 0], sizes = [1, 256], strides = [1, 1]} : vector<25x256xf32> to vector<1x256xf32>
    %c226_i32_266 = arith.constant 226 : i32
    %708 = tpu.dynamic_rotate %622 by %c226_i32_266 dim 1 : vector<1x256xf32>, i32 -> vector<1x256xf32>
    %709 = arith.mulf %707, %708 : vector<1x256xf32>
    %710 = arith.addf %706, %709 : vector<1x256xf32>
    %711 = vector.extract_strided_slice %6 {offsets = [21, 0], sizes = [1, 256], strides = [1, 1]} : vector<25x256xf32> to vector<1x256xf32>
    %c225_i32_267 = arith.constant 225 : i32
    %712 = tpu.dynamic_rotate %622 by %c225_i32_267 dim 1 : vector<1x256xf32>, i32 -> vector<1x256xf32>
    %713 = arith.mulf %711, %712 : vector<1x256xf32>
    %714 = arith.addf %710, %713 : vector<1x256xf32>
    %715 = vector.extract_strided_slice %6 {offsets = [22, 0], sizes = [1, 256], strides = [1, 1]} : vector<25x256xf32> to vector<1x256xf32>
    %c224_i32_268 = arith.constant 224 : i32
    %716 = tpu.dynamic_rotate %622 by %c224_i32_268 dim 1 : vector<1x256xf32>, i32 -> vector<1x256xf32>
    %717 = arith.mulf %715, %716 : vector<1x256xf32>
    %718 = arith.addf %714, %717 : vector<1x256xf32>
    %719 = vector.extract_strided_slice %6 {offsets = [23, 0], sizes = [1, 256], strides = [1, 1]} : vector<25x256xf32> to vector<1x256xf32>
    %c223_i32_269 = arith.constant 223 : i32
    %720 = tpu.dynamic_rotate %622 by %c223_i32_269 dim 1 : vector<1x256xf32>, i32 -> vector<1x256xf32>
    %721 = arith.mulf %719, %720 : vector<1x256xf32>
    %722 = arith.addf %718, %721 : vector<1x256xf32>
    %723 = vector.extract_strided_slice %6 {offsets = [24, 0], sizes = [1, 256], strides = [1, 1]} : vector<25x256xf32> to vector<1x256xf32>
    %c222_i32_270 = arith.constant 222 : i32
    %724 = tpu.dynamic_rotate %622 by %c222_i32_270 dim 1 : vector<1x256xf32>, i32 -> vector<1x256xf32>
    %725 = arith.mulf %723, %724 : vector<1x256xf32>
    %726 = arith.addf %722, %725 : vector<1x256xf32>
    %727 = arith.mulf %622, %726 : vector<1x256xf32>
    %728 = vector.shape_cast %727 : vector<1x256xf32> to vector<1x1x256xf32>
    %cst_271 = arith.constant dense<0.000000e+00> : vector<1xf32>
    %729 = vector.multi_reduction <add>, %728, %cst_271 [1, 2] : vector<1x1x256xf32> to vector<1xf32>
    %730 = vector.shape_cast %729 : vector<1xf32> to vector<1x1x1xf32>
    %731 = vector.extract %730[0, 0, 0] : f32 from vector<1x1x1xf32>
    %732 = vector.broadcast %731 : f32 to vector<1x1xf32>
    %733 = arith.divf %628, %732 : vector<1x1xf32>
    %734 = vector.broadcast %733 : vector<1x1xf32> to vector<1x256xf32>
    %735 = arith.mulf %734, %622 : vector<1x256xf32>
    %736 = arith.addf %518, %735 : vector<1x256xf32>
    %737 = vector.broadcast %733 : vector<1x1xf32> to vector<1x256xf32>
    %738 = arith.mulf %737, %726 : vector<1x256xf32>
    %739 = arith.addf %620, %738 : vector<1x256xf32>
    %740 = arith.mulf %739, %739 : vector<1x256xf32>
    %741 = vector.shape_cast %740 : vector<1x256xf32> to vector<1x1x256xf32>
    %cst_272 = arith.constant dense<0.000000e+00> : vector<1xf32>
    %742 = vector.multi_reduction <add>, %741, %cst_272 [1, 2] : vector<1x1x256xf32> to vector<1xf32>
    %743 = vector.shape_cast %742 : vector<1xf32> to vector<1x1x1xf32>
    %744 = vector.extract %743[0, 0, 0] : f32 from vector<1x1x1xf32>
    %745 = vector.broadcast %744 : f32 to vector<1x1xf32>
    %cst_273 = arith.constant 0.000000e+00 : f32
    %746 = vector.broadcast %cst_273 : f32 to vector<1x256xf32>
    %747 = arith.subf %746, %739 : vector<1x256xf32>
    %748 = arith.divf %745, %628 : vector<1x1xf32>
    %749 = vector.broadcast %748 : vector<1x1xf32> to vector<1x256xf32>
    %750 = arith.mulf %749, %622 : vector<1x256xf32>
    %751 = arith.addf %747, %750 : vector<1x256xf32>
    %752 = vector.extract_strided_slice %6 {offsets = [0, 0], sizes = [1, 256], strides = [1, 1]} : vector<25x256xf32> to vector<1x256xf32>
    %c34_i32_274 = arith.constant 34 : i32
    %753 = tpu.dynamic_rotate %751 by %c34_i32_274 dim 1 : vector<1x256xf32>, i32 -> vector<1x256xf32>
    %754 = arith.mulf %752, %753 : vector<1x256xf32>
    %755 = vector.extract_strided_slice %6 {offsets = [1, 0], sizes = [1, 256], strides = [1, 1]} : vector<25x256xf32> to vector<1x256xf32>
    %c33_i32_275 = arith.constant 33 : i32
    %756 = tpu.dynamic_rotate %751 by %c33_i32_275 dim 1 : vector<1x256xf32>, i32 -> vector<1x256xf32>
    %757 = arith.mulf %755, %756 : vector<1x256xf32>
    %758 = arith.addf %754, %757 : vector<1x256xf32>
    %759 = vector.extract_strided_slice %6 {offsets = [2, 0], sizes = [1, 256], strides = [1, 1]} : vector<25x256xf32> to vector<1x256xf32>
    %c32_i32_276 = arith.constant 32 : i32
    %760 = tpu.dynamic_rotate %751 by %c32_i32_276 dim 1 : vector<1x256xf32>, i32 -> vector<1x256xf32>
    %761 = arith.mulf %759, %760 : vector<1x256xf32>
    %762 = arith.addf %758, %761 : vector<1x256xf32>
    %763 = vector.extract_strided_slice %6 {offsets = [3, 0], sizes = [1, 256], strides = [1, 1]} : vector<25x256xf32> to vector<1x256xf32>
    %c31_i32_277 = arith.constant 31 : i32
    %764 = tpu.dynamic_rotate %751 by %c31_i32_277 dim 1 : vector<1x256xf32>, i32 -> vector<1x256xf32>
    %765 = arith.mulf %763, %764 : vector<1x256xf32>
    %766 = arith.addf %762, %765 : vector<1x256xf32>
    %767 = vector.extract_strided_slice %6 {offsets = [4, 0], sizes = [1, 256], strides = [1, 1]} : vector<25x256xf32> to vector<1x256xf32>
    %c30_i32_278 = arith.constant 30 : i32
    %768 = tpu.dynamic_rotate %751 by %c30_i32_278 dim 1 : vector<1x256xf32>, i32 -> vector<1x256xf32>
    %769 = arith.mulf %767, %768 : vector<1x256xf32>
    %770 = arith.addf %766, %769 : vector<1x256xf32>
    %771 = vector.extract_strided_slice %6 {offsets = [5, 0], sizes = [1, 256], strides = [1, 1]} : vector<25x256xf32> to vector<1x256xf32>
    %c18_i32_279 = arith.constant 18 : i32
    %772 = tpu.dynamic_rotate %751 by %c18_i32_279 dim 1 : vector<1x256xf32>, i32 -> vector<1x256xf32>
    %773 = arith.mulf %771, %772 : vector<1x256xf32>
    %774 = arith.addf %770, %773 : vector<1x256xf32>
    %775 = vector.extract_strided_slice %6 {offsets = [6, 0], sizes = [1, 256], strides = [1, 1]} : vector<25x256xf32> to vector<1x256xf32>
    %c17_i32_280 = arith.constant 17 : i32
    %776 = tpu.dynamic_rotate %751 by %c17_i32_280 dim 1 : vector<1x256xf32>, i32 -> vector<1x256xf32>
    %777 = arith.mulf %775, %776 : vector<1x256xf32>
    %778 = arith.addf %774, %777 : vector<1x256xf32>
    %779 = vector.extract_strided_slice %6 {offsets = [7, 0], sizes = [1, 256], strides = [1, 1]} : vector<25x256xf32> to vector<1x256xf32>
    %c16_i32_281 = arith.constant 16 : i32
    %780 = tpu.dynamic_rotate %751 by %c16_i32_281 dim 1 : vector<1x256xf32>, i32 -> vector<1x256xf32>
    %781 = arith.mulf %779, %780 : vector<1x256xf32>
    %782 = arith.addf %778, %781 : vector<1x256xf32>
    %783 = vector.extract_strided_slice %6 {offsets = [8, 0], sizes = [1, 256], strides = [1, 1]} : vector<25x256xf32> to vector<1x256xf32>
    %c15_i32_282 = arith.constant 15 : i32
    %784 = tpu.dynamic_rotate %751 by %c15_i32_282 dim 1 : vector<1x256xf32>, i32 -> vector<1x256xf32>
    %785 = arith.mulf %783, %784 : vector<1x256xf32>
    %786 = arith.addf %782, %785 : vector<1x256xf32>
    %787 = vector.extract_strided_slice %6 {offsets = [9, 0], sizes = [1, 256], strides = [1, 1]} : vector<25x256xf32> to vector<1x256xf32>
    %c14_i32_283 = arith.constant 14 : i32
    %788 = tpu.dynamic_rotate %751 by %c14_i32_283 dim 1 : vector<1x256xf32>, i32 -> vector<1x256xf32>
    %789 = arith.mulf %787, %788 : vector<1x256xf32>
    %790 = arith.addf %786, %789 : vector<1x256xf32>
    %791 = vector.extract_strided_slice %6 {offsets = [10, 0], sizes = [1, 256], strides = [1, 1]} : vector<25x256xf32> to vector<1x256xf32>
    %c2_i32_284 = arith.constant 2 : i32
    %792 = tpu.dynamic_rotate %751 by %c2_i32_284 dim 1 : vector<1x256xf32>, i32 -> vector<1x256xf32>
    %793 = arith.mulf %791, %792 : vector<1x256xf32>
    %794 = arith.addf %790, %793 : vector<1x256xf32>
    %795 = vector.extract_strided_slice %6 {offsets = [11, 0], sizes = [1, 256], strides = [1, 1]} : vector<25x256xf32> to vector<1x256xf32>
    %c1_i32_285 = arith.constant 1 : i32
    %796 = tpu.dynamic_rotate %751 by %c1_i32_285 dim 1 : vector<1x256xf32>, i32 -> vector<1x256xf32>
    %797 = arith.mulf %795, %796 : vector<1x256xf32>
    %798 = arith.addf %794, %797 : vector<1x256xf32>
    %799 = vector.extract_strided_slice %6 {offsets = [12, 0], sizes = [1, 256], strides = [1, 1]} : vector<25x256xf32> to vector<1x256xf32>
    %800 = arith.mulf %799, %751 : vector<1x256xf32>
    %801 = arith.addf %798, %800 : vector<1x256xf32>
    %802 = vector.extract_strided_slice %6 {offsets = [13, 0], sizes = [1, 256], strides = [1, 1]} : vector<25x256xf32> to vector<1x256xf32>
    %c255_i32_286 = arith.constant 255 : i32
    %803 = tpu.dynamic_rotate %751 by %c255_i32_286 dim 1 : vector<1x256xf32>, i32 -> vector<1x256xf32>
    %804 = arith.mulf %802, %803 : vector<1x256xf32>
    %805 = arith.addf %801, %804 : vector<1x256xf32>
    %806 = vector.extract_strided_slice %6 {offsets = [14, 0], sizes = [1, 256], strides = [1, 1]} : vector<25x256xf32> to vector<1x256xf32>
    %c254_i32_287 = arith.constant 254 : i32
    %807 = tpu.dynamic_rotate %751 by %c254_i32_287 dim 1 : vector<1x256xf32>, i32 -> vector<1x256xf32>
    %808 = arith.mulf %806, %807 : vector<1x256xf32>
    %809 = arith.addf %805, %808 : vector<1x256xf32>
    %810 = vector.extract_strided_slice %6 {offsets = [15, 0], sizes = [1, 256], strides = [1, 1]} : vector<25x256xf32> to vector<1x256xf32>
    %c242_i32_288 = arith.constant 242 : i32
    %811 = tpu.dynamic_rotate %751 by %c242_i32_288 dim 1 : vector<1x256xf32>, i32 -> vector<1x256xf32>
    %812 = arith.mulf %810, %811 : vector<1x256xf32>
    %813 = arith.addf %809, %812 : vector<1x256xf32>
    %814 = vector.extract_strided_slice %6 {offsets = [16, 0], sizes = [1, 256], strides = [1, 1]} : vector<25x256xf32> to vector<1x256xf32>
    %c241_i32_289 = arith.constant 241 : i32
    %815 = tpu.dynamic_rotate %751 by %c241_i32_289 dim 1 : vector<1x256xf32>, i32 -> vector<1x256xf32>
    %816 = arith.mulf %814, %815 : vector<1x256xf32>
    %817 = arith.addf %813, %816 : vector<1x256xf32>
    %818 = vector.extract_strided_slice %6 {offsets = [17, 0], sizes = [1, 256], strides = [1, 1]} : vector<25x256xf32> to vector<1x256xf32>
    %c240_i32_290 = arith.constant 240 : i32
    %819 = tpu.dynamic_rotate %751 by %c240_i32_290 dim 1 : vector<1x256xf32>, i32 -> vector<1x256xf32>
    %820 = arith.mulf %818, %819 : vector<1x256xf32>
    %821 = arith.addf %817, %820 : vector<1x256xf32>
    %822 = vector.extract_strided_slice %6 {offsets = [18, 0], sizes = [1, 256], strides = [1, 1]} : vector<25x256xf32> to vector<1x256xf32>
    %c239_i32_291 = arith.constant 239 : i32
    %823 = tpu.dynamic_rotate %751 by %c239_i32_291 dim 1 : vector<1x256xf32>, i32 -> vector<1x256xf32>
    %824 = arith.mulf %822, %823 : vector<1x256xf32>
    %825 = arith.addf %821, %824 : vector<1x256xf32>
    %826 = vector.extract_strided_slice %6 {offsets = [19, 0], sizes = [1, 256], strides = [1, 1]} : vector<25x256xf32> to vector<1x256xf32>
    %c238_i32_292 = arith.constant 238 : i32
    %827 = tpu.dynamic_rotate %751 by %c238_i32_292 dim 1 : vector<1x256xf32>, i32 -> vector<1x256xf32>
    %828 = arith.mulf %826, %827 : vector<1x256xf32>
    %829 = arith.addf %825, %828 : vector<1x256xf32>
    %830 = vector.extract_strided_slice %6 {offsets = [20, 0], sizes = [1, 256], strides = [1, 1]} : vector<25x256xf32> to vector<1x256xf32>
    %c226_i32_293 = arith.constant 226 : i32
    %831 = tpu.dynamic_rotate %751 by %c226_i32_293 dim 1 : vector<1x256xf32>, i32 -> vector<1x256xf32>
    %832 = arith.mulf %830, %831 : vector<1x256xf32>
    %833 = arith.addf %829, %832 : vector<1x256xf32>
    %834 = vector.extract_strided_slice %6 {offsets = [21, 0], sizes = [1, 256], strides = [1, 1]} : vector<25x256xf32> to vector<1x256xf32>
    %c225_i32_294 = arith.constant 225 : i32
    %835 = tpu.dynamic_rotate %751 by %c225_i32_294 dim 1 : vector<1x256xf32>, i32 -> vector<1x256xf32>
    %836 = arith.mulf %834, %835 : vector<1x256xf32>
    %837 = arith.addf %833, %836 : vector<1x256xf32>
    %838 = vector.extract_strided_slice %6 {offsets = [22, 0], sizes = [1, 256], strides = [1, 1]} : vector<25x256xf32> to vector<1x256xf32>
    %c224_i32_295 = arith.constant 224 : i32
    %839 = tpu.dynamic_rotate %751 by %c224_i32_295 dim 1 : vector<1x256xf32>, i32 -> vector<1x256xf32>
    %840 = arith.mulf %838, %839 : vector<1x256xf32>
    %841 = arith.addf %837, %840 : vector<1x256xf32>
    %842 = vector.extract_strided_slice %6 {offsets = [23, 0], sizes = [1, 256], strides = [1, 1]} : vector<25x256xf32> to vector<1x256xf32>
    %c223_i32_296 = arith.constant 223 : i32
    %843 = tpu.dynamic_rotate %751 by %c223_i32_296 dim 1 : vector<1x256xf32>, i32 -> vector<1x256xf32>
    %844 = arith.mulf %842, %843 : vector<1x256xf32>
    %845 = arith.addf %841, %844 : vector<1x256xf32>
    %846 = vector.extract_strided_slice %6 {offsets = [24, 0], sizes = [1, 256], strides = [1, 1]} : vector<25x256xf32> to vector<1x256xf32>
    %c222_i32_297 = arith.constant 222 : i32
    %847 = tpu.dynamic_rotate %751 by %c222_i32_297 dim 1 : vector<1x256xf32>, i32 -> vector<1x256xf32>
    %848 = arith.mulf %846, %847 : vector<1x256xf32>
    %849 = arith.addf %845, %848 : vector<1x256xf32>
    %850 = arith.mulf %751, %849 : vector<1x256xf32>
    %851 = vector.shape_cast %850 : vector<1x256xf32> to vector<1x1x256xf32>
    %cst_298 = arith.constant dense<0.000000e+00> : vector<1xf32>
    %852 = vector.multi_reduction <add>, %851, %cst_298 [1, 2] : vector<1x1x256xf32> to vector<1xf32>
    %853 = vector.shape_cast %852 : vector<1xf32> to vector<1x1x1xf32>
    %854 = vector.extract %853[0, 0, 0] : f32 from vector<1x1x1xf32>
    %855 = vector.broadcast %854 : f32 to vector<1x1xf32>
    %856 = arith.divf %745, %855 : vector<1x1xf32>
    %857 = vector.broadcast %856 : vector<1x1xf32> to vector<1x256xf32>
    %858 = arith.mulf %857, %751 : vector<1x256xf32>
    %859 = arith.addf %736, %858 : vector<1x256xf32>
    %860 = vector.broadcast %856 : vector<1x1xf32> to vector<1x256xf32>
    %861 = arith.mulf %860, %849 : vector<1x256xf32>
    %862 = arith.addf %739, %861 : vector<1x256xf32>
    %863 = arith.mulf %862, %862 : vector<1x256xf32>
    %864 = vector.shape_cast %863 : vector<1x256xf32> to vector<1x1x256xf32>
    %cst_299 = arith.constant dense<0.000000e+00> : vector<1xf32>
    %865 = vector.multi_reduction <add>, %864, %cst_299 [1, 2] : vector<1x1x256xf32> to vector<1xf32>
    %866 = vector.shape_cast %865 : vector<1xf32> to vector<1x1x1xf32>
    %867 = vector.extract %866[0, 0, 0] : f32 from vector<1x1x1xf32>
    %868 = vector.broadcast %867 : f32 to vector<1x1xf32>
    %cst_300 = arith.constant 0.000000e+00 : f32
    %869 = vector.broadcast %cst_300 : f32 to vector<1x256xf32>
    %870 = arith.subf %869, %862 : vector<1x256xf32>
    %871 = arith.divf %868, %745 : vector<1x1xf32>
    %872 = vector.broadcast %871 : vector<1x1xf32> to vector<1x256xf32>
    %873 = arith.mulf %872, %751 : vector<1x256xf32>
    %874 = arith.addf %870, %873 : vector<1x256xf32>
    %875 = vector.extract_strided_slice %6 {offsets = [0, 0], sizes = [1, 256], strides = [1, 1]} : vector<25x256xf32> to vector<1x256xf32>
    %c34_i32_301 = arith.constant 34 : i32
    %876 = tpu.dynamic_rotate %874 by %c34_i32_301 dim 1 : vector<1x256xf32>, i32 -> vector<1x256xf32>
    %877 = arith.mulf %875, %876 : vector<1x256xf32>
    %878 = vector.extract_strided_slice %6 {offsets = [1, 0], sizes = [1, 256], strides = [1, 1]} : vector<25x256xf32> to vector<1x256xf32>
    %c33_i32_302 = arith.constant 33 : i32
    %879 = tpu.dynamic_rotate %874 by %c33_i32_302 dim 1 : vector<1x256xf32>, i32 -> vector<1x256xf32>
    %880 = arith.mulf %878, %879 : vector<1x256xf32>
    %881 = arith.addf %877, %880 : vector<1x256xf32>
    %882 = vector.extract_strided_slice %6 {offsets = [2, 0], sizes = [1, 256], strides = [1, 1]} : vector<25x256xf32> to vector<1x256xf32>
    %c32_i32_303 = arith.constant 32 : i32
    %883 = tpu.dynamic_rotate %874 by %c32_i32_303 dim 1 : vector<1x256xf32>, i32 -> vector<1x256xf32>
    %884 = arith.mulf %882, %883 : vector<1x256xf32>
    %885 = arith.addf %881, %884 : vector<1x256xf32>
    %886 = vector.extract_strided_slice %6 {offsets = [3, 0], sizes = [1, 256], strides = [1, 1]} : vector<25x256xf32> to vector<1x256xf32>
    %c31_i32_304 = arith.constant 31 : i32
    %887 = tpu.dynamic_rotate %874 by %c31_i32_304 dim 1 : vector<1x256xf32>, i32 -> vector<1x256xf32>
    %888 = arith.mulf %886, %887 : vector<1x256xf32>
    %889 = arith.addf %885, %888 : vector<1x256xf32>
    %890 = vector.extract_strided_slice %6 {offsets = [4, 0], sizes = [1, 256], strides = [1, 1]} : vector<25x256xf32> to vector<1x256xf32>
    %c30_i32_305 = arith.constant 30 : i32
    %891 = tpu.dynamic_rotate %874 by %c30_i32_305 dim 1 : vector<1x256xf32>, i32 -> vector<1x256xf32>
    %892 = arith.mulf %890, %891 : vector<1x256xf32>
    %893 = arith.addf %889, %892 : vector<1x256xf32>
    %894 = vector.extract_strided_slice %6 {offsets = [5, 0], sizes = [1, 256], strides = [1, 1]} : vector<25x256xf32> to vector<1x256xf32>
    %c18_i32_306 = arith.constant 18 : i32
    %895 = tpu.dynamic_rotate %874 by %c18_i32_306 dim 1 : vector<1x256xf32>, i32 -> vector<1x256xf32>
    %896 = arith.mulf %894, %895 : vector<1x256xf32>
    %897 = arith.addf %893, %896 : vector<1x256xf32>
    %898 = vector.extract_strided_slice %6 {offsets = [6, 0], sizes = [1, 256], strides = [1, 1]} : vector<25x256xf32> to vector<1x256xf32>
    %c17_i32_307 = arith.constant 17 : i32
    %899 = tpu.dynamic_rotate %874 by %c17_i32_307 dim 1 : vector<1x256xf32>, i32 -> vector<1x256xf32>
    %900 = arith.mulf %898, %899 : vector<1x256xf32>
    %901 = arith.addf %897, %900 : vector<1x256xf32>
    %902 = vector.extract_strided_slice %6 {offsets = [7, 0], sizes = [1, 256], strides = [1, 1]} : vector<25x256xf32> to vector<1x256xf32>
    %c16_i32_308 = arith.constant 16 : i32
    %903 = tpu.dynamic_rotate %874 by %c16_i32_308 dim 1 : vector<1x256xf32>, i32 -> vector<1x256xf32>
    %904 = arith.mulf %902, %903 : vector<1x256xf32>
    %905 = arith.addf %901, %904 : vector<1x256xf32>
    %906 = vector.extract_strided_slice %6 {offsets = [8, 0], sizes = [1, 256], strides = [1, 1]} : vector<25x256xf32> to vector<1x256xf32>
    %c15_i32_309 = arith.constant 15 : i32
    %907 = tpu.dynamic_rotate %874 by %c15_i32_309 dim 1 : vector<1x256xf32>, i32 -> vector<1x256xf32>
    %908 = arith.mulf %906, %907 : vector<1x256xf32>
    %909 = arith.addf %905, %908 : vector<1x256xf32>
    %910 = vector.extract_strided_slice %6 {offsets = [9, 0], sizes = [1, 256], strides = [1, 1]} : vector<25x256xf32> to vector<1x256xf32>
    %c14_i32_310 = arith.constant 14 : i32
    %911 = tpu.dynamic_rotate %874 by %c14_i32_310 dim 1 : vector<1x256xf32>, i32 -> vector<1x256xf32>
    %912 = arith.mulf %910, %911 : vector<1x256xf32>
    %913 = arith.addf %909, %912 : vector<1x256xf32>
    %914 = vector.extract_strided_slice %6 {offsets = [10, 0], sizes = [1, 256], strides = [1, 1]} : vector<25x256xf32> to vector<1x256xf32>
    %c2_i32_311 = arith.constant 2 : i32
    %915 = tpu.dynamic_rotate %874 by %c2_i32_311 dim 1 : vector<1x256xf32>, i32 -> vector<1x256xf32>
    %916 = arith.mulf %914, %915 : vector<1x256xf32>
    %917 = arith.addf %913, %916 : vector<1x256xf32>
    %918 = vector.extract_strided_slice %6 {offsets = [11, 0], sizes = [1, 256], strides = [1, 1]} : vector<25x256xf32> to vector<1x256xf32>
    %c1_i32_312 = arith.constant 1 : i32
    %919 = tpu.dynamic_rotate %874 by %c1_i32_312 dim 1 : vector<1x256xf32>, i32 -> vector<1x256xf32>
    %920 = arith.mulf %918, %919 : vector<1x256xf32>
    %921 = arith.addf %917, %920 : vector<1x256xf32>
    %922 = vector.extract_strided_slice %6 {offsets = [12, 0], sizes = [1, 256], strides = [1, 1]} : vector<25x256xf32> to vector<1x256xf32>
    %923 = arith.mulf %922, %874 : vector<1x256xf32>
    %924 = arith.addf %921, %923 : vector<1x256xf32>
    %925 = vector.extract_strided_slice %6 {offsets = [13, 0], sizes = [1, 256], strides = [1, 1]} : vector<25x256xf32> to vector<1x256xf32>
    %c255_i32_313 = arith.constant 255 : i32
    %926 = tpu.dynamic_rotate %874 by %c255_i32_313 dim 1 : vector<1x256xf32>, i32 -> vector<1x256xf32>
    %927 = arith.mulf %925, %926 : vector<1x256xf32>
    %928 = arith.addf %924, %927 : vector<1x256xf32>
    %929 = vector.extract_strided_slice %6 {offsets = [14, 0], sizes = [1, 256], strides = [1, 1]} : vector<25x256xf32> to vector<1x256xf32>
    %c254_i32_314 = arith.constant 254 : i32
    %930 = tpu.dynamic_rotate %874 by %c254_i32_314 dim 1 : vector<1x256xf32>, i32 -> vector<1x256xf32>
    %931 = arith.mulf %929, %930 : vector<1x256xf32>
    %932 = arith.addf %928, %931 : vector<1x256xf32>
    %933 = vector.extract_strided_slice %6 {offsets = [15, 0], sizes = [1, 256], strides = [1, 1]} : vector<25x256xf32> to vector<1x256xf32>
    %c242_i32_315 = arith.constant 242 : i32
    %934 = tpu.dynamic_rotate %874 by %c242_i32_315 dim 1 : vector<1x256xf32>, i32 -> vector<1x256xf32>
    %935 = arith.mulf %933, %934 : vector<1x256xf32>
    %936 = arith.addf %932, %935 : vector<1x256xf32>
    %937 = vector.extract_strided_slice %6 {offsets = [16, 0], sizes = [1, 256], strides = [1, 1]} : vector<25x256xf32> to vector<1x256xf32>
    %c241_i32_316 = arith.constant 241 : i32
    %938 = tpu.dynamic_rotate %874 by %c241_i32_316 dim 1 : vector<1x256xf32>, i32 -> vector<1x256xf32>
    %939 = arith.mulf %937, %938 : vector<1x256xf32>
    %940 = arith.addf %936, %939 : vector<1x256xf32>
    %941 = vector.extract_strided_slice %6 {offsets = [17, 0], sizes = [1, 256], strides = [1, 1]} : vector<25x256xf32> to vector<1x256xf32>
    %c240_i32_317 = arith.constant 240 : i32
    %942 = tpu.dynamic_rotate %874 by %c240_i32_317 dim 1 : vector<1x256xf32>, i32 -> vector<1x256xf32>
    %943 = arith.mulf %941, %942 : vector<1x256xf32>
    %944 = arith.addf %940, %943 : vector<1x256xf32>
    %945 = vector.extract_strided_slice %6 {offsets = [18, 0], sizes = [1, 256], strides = [1, 1]} : vector<25x256xf32> to vector<1x256xf32>
    %c239_i32_318 = arith.constant 239 : i32
    %946 = tpu.dynamic_rotate %874 by %c239_i32_318 dim 1 : vector<1x256xf32>, i32 -> vector<1x256xf32>
    %947 = arith.mulf %945, %946 : vector<1x256xf32>
    %948 = arith.addf %944, %947 : vector<1x256xf32>
    %949 = vector.extract_strided_slice %6 {offsets = [19, 0], sizes = [1, 256], strides = [1, 1]} : vector<25x256xf32> to vector<1x256xf32>
    %c238_i32_319 = arith.constant 238 : i32
    %950 = tpu.dynamic_rotate %874 by %c238_i32_319 dim 1 : vector<1x256xf32>, i32 -> vector<1x256xf32>
    %951 = arith.mulf %949, %950 : vector<1x256xf32>
    %952 = arith.addf %948, %951 : vector<1x256xf32>
    %953 = vector.extract_strided_slice %6 {offsets = [20, 0], sizes = [1, 256], strides = [1, 1]} : vector<25x256xf32> to vector<1x256xf32>
    %c226_i32_320 = arith.constant 226 : i32
    %954 = tpu.dynamic_rotate %874 by %c226_i32_320 dim 1 : vector<1x256xf32>, i32 -> vector<1x256xf32>
    %955 = arith.mulf %953, %954 : vector<1x256xf32>
    %956 = arith.addf %952, %955 : vector<1x256xf32>
    %957 = vector.extract_strided_slice %6 {offsets = [21, 0], sizes = [1, 256], strides = [1, 1]} : vector<25x256xf32> to vector<1x256xf32>
    %c225_i32_321 = arith.constant 225 : i32
    %958 = tpu.dynamic_rotate %874 by %c225_i32_321 dim 1 : vector<1x256xf32>, i32 -> vector<1x256xf32>
    %959 = arith.mulf %957, %958 : vector<1x256xf32>
    %960 = arith.addf %956, %959 : vector<1x256xf32>
    %961 = vector.extract_strided_slice %6 {offsets = [22, 0], sizes = [1, 256], strides = [1, 1]} : vector<25x256xf32> to vector<1x256xf32>
    %c224_i32_322 = arith.constant 224 : i32
    %962 = tpu.dynamic_rotate %874 by %c224_i32_322 dim 1 : vector<1x256xf32>, i32 -> vector<1x256xf32>
    %963 = arith.mulf %961, %962 : vector<1x256xf32>
    %964 = arith.addf %960, %963 : vector<1x256xf32>
    %965 = vector.extract_strided_slice %6 {offsets = [23, 0], sizes = [1, 256], strides = [1, 1]} : vector<25x256xf32> to vector<1x256xf32>
    %c223_i32_323 = arith.constant 223 : i32
    %966 = tpu.dynamic_rotate %874 by %c223_i32_323 dim 1 : vector<1x256xf32>, i32 -> vector<1x256xf32>
    %967 = arith.mulf %965, %966 : vector<1x256xf32>
    %968 = arith.addf %964, %967 : vector<1x256xf32>
    %969 = vector.extract_strided_slice %6 {offsets = [24, 0], sizes = [1, 256], strides = [1, 1]} : vector<25x256xf32> to vector<1x256xf32>
    %c222_i32_324 = arith.constant 222 : i32
    %970 = tpu.dynamic_rotate %874 by %c222_i32_324 dim 1 : vector<1x256xf32>, i32 -> vector<1x256xf32>
    %971 = arith.mulf %969, %970 : vector<1x256xf32>
    %972 = arith.addf %968, %971 : vector<1x256xf32>
    %973 = arith.mulf %874, %972 : vector<1x256xf32>
    %974 = vector.shape_cast %973 : vector<1x256xf32> to vector<1x1x256xf32>
    %cst_325 = arith.constant dense<0.000000e+00> : vector<1xf32>
    %975 = vector.multi_reduction <add>, %974, %cst_325 [1, 2] : vector<1x1x256xf32> to vector<1xf32>
    %976 = vector.shape_cast %975 : vector<1xf32> to vector<1x1x1xf32>
    %977 = vector.extract %976[0, 0, 0] : f32 from vector<1x1x1xf32>
    %978 = vector.broadcast %977 : f32 to vector<1x1xf32>
    %979 = arith.divf %868, %978 : vector<1x1xf32>
    %980 = vector.broadcast %979 : vector<1x1xf32> to vector<1x256xf32>
    %981 = arith.mulf %980, %874 : vector<1x256xf32>
    %982 = arith.addf %859, %981 : vector<1x256xf32>
    %983 = vector.broadcast %979 : vector<1x1xf32> to vector<1x256xf32>
    %984 = arith.mulf %983, %972 : vector<1x256xf32>
    %985 = arith.addf %862, %984 : vector<1x256xf32>
    %986 = arith.mulf %985, %985 : vector<1x256xf32>
    %987 = vector.shape_cast %986 : vector<1x256xf32> to vector<1x1x256xf32>
    %cst_326 = arith.constant dense<0.000000e+00> : vector<1xf32>
    %988 = vector.multi_reduction <add>, %987, %cst_326 [1, 2] : vector<1x1x256xf32> to vector<1xf32>
    %989 = vector.shape_cast %988 : vector<1xf32> to vector<1x1x1xf32>
    %990 = vector.extract %989[0, 0, 0] : f32 from vector<1x1x1xf32>
    %991 = vector.broadcast %990 : f32 to vector<1x1xf32>
    %cst_327 = arith.constant 0.000000e+00 : f32
    %992 = vector.broadcast %cst_327 : f32 to vector<1x256xf32>
    %993 = arith.subf %992, %985 : vector<1x256xf32>
    %994 = arith.divf %991, %868 : vector<1x1xf32>
    %995 = vector.broadcast %994 : vector<1x1xf32> to vector<1x256xf32>
    %996 = arith.mulf %995, %874 : vector<1x256xf32>
    %997 = arith.addf %993, %996 : vector<1x256xf32>
    %998 = vector.extract_strided_slice %6 {offsets = [0, 0], sizes = [1, 256], strides = [1, 1]} : vector<25x256xf32> to vector<1x256xf32>
    %c34_i32_328 = arith.constant 34 : i32
    %999 = tpu.dynamic_rotate %997 by %c34_i32_328 dim 1 : vector<1x256xf32>, i32 -> vector<1x256xf32>
    %1000 = arith.mulf %998, %999 : vector<1x256xf32>
    %1001 = vector.extract_strided_slice %6 {offsets = [1, 0], sizes = [1, 256], strides = [1, 1]} : vector<25x256xf32> to vector<1x256xf32>
    %c33_i32_329 = arith.constant 33 : i32
    %1002 = tpu.dynamic_rotate %997 by %c33_i32_329 dim 1 : vector<1x256xf32>, i32 -> vector<1x256xf32>
    %1003 = arith.mulf %1001, %1002 : vector<1x256xf32>
    %1004 = arith.addf %1000, %1003 : vector<1x256xf32>
    %1005 = vector.extract_strided_slice %6 {offsets = [2, 0], sizes = [1, 256], strides = [1, 1]} : vector<25x256xf32> to vector<1x256xf32>
    %c32_i32_330 = arith.constant 32 : i32
    %1006 = tpu.dynamic_rotate %997 by %c32_i32_330 dim 1 : vector<1x256xf32>, i32 -> vector<1x256xf32>
    %1007 = arith.mulf %1005, %1006 : vector<1x256xf32>
    %1008 = arith.addf %1004, %1007 : vector<1x256xf32>
    %1009 = vector.extract_strided_slice %6 {offsets = [3, 0], sizes = [1, 256], strides = [1, 1]} : vector<25x256xf32> to vector<1x256xf32>
    %c31_i32_331 = arith.constant 31 : i32
    %1010 = tpu.dynamic_rotate %997 by %c31_i32_331 dim 1 : vector<1x256xf32>, i32 -> vector<1x256xf32>
    %1011 = arith.mulf %1009, %1010 : vector<1x256xf32>
    %1012 = arith.addf %1008, %1011 : vector<1x256xf32>
    %1013 = vector.extract_strided_slice %6 {offsets = [4, 0], sizes = [1, 256], strides = [1, 1]} : vector<25x256xf32> to vector<1x256xf32>
    %c30_i32_332 = arith.constant 30 : i32
    %1014 = tpu.dynamic_rotate %997 by %c30_i32_332 dim 1 : vector<1x256xf32>, i32 -> vector<1x256xf32>
    %1015 = arith.mulf %1013, %1014 : vector<1x256xf32>
    %1016 = arith.addf %1012, %1015 : vector<1x256xf32>
    %1017 = vector.extract_strided_slice %6 {offsets = [5, 0], sizes = [1, 256], strides = [1, 1]} : vector<25x256xf32> to vector<1x256xf32>
    %c18_i32_333 = arith.constant 18 : i32
    %1018 = tpu.dynamic_rotate %997 by %c18_i32_333 dim 1 : vector<1x256xf32>, i32 -> vector<1x256xf32>
    %1019 = arith.mulf %1017, %1018 : vector<1x256xf32>
    %1020 = arith.addf %1016, %1019 : vector<1x256xf32>
    %1021 = vector.extract_strided_slice %6 {offsets = [6, 0], sizes = [1, 256], strides = [1, 1]} : vector<25x256xf32> to vector<1x256xf32>
    %c17_i32_334 = arith.constant 17 : i32
    %1022 = tpu.dynamic_rotate %997 by %c17_i32_334 dim 1 : vector<1x256xf32>, i32 -> vector<1x256xf32>
    %1023 = arith.mulf %1021, %1022 : vector<1x256xf32>
    %1024 = arith.addf %1020, %1023 : vector<1x256xf32>
    %1025 = vector.extract_strided_slice %6 {offsets = [7, 0], sizes = [1, 256], strides = [1, 1]} : vector<25x256xf32> to vector<1x256xf32>
    %c16_i32_335 = arith.constant 16 : i32
    %1026 = tpu.dynamic_rotate %997 by %c16_i32_335 dim 1 : vector<1x256xf32>, i32 -> vector<1x256xf32>
    %1027 = arith.mulf %1025, %1026 : vector<1x256xf32>
    %1028 = arith.addf %1024, %1027 : vector<1x256xf32>
    %1029 = vector.extract_strided_slice %6 {offsets = [8, 0], sizes = [1, 256], strides = [1, 1]} : vector<25x256xf32> to vector<1x256xf32>
    %c15_i32_336 = arith.constant 15 : i32
    %1030 = tpu.dynamic_rotate %997 by %c15_i32_336 dim 1 : vector<1x256xf32>, i32 -> vector<1x256xf32>
    %1031 = arith.mulf %1029, %1030 : vector<1x256xf32>
    %1032 = arith.addf %1028, %1031 : vector<1x256xf32>
    %1033 = vector.extract_strided_slice %6 {offsets = [9, 0], sizes = [1, 256], strides = [1, 1]} : vector<25x256xf32> to vector<1x256xf32>
    %c14_i32_337 = arith.constant 14 : i32
    %1034 = tpu.dynamic_rotate %997 by %c14_i32_337 dim 1 : vector<1x256xf32>, i32 -> vector<1x256xf32>
    %1035 = arith.mulf %1033, %1034 : vector<1x256xf32>
    %1036 = arith.addf %1032, %1035 : vector<1x256xf32>
    %1037 = vector.extract_strided_slice %6 {offsets = [10, 0], sizes = [1, 256], strides = [1, 1]} : vector<25x256xf32> to vector<1x256xf32>
    %c2_i32_338 = arith.constant 2 : i32
    %1038 = tpu.dynamic_rotate %997 by %c2_i32_338 dim 1 : vector<1x256xf32>, i32 -> vector<1x256xf32>
    %1039 = arith.mulf %1037, %1038 : vector<1x256xf32>
    %1040 = arith.addf %1036, %1039 : vector<1x256xf32>
    %1041 = vector.extract_strided_slice %6 {offsets = [11, 0], sizes = [1, 256], strides = [1, 1]} : vector<25x256xf32> to vector<1x256xf32>
    %c1_i32_339 = arith.constant 1 : i32
    %1042 = tpu.dynamic_rotate %997 by %c1_i32_339 dim 1 : vector<1x256xf32>, i32 -> vector<1x256xf32>
    %1043 = arith.mulf %1041, %1042 : vector<1x256xf32>
    %1044 = arith.addf %1040, %1043 : vector<1x256xf32>
    %1045 = vector.extract_strided_slice %6 {offsets = [12, 0], sizes = [1, 256], strides = [1, 1]} : vector<25x256xf32> to vector<1x256xf32>
    %1046 = arith.mulf %1045, %997 : vector<1x256xf32>
    %1047 = arith.addf %1044, %1046 : vector<1x256xf32>
    %1048 = vector.extract_strided_slice %6 {offsets = [13, 0], sizes = [1, 256], strides = [1, 1]} : vector<25x256xf32> to vector<1x256xf32>
    %c255_i32_340 = arith.constant 255 : i32
    %1049 = tpu.dynamic_rotate %997 by %c255_i32_340 dim 1 : vector<1x256xf32>, i32 -> vector<1x256xf32>
    %1050 = arith.mulf %1048, %1049 : vector<1x256xf32>
    %1051 = arith.addf %1047, %1050 : vector<1x256xf32>
    %1052 = vector.extract_strided_slice %6 {offsets = [14, 0], sizes = [1, 256], strides = [1, 1]} : vector<25x256xf32> to vector<1x256xf32>
    %c254_i32_341 = arith.constant 254 : i32
    %1053 = tpu.dynamic_rotate %997 by %c254_i32_341 dim 1 : vector<1x256xf32>, i32 -> vector<1x256xf32>
    %1054 = arith.mulf %1052, %1053 : vector<1x256xf32>
    %1055 = arith.addf %1051, %1054 : vector<1x256xf32>
    %1056 = vector.extract_strided_slice %6 {offsets = [15, 0], sizes = [1, 256], strides = [1, 1]} : vector<25x256xf32> to vector<1x256xf32>
    %c242_i32_342 = arith.constant 242 : i32
    %1057 = tpu.dynamic_rotate %997 by %c242_i32_342 dim 1 : vector<1x256xf32>, i32 -> vector<1x256xf32>
    %1058 = arith.mulf %1056, %1057 : vector<1x256xf32>
    %1059 = arith.addf %1055, %1058 : vector<1x256xf32>
    %1060 = vector.extract_strided_slice %6 {offsets = [16, 0], sizes = [1, 256], strides = [1, 1]} : vector<25x256xf32> to vector<1x256xf32>
    %c241_i32_343 = arith.constant 241 : i32
    %1061 = tpu.dynamic_rotate %997 by %c241_i32_343 dim 1 : vector<1x256xf32>, i32 -> vector<1x256xf32>
    %1062 = arith.mulf %1060, %1061 : vector<1x256xf32>
    %1063 = arith.addf %1059, %1062 : vector<1x256xf32>
    %1064 = vector.extract_strided_slice %6 {offsets = [17, 0], sizes = [1, 256], strides = [1, 1]} : vector<25x256xf32> to vector<1x256xf32>
    %c240_i32_344 = arith.constant 240 : i32
    %1065 = tpu.dynamic_rotate %997 by %c240_i32_344 dim 1 : vector<1x256xf32>, i32 -> vector<1x256xf32>
    %1066 = arith.mulf %1064, %1065 : vector<1x256xf32>
    %1067 = arith.addf %1063, %1066 : vector<1x256xf32>
    %1068 = vector.extract_strided_slice %6 {offsets = [18, 0], sizes = [1, 256], strides = [1, 1]} : vector<25x256xf32> to vector<1x256xf32>
    %c239_i32_345 = arith.constant 239 : i32
    %1069 = tpu.dynamic_rotate %997 by %c239_i32_345 dim 1 : vector<1x256xf32>, i32 -> vector<1x256xf32>
    %1070 = arith.mulf %1068, %1069 : vector<1x256xf32>
    %1071 = arith.addf %1067, %1070 : vector<1x256xf32>
    %1072 = vector.extract_strided_slice %6 {offsets = [19, 0], sizes = [1, 256], strides = [1, 1]} : vector<25x256xf32> to vector<1x256xf32>
    %c238_i32_346 = arith.constant 238 : i32
    %1073 = tpu.dynamic_rotate %997 by %c238_i32_346 dim 1 : vector<1x256xf32>, i32 -> vector<1x256xf32>
    %1074 = arith.mulf %1072, %1073 : vector<1x256xf32>
    %1075 = arith.addf %1071, %1074 : vector<1x256xf32>
    %1076 = vector.extract_strided_slice %6 {offsets = [20, 0], sizes = [1, 256], strides = [1, 1]} : vector<25x256xf32> to vector<1x256xf32>
    %c226_i32_347 = arith.constant 226 : i32
    %1077 = tpu.dynamic_rotate %997 by %c226_i32_347 dim 1 : vector<1x256xf32>, i32 -> vector<1x256xf32>
    %1078 = arith.mulf %1076, %1077 : vector<1x256xf32>
    %1079 = arith.addf %1075, %1078 : vector<1x256xf32>
    %1080 = vector.extract_strided_slice %6 {offsets = [21, 0], sizes = [1, 256], strides = [1, 1]} : vector<25x256xf32> to vector<1x256xf32>
    %c225_i32_348 = arith.constant 225 : i32
    %1081 = tpu.dynamic_rotate %997 by %c225_i32_348 dim 1 : vector<1x256xf32>, i32 -> vector<1x256xf32>
    %1082 = arith.mulf %1080, %1081 : vector<1x256xf32>
    %1083 = arith.addf %1079, %1082 : vector<1x256xf32>
    %1084 = vector.extract_strided_slice %6 {offsets = [22, 0], sizes = [1, 256], strides = [1, 1]} : vector<25x256xf32> to vector<1x256xf32>
    %c224_i32_349 = arith.constant 224 : i32
    %1085 = tpu.dynamic_rotate %997 by %c224_i32_349 dim 1 : vector<1x256xf32>, i32 -> vector<1x256xf32>
    %1086 = arith.mulf %1084, %1085 : vector<1x256xf32>
    %1087 = arith.addf %1083, %1086 : vector<1x256xf32>
    %1088 = vector.extract_strided_slice %6 {offsets = [23, 0], sizes = [1, 256], strides = [1, 1]} : vector<25x256xf32> to vector<1x256xf32>
    %c223_i32_350 = arith.constant 223 : i32
    %1089 = tpu.dynamic_rotate %997 by %c223_i32_350 dim 1 : vector<1x256xf32>, i32 -> vector<1x256xf32>
    %1090 = arith.mulf %1088, %1089 : vector<1x256xf32>
    %1091 = arith.addf %1087, %1090 : vector<1x256xf32>
    %1092 = vector.extract_strided_slice %6 {offsets = [24, 0], sizes = [1, 256], strides = [1, 1]} : vector<25x256xf32> to vector<1x256xf32>
    %c222_i32_351 = arith.constant 222 : i32
    %1093 = tpu.dynamic_rotate %997 by %c222_i32_351 dim 1 : vector<1x256xf32>, i32 -> vector<1x256xf32>
    %1094 = arith.mulf %1092, %1093 : vector<1x256xf32>
    %1095 = arith.addf %1091, %1094 : vector<1x256xf32>
    %1096 = arith.mulf %997, %1095 : vector<1x256xf32>
    %1097 = vector.shape_cast %1096 : vector<1x256xf32> to vector<1x1x256xf32>
    %cst_352 = arith.constant dense<0.000000e+00> : vector<1xf32>
    %1098 = vector.multi_reduction <add>, %1097, %cst_352 [1, 2] : vector<1x1x256xf32> to vector<1xf32>
    %1099 = vector.shape_cast %1098 : vector<1xf32> to vector<1x1x1xf32>
    %1100 = vector.extract %1099[0, 0, 0] : f32 from vector<1x1x1xf32>
    %1101 = vector.broadcast %1100 : f32 to vector<1x1xf32>
    %1102 = arith.divf %991, %1101 : vector<1x1xf32>
    %1103 = vector.broadcast %1102 : vector<1x1xf32> to vector<1x256xf32>
    %1104 = arith.mulf %1103, %997 : vector<1x256xf32>
    %1105 = arith.addf %982, %1104 : vector<1x256xf32>
    %1106 = vector.broadcast %1102 : vector<1x1xf32> to vector<1x256xf32>
    %1107 = arith.mulf %1106, %1095 : vector<1x256xf32>
    %1108 = arith.addf %985, %1107 : vector<1x256xf32>
    %1109 = arith.mulf %1108, %1108 : vector<1x256xf32>
    %1110 = vector.shape_cast %1109 : vector<1x256xf32> to vector<1x1x256xf32>
    %cst_353 = arith.constant dense<0.000000e+00> : vector<1xf32>
    %1111 = vector.multi_reduction <add>, %1110, %cst_353 [1, 2] : vector<1x1x256xf32> to vector<1xf32>
    %1112 = vector.shape_cast %1111 : vector<1xf32> to vector<1x1x1xf32>
    %1113 = vector.extract %1112[0, 0, 0] : f32 from vector<1x1x1xf32>
    %1114 = vector.broadcast %1113 : f32 to vector<1x1xf32>
    %cst_354 = arith.constant 0.000000e+00 : f32
    %1115 = vector.broadcast %cst_354 : f32 to vector<1x256xf32>
    %1116 = arith.subf %1115, %1108 : vector<1x256xf32>
    %1117 = arith.divf %1114, %991 : vector<1x1xf32>
    %1118 = vector.broadcast %1117 : vector<1x1xf32> to vector<1x256xf32>
    %1119 = arith.mulf %1118, %997 : vector<1x256xf32>
    %1120 = arith.addf %1116, %1119 : vector<1x256xf32>
    %1121 = vector.extract_strided_slice %6 {offsets = [0, 0], sizes = [1, 256], strides = [1, 1]} : vector<25x256xf32> to vector<1x256xf32>
    %c34_i32_355 = arith.constant 34 : i32
    %1122 = tpu.dynamic_rotate %1120 by %c34_i32_355 dim 1 : vector<1x256xf32>, i32 -> vector<1x256xf32>
    %1123 = arith.mulf %1121, %1122 : vector<1x256xf32>
    %1124 = vector.extract_strided_slice %6 {offsets = [1, 0], sizes = [1, 256], strides = [1, 1]} : vector<25x256xf32> to vector<1x256xf32>
    %c33_i32_356 = arith.constant 33 : i32
    %1125 = tpu.dynamic_rotate %1120 by %c33_i32_356 dim 1 : vector<1x256xf32>, i32 -> vector<1x256xf32>
    %1126 = arith.mulf %1124, %1125 : vector<1x256xf32>
    %1127 = arith.addf %1123, %1126 : vector<1x256xf32>
    %1128 = vector.extract_strided_slice %6 {offsets = [2, 0], sizes = [1, 256], strides = [1, 1]} : vector<25x256xf32> to vector<1x256xf32>
    %c32_i32_357 = arith.constant 32 : i32
    %1129 = tpu.dynamic_rotate %1120 by %c32_i32_357 dim 1 : vector<1x256xf32>, i32 -> vector<1x256xf32>
    %1130 = arith.mulf %1128, %1129 : vector<1x256xf32>
    %1131 = arith.addf %1127, %1130 : vector<1x256xf32>
    %1132 = vector.extract_strided_slice %6 {offsets = [3, 0], sizes = [1, 256], strides = [1, 1]} : vector<25x256xf32> to vector<1x256xf32>
    %c31_i32_358 = arith.constant 31 : i32
    %1133 = tpu.dynamic_rotate %1120 by %c31_i32_358 dim 1 : vector<1x256xf32>, i32 -> vector<1x256xf32>
    %1134 = arith.mulf %1132, %1133 : vector<1x256xf32>
    %1135 = arith.addf %1131, %1134 : vector<1x256xf32>
    %1136 = vector.extract_strided_slice %6 {offsets = [4, 0], sizes = [1, 256], strides = [1, 1]} : vector<25x256xf32> to vector<1x256xf32>
    %c30_i32_359 = arith.constant 30 : i32
    %1137 = tpu.dynamic_rotate %1120 by %c30_i32_359 dim 1 : vector<1x256xf32>, i32 -> vector<1x256xf32>
    %1138 = arith.mulf %1136, %1137 : vector<1x256xf32>
    %1139 = arith.addf %1135, %1138 : vector<1x256xf32>
    %1140 = vector.extract_strided_slice %6 {offsets = [5, 0], sizes = [1, 256], strides = [1, 1]} : vector<25x256xf32> to vector<1x256xf32>
    %c18_i32_360 = arith.constant 18 : i32
    %1141 = tpu.dynamic_rotate %1120 by %c18_i32_360 dim 1 : vector<1x256xf32>, i32 -> vector<1x256xf32>
    %1142 = arith.mulf %1140, %1141 : vector<1x256xf32>
    %1143 = arith.addf %1139, %1142 : vector<1x256xf32>
    %1144 = vector.extract_strided_slice %6 {offsets = [6, 0], sizes = [1, 256], strides = [1, 1]} : vector<25x256xf32> to vector<1x256xf32>
    %c17_i32_361 = arith.constant 17 : i32
    %1145 = tpu.dynamic_rotate %1120 by %c17_i32_361 dim 1 : vector<1x256xf32>, i32 -> vector<1x256xf32>
    %1146 = arith.mulf %1144, %1145 : vector<1x256xf32>
    %1147 = arith.addf %1143, %1146 : vector<1x256xf32>
    %1148 = vector.extract_strided_slice %6 {offsets = [7, 0], sizes = [1, 256], strides = [1, 1]} : vector<25x256xf32> to vector<1x256xf32>
    %c16_i32_362 = arith.constant 16 : i32
    %1149 = tpu.dynamic_rotate %1120 by %c16_i32_362 dim 1 : vector<1x256xf32>, i32 -> vector<1x256xf32>
    %1150 = arith.mulf %1148, %1149 : vector<1x256xf32>
    %1151 = arith.addf %1147, %1150 : vector<1x256xf32>
    %1152 = vector.extract_strided_slice %6 {offsets = [8, 0], sizes = [1, 256], strides = [1, 1]} : vector<25x256xf32> to vector<1x256xf32>
    %c15_i32_363 = arith.constant 15 : i32
    %1153 = tpu.dynamic_rotate %1120 by %c15_i32_363 dim 1 : vector<1x256xf32>, i32 -> vector<1x256xf32>
    %1154 = arith.mulf %1152, %1153 : vector<1x256xf32>
    %1155 = arith.addf %1151, %1154 : vector<1x256xf32>
    %1156 = vector.extract_strided_slice %6 {offsets = [9, 0], sizes = [1, 256], strides = [1, 1]} : vector<25x256xf32> to vector<1x256xf32>
    %c14_i32_364 = arith.constant 14 : i32
    %1157 = tpu.dynamic_rotate %1120 by %c14_i32_364 dim 1 : vector<1x256xf32>, i32 -> vector<1x256xf32>
    %1158 = arith.mulf %1156, %1157 : vector<1x256xf32>
    %1159 = arith.addf %1155, %1158 : vector<1x256xf32>
    %1160 = vector.extract_strided_slice %6 {offsets = [10, 0], sizes = [1, 256], strides = [1, 1]} : vector<25x256xf32> to vector<1x256xf32>
    %c2_i32_365 = arith.constant 2 : i32
    %1161 = tpu.dynamic_rotate %1120 by %c2_i32_365 dim 1 : vector<1x256xf32>, i32 -> vector<1x256xf32>
    %1162 = arith.mulf %1160, %1161 : vector<1x256xf32>
    %1163 = arith.addf %1159, %1162 : vector<1x256xf32>
    %1164 = vector.extract_strided_slice %6 {offsets = [11, 0], sizes = [1, 256], strides = [1, 1]} : vector<25x256xf32> to vector<1x256xf32>
    %c1_i32_366 = arith.constant 1 : i32
    %1165 = tpu.dynamic_rotate %1120 by %c1_i32_366 dim 1 : vector<1x256xf32>, i32 -> vector<1x256xf32>
    %1166 = arith.mulf %1164, %1165 : vector<1x256xf32>
    %1167 = arith.addf %1163, %1166 : vector<1x256xf32>
    %1168 = vector.extract_strided_slice %6 {offsets = [12, 0], sizes = [1, 256], strides = [1, 1]} : vector<25x256xf32> to vector<1x256xf32>
    %1169 = arith.mulf %1168, %1120 : vector<1x256xf32>
    %1170 = arith.addf %1167, %1169 : vector<1x256xf32>
    %1171 = vector.extract_strided_slice %6 {offsets = [13, 0], sizes = [1, 256], strides = [1, 1]} : vector<25x256xf32> to vector<1x256xf32>
    %c255_i32_367 = arith.constant 255 : i32
    %1172 = tpu.dynamic_rotate %1120 by %c255_i32_367 dim 1 : vector<1x256xf32>, i32 -> vector<1x256xf32>
    %1173 = arith.mulf %1171, %1172 : vector<1x256xf32>
    %1174 = arith.addf %1170, %1173 : vector<1x256xf32>
    %1175 = vector.extract_strided_slice %6 {offsets = [14, 0], sizes = [1, 256], strides = [1, 1]} : vector<25x256xf32> to vector<1x256xf32>
    %c254_i32_368 = arith.constant 254 : i32
    %1176 = tpu.dynamic_rotate %1120 by %c254_i32_368 dim 1 : vector<1x256xf32>, i32 -> vector<1x256xf32>
    %1177 = arith.mulf %1175, %1176 : vector<1x256xf32>
    %1178 = arith.addf %1174, %1177 : vector<1x256xf32>
    %1179 = vector.extract_strided_slice %6 {offsets = [15, 0], sizes = [1, 256], strides = [1, 1]} : vector<25x256xf32> to vector<1x256xf32>
    %c242_i32_369 = arith.constant 242 : i32
    %1180 = tpu.dynamic_rotate %1120 by %c242_i32_369 dim 1 : vector<1x256xf32>, i32 -> vector<1x256xf32>
    %1181 = arith.mulf %1179, %1180 : vector<1x256xf32>
    %1182 = arith.addf %1178, %1181 : vector<1x256xf32>
    %1183 = vector.extract_strided_slice %6 {offsets = [16, 0], sizes = [1, 256], strides = [1, 1]} : vector<25x256xf32> to vector<1x256xf32>
    %c241_i32_370 = arith.constant 241 : i32
    %1184 = tpu.dynamic_rotate %1120 by %c241_i32_370 dim 1 : vector<1x256xf32>, i32 -> vector<1x256xf32>
    %1185 = arith.mulf %1183, %1184 : vector<1x256xf32>
    %1186 = arith.addf %1182, %1185 : vector<1x256xf32>
    %1187 = vector.extract_strided_slice %6 {offsets = [17, 0], sizes = [1, 256], strides = [1, 1]} : vector<25x256xf32> to vector<1x256xf32>
    %c240_i32_371 = arith.constant 240 : i32
    %1188 = tpu.dynamic_rotate %1120 by %c240_i32_371 dim 1 : vector<1x256xf32>, i32 -> vector<1x256xf32>
    %1189 = arith.mulf %1187, %1188 : vector<1x256xf32>
    %1190 = arith.addf %1186, %1189 : vector<1x256xf32>
    %1191 = vector.extract_strided_slice %6 {offsets = [18, 0], sizes = [1, 256], strides = [1, 1]} : vector<25x256xf32> to vector<1x256xf32>
    %c239_i32_372 = arith.constant 239 : i32
    %1192 = tpu.dynamic_rotate %1120 by %c239_i32_372 dim 1 : vector<1x256xf32>, i32 -> vector<1x256xf32>
    %1193 = arith.mulf %1191, %1192 : vector<1x256xf32>
    %1194 = arith.addf %1190, %1193 : vector<1x256xf32>
    %1195 = vector.extract_strided_slice %6 {offsets = [19, 0], sizes = [1, 256], strides = [1, 1]} : vector<25x256xf32> to vector<1x256xf32>
    %c238_i32_373 = arith.constant 238 : i32
    %1196 = tpu.dynamic_rotate %1120 by %c238_i32_373 dim 1 : vector<1x256xf32>, i32 -> vector<1x256xf32>
    %1197 = arith.mulf %1195, %1196 : vector<1x256xf32>
    %1198 = arith.addf %1194, %1197 : vector<1x256xf32>
    %1199 = vector.extract_strided_slice %6 {offsets = [20, 0], sizes = [1, 256], strides = [1, 1]} : vector<25x256xf32> to vector<1x256xf32>
    %c226_i32_374 = arith.constant 226 : i32
    %1200 = tpu.dynamic_rotate %1120 by %c226_i32_374 dim 1 : vector<1x256xf32>, i32 -> vector<1x256xf32>
    %1201 = arith.mulf %1199, %1200 : vector<1x256xf32>
    %1202 = arith.addf %1198, %1201 : vector<1x256xf32>
    %1203 = vector.extract_strided_slice %6 {offsets = [21, 0], sizes = [1, 256], strides = [1, 1]} : vector<25x256xf32> to vector<1x256xf32>
    %c225_i32_375 = arith.constant 225 : i32
    %1204 = tpu.dynamic_rotate %1120 by %c225_i32_375 dim 1 : vector<1x256xf32>, i32 -> vector<1x256xf32>
    %1205 = arith.mulf %1203, %1204 : vector<1x256xf32>
    %1206 = arith.addf %1202, %1205 : vector<1x256xf32>
    %1207 = vector.extract_strided_slice %6 {offsets = [22, 0], sizes = [1, 256], strides = [1, 1]} : vector<25x256xf32> to vector<1x256xf32>
    %c224_i32_376 = arith.constant 224 : i32
    %1208 = tpu.dynamic_rotate %1120 by %c224_i32_376 dim 1 : vector<1x256xf32>, i32 -> vector<1x256xf32>
    %1209 = arith.mulf %1207, %1208 : vector<1x256xf32>
    %1210 = arith.addf %1206, %1209 : vector<1x256xf32>
    %1211 = vector.extract_strided_slice %6 {offsets = [23, 0], sizes = [1, 256], strides = [1, 1]} : vector<25x256xf32> to vector<1x256xf32>
    %c223_i32_377 = arith.constant 223 : i32
    %1212 = tpu.dynamic_rotate %1120 by %c223_i32_377 dim 1 : vector<1x256xf32>, i32 -> vector<1x256xf32>
    %1213 = arith.mulf %1211, %1212 : vector<1x256xf32>
    %1214 = arith.addf %1210, %1213 : vector<1x256xf32>
    %1215 = vector.extract_strided_slice %6 {offsets = [24, 0], sizes = [1, 256], strides = [1, 1]} : vector<25x256xf32> to vector<1x256xf32>
    %c222_i32_378 = arith.constant 222 : i32
    %1216 = tpu.dynamic_rotate %1120 by %c222_i32_378 dim 1 : vector<1x256xf32>, i32 -> vector<1x256xf32>
    %1217 = arith.mulf %1215, %1216 : vector<1x256xf32>
    %1218 = arith.addf %1214, %1217 : vector<1x256xf32>
    %1219 = arith.mulf %1120, %1218 : vector<1x256xf32>
    %1220 = vector.shape_cast %1219 : vector<1x256xf32> to vector<1x1x256xf32>
    %cst_379 = arith.constant dense<0.000000e+00> : vector<1xf32>
    %1221 = vector.multi_reduction <add>, %1220, %cst_379 [1, 2] : vector<1x1x256xf32> to vector<1xf32>
    %1222 = vector.shape_cast %1221 : vector<1xf32> to vector<1x1x1xf32>
    %1223 = vector.extract %1222[0, 0, 0] : f32 from vector<1x1x1xf32>
    %1224 = vector.broadcast %1223 : f32 to vector<1x1xf32>
    %1225 = arith.divf %1114, %1224 : vector<1x1xf32>
    %1226 = vector.broadcast %1225 : vector<1x1xf32> to vector<1x256xf32>
    %1227 = arith.mulf %1226, %1120 : vector<1x256xf32>
    %1228 = arith.addf %1105, %1227 : vector<1x256xf32>
    %1229 = vector.broadcast %1225 : vector<1x1xf32> to vector<1x256xf32>
    %1230 = arith.mulf %1229, %1218 : vector<1x256xf32>
    %1231 = arith.addf %1108, %1230 : vector<1x256xf32>
    %1232 = arith.mulf %1231, %1231 : vector<1x256xf32>
    %1233 = vector.shape_cast %1232 : vector<1x256xf32> to vector<1x1x256xf32>
    %cst_380 = arith.constant dense<0.000000e+00> : vector<1xf32>
    %1234 = vector.multi_reduction <add>, %1233, %cst_380 [1, 2] : vector<1x1x256xf32> to vector<1xf32>
    %1235 = vector.shape_cast %1234 : vector<1xf32> to vector<1x1x1xf32>
    %1236 = vector.extract %1235[0, 0, 0] : f32 from vector<1x1x1xf32>
    %1237 = vector.broadcast %1236 : f32 to vector<1x1xf32>
    %cst_381 = arith.constant 0.000000e+00 : f32
    %1238 = vector.broadcast %cst_381 : f32 to vector<1x256xf32>
    %1239 = arith.subf %1238, %1231 : vector<1x256xf32>
    %1240 = arith.divf %1237, %1114 : vector<1x1xf32>
    %1241 = vector.broadcast %1240 : vector<1x1xf32> to vector<1x256xf32>
    %1242 = arith.mulf %1241, %1120 : vector<1x256xf32>
    %1243 = arith.addf %1239, %1242 : vector<1x256xf32>
    %1244 = vector.extract_strided_slice %6 {offsets = [0, 0], sizes = [1, 256], strides = [1, 1]} : vector<25x256xf32> to vector<1x256xf32>
    %c34_i32_382 = arith.constant 34 : i32
    %1245 = tpu.dynamic_rotate %1243 by %c34_i32_382 dim 1 : vector<1x256xf32>, i32 -> vector<1x256xf32>
    %1246 = arith.mulf %1244, %1245 : vector<1x256xf32>
    %1247 = vector.extract_strided_slice %6 {offsets = [1, 0], sizes = [1, 256], strides = [1, 1]} : vector<25x256xf32> to vector<1x256xf32>
    %c33_i32_383 = arith.constant 33 : i32
    %1248 = tpu.dynamic_rotate %1243 by %c33_i32_383 dim 1 : vector<1x256xf32>, i32 -> vector<1x256xf32>
    %1249 = arith.mulf %1247, %1248 : vector<1x256xf32>
    %1250 = arith.addf %1246, %1249 : vector<1x256xf32>
    %1251 = vector.extract_strided_slice %6 {offsets = [2, 0], sizes = [1, 256], strides = [1, 1]} : vector<25x256xf32> to vector<1x256xf32>
    %c32_i32_384 = arith.constant 32 : i32
    %1252 = tpu.dynamic_rotate %1243 by %c32_i32_384 dim 1 : vector<1x256xf32>, i32 -> vector<1x256xf32>
    %1253 = arith.mulf %1251, %1252 : vector<1x256xf32>
    %1254 = arith.addf %1250, %1253 : vector<1x256xf32>
    %1255 = vector.extract_strided_slice %6 {offsets = [3, 0], sizes = [1, 256], strides = [1, 1]} : vector<25x256xf32> to vector<1x256xf32>
    %c31_i32_385 = arith.constant 31 : i32
    %1256 = tpu.dynamic_rotate %1243 by %c31_i32_385 dim 1 : vector<1x256xf32>, i32 -> vector<1x256xf32>
    %1257 = arith.mulf %1255, %1256 : vector<1x256xf32>
    %1258 = arith.addf %1254, %1257 : vector<1x256xf32>
    %1259 = vector.extract_strided_slice %6 {offsets = [4, 0], sizes = [1, 256], strides = [1, 1]} : vector<25x256xf32> to vector<1x256xf32>
    %c30_i32_386 = arith.constant 30 : i32
    %1260 = tpu.dynamic_rotate %1243 by %c30_i32_386 dim 1 : vector<1x256xf32>, i32 -> vector<1x256xf32>
    %1261 = arith.mulf %1259, %1260 : vector<1x256xf32>
    %1262 = arith.addf %1258, %1261 : vector<1x256xf32>
    %1263 = vector.extract_strided_slice %6 {offsets = [5, 0], sizes = [1, 256], strides = [1, 1]} : vector<25x256xf32> to vector<1x256xf32>
    %c18_i32_387 = arith.constant 18 : i32
    %1264 = tpu.dynamic_rotate %1243 by %c18_i32_387 dim 1 : vector<1x256xf32>, i32 -> vector<1x256xf32>
    %1265 = arith.mulf %1263, %1264 : vector<1x256xf32>
    %1266 = arith.addf %1262, %1265 : vector<1x256xf32>
    %1267 = vector.extract_strided_slice %6 {offsets = [6, 0], sizes = [1, 256], strides = [1, 1]} : vector<25x256xf32> to vector<1x256xf32>
    %c17_i32_388 = arith.constant 17 : i32
    %1268 = tpu.dynamic_rotate %1243 by %c17_i32_388 dim 1 : vector<1x256xf32>, i32 -> vector<1x256xf32>
    %1269 = arith.mulf %1267, %1268 : vector<1x256xf32>
    %1270 = arith.addf %1266, %1269 : vector<1x256xf32>
    %1271 = vector.extract_strided_slice %6 {offsets = [7, 0], sizes = [1, 256], strides = [1, 1]} : vector<25x256xf32> to vector<1x256xf32>
    %c16_i32_389 = arith.constant 16 : i32
    %1272 = tpu.dynamic_rotate %1243 by %c16_i32_389 dim 1 : vector<1x256xf32>, i32 -> vector<1x256xf32>
    %1273 = arith.mulf %1271, %1272 : vector<1x256xf32>
    %1274 = arith.addf %1270, %1273 : vector<1x256xf32>
    %1275 = vector.extract_strided_slice %6 {offsets = [8, 0], sizes = [1, 256], strides = [1, 1]} : vector<25x256xf32> to vector<1x256xf32>
    %c15_i32_390 = arith.constant 15 : i32
    %1276 = tpu.dynamic_rotate %1243 by %c15_i32_390 dim 1 : vector<1x256xf32>, i32 -> vector<1x256xf32>
    %1277 = arith.mulf %1275, %1276 : vector<1x256xf32>
    %1278 = arith.addf %1274, %1277 : vector<1x256xf32>
    %1279 = vector.extract_strided_slice %6 {offsets = [9, 0], sizes = [1, 256], strides = [1, 1]} : vector<25x256xf32> to vector<1x256xf32>
    %c14_i32_391 = arith.constant 14 : i32
    %1280 = tpu.dynamic_rotate %1243 by %c14_i32_391 dim 1 : vector<1x256xf32>, i32 -> vector<1x256xf32>
    %1281 = arith.mulf %1279, %1280 : vector<1x256xf32>
    %1282 = arith.addf %1278, %1281 : vector<1x256xf32>
    %1283 = vector.extract_strided_slice %6 {offsets = [10, 0], sizes = [1, 256], strides = [1, 1]} : vector<25x256xf32> to vector<1x256xf32>
    %c2_i32_392 = arith.constant 2 : i32
    %1284 = tpu.dynamic_rotate %1243 by %c2_i32_392 dim 1 : vector<1x256xf32>, i32 -> vector<1x256xf32>
    %1285 = arith.mulf %1283, %1284 : vector<1x256xf32>
    %1286 = arith.addf %1282, %1285 : vector<1x256xf32>
    %1287 = vector.extract_strided_slice %6 {offsets = [11, 0], sizes = [1, 256], strides = [1, 1]} : vector<25x256xf32> to vector<1x256xf32>
    %c1_i32_393 = arith.constant 1 : i32
    %1288 = tpu.dynamic_rotate %1243 by %c1_i32_393 dim 1 : vector<1x256xf32>, i32 -> vector<1x256xf32>
    %1289 = arith.mulf %1287, %1288 : vector<1x256xf32>
    %1290 = arith.addf %1286, %1289 : vector<1x256xf32>
    %1291 = vector.extract_strided_slice %6 {offsets = [12, 0], sizes = [1, 256], strides = [1, 1]} : vector<25x256xf32> to vector<1x256xf32>
    %1292 = arith.mulf %1291, %1243 : vector<1x256xf32>
    %1293 = arith.addf %1290, %1292 : vector<1x256xf32>
    %1294 = vector.extract_strided_slice %6 {offsets = [13, 0], sizes = [1, 256], strides = [1, 1]} : vector<25x256xf32> to vector<1x256xf32>
    %c255_i32_394 = arith.constant 255 : i32
    %1295 = tpu.dynamic_rotate %1243 by %c255_i32_394 dim 1 : vector<1x256xf32>, i32 -> vector<1x256xf32>
    %1296 = arith.mulf %1294, %1295 : vector<1x256xf32>
    %1297 = arith.addf %1293, %1296 : vector<1x256xf32>
    %1298 = vector.extract_strided_slice %6 {offsets = [14, 0], sizes = [1, 256], strides = [1, 1]} : vector<25x256xf32> to vector<1x256xf32>
    %c254_i32_395 = arith.constant 254 : i32
    %1299 = tpu.dynamic_rotate %1243 by %c254_i32_395 dim 1 : vector<1x256xf32>, i32 -> vector<1x256xf32>
    %1300 = arith.mulf %1298, %1299 : vector<1x256xf32>
    %1301 = arith.addf %1297, %1300 : vector<1x256xf32>
    %1302 = vector.extract_strided_slice %6 {offsets = [15, 0], sizes = [1, 256], strides = [1, 1]} : vector<25x256xf32> to vector<1x256xf32>
    %c242_i32_396 = arith.constant 242 : i32
    %1303 = tpu.dynamic_rotate %1243 by %c242_i32_396 dim 1 : vector<1x256xf32>, i32 -> vector<1x256xf32>
    %1304 = arith.mulf %1302, %1303 : vector<1x256xf32>
    %1305 = arith.addf %1301, %1304 : vector<1x256xf32>
    %1306 = vector.extract_strided_slice %6 {offsets = [16, 0], sizes = [1, 256], strides = [1, 1]} : vector<25x256xf32> to vector<1x256xf32>
    %c241_i32_397 = arith.constant 241 : i32
    %1307 = tpu.dynamic_rotate %1243 by %c241_i32_397 dim 1 : vector<1x256xf32>, i32 -> vector<1x256xf32>
    %1308 = arith.mulf %1306, %1307 : vector<1x256xf32>
    %1309 = arith.addf %1305, %1308 : vector<1x256xf32>
    %1310 = vector.extract_strided_slice %6 {offsets = [17, 0], sizes = [1, 256], strides = [1, 1]} : vector<25x256xf32> to vector<1x256xf32>
    %c240_i32_398 = arith.constant 240 : i32
    %1311 = tpu.dynamic_rotate %1243 by %c240_i32_398 dim 1 : vector<1x256xf32>, i32 -> vector<1x256xf32>
    %1312 = arith.mulf %1310, %1311 : vector<1x256xf32>
    %1313 = arith.addf %1309, %1312 : vector<1x256xf32>
    %1314 = vector.extract_strided_slice %6 {offsets = [18, 0], sizes = [1, 256], strides = [1, 1]} : vector<25x256xf32> to vector<1x256xf32>
    %c239_i32_399 = arith.constant 239 : i32
    %1315 = tpu.dynamic_rotate %1243 by %c239_i32_399 dim 1 : vector<1x256xf32>, i32 -> vector<1x256xf32>
    %1316 = arith.mulf %1314, %1315 : vector<1x256xf32>
    %1317 = arith.addf %1313, %1316 : vector<1x256xf32>
    %1318 = vector.extract_strided_slice %6 {offsets = [19, 0], sizes = [1, 256], strides = [1, 1]} : vector<25x256xf32> to vector<1x256xf32>
    %c238_i32_400 = arith.constant 238 : i32
    %1319 = tpu.dynamic_rotate %1243 by %c238_i32_400 dim 1 : vector<1x256xf32>, i32 -> vector<1x256xf32>
    %1320 = arith.mulf %1318, %1319 : vector<1x256xf32>
    %1321 = arith.addf %1317, %1320 : vector<1x256xf32>
    %1322 = vector.extract_strided_slice %6 {offsets = [20, 0], sizes = [1, 256], strides = [1, 1]} : vector<25x256xf32> to vector<1x256xf32>
    %c226_i32_401 = arith.constant 226 : i32
    %1323 = tpu.dynamic_rotate %1243 by %c226_i32_401 dim 1 : vector<1x256xf32>, i32 -> vector<1x256xf32>
    %1324 = arith.mulf %1322, %1323 : vector<1x256xf32>
    %1325 = arith.addf %1321, %1324 : vector<1x256xf32>
    %1326 = vector.extract_strided_slice %6 {offsets = [21, 0], sizes = [1, 256], strides = [1, 1]} : vector<25x256xf32> to vector<1x256xf32>
    %c225_i32_402 = arith.constant 225 : i32
    %1327 = tpu.dynamic_rotate %1243 by %c225_i32_402 dim 1 : vector<1x256xf32>, i32 -> vector<1x256xf32>
    %1328 = arith.mulf %1326, %1327 : vector<1x256xf32>
    %1329 = arith.addf %1325, %1328 : vector<1x256xf32>
    %1330 = vector.extract_strided_slice %6 {offsets = [22, 0], sizes = [1, 256], strides = [1, 1]} : vector<25x256xf32> to vector<1x256xf32>
    %c224_i32_403 = arith.constant 224 : i32
    %1331 = tpu.dynamic_rotate %1243 by %c224_i32_403 dim 1 : vector<1x256xf32>, i32 -> vector<1x256xf32>
    %1332 = arith.mulf %1330, %1331 : vector<1x256xf32>
    %1333 = arith.addf %1329, %1332 : vector<1x256xf32>
    %1334 = vector.extract_strided_slice %6 {offsets = [23, 0], sizes = [1, 256], strides = [1, 1]} : vector<25x256xf32> to vector<1x256xf32>
    %c223_i32_404 = arith.constant 223 : i32
    %1335 = tpu.dynamic_rotate %1243 by %c223_i32_404 dim 1 : vector<1x256xf32>, i32 -> vector<1x256xf32>
    %1336 = arith.mulf %1334, %1335 : vector<1x256xf32>
    %1337 = arith.addf %1333, %1336 : vector<1x256xf32>
    %1338 = vector.extract_strided_slice %6 {offsets = [24, 0], sizes = [1, 256], strides = [1, 1]} : vector<25x256xf32> to vector<1x256xf32>
    %c222_i32_405 = arith.constant 222 : i32
    %1339 = tpu.dynamic_rotate %1243 by %c222_i32_405 dim 1 : vector<1x256xf32>, i32 -> vector<1x256xf32>
    %1340 = arith.mulf %1338, %1339 : vector<1x256xf32>
    %1341 = arith.addf %1337, %1340 : vector<1x256xf32>
    %1342 = arith.mulf %1243, %1341 : vector<1x256xf32>
    %1343 = vector.shape_cast %1342 : vector<1x256xf32> to vector<1x1x256xf32>
    %cst_406 = arith.constant dense<0.000000e+00> : vector<1xf32>
    %1344 = vector.multi_reduction <add>, %1343, %cst_406 [1, 2] : vector<1x1x256xf32> to vector<1xf32>
    %1345 = vector.shape_cast %1344 : vector<1xf32> to vector<1x1x1xf32>
    %1346 = vector.extract %1345[0, 0, 0] : f32 from vector<1x1x1xf32>
    %1347 = vector.broadcast %1346 : f32 to vector<1x1xf32>
    %1348 = arith.divf %1237, %1347 : vector<1x1xf32>
    %1349 = vector.broadcast %1348 : vector<1x1xf32> to vector<1x256xf32>
    %1350 = arith.mulf %1349, %1243 : vector<1x256xf32>
    %1351 = arith.addf %1228, %1350 : vector<1x256xf32>
    %c0_407 = arith.constant 0 : index
    %c0_408 = arith.constant 0 : index
    %c0_409 = arith.constant 0 : index
    %1352 = vector.load %arg13[%c0_407, %c0_408, %c0_409] : memref<1x1x256xf32, #tpu.memory_space<vmem>>, vector<1x1x256xf32>
    %1353 = vector.shape_cast %1352 : vector<1x1x256xf32> to vector<1x256xf32>
    %1354 = vector.shape_cast %1351 : vector<1x256xf32> to vector<1x1x256xf32>
    tpu.vector_store %arg13[%c0_407, %c0_408, %c0_409], %1354 {strides = array<i32>} : memref<1x1x256xf32, #tpu.memory_space<vmem>>, vector<1x1x256xf32>,
    return
  }
  func.func @transform_0(%arg0: i32) -> i32 {
    %c0_i32 = arith.constant 0 : i32
    %c0_i32_0 = arith.constant 0 : i32
    return %c0_i32 : i32
  }
  func.func @transform_1(%arg0: i32) -> (i32, i32, i32) {
    %c0_i32 = arith.constant 0 : i32
    %c0_i32_0 = arith.constant 0 : i32
    %c0_i32_1 = arith.constant 0 : i32
    return %arg0, %c0_i32, %c0_i32_0 : i32, i32, i32
  }
  func.func @transform_2(%arg0: i32) -> (i32, i32, i32) {
    %c0_i32 = arith.constant 0 : i32
    %c0_i32_0 = arith.constant 0 : i32
    %c0_i32_1 = arith.constant 0 : i32
    return %arg0, %c0_i32, %c0_i32_0 : i32, i32, i32
  }
  func.func @transform_3(%arg0: i32) -> (i32, i32) {
    %c0_i32 = arith.constant 0 : i32
    %c0_i32_0 = arith.constant 0 : i32
    %c0_i32_1 = arith.constant 0 : i32
    return %c0_i32, %c0_i32_0 : i32, i32
  }
  func.func @transform_4(%arg0: i32) -> (i32, i32) {
    %c0_i32 = arith.constant 0 : i32
    %c0_i32_0 = arith.constant 0 : i32
    %c0_i32_1 = arith.constant 0 : i32
    return %c0_i32, %c0_i32_0 : i32, i32
  }
  func.func @transform_5(%arg0: i32) -> (i32, i32) {
    %c0_i32 = arith.constant 0 : i32
    %c0_i32_0 = arith.constant 0 : i32
    %c0_i32_1 = arith.constant 0 : i32
    return %c0_i32, %c0_i32_0 : i32, i32
  }
  func.func @transform_6(%arg0: i32) -> (i32, i32) {
    %c0_i32 = arith.constant 0 : i32
    %c0_i32_0 = arith.constant 0 : i32
    %c0_i32_1 = arith.constant 0 : i32
    return %c0_i32, %c0_i32_0 : i32, i32
  }
  func.func @transform_7(%arg0: i32) -> (i32, i32) {
    %c0_i32 = arith.constant 0 : i32
    %c0_i32_0 = arith.constant 0 : i32
    %c0_i32_1 = arith.constant 0 : i32
    return %c0_i32, %c0_i32_0 : i32, i32
  }
  func.func @transform_8(%arg0: i32) -> (i32, i32) {
    %c0_i32 = arith.constant 0 : i32
    %c0_i32_0 = arith.constant 0 : i32
    %c0_i32_1 = arith.constant 0 : i32
    return %c0_i32, %c0_i32_0 : i32, i32
  }
  func.func @transform_9(%arg0: i32) -> (i32, i32, i32) {
    %c0_i32 = arith.constant 0 : i32
    %c0_i32_0 = arith.constant 0 : i32
    %c0_i32_1 = arith.constant 0 : i32
    %c0_i32_2 = arith.constant 0 : i32
    return %c0_i32, %c0_i32_0, %c0_i32_1 : i32, i32, i32
  }
  func.func @transform_10(%arg0: i32) -> (i32, i32, i32) {
    %c0_i32 = arith.constant 0 : i32
    %c0_i32_0 = arith.constant 0 : i32
    %c0_i32_1 = arith.constant 0 : i32
    %c0_i32_2 = arith.constant 0 : i32
    return %c0_i32, %c0_i32_0, %c0_i32_1 : i32, i32, i32
  }
  func.func @transform_11(%arg0: i32) -> (i32, i32, i32) {
    %c0_i32 = arith.constant 0 : i32
    %c0_i32_0 = arith.constant 0 : i32
    %c0_i32_1 = arith.constant 0 : i32
    %c0_i32_2 = arith.constant 0 : i32
    return %c0_i32, %c0_i32_0, %c0_i32_1 : i32, i32, i32
  }
  func.func @transform_12(%arg0: i32) -> (i32, i32, i32) {
    %c0_i32 = arith.constant 0 : i32
    %c0_i32_0 = arith.constant 0 : i32
    %c0_i32_1 = arith.constant 0 : i32
    return %arg0, %c0_i32, %c0_i32_0 : i32, i32, i32
  }
  func.func @transform_13(%arg0: i32) -> (i32, i32, i32) {
    %c0_i32 = arith.constant 0 : i32
    %c0_i32_0 = arith.constant 0 : i32
    %c0_i32_1 = arith.constant 0 : i32
    return %arg0, %c0_i32, %c0_i32_0 : i32, i32, i32
  }
}

</mosaic_0001>

<llo_original>
// kernel: tpu_custom_call.1
$region0: #{tpu_custom_call.1}
  #allocation0 [shape = 'u32[]', space=smem, size = 0x4, offset = 0x4, fixed_abs, tag = 'smem constant byte address 0x4 - core index']
  #allocation1 [shape = 'u32[72,128]{1,0:T(1,128)}', space=vmem, size = 0x9000, scoped, tag = 'internal scratch']
  #allocation2 [shape = 'f32[72,256]{1,0:T(8,128)}', space=vmem, size = 0x12000, scoped, tag = 'scratch operand']
  #allocation3 [shape = 'f32[1]{0:T(128)S(6)}', space=smem, size = 0x200, scoped, tag = 'scoped memory for tpu_custom_call.1']
  %s0 = inlined_call_operand.<no memory space> [shape: f32[1], index: 0, kind: input, shape index: {}]
  %s1 = inlined_call_operand.hbm [shape: f32[2,1,256], index: 1, kind: input, shape index: {}]
  %s2 = inlined_call_operand.hbm [shape: f32[2,1,256], index: 2, kind: input, shape index: {}]
  %s3 = inlined_call_operand.vmem [shape: f32[9,256], index: 3, kind: input, shape index: {}]
  %s4 = inlined_call_operand.vmem [shape: f32[25,256], index: 4, kind: input, shape index: {}]
  %s5 = inlined_call_operand.hbm [shape: f32[18,256], index: 5, kind: input, shape index: {}]
  %s6 = inlined_call_operand.hbm [shape: f32[18,256], index: 6, kind: input, shape index: {}]
  %s7 = inlined_call_operand.hbm [shape: f32[9,256], index: 7, kind: input, shape index: {}]
  %s8 = inlined_call_operand.hbm [shape: f32[8,16], index: 8, kind: input, shape index: {}]
  %s9 = inlined_call_operand.hbm [shape: f32[5,8,72], index: 9, kind: input, shape index: {}]
  %s10 = inlined_call_operand.vmem [shape: f32[6,8,1], index: 10, kind: input, shape index: {}]
  %s11 = inlined_call_operand.vmem [shape: f32[5,8,1], index: 11, kind: input, shape index: {}]
  %s12 = inlined_call_operand.hbm [shape: f32[2,1,256], index: 12, kind: output, shape index: {0}]
  %s13 = inlined_call_operand.hbm [shape: f32[2,1,256], index: 13, kind: output, shape index: {1}]
  %14 = xla_tuple %s12, %s13
  %s15 = sld [smem:[#allocation0]]
  $region117: #{tpu_custom_call.1} parent=0
    _
  %s17 = ssub.s32 1, %s15
  %s18 = scalar_select 0, %s17, %s15
  %19 = sst [smem:[#allocation3]] %s0
  $region1: #{tpu_custom_call.1} parent=0
    #allocation4 [shape = 'u8[2048]{0}', space=vmem, size = 0x800, scoped, tag = 'input window, operand 1']
    #allocation5 [shape = 's32[2]{0}', space=sflag, size = 0x8, scoped, tag = 'scoped memory for tpu_custom_call.1']
    #allocation6 [shape = 's32[2]{0}', space=sflag, size = 0x8, scoped, tag = 'scoped memory for tpu_custom_call.1']
    #allocation7 [shape = 'u8[2048]{0}', space=vmem, size = 0x800, scoped, tag = 'input window, operand 2']
    #allocation8 [shape = 's32[2]{0}', space=sflag, size = 0x8, scoped, tag = 'scoped memory for tpu_custom_call.1']
    #allocation9 [shape = 'u8[24576]{0}', space=vmem, size = 0x6000, scoped, tag = 'input window, operand 5, single buffered']
    #allocation10 [shape = 'u8[24576]{0}', space=vmem, size = 0x6000, scoped, tag = 'input window, operand 6, single buffered']
    #allocation11 [shape = 's32[1]{0}', space=sflag, size = 0x4, scoped, tag = 'scoped memory for tpu_custom_call.1']
    #allocation12 [shape = 'u8[16384]{0}', space=vmem, size = 0x4000, scoped, tag = 'input window, operand 7, single buffered']
    #allocation13 [shape = 'u8[4096]{0}', space=vmem, size = 0x1000, scoped, tag = 'input window, operand 8, single buffered']
    #allocation14 [shape = 's32[1]{0}', space=sflag, size = 0x4, scoped, tag = 'scoped memory for tpu_custom_call.1']
    #allocation15 [shape = 'u8[20480]{0}', space=vmem, size = 0x5000, scoped, tag = 'input window, operand 9, single buffered']
    #allocation16 [shape = 'u8[2048]{0}', space=vmem, size = 0x800, scoped, tag = 'output window, operand 0']
    #allocation17 [shape = 'u8[2048]{0}', space=vmem, size = 0x800, scoped, tag = 'output window, operand 1']
    #allocation18 [shape = 's32[2]{0}', space=sflag, size = 0x8, scoped, tag = 'scoped memory for tpu_custom_call.1']
    %20 = vsyncpa [#allocation5], 0
    %s21 = scalar_lea.sflag [#allocation5], 1
    %22 = vsyncpa %s21, 0
    %23 = vsyncpa [#allocation8], 0
    %s24 = scalar_lea.sflag [#allocation8], 1
    %25 = vsyncpa %s24, 0
    %26 = vsyncpa [#allocation11], 0
    %27 = vsyncpa [#allocation14], 0
    %28 = vsyncpa [#allocation6], 0
    %s29 = scalar_lea.sflag [#allocation6], 1
    %30 = vsyncpa %s29, 0
    %31 = vsyncpa [#allocation18], 0
    %s32 = scalar_lea.sflag [#allocation18], 1
    %33 = vsyncpa %s32, 0
    loop: start=0, step=1, limit=4
    $region2: #{tpu_custom_call.1} parent=1 // loop_pre_header
      _
    $region3: #{tpu_custom_call.1} parent=1 // loop_header
      %s35 = sphi 0, %s39
      %p36 = scmp.ge.s32.totalorder %s35, 4
      %s43 = sphi 0, %s43
      %s45 = sphi 0, %s43
      %s46 = sphi 0, %s45
      %s60 = sphi 0, %s46
      %s66 = sphi 0, %s68
      %s69 = sphi 0, %s66
      %s70 = sphi 0, %s69
      %s86 = sphi 0, %s70
      %s92 = sphi 0, %s94
      %s95 = sphi 0, %s92
      %s96 = sphi 0, %s95
      %s112 = sphi 0, %s96
      %s116 = sphi 0, %s116
      %s118 = sphi 0, %s116
      %s119 = sphi 0, %s118
      %s133 = sphi 0, %s119
      %s137 = sphi 0, %s137
      %s139 = sphi 0, %s137
      %s140 = sphi 0, %s139
      %s154 = sphi 0, %s140
      %s158 = sphi 0, %s158
      %s160 = sphi 0, %s158
      %s161 = sphi 0, %s160
      %s175 = sphi 0, %s161
      %s179 = sphi 0, %s179
      %s181 = sphi 0, %s179
      %s182 = sphi 0, %s181
      %s196 = sphi 0, %s182
      %s200 = sphi 0, %s200
      %s202 = sphi 0, %s200
      %s203 = sphi 0, %s202
      %s217 = sphi 0, %s203
      %s221 = sphi 0, %s221
      %s223 = sphi 0, %s221
      %s224 = sphi 0, %s223
      %s238 = sphi 0, %s224
      %s242 = sphi 0, %s242
      %s244 = sphi 0, %s242
      %s245 = sphi 0, %s244
      %s259 = sphi 0, %s245
      %s263 = sphi 0, %s263
      %s265 = sphi 0, %s263
      %s266 = sphi 0, %s265
      %s280 = sphi 0, %s266
      %s284 = sphi 0, %s284
      %s286 = sphi 0, %s284
      %s287 = sphi 0, %s286
      %s301 = sphi 0, %s287
      %s307 = sphi 0, %s309
      %s310 = sphi 0, %s307
      %s311 = sphi 0, %s310
      %s327 = sphi 0, %s311
      %s333 = sphi 0, %s335
      %s336 = sphi 0, %s333
      %s337 = sphi 0, %s336
      %s353 = sphi 0, %s337
    $region4: #{tpu_custom_call.1} parent=1 // loop_header_branch
      %38 = sbr.rel (%p36) target = $region8
    $region5: #{tpu_custom_call.1} parent=1 // loop_body
      %s40 = ssub.s32 %s35, 1
      %s41 = ssub.s32 %s35, 2
      %s42 = sadd.s32 %s35, 1
      %s44 = sadd.s32 %s43, 1
      %p47 = scmp.eq.s32.totalorder %s35, 1
      %p48 = scmp.ne.s32.totalorder %s43, %s45
      %p49 = scmp.eq.s32.totalorder %s35, 0
      %p50 = por %p48, %p49
      %p51 = scmp.ne.s32.totalorder %s43, %s45
      %p52 = scmp.eq.s32.totalorder %s40, 1
      %p53 = por %p51, %p52
      %p54 = scmp.ne.s32.totalorder %s45, %s46
      %p55 = scmp.eq.s32.totalorder %s40, 0
      %p56 = por %p54, %p55
      %p57 = scmp.ne.s32.totalorder %s45, %s46
      %p58 = scmp.eq.s32.totalorder %s41, 1
      %p59 = por %p57, %p58
      %p61 = scmp.ne.s32.totalorder %s46, %s60
      %p62 = scmp.eq.s32.totalorder %s41, 0
      %p63 = por %p61, %p62
      %s64 = ssub.s32 %s35, %s42
      %p65 = scmp.eq.s32.totalorder %s64, 0
      %s67 = sadd.s32 %s66, 1
      %s68 = scalar_select %p65, %s66, %s67
      %p71 = pneg %p65
      %p72 = scmp.eq.s32.totalorder %s35, 1
      %p73 = por %p71, %p72
      %p74 = scmp.ne.s32.totalorder %s66, %s69
      %p75 = scmp.eq.s32.totalorder %s35, 0
      %p76 = por %p74, %p75
      %p77 = scmp.ne.s32.totalorder %s66, %s69
      %p78 = scmp.eq.s32.totalorder %s40, 1
      %p79 = por %p77, %p78
      %p80 = scmp.ne.s32.totalorder %s69, %s70
      %p81 = scmp.eq.s32.totalorder %s40, 0
      %p82 = por %p80, %p81
      %p83 = scmp.ne.s32.totalorder %s69, %s70
      %p84 = scmp.eq.s32.totalorder %s41, 1
      %p85 = por %p83, %p84
      %p87 = scmp.ne.s32.totalorder %s70, %s86
      %p88 = scmp.eq.s32.totalorder %s41, 0
      %p89 = por %p87, %p88
      %s90 = ssub.s32 %s35, %s42
      %p91 = scmp.eq.s32.totalorder %s90, 0
      %s93 = sadd.s32 %s92, 1
      %s94 = scalar_select %p91, %s92, %s93
      %p97 = pneg %p91
      %p98 = scmp.eq.s32.totalorder %s35, 1
      %p99 = por %p97, %p98
      %p100 = scmp.ne.s32.totalorder %s92, %s95
      %p101 = scmp.eq.s32.totalorder %s35, 0
      %p102 = por %p100, %p101
      %p103 = scmp.ne.s32.totalorder %s92, %s95
      %p104 = scmp.eq.s32.totalorder %s40, 1
      %p105 = por %p103, %p104
      %p106 = scmp.ne.s32.totalorder %s95, %s96
      %p107 = scmp.eq.s32.totalorder %s40, 0
      %p108 = por %p106, %p107
      %p109 = scmp.ne.s32.totalorder %s95, %s96
      %p110 = scmp.eq.s32.totalorder %s41, 1
      %p111 = por %p109, %p110
      %p113 = scmp.ne.s32.totalorder %s96, %s112
      %p114 = scmp.eq.s32.totalorder %s41, 0
      %p115 = por %p113, %p114
      %s117 = sadd.s32 %s116, 1
      %p120 = scmp.eq.s32.totalorder %s35, 1
      %p121 = scmp.ne.s32.totalorder %s116, %s118
      %p122 = scmp.eq.s32.totalorder %s35, 0
      %p123 = por %p121, %p122
      %p124 = scmp.ne.s32.totalorder %s116, %s118
      %p125 = scmp.eq.s32.totalorder %s40, 1
      %p126 = por %p124, %p125
      %p127 = scmp.ne.s32.totalorder %s118, %s119
      %p128 = scmp.eq.s32.totalorder %s40, 0
      %p129 = por %p127, %p128
      %p130 = scmp.ne.s32.totalorder %s118, %s119
      %p131 = scmp.eq.s32.totalorder %s41, 1
      %p132 = por %p130, %p131
      %p134 = scmp.ne.s32.totalorder %s119, %s133
      %p135 = scmp.eq.s32.totalorder %s41, 0
      %p136 = por %p134, %p135
      %s138 = sadd.s32 %s137, 1
      %p141 = scmp.eq.s32.totalorder %s35, 1
      %p142 = scmp.ne.s32.totalorder %s137, %s139
      %p143 = scmp.eq.s32.totalorder %s35, 0
      %p144 = por %p142, %p143
      %p145 = scmp.ne.s32.totalorder %s137, %s139
      %p146 = scmp.eq.s32.totalorder %s40, 1
      %p147 = por %p145, %p146
      %p148 = scmp.ne.s32.totalorder %s139, %s140
      %p149 = scmp.eq.s32.totalorder %s40, 0
      %p150 = por %p148, %p149
      %p151 = scmp.ne.s32.totalorder %s139, %s140
      %p152 = scmp.eq.s32.totalorder %s41, 1
      %p153 = por %p151, %p152
      %p155 = scmp.ne.s32.totalorder %s140, %s154
      %p156 = scmp.eq.s32.totalorder %s41, 0
      %p157 = por %p155, %p156
      %s159 = sadd.s32 %s158, 1
      %p162 = scmp.eq.s32.totalorder %s35, 1
      %p163 = scmp.ne.s32.totalorder %s158, %s160
      %p164 = scmp.eq.s32.totalorder %s35, 0
      %p165 = por %p163, %p164
      %p166 = scmp.ne.s32.totalorder %s158, %s160
      %p167 = scmp.eq.s32.totalorder %s40, 1
      %p168 = por %p166, %p167
      %p169 = scmp.ne.s32.totalorder %s160, %s161
      %p170 = scmp.eq.s32.totalorder %s40, 0
      %p171 = por %p169, %p170
      %p172 = scmp.ne.s32.totalorder %s160, %s161
      %p173 = scmp.eq.s32.totalorder %s41, 1
      %p174 = por %p172, %p173
      %p176 = scmp.ne.s32.totalorder %s161, %s175
      %p177 = scmp.eq.s32.totalorder %s41, 0
      %p178 = por %p176, %p177
      %s180 = sadd.s32 %s179, 1
      %p183 = scmp.eq.s32.totalorder %s35, 1
      %p184 = scmp.ne.s32.totalorder %s179, %s181
      %p185 = scmp.eq.s32.totalorder %s35, 0
      %p186 = por %p184, %p185
      %p187 = scmp.ne.s32.totalorder %s179, %s181
      %p188 = scmp.eq.s32.totalorder %s40, 1
      %p189 = por %p187, %p188
      %p190 = scmp.ne.s32.totalorder %s181, %s182
      %p191 = scmp.eq.s32.totalorder %s40, 0
      %p192 = por %p190, %p191
      %p193 = scmp.ne.s32.totalorder %s181, %s182
      %p194 = scmp.eq.s32.totalorder %s41, 1
      %p195 = por %p193, %p194
      %p197 = scmp.ne.s32.totalorder %s182, %s196
      %p198 = scmp.eq.s32.totalorder %s41, 0
      %p199 = por %p197, %p198
      %s201 = sadd.s32 %s200, 1
      %p204 = scmp.eq.s32.totalorder %s35, 1
      %p205 = scmp.ne.s32.totalorder %s200, %s202
      %p206 = scmp.eq.s32.totalorder %s35, 0
      %p207 = por %p205, %p206
      %p208 = scmp.ne.s32.totalorder %s200, %s202
      %p209 = scmp.eq.s32.totalorder %s40, 1
      %p210 = por %p208, %p209
      %p211 = scmp.ne.s32.totalorder %s202, %s203
      %p212 = scmp.eq.s32.totalorder %s40, 0
      %p213 = por %p211, %p212
      %p214 = scmp.ne.s32.totalorder %s202, %s203
      %p215 = scmp.eq.s32.totalorder %s41, 1
      %p216 = por %p214, %p215
      %p218 = scmp.ne.s32.totalorder %s203, %s217
      %p219 = scmp.eq.s32.totalorder %s41, 0
      %p220 = por %p218, %p219
      %s222 = sadd.s32 %s221, 1
      %p225 = scmp.eq.s32.totalorder %s35, 1
      %p226 = scmp.ne.s32.totalorder %s221, %s223
      %p227 = scmp.eq.s32.totalorder %s35, 0
      %p228 = por %p226, %p227
      %p229 = scmp.ne.s32.totalorder %s221, %s223
      %p230 = scmp.eq.s32.totalorder %s40, 1
      %p231 = por %p229, %p230
      %p232 = scmp.ne.s32.totalorder %s223, %s224
      %p233 = scmp.eq.s32.totalorder %s40, 0
      %p234 = por %p232, %p233
      %p235 = scmp.ne.s32.totalorder %s223, %s224
      %p236 = scmp.eq.s32.totalorder %s41, 1
      %p237 = por %p235, %p236
      %p239 = scmp.ne.s32.totalorder %s224, %s238
      %p240 = scmp.eq.s32.totalorder %s41, 0
      %p241 = por %p239, %p240
      %s243 = sadd.s32 %s242, 1
      %p246 = scmp.eq.s32.totalorder %s35, 1
      %p247 = scmp.ne.s32.totalorder %s242, %s244
      %p248 = scmp.eq.s32.totalorder %s35, 0
      %p249 = por %p247, %p248
      %p250 = scmp.ne.s32.totalorder %s242, %s244
      %p251 = scmp.eq.s32.totalorder %s40, 1
      %p252 = por %p250, %p251
      %p253 = scmp.ne.s32.totalorder %s244, %s245
      %p254 = scmp.eq.s32.totalorder %s40, 0
      %p255 = por %p253, %p254
      %p256 = scmp.ne.s32.totalorder %s244, %s245
      %p257 = scmp.eq.s32.totalorder %s41, 1
      %p258 = por %p256, %p257
      %p260 = scmp.ne.s32.totalorder %s245, %s259
      %p261 = scmp.eq.s32.totalorder %s41, 0
      %p262 = por %p260, %p261
      %s264 = sadd.s32 %s263, 1
      %p267 = scmp.eq.s32.totalorder %s35, 1
      %p268 = scmp.ne.s32.totalorder %s263, %s265
      %p269 = scmp.eq.s32.totalorder %s35, 0
      %p270 = por %p268, %p269
      %p271 = scmp.ne.s32.totalorder %s263, %s265
      %p272 = scmp.eq.s32.totalorder %s40, 1
      %p273 = por %p271, %p272
      %p274 = scmp.ne.s32.totalorder %s265, %s266
      %p275 = scmp.eq.s32.totalorder %s40, 0
      %p276 = por %p274, %p275
      %p277 = scmp.ne.s32.totalorder %s265, %s266
      %p278 = scmp.eq.s32.totalorder %s41, 1
      %p279 = por %p277, %p278
      %p281 = scmp.ne.s32.totalorder %s266, %s280
      %p282 = scmp.eq.s32.totalorder %s41, 0
      %p283 = por %p281, %p282
      %s285 = sadd.s32 %s284, 1
      %p288 = scmp.eq.s32.totalorder %s35, 1
      %p289 = scmp.ne.s32.totalorder %s284, %s286
      %p290 = scmp.eq.s32.totalorder %s35, 0
      %p291 = por %p289, %p290
      %p292 = scmp.ne.s32.totalorder %s284, %s286
      %p293 = scmp.eq.s32.totalorder %s40, 1
      %p294 = por %p292, %p293
      %p295 = scmp.ne.s32.totalorder %s286, %s287
      %p296 = scmp.eq.s32.totalorder %s40, 0
      %p297 = por %p295, %p296
      %p298 = scmp.ne.s32.totalorder %s286, %s287
      %p299 = scmp.eq.s32.totalorder %s41, 1
      %p300 = por %p298, %p299
      %p302 = scmp.ne.s32.totalorder %s287, %s301
      %p303 = scmp.eq.s32.totalorder %s41, 0
      %p304 = por %p302, %p303
      %s305 = ssub.s32 %s35, %s42
      %p306 = scmp.eq.s32.totalorder %s305, 0
      %s308 = sadd.s32 %s307, 1
      %s309 = scalar_select %p306, %s307, %s308
      %p312 = pneg %p306
      %p313 = scmp.eq.s32.totalorder %s35, 1
      %p314 = por %p312, %p313
      %p315 = scmp.ne.s32.totalorder %s307, %s310
      %p316 = scmp.eq.s32.totalorder %s35, 0
      %p317 = por %p315, %p316
      %p318 = scmp.ne.s32.totalorder %s307, %s310
      %p319 = scmp.eq.s32.totalorder %s40, 1
      %p320 = por %p318, %p319
      %p321 = scmp.ne.s32.totalorder %s310, %s311
      %p322 = scmp.eq.s32.totalorder %s40, 0
      %p323 = por %p321, %p322
      %p324 = scmp.ne.s32.totalorder %s310, %s311
      %p325 = scmp.eq.s32.totalorder %s41, 1
      %p326 = por %p324, %p325
      %p328 = scmp.ne.s32.totalorder %s311, %s327
      %p329 = scmp.eq.s32.totalorder %s41, 0
      %p330 = por %p328, %p329
      %s331 = ssub.s32 %s35, %s42
      %p332 = scmp.eq.s32.totalorder %s331, 0
      %s334 = sadd.s32 %s333, 1
      %s335 = scalar_select %p332, %s333, %s334
      %p338 = pneg %p332
      %p339 = scmp.eq.s32.totalorder %s35, 1
      %p340 = por %p338, %p339
      %p341 = scmp.ne.s32.totalorder %s333, %s336
      %p342 = scmp.eq.s32.totalorder %s35, 0
      %p343 = por %p341, %p342
      %p344 = scmp.ne.s32.totalorder %s333, %s336
      %p345 = scmp.eq.s32.totalorder %s40, 1
      %p346 = por %p344, %p345
      %p347 = scmp.ne.s32.totalorder %s336, %s337
      %p348 = scmp.eq.s32.totalorder %s40, 0
      %p349 = por %p347, %p348
      %p350 = scmp.ne.s32.totalorder %s336, %s337
      %p351 = scmp.eq.s32.totalorder %s41, 1
      %p352 = por %p350, %p351
      %p354 = scmp.ne.s32.totalorder %s337, %s353
      %p355 = scmp.eq.s32.totalorder %s41, 0
      %p356 = por %p354, %p355
      %p357 = scmp.le.s32.totalorder 1, %s35
      %p358 = scmp.lt.s32.totalorder %s35, 3
      %p359 = pnand %p357, %p358
      %p360 = pneg %p359
      // Predicated region
      $region9: #{tpu_custom_call.1} parent=5 // pred_check
        _
      $region10: #{tpu_custom_call.1} parent=5 // pred_check_branch
        %362 = sbr.rel (%p359) target = $region12
      $region11: #{tpu_custom_call.1} parent=5 // pred_region
        %s363 = ssub.s32 %s35, 1
        // Predicated region
        $region13: #{tpu_custom_call.1} parent=11 // pred_check
          %p364 = pneg %p56
        $region14: #{tpu_custom_call.1} parent=11 // pred_check_branch
          %366 = sbr.rel (%p364) target = $region16
        $region15: #{tpu_custom_call.1} parent=11 // pred_region
          _
        $region16: #{tpu_custom_call.1} parent=11 // pred_fallthru
          _
        // Predicated region
        $region17: #{tpu_custom_call.1} parent=11 // pred_check
          %p367 = pneg %p129
        $region18: #{tpu_custom_call.1} parent=11 // pred_check_branch
          %369 = sbr.rel (%p367) target = $region20
        $region19: #{tpu_custom_call.1} parent=11 // pred_region
          _
        $region20: #{tpu_custom_call.1} parent=11 // pred_fallthru
          _
        // Predicated region
        $region21: #{tpu_custom_call.1} parent=11 // pred_check
          %p370 = pneg %p150
        $region22: #{tpu_custom_call.1} parent=11 // pred_check_branch
          %372 = sbr.rel (%p370) target = $region24
        $region23: #{tpu_custom_call.1} parent=11 // pred_region
          _
        $region24: #{tpu_custom_call.1} parent=11 // pred_fallthru
          _
        // Predicated region
        $region25: #{tpu_custom_call.1} parent=11 // pred_check
          %p373 = pneg %p171
        $region26: #{tpu_custom_call.1} parent=11 // pred_check_branch
          %375 = sbr.rel (%p373) target = $region28
        $region27: #{tpu_custom_call.1} parent=11 // pred_region
          %377 = vsyncadd [#allocation8], 0
          %s378 = sshll.u32 %s5, 4
          %s379 = int_to_ptr.hbm [resolvable:$true] %s378
          %s380 = sshll.u32 [#allocation9], 4
          %s381 = int_to_ptr.vmem [resolvable:$true] %s380
          %386 = dma.hbm_to_vmem [thread:$0]  %s379, 768, %s381, [#allocation8], 256, 256, 16
        $region28: #{tpu_custom_call.1} parent=11 // pred_fallthru
          _
        // Predicated region
        $region29: #{tpu_custom_call.1} parent=11 // pred_check
          %p387 = pneg %p192
        $region30: #{tpu_custom_call.1} parent=11 // pred_check_branch
          %389 = sbr.rel (%p387) target = $region32
        $region31: #{tpu_custom_call.1} parent=11 // pred_region
          %391 = vsyncadd [#allocation11], 0
          %s392 = sshll.u32 %s6, 4
          %s393 = int_to_ptr.hbm [resolvable:$true] %s392
          %s394 = sshll.u32 [#allocation10], 4
          %s395 = int_to_ptr.vmem [resolvable:$true] %s394
          %400 = dma.hbm_to_vmem [thread:$0]  %s393, 768, %s395, [#allocation11], 256, 256, 16
        $region32: #{tpu_custom_call.1} parent=11 // pred_fallthru
          _
        // Predicated region
        $region33: #{tpu_custom_call.1} parent=11 // pred_check
          %p401 = pneg %p213
        $region34: #{tpu_custom_call.1} parent=11 // pred_check_branch
          %403 = sbr.rel (%p401) target = $region36
        $region35: #{tpu_custom_call.1} parent=11 // pred_region
          %405 = vsyncadd [#allocation11], 0
          %s406 = sshll.u32 %s7, 4
          %s407 = int_to_ptr.hbm [resolvable:$true] %s406
          %s408 = sshll.u32 [#allocation12], 4
          %s409 = int_to_ptr.vmem [resolvable:$true] %s408
          %414 = dma.hbm_to_vmem [thread:$0]  %s407, 512, %s409, [#allocation11], 256, 256, 16
        $region36: #{tpu_custom_call.1} parent=11 // pred_fallthru
          _
        // Predicated region
        $region37: #{tpu_custom_call.1} parent=11 // pred_check
          %p415 = pneg %p234
        $region38: #{tpu_custom_call.1} parent=11 // pred_check_branch
          %417 = sbr.rel (%p415) target = $region40
        $region39: #{tpu_custom_call.1} parent=11 // pred_region
          %419 = vsyncadd [#allocation14], 0
          %s421 = sshll.u32 %s8, 4
          %s422 = int_to_ptr.hbm [resolvable:$true] %s421
          %s423 = sshll.u32 [#allocation13], 4
          %s424 = int_to_ptr.vmem [resolvable:$true] %s423
          %426 = dma.hbm_to_vmem [thread:$0]  %s422, 128, %s424, [#allocation14]
        $region40: #{tpu_custom_call.1} parent=11 // pred_fallthru
          _
        // Predicated region
        $region41: #{tpu_custom_call.1} parent=11 // pred_check
          %p427 = pneg %p255
        $region42: #{tpu_custom_call.1} parent=11 // pred_check_branch
          %429 = sbr.rel (%p427) target = $region44
        $region43: #{tpu_custom_call.1} parent=11 // pred_region
          %431 = vsyncadd [#allocation14], 0
          %s432 = sshll.u32 %s9, 4
          %s433 = int_to_ptr.hbm [resolvable:$true] %s432
          %s434 = sshll.u32 [#allocation15], 4
          %s435 = int_to_ptr.vmem [resolvable:$true] %s434
          %440 = dma.hbm_to_vmem [thread:$0]  %s433, 640, %s435, [#allocation14], 128, 128, 8
        $region44: #{tpu_custom_call.1} parent=11 // pred_fallthru
          _
        // Predicated region
        $region45: #{tpu_custom_call.1} parent=11 // pred_check
          %p441 = pneg %p276
        $region46: #{tpu_custom_call.1} parent=11 // pred_check_branch
          %443 = sbr.rel (%p441) target = $region48
        $region47: #{tpu_custom_call.1} parent=11 // pred_region
          _
        $region48: #{tpu_custom_call.1} parent=11 // pred_fallthru
          _
        // Predicated region
        $region49: #{tpu_custom_call.1} parent=11 // pred_check
          %p444 = pneg %p297
        $region50: #{tpu_custom_call.1} parent=11 // pred_check_branch
          %446 = sbr.rel (%p444) target = $region52
        $region51: #{tpu_custom_call.1} parent=11 // pred_region
          _
        $region52: #{tpu_custom_call.1} parent=11 // pred_fallthru
          _
      $region12: #{tpu_custom_call.1} parent=5 // pred_fallthru
        _
      %p447 = scmp.lt.s32.totalorder %s35, 2
      // Predicated region
      $region53: #{tpu_custom_call.1} parent=5 // pred_check
        %p448 = pneg %p447
      $region54: #{tpu_custom_call.1} parent=5 // pred_check_branch
        %450 = sbr.rel (%p448) target = $region56
      $region55: #{tpu_custom_call.1} parent=5 // pred_region
        // Predicated region
        $region57: #{tpu_custom_call.1} parent=55 // pred_check
          %p451 = pneg %p76
        $region58: #{tpu_custom_call.1} parent=55 // pred_check_branch
          %453 = sbr.rel (%p451) target = $region60
        $region59: #{tpu_custom_call.1} parent=55 // pred_region
          %s454 = sand.u32 %s66, 1
          %s455 = scalar_lea.sflag [#allocation5], %s454
          %s456 = sand.u32 %s66, 1
          %s457 = smul.addr %s456, 2
          %s458 = scalar_lea.vmem [#allocation4], %s457
          %460 = vsyncadd %s455, 0
          %s461 = smul.addr %s35, 2
          %s462 = scalar_lea.hbm %s1, %s461
          %s464 = sshll.u32 %s462, 4
          %s465 = int_to_ptr.hbm [resolvable:$true] %s464
          %s466 = sshll.u32 %s458, 4
          %s467 = int_to_ptr.vmem [resolvable:$true] %s466
          %469 = dma.hbm_to_vmem [thread:$0]  %s465, 32, %s467, %s455
        $region60: #{tpu_custom_call.1} parent=55 // pred_fallthru
          _
        // Predicated region
        $region61: #{tpu_custom_call.1} parent=55 // pred_check
          %p470 = pneg %p102
        $region62: #{tpu_custom_call.1} parent=55 // pred_check_branch
          %472 = sbr.rel (%p470) target = $region64
        $region63: #{tpu_custom_call.1} parent=55 // pred_region
          %s473 = sand.u32 %s35, 1
          %s474 = scalar_lea.sflag [#allocation8], %s473
          %s475 = sand.u32 %s92, 1
          %s476 = smul.addr %s475, 2
          %s477 = scalar_lea.vmem [#allocation7], %s476
          %479 = vsyncadd %s474, 0
          %s480 = smul.addr %s35, 2
          %s481 = scalar_lea.hbm %s2, %s480
          %s483 = sshll.u32 %s481, 4
          %s484 = int_to_ptr.hbm [resolvable:$true] %s483
          %s485 = sshll.u32 %s477, 4
          %s486 = int_to_ptr.vmem [resolvable:$true] %s485
          %488 = dma.hbm_to_vmem [thread:$0]  %s484, 32, %s486, %s474
        $region64: #{tpu_custom_call.1} parent=55 // pred_fallthru
          _
      $region56: #{tpu_custom_call.1} parent=5 // pred_fallthru
        _
      %p489 = scmp.le.s32.totalorder 1, %s35
      %p490 = scmp.lt.s32.totalorder %s35, 3
      %p491 = pnand %p489, %p490
      %p492 = pneg %p491
      // Predicated region
      $region65: #{tpu_custom_call.1} parent=5 // pred_check
        _
      $region66: #{tpu_custom_call.1} parent=5 // pred_check_branch
        %494 = sbr.rel (%p491) target = $region68
      $region67: #{tpu_custom_call.1} parent=5 // pred_region
        %s495 = ssub.s32 %s35, 1
        %s496 = sand.u32 %s69, 1
        %s497 = scalar_lea.sflag [#allocation5], %s496
        %s498 = sand.u32 %s69, 1
        %s499 = smul.addr %s498, 2
        %s500 = scalar_lea.vmem [#allocation4], %s499
        // Predicated region
        $region69: #{tpu_custom_call.1} parent=67 // pred_check
          %p501 = pneg %p82
        $region70: #{tpu_custom_call.1} parent=67 // pred_check_branch
          %503 = sbr.rel (%p501) target = $region72
        $region71: #{tpu_custom_call.1} parent=67 // pred_region
          %505 = dma.done %s497, 32
        $region72: #{tpu_custom_call.1} parent=67 // pred_fallthru
          _
        %s506 = sand.u32 %s40, 1
        %s507 = scalar_lea.sflag [#allocation8], %s506
        %s508 = sand.u32 %s95, 1
        %s509 = smul.addr %s508, 2
        %s510 = scalar_lea.vmem [#allocation7], %s509
        // Predicated region
        $region73: #{tpu_custom_call.1} parent=67 // pred_check
          %p511 = pneg %p108
        $region74: #{tpu_custom_call.1} parent=67 // pred_check_branch
          %513 = sbr.rel (%p511) target = $region76
        $region75: #{tpu_custom_call.1} parent=67 // pred_region
          %515 = dma.done %s507, 32
        $region76: #{tpu_custom_call.1} parent=67 // pred_fallthru
          _
        // Predicated region
        $region77: #{tpu_custom_call.1} parent=67 // pred_check
          %p516 = pneg %p171
        $region78: #{tpu_custom_call.1} parent=67 // pred_check_branch
          %518 = sbr.rel (%p516) target = $region80
        $region79: #{tpu_custom_call.1} parent=67 // pred_region
          %520 = dma.done [#allocation8], 768
        $region80: #{tpu_custom_call.1} parent=67 // pred_fallthru
          _
        // Predicated region
        $region81: #{tpu_custom_call.1} parent=67 // pred_check
          %p521 = pneg %p192
        $region82: #{tpu_custom_call.1} parent=67 // pred_check_branch
          %523 = sbr.rel (%p521) target = $region84
        $region83: #{tpu_custom_call.1} parent=67 // pred_region
          %525 = dma.done [#allocation11], 768
        $region84: #{tpu_custom_call.1} parent=67 // pred_fallthru
          _
        // Predicated region
        $region85: #{tpu_custom_call.1} parent=67 // pred_check
          %p526 = pneg %p213
        $region86: #{tpu_custom_call.1} parent=67 // pred_check_branch
          %528 = sbr.rel (%p526) target = $region88
        $region87: #{tpu_custom_call.1} parent=67 // pred_region
          %530 = dma.done [#allocation11], 512
        $region88: #{tpu_custom_call.1} parent=67 // pred_fallthru
          _
        // Predicated region
        $region89: #{tpu_custom_call.1} parent=67 // pred_check
          %p531 = pneg %p234
        $region90: #{tpu_custom_call.1} parent=67 // pred_check_branch
          %533 = sbr.rel (%p531) target = $region92
        $region91: #{tpu_custom_call.1} parent=67 // pred_region
          %535 = dma.done [#allocation14], 128
        $region92: #{tpu_custom_call.1} parent=67 // pred_fallthru
          _
        // Predicated region
        $region93: #{tpu_custom_call.1} parent=67 // pred_check
          %p536 = pneg %p255
        $region94: #{tpu_custom_call.1} parent=67 // pred_check_branch
          %538 = sbr.rel (%p536) target = $region96
        $region95: #{tpu_custom_call.1} parent=67 // pred_region
          %540 = dma.done [#allocation14], 640
        $region96: #{tpu_custom_call.1} parent=67 // pred_fallthru
          _
        %p541 = pneg %p56
        %p542 = pneg %p53
        %s543 = sand.u32 %s69, 1
        %s544 = scalar_lea.sflag [#allocation5], %s543
        %s545 = sand.u32 %s69, 1
        %s546 = smul.addr %s545, 2
        %s547 = scalar_lea.vmem [#allocation4], %s546
        %p548 = pneg %p82
        %p549 = pneg %p79
        %s550 = sand.u32 %s40, 1
        %s551 = scalar_lea.sflag [#allocation8], %s550
        %s552 = sand.u32 %s95, 1
        %s553 = smul.addr %s552, 2
        %s554 = scalar_lea.vmem [#allocation7], %s553
        %p555 = pneg %p108
        %p556 = pneg %p105
        %p557 = pneg %p129
        %p558 = pneg %p126
        %p559 = pneg %p150
        %p560 = pneg %p147
        %p561 = pneg %p171
        %p562 = pneg %p168
        %p563 = pneg %p192
        %p564 = pneg %p189
        %p565 = pneg %p213
        %p566 = pneg %p210
        %p567 = pneg %p234
        %p568 = pneg %p231
        %p569 = pneg %p255
        %p570 = pneg %p252
        %p571 = pneg %p276
        %p572 = pneg %p273
        %p573 = pneg %p297
        %p574 = pneg %p294
        %p575 = pneg %p323
        %p576 = pneg %p320
        %s577 = sand.u32 %s310, 1
        %s578 = scalar_lea.sflag [#allocation6], %s577
        %s579 = sand.u32 %s310, 1
        %s580 = smul.addr %s579, 2
        %s581 = scalar_lea.vmem [#allocation16], %s580
        %p582 = pneg %p349
        %p583 = pneg %p346
        %s584 = sand.u32 %s336, 1
        %s585 = scalar_lea.sflag [#allocation18], %s584
        %s586 = sand.u32 %s336, 1
        %s587 = smul.addr %s586, 2
        %s588 = scalar_lea.vmem [#allocation17], %s587
        %s589 = sld [smem:[#allocation3]]
        %v590 = vld [vmem:[%s510] sm:$0x3]
        %v591 = vld [vmem:[%s500] sm:$0x3]
        %v592 = vld [vmem:[%s3] sm:$0xff]
        %v593 = vld [vmem:[%s3 + $0x8] sm:$0xff]
        %v594 = vld [vmem:[%s3 + $0x10] sm:$0x1]
        %v595 = vld [vmem:[%s3 + $0x18] sm:$0x1]
        %v596 = vld [vmem:[%s4] sm:$0xff]
        %v597 = vld [vmem:[%s4 + $0x8] sm:$0xff]
        %v598 = vld [vmem:[%s4 + $0x10] sm:$0xff]
        %v599 = vld [vmem:[%s4 + $0x18] sm:$0xff]
        %v600 = vld [vmem:[%s4 + $0x20] sm:$0xff]
        %v601 = vld [vmem:[%s4 + $0x28] sm:$0xff]
        %v602 = vld [vmem:[%s4 + $0x30] sm:$0x1]
        %v603 = vld [vmem:[%s4 + $0x38] sm:$0x1]
        %v604 = vld [vmem:[#allocation9] sm:$0xff]
        %v605 = vld [vmem:[#allocation9 + $0x8] sm:$0xff]
        %v606 = vld [vmem:[#allocation9 + $0x10] sm:$0xff]
        %v607 = vld [vmem:[#allocation9 + $0x18] sm:$0xff]
        %v608 = vld [vmem:[#allocation9 + $0x20] sm:$0x3]
        %v609 = vld [vmem:[#allocation9 + $0x28] sm:$0x3]
        %v610 = vld [vmem:[#allocation10] sm:$0xff]
        %v611 = vld [vmem:[#allocation10 + $0x8] sm:$0xff]
        %v612 = vld [vmem:[#allocation10 + $0x10] sm:$0xff]
        %v613 = vld [vmem:[#allocation10 + $0x18] sm:$0xff]
        %v614 = vld [vmem:[#allocation10 + $0x20] sm:$0x3]
        %v615 = vld [vmem:[#allocation10 + $0x28] sm:$0x3]
        %v616 = vld [vmem:[#allocation12] sm:$0xff]
        %v617 = vld [vmem:[#allocation12 + $0x8] sm:$0xff]
        %v618 = vld [vmem:[#allocation12 + $0x10] sm:$0x1]
        %v619 = vld [vmem:[#allocation12 + $0x18] sm:$0x1]
        %v621 = vperm.slane %v590, 0
        %v622 = vperm.slane %v590, 1
        %625 = vrot.lane.b32.xlu0 %v621, 17
        %v626 = vpop.permute.xlu0 %625
        %627 = vrot.lane.b32.xlu0 %v622, 17
        %v628 = vpop.permute.xlu0 %627
        %v629 = vlaneseq
        %v630 = vand.u32 %v629, 127
        %vm631 = vcmp.lt.s32.totalorder %v630, 17
        %v632 = vsel %vm631, %v626, %v628
        %v633 = vsel %vm631, %v628, %v626
        %v634 = vmul.f32 %v633, %v592
        %v635 = vmul.f32 %v632, %v593
        %v636 = vmul.f32 %v604, %v633
        %v637 = vmul.f32 %v605, %v632
        %v640 = vrot.slane %v633, 7
        %v641 = vrot.slane %v632, 7
        %v644 = vmul.f32 %v606, %v640
        %v645 = vmul.f32 %v607, %v641
        %646 = vrot.lane.b32.xlu0 %v621, 16
        %v647 = vpop.permute.xlu0 %646
        %648 = vrot.lane.b32.xlu0 %v622, 16
        %v649 = vpop.permute.xlu0 %648
        %vm650 = vcmp.lt.s32.totalorder %v630, 16
        %v651 = vsel %vm650, %v647, %v649
        %v652 = vsel %vm650, %v649, %v647
        %v655 = vrot.slane %v592, 1
        %v656 = vrot.slane %v593, 1
        %v659 = vmul.f32 %v652, %v655
        %v660 = vmul.f32 %v651, %v656
        %v663 = vrot.slane %v652, 7
        %v664 = vrot.slane %v651, 7
        %v667 = vmul.f32 %v604, %v663
        %v668 = vmul.f32 %v605, %v664
        %v669 = vrot.slane %v652, 6
        %v670 = vrot.slane %v651, 6
        %v673 = vmul.f32 %v606, %v669
        %v674 = vmul.f32 %v607, %v670
        %v677 = vrot.slane %v667, 1
        %v678 = vrot.slane %v668, 1
        %v681 = vadd.f32 %v636, %v677
        %v682 = vadd.f32 %v637, %v678
        %v685 = vrot.slane %v673, 1
        %v686 = vrot.slane %v674, 1
        %v689 = vadd.f32 %v644, %v685
        %v690 = vadd.f32 %v645, %v686
        %691 = vrot.lane.b32.xlu0 %v621, 15
        %v692 = vpop.permute.xlu0 %691
        %693 = vrot.lane.b32.xlu0 %v622, 15
        %v694 = vpop.permute.xlu0 %693
        %vm695 = vcmp.lt.s32.totalorder %v630, 15
        %v696 = vsel %vm695, %v692, %v694
        %v697 = vsel %vm695, %v694, %v692
        %v698 = vrot.slane %v592, 2
        %v699 = vrot.slane %v593, 2
        %v702 = vmul.f32 %v697, %v698
        %v703 = vmul.f32 %v696, %v699
        %v706 = vrot.slane %v697, 6
        %v707 = vrot.slane %v696, 6
        %v710 = vmul.f32 %v604, %v706
        %v711 = vmul.f32 %v605, %v707
        %v712 = vrot.slane %v697, 5
        %v713 = vrot.slane %v696, 5
        %v716 = vmul.f32 %v606, %v712
        %v717 = vmul.f32 %v607, %v713
        %v720 = vrot.slane %v710, 2
        %v721 = vrot.slane %v711, 2
        %v724 = vadd.f32 %v681, %v720
        %v725 = vadd.f32 %v682, %v721
        %v728 = vrot.slane %v716, 2
        %v729 = vrot.slane %v717, 2
        %v732 = vadd.f32 %v689, %v728
        %v733 = vadd.f32 %v690, %v729
        %734 = vrot.lane.b32.xlu0 %v621, 1
        %v735 = vpop.permute.xlu0 %734
        %736 = vrot.lane.b32.xlu0 %v622, 1
        %v737 = vpop.permute.xlu0 %736
        %vm738 = vcmp.lt.s32.totalorder %v630, 1
        %v739 = vsel %vm738, %v735, %v737
        %v740 = vsel %vm738, %v737, %v735
        %v741 = vrot.slane %v592, 3
        %v742 = vrot.slane %v593, 3
        %v745 = vmul.f32 %v740, %v741
        %v746 = vmul.f32 %v739, %v742
        %v749 = vrot.slane %v740, 5
        %v750 = vrot.slane %v739, 5
        %v753 = vmul.f32 %v604, %v749
        %v754 = vmul.f32 %v605, %v750
        %v755 = vrot.slane %v740, 4
        %v756 = vrot.slane %v739, 4
        %v759 = vmul.f32 %v606, %v755
        %v760 = vmul.f32 %v607, %v756
        %v763 = vrot.slane %v753, 3
        %v764 = vrot.slane %v754, 3
        %v767 = vadd.f32 %v724, %v763
        %v768 = vadd.f32 %v725, %v764
        %v771 = vrot.slane %v759, 3
        %v772 = vrot.slane %v760, 3
        %v775 = vadd.f32 %v732, %v771
        %v776 = vadd.f32 %v733, %v772
        %777 = vst [vmem:[#allocation1] sm:$0xff] %v592
        %778 = vst [vmem:[#allocation1 + $0x9] sm:$0xff] %v593
        %s779 = scalar_lea.vmem [#allocation1], 4
        %v780 = vld [vmem:[%s779] ss:$9 sm:$0xff]
        %v782 = vmul.f32 %v590, %v780
        %v783 = vmul.f32 %v604, %v621
        %v784 = vmul.f32 %v605, %v622
        %v785 = vmul.f32 %v606, %v621
        %v786 = vmul.f32 %v607, %v622
        %v789 = vrot.slane %v783, 4
        %v790 = vrot.slane %v784, 4
        %v793 = vadd.f32 %v767, %v789
        %v794 = vadd.f32 %v768, %v790
        %v797 = vrot.slane %v785, 4
        %v798 = vrot.slane %v786, 4
        %v801 = vadd.f32 %v775, %v797
        %v802 = vadd.f32 %v776, %v798
        %803 = vrot.lane.b32.xlu0 %v621, 127
        %v804 = vpop.permute.xlu0 %803
        %805 = vrot.lane.b32.xlu0 %v622, 127
        %v806 = vpop.permute.xlu0 %805
        %vm807 = vcmp.lt.s32.totalorder %v630, 127
        %v808 = vsel %vm807, %v804, %v806
        %v809 = vsel %vm807, %v806, %v804
        %v810 = vrot.slane %v592, 5
        %v811 = vrot.slane %v593, 5
        %v814 = vmul.f32 %v808, %v810
        %v815 = vmul.f32 %v809, %v811
        %v818 = vrot.slane %v808, 3
        %v819 = vrot.slane %v809, 3
        %v822 = vmul.f32 %v604, %v818
        %v823 = vmul.f32 %v605, %v819
        %v824 = vrot.slane %v808, 2
        %v825 = vrot.slane %v809, 2
        %v828 = vmul.f32 %v606, %v824
        %v829 = vmul.f32 %v607, %v825
        %v832 = vrot.slane %v822, 5
        %v833 = vrot.slane %v823, 5
        %v836 = vadd.f32 %v793, %v832
        %v837 = vadd.f32 %v794, %v833
        %v840 = vrot.slane %v828, 5
        %v841 = vrot.slane %v829, 5
        %v844 = vadd.f32 %v801, %v840
        %v845 = vadd.f32 %v802, %v841
        %846 = vrot.lane.b32.xlu0 %v621, 113
        %v847 = vpop.permute.xlu0 %846
        %848 = vrot.lane.b32.xlu0 %v622, 113
        %v849 = vpop.permute.xlu0 %848
        %vm850 = vcmp.lt.s32.totalorder %v630, 113
        %v851 = vsel %vm850, %v847, %v849
        %v852 = vsel %vm850, %v849, %v847
        %v853 = vrot.slane %v592, 6
        %v854 = vrot.slane %v593, 6
        %v857 = vmul.f32 %v851, %v853
        %v858 = vmul.f32 %v852, %v854
        %v861 = vrot.slane %v851, 2
        %v862 = vrot.slane %v852, 2
        %v865 = vmul.f32 %v604, %v861
        %v866 = vmul.f32 %v605, %v862
        %v867 = vrot.slane %v851, 1
        %v868 = vrot.slane %v852, 1
        %v871 = vmul.f32 %v606, %v867
        %v872 = vmul.f32 %v607, %v868
        %v875 = vrot.slane %v865, 6
        %v876 = vrot.slane %v866, 6
        %v879 = vadd.f32 %v836, %v875
        %v880 = vadd.f32 %v837, %v876
        %v883 = vrot.slane %v871, 6
        %v884 = vrot.slane %v872, 6
        %v887 = vadd.f32 %v844, %v883
        %v888 = vadd.f32 %v845, %v884
        %889 = vrot.lane.b32.xlu0 %v621, 112
        %v890 = vpop.permute.xlu0 %889
        %891 = vrot.lane.b32.xlu0 %v622, 112
        %v892 = vpop.permute.xlu0 %891
        %vm893 = vcmp.lt.s32.totalorder %v630, 112
        %v894 = vsel %vm893, %v890, %v892
        %v895 = vsel %vm893, %v892, %v890
        %v896 = vrot.slane %v592, 7
        %v897 = vrot.slane %v593, 7
        %v900 = vmul.f32 %v894, %v896
        %v901 = vmul.f32 %v895, %v897
        %v904 = vrot.slane %v894, 1
        %v905 = vrot.slane %v895, 1
        %v908 = vmul.f32 %v604, %v904
        %v909 = vmul.f32 %v605, %v905
        %v910 = vmul.f32 %v608, %v894
        %v911 = vmul.f32 %v609, %v895
        %v914 = vrot.slane %v908, 7
        %v915 = vrot.slane %v909, 7
        %v918 = vadd.f32 %v879, %v914
        %v919 = vadd.f32 %v880, %v915
        %v922 = vrot.slane %v910, 7
        %v923 = vrot.slane %v911, 7
        %v926 = vadd.f32 %v887, %v922
        %v927 = vadd.f32 %v888, %v923
        %928 = vrot.lane.b32.xlu0 %v621, 111
        %v929 = vpop.permute.xlu0 %928
        %930 = vrot.lane.b32.xlu0 %v622, 111
        %v931 = vpop.permute.xlu0 %930
        %vm932 = vcmp.lt.s32.totalorder %v630, 111
        %v933 = vsel %vm932, %v929, %v931
        %v934 = vsel %vm932, %v931, %v929
        %v935 = vmul.f32 %v933, %v594
        %v936 = vmul.f32 %v934, %v595
        %v937 = vmul.f32 %v606, %v933
        %v938 = vmul.f32 %v607, %v934
        %v941 = vrot.slane %v933, 7
        %v942 = vrot.slane %v934, 7
        %v945 = vmul.f32 %v608, %v941
        %v946 = vmul.f32 %v609, %v942
        %v947 = vadd.f32 %v918, %v937
        %v948 = vadd.f32 %v919, %v938
        %v949 = vadd.f32 %v926, %v945
        %v950 = vadd.f32 %v927, %v946
        %v951 = vstv %s589
        %v952 = vsub.f32 %v947, %v951
        %v953 = vsub.f32 %v948, %v951
        %v954 = vmax.f32 %v952, 0.0
        %v955 = vmax.f32 %v953, 0.0
        %v956 = vsub.f32 0.0, %v947
        %v957 = vsub.f32 0.0, %v948
        %v958 = vsub.f32 %v956, %v951
        %v959 = vsub.f32 %v957, %v951
        %v960 = vmax.f32 %v958, 0.0
        %v961 = vmax.f32 %v959, 0.0
        %v962 = vsub.f32 %v954, %v960
        %v963 = vsub.f32 %v955, %v961
        %v964 = vsub.f32 %v949, %v951
        %v965 = vsub.f32 %v950, %v951
        %v966 = vmax.f32 %v964, 0.0
        %v967 = vmax.f32 %v965, 0.0
        %v968 = vsub.f32 0.0, %v949
        %v969 = vsub.f32 0.0, %v950
        %v970 = vsub.f32 %v968, %v951
        %v971 = vsub.f32 %v969, %v951
        %v972 = vmax.f32 %v970, 0.0
        %v973 = vmax.f32 %v971, 0.0
        %v974 = vsub.f32 %v966, %v972
        %v975 = vsub.f32 %v967, %v973
        %976 = vrot.lane.b32.xlu0 %v962, 17
        %v977 = vpop.permute.xlu0 %976
        %978 = vrot.lane.b32.xlu0 %v963, 17
        %v979 = vpop.permute.xlu0 %978
        %v980 = vsel %vm631, %v977, %v979
        %v981 = vsel %vm631, %v979, %v977
        %v982 = vmul.f32 %v610, %v981
        %v983 = vmul.f32 %v611, %v980
        %v986 = vrot.slane %v974, 1
        %v987 = vrot.slane %v975, 1
        %990 = vrot.lane.b32.xlu0 %v986, 17
        %v991 = vpop.permute.xlu0 %990
        %992 = vrot.lane.b32.xlu0 %v987, 17
        %v993 = vpop.permute.xlu0 %992
        %v994 = vsel %vm631, %v991, %v993
        %v995 = vsel %vm631, %v993, %v991
        %v998 = vrot.slane %v995, 7
        %v999 = vrot.slane %v994, 7
        %v1002 = vmul.f32 %v612, %v998
        %v1003 = vmul.f32 %v613, %v999
        %v1006 = vrot.slane %v1002, 1
        %v1007 = vrot.slane %v1003, 1
        %v1010 = vadd.f32 %v982, %v1006
        %v1011 = vadd.f32 %v983, %v1007
        %v1013 = vperm.slane %v591, 0
        %v1014 = vperm.slane %v591, 1
        %1017 = vrot.lane.b32.xlu0 %v1013, 17
        %v1018 = vpop.permute.xlu0 %1017
        %1019 = vrot.lane.b32.xlu0 %v1014, 17
        %v1020 = vpop.permute.xlu0 %1019
        %v1021 = vsel %vm631, %v1018, %v1020
        %v1022 = vsel %vm631, %v1020, %v1018
        %v1023 = vmul.f32 %v616, %v1022
        %v1024 = vmul.f32 %v617, %v1021
        %v1025 = vadd.f32 %v1010, %v1023
        %v1026 = vadd.f32 %v1011, %v1024
        %1027 = vrot.lane.b32.xlu0 %v962, 16
        %v1028 = vpop.permute.xlu0 %1027
        %1029 = vrot.lane.b32.xlu0 %v963, 16
        %v1030 = vpop.permute.xlu0 %1029
        %v1031 = vsel %vm650, %v1028, %v1030
        %v1032 = vsel %vm650, %v1030, %v1028
        %v1035 = vrot.slane %v1032, 7
        %v1036 = vrot.slane %v1031, 7
        %v1039 = vmul.f32 %v610, %v1035
        %v1040 = vmul.f32 %v611, %v1036
        %1041 = vrot.lane.b32.xlu0 %v986, 16
        %v1042 = vpop.permute.xlu0 %1041
        %1043 = vrot.lane.b32.xlu0 %v987, 16
        %v1044 = vpop.permute.xlu0 %1043
        %v1045 = vsel %vm650, %v1042, %v1044
        %v1046 = vsel %vm650, %v1044, %v1042
        %v1049 = vrot.slane %v1046, 6
        %v1050 = vrot.slane %v1045, 6
        %v1053 = vmul.f32 %v612, %v1049
        %v1054 = vmul.f32 %v613, %v1050
        %v1057 = vrot.slane %v1053, 1
        %v1058 = vrot.slane %v1054, 1
        %v1061 = vadd.f32 %v1039, %v1057
        %v1062 = vadd.f32 %v1040, %v1058
        %1063 = vrot.lane.b32.xlu0 %v1013, 16
        %v1064 = vpop.permute.xlu0 %1063
        %1065 = vrot.lane.b32.xlu0 %v1014, 16
        %v1066 = vpop.permute.xlu0 %1065
        %v1067 = vsel %vm650, %v1064, %v1066
        %v1068 = vsel %vm650, %v1066, %v1064
        %v1071 = vrot.slane %v1068, 7
        %v1072 = vrot.slane %v1067, 7
        %v1075 = vmul.f32 %v616, %v1071
        %v1076 = vmul.f32 %v617, %v1072
        %v1077 = vadd.f32 %v1061, %v1075
        %v1078 = vadd.f32 %v1062, %v1076
        %v1081 = vrot.slane %v1077, 1
        %v1082 = vrot.slane %v1078, 1
        %v1085 = vadd.f32 %v1025, %v1081
        %v1086 = vadd.f32 %v1026, %v1082
        %1087 = vrot.lane.b32.xlu0 %v962, 15
        %v1088 = vpop.permute.xlu0 %1087
        %1089 = vrot.lane.b32.xlu0 %v963, 15
        %v1090 = vpop.permute.xlu0 %1089
        %v1091 = vsel %vm695, %v1088, %v1090
        %v1092 = vsel %vm695, %v1090, %v1088
        %v1095 = vrot.slane %v1092, 6
        %v1096 = vrot.slane %v1091, 6
        %v1099 = vmul.f32 %v610, %v1095
        %v1100 = vmul.f32 %v611, %v1096
        %1101 = vrot.lane.b32.xlu0 %v986, 15
        %v1102 = vpop.permute.xlu0 %1101
        %1103 = vrot.lane.b32.xlu0 %v987, 15
        %v1104 = vpop.permute.xlu0 %1103
        %v1105 = vsel %vm695, %v1102, %v1104
        %v1106 = vsel %vm695, %v1104, %v1102
        %v1109 = vrot.slane %v1106, 5
        %v1110 = vrot.slane %v1105, 5
        %v1113 = vmul.f32 %v612, %v1109
        %v1114 = vmul.f32 %v613, %v1110
        %v1117 = vrot.slane %v1113, 1
        %v1118 = vrot.slane %v1114, 1
        %v1121 = vadd.f32 %v1099, %v1117
        %v1122 = vadd.f32 %v1100, %v1118
        %1123 = vrot.lane.b32.xlu0 %v1013, 15
        %v1124 = vpop.permute.xlu0 %1123
        %1125 = vrot.lane.b32.xlu0 %v1014, 15
        %v1126 = vpop.permute.xlu0 %1125
        %v1127 = vsel %vm695, %v1124, %v1126
        %v1128 = vsel %vm695, %v1126, %v1124
        %v1131 = vrot.slane %v1128, 6
        %v1132 = vrot.slane %v1127, 6
        %v1135 = vmul.f32 %v616, %v1131
        %v1136 = vmul.f32 %v617, %v1132
        %v1137 = vadd.f32 %v1121, %v1135
        %v1138 = vadd.f32 %v1122, %v1136
        %v1141 = vrot.slane %v1137, 2
        %v1142 = vrot.slane %v1138, 2
        %v1145 = vadd.f32 %v1085, %v1141
        %v1146 = vadd.f32 %v1086, %v1142
        %1147 = vrot.lane.b32.xlu0 %v962, 1
        %v1148 = vpop.permute.xlu0 %1147
        %1149 = vrot.lane.b32.xlu0 %v963, 1
        %v1150 = vpop.permute.xlu0 %1149
        %v1151 = vsel %vm738, %v1148, %v1150
        %v1152 = vsel %vm738, %v1150, %v1148
        %v1155 = vrot.slane %v1152, 5
        %v1156 = vrot.slane %v1151, 5
        %v1159 = vmul.f32 %v610, %v1155
        %v1160 = vmul.f32 %v611, %v1156
        %1161 = vrot.lane.b32.xlu0 %v986, 1
        %v1162 = vpop.permute.xlu0 %1161
        %1163 = vrot.lane.b32.xlu0 %v987, 1
        %v1164 = vpop.permute.xlu0 %1163
        %v1165 = vsel %vm738, %v1162, %v1164
        %v1166 = vsel %vm738, %v1164, %v1162
        %v1169 = vrot.slane %v1166, 4
        %v1170 = vrot.slane %v1165, 4
        %v1173 = vmul.f32 %v612, %v1169
        %v1174 = vmul.f32 %v613, %v1170
        %v1177 = vrot.slane %v1173, 1
        %v1178 = vrot.slane %v1174, 1
        %v1181 = vadd.f32 %v1159, %v1177
        %v1182 = vadd.f32 %v1160, %v1178
        %1183 = vrot.lane.b32.xlu0 %v1013, 1
        %v1184 = vpop.permute.xlu0 %1183
        %1185 = vrot.lane.b32.xlu0 %v1014, 1
        %v1186 = vpop.permute.xlu0 %1185
        %v1187 = vsel %vm738, %v1184, %v1186
        %v1188 = vsel %vm738, %v1186, %v1184
        %v1191 = vrot.slane %v1188, 5
        %v1192 = vrot.slane %v1187, 5
        %v1195 = vmul.f32 %v616, %v1191
        %v1196 = vmul.f32 %v617, %v1192
        %v1197 = vadd.f32 %v1181, %v1195
        %v1198 = vadd.f32 %v1182, %v1196
        %v1201 = vrot.slane %v1197, 3
        %v1202 = vrot.slane %v1198, 3
        %v1205 = vadd.f32 %v1145, %v1201
        %v1206 = vadd.f32 %v1146, %v1202
        %v1209 = vrot.slane %v962, 4
        %v1210 = vrot.slane %v963, 4
        %v1213 = vmul.f32 %v610, %v1209
        %v1214 = vmul.f32 %v611, %v1210
        %v1215 = vrot.slane %v974, 4
        %v1216 = vrot.slane %v975, 4
        %v1219 = vmul.f32 %v612, %v1215
        %v1220 = vmul.f32 %v613, %v1216
        %v1223 = vrot.slane %v1219, 1
        %v1224 = vrot.slane %v1220, 1
        %v1227 = vadd.f32 %v1213, %v1223
        %v1228 = vadd.f32 %v1214, %v1224
        %v1229 = vmul.f32 %v616, %v1013
        %v1230 = vmul.f32 %v617, %v1014
        %v1231 = vadd.f32 %v1227, %v1229
        %v1232 = vadd.f32 %v1228, %v1230
        %v1235 = vrot.slane %v1231, 4
        %v1236 = vrot.slane %v1232, 4
        %v1239 = vadd.f32 %v1205, %v1235
        %v1240 = vadd.f32 %v1206, %v1236
        %1241 = vrot.lane.b32.xlu0 %v962, 127
        %v1242 = vpop.permute.xlu0 %1241
        %1243 = vrot.lane.b32.xlu0 %v963, 127
        %v1244 = vpop.permute.xlu0 %1243
        %v1245 = vsel %vm807, %v1242, %v1244
        %v1246 = vsel %vm807, %v1244, %v1242
        %v1249 = vrot.slane %v1245, 3
        %v1250 = vrot.slane %v1246, 3
        %v1253 = vmul.f32 %v610, %v1249
        %v1254 = vmul.f32 %v611, %v1250
        %1255 = vrot.lane.b32.xlu0 %v986, 127
        %v1256 = vpop.permute.xlu0 %1255
        %1257 = vrot.lane.b32.xlu0 %v987, 127
        %v1258 = vpop.permute.xlu0 %1257
        %v1259 = vsel %vm807, %v1256, %v1258
        %v1260 = vsel %vm807, %v1258, %v1256
        %v1263 = vrot.slane %v1259, 2
        %v1264 = vrot.slane %v1260, 2
        %v1267 = vmul.f32 %v612, %v1263
        %v1268 = vmul.f32 %v613, %v1264
        %v1271 = vrot.slane %v1267, 1
        %v1272 = vrot.slane %v1268, 1
        %v1275 = vadd.f32 %v1253, %v1271
        %v1276 = vadd.f32 %v1254, %v1272
        %1277 = vrot.lane.b32.xlu0 %v1013, 127
        %v1278 = vpop.permute.xlu0 %1277
        %1279 = vrot.lane.b32.xlu0 %v1014, 127
        %v1280 = vpop.permute.xlu0 %1279
        %v1281 = vsel %vm807, %v1278, %v1280
        %v1282 = vsel %vm807, %v1280, %v1278
        %v1285 = vrot.slane %v1281, 3
        %v1286 = vrot.slane %v1282, 3
        %v1289 = vmul.f32 %v616, %v1285
        %v1290 = vmul.f32 %v617, %v1286
        %v1291 = vadd.f32 %v1275, %v1289
        %v1292 = vadd.f32 %v1276, %v1290
        %v1295 = vrot.slane %v1291, 5
        %v1296 = vrot.slane %v1292, 5
        %v1299 = vadd.f32 %v1239, %v1295
        %v1300 = vadd.f32 %v1240, %v1296
        %1301 = vrot.lane.b32.xlu0 %v962, 113
        %v1302 = vpop.permute.xlu0 %1301
        %1303 = vrot.lane.b32.xlu0 %v963, 113
        %v1304 = vpop.permute.xlu0 %1303
        %v1305 = vsel %vm850, %v1302, %v1304
        %v1306 = vsel %vm850, %v1304, %v1302
        %v1309 = vrot.slane %v1305, 2
        %v1310 = vrot.slane %v1306, 2
        %v1313 = vmul.f32 %v610, %v1309
        %v1314 = vmul.f32 %v611, %v1310
        %1315 = vrot.lane.b32.xlu0 %v986, 113
        %v1316 = vpop.permute.xlu0 %1315
        %1317 = vrot.lane.b32.xlu0 %v987, 113
        %v1318 = vpop.permute.xlu0 %1317
        %v1319 = vsel %vm850, %v1316, %v1318
        %v1320 = vsel %vm850, %v1318, %v1316
        %v1323 = vrot.slane %v1319, 1
        %v1324 = vrot.slane %v1320, 1
        %v1327 = vmul.f32 %v612, %v1323
        %v1328 = vmul.f32 %v613, %v1324
        %v1331 = vrot.slane %v1327, 1
        %v1332 = vrot.slane %v1328, 1
        %v1335 = vadd.f32 %v1313, %v1331
        %v1336 = vadd.f32 %v1314, %v1332
        %1337 = vrot.lane.b32.xlu0 %v1013, 113
        %v1338 = vpop.permute.xlu0 %1337
        %1339 = vrot.lane.b32.xlu0 %v1014, 113
        %v1340 = vpop.permute.xlu0 %1339
        %v1341 = vsel %vm850, %v1338, %v1340
        %v1342 = vsel %vm850, %v1340, %v1338
        %v1345 = vrot.slane %v1341, 2
        %v1346 = vrot.slane %v1342, 2
        %v1349 = vmul.f32 %v616, %v1345
        %v1350 = vmul.f32 %v617, %v1346
        %v1351 = vadd.f32 %v1335, %v1349
        %v1352 = vadd.f32 %v1336, %v1350
        %v1355 = vrot.slane %v1351, 6
        %v1356 = vrot.slane %v1352, 6
        %v1359 = vadd.f32 %v1299, %v1355
        %v1360 = vadd.f32 %v1300, %v1356
        %1361 = vrot.lane.b32.xlu0 %v962, 112
        %v1362 = vpop.permute.xlu0 %1361
        %1363 = vrot.lane.b32.xlu0 %v963, 112
        %v1364 = vpop.permute.xlu0 %1363
        %v1365 = vsel %vm893, %v1362, %v1364
        %v1366 = vsel %vm893, %v1364, %v1362
        %v1369 = vrot.slane %v1365, 1
        %v1370 = vrot.slane %v1366, 1
        %v1373 = vmul.f32 %v610, %v1369
        %v1374 = vmul.f32 %v611, %v1370
        %1375 = vrot.lane.b32.xlu0 %v986, 112
        %v1376 = vpop.permute.xlu0 %1375
        %1377 = vrot.lane.b32.xlu0 %v987, 112
        %v1378 = vpop.permute.xlu0 %1377
        %v1379 = vsel %vm893, %v1376, %v1378
        %v1380 = vsel %vm893, %v1378, %v1376
        %v1381 = vmul.f32 %v614, %v1379
        %v1382 = vmul.f32 %v615, %v1380
        %v1385 = vrot.slane %v1381, 1
        %v1386 = vrot.slane %v1382, 1
        %v1389 = vadd.f32 %v1373, %v1385
        %v1390 = vadd.f32 %v1374, %v1386
        %1391 = vrot.lane.b32.xlu0 %v1013, 112
        %v1392 = vpop.permute.xlu0 %1391
        %1393 = vrot.lane.b32.xlu0 %v1014, 112
        %v1394 = vpop.permute.xlu0 %1393
        %v1395 = vsel %vm893, %v1392, %v1394
        %v1396 = vsel %vm893, %v1394, %v1392
        %v1399 = vrot.slane %v1395, 1
        %v1400 = vrot.slane %v1396, 1
        %v1403 = vmul.f32 %v616, %v1399
        %v1404 = vmul.f32 %v617, %v1400
        %v1405 = vadd.f32 %v1389, %v1403
        %v1406 = vadd.f32 %v1390, %v1404
        %v1409 = vrot.slane %v1405, 7
        %v1410 = vrot.slane %v1406, 7
        %v1413 = vadd.f32 %v1359, %v1409
        %v1414 = vadd.f32 %v1360, %v1410
        %1415 = vrot.lane.b32.xlu0 %v962, 111
        %v1416 = vpop.permute.xlu0 %1415
        %1417 = vrot.lane.b32.xlu0 %v963, 111
        %v1418 = vpop.permute.xlu0 %1417
        %v1419 = vsel %vm932, %v1416, %v1418
        %v1420 = vsel %vm932, %v1418, %v1416
        %v1421 = vmul.f32 %v612, %v1419
        %v1422 = vmul.f32 %v613, %v1420
        %1423 = vrot.lane.b32.xlu0 %v986, 111
        %v1424 = vpop.permute.xlu0 %1423
        %1425 = vrot.lane.b32.xlu0 %v987, 111
        %v1426 = vpop.permute.xlu0 %1425
        %v1427 = vsel %vm932, %v1424, %v1426
        %v1428 = vsel %vm932, %v1426, %v1424
        %v1431 = vrot.slane %v1427, 7
        %v1432 = vrot.slane %v1428, 7
        %v1435 = vmul.f32 %v614, %v1431
        %v1436 = vmul.f32 %v615, %v1432
        %v1439 = vrot.slane %v1435, 1
        %v1440 = vrot.slane %v1436, 1
        %v1443 = vadd.f32 %v1421, %v1439
        %v1444 = vadd.f32 %v1422, %v1440
        %1445 = vrot.lane.b32.xlu0 %v1013, 111
        %v1446 = vpop.permute.xlu0 %1445
        %1447 = vrot.lane.b32.xlu0 %v1014, 111
        %v1448 = vpop.permute.xlu0 %1447
        %v1449 = vsel %vm932, %v1446, %v1448
        %v1450 = vsel %vm932, %v1448, %v1446
        %v1451 = vmul.f32 %v618, %v1449
        %v1452 = vmul.f32 %v619, %v1450
        %v1453 = vadd.f32 %v1443, %v1451
        %v1454 = vadd.f32 %v1444, %v1452
        %v1455 = vadd.f32 %v1413, %v1453
        %v1456 = vadd.f32 %v1414, %v1454
        %v1459 = vrot.slane %v659, 7
        %v1460 = vrot.slane %v660, 7
        %v1465 = vrot.slane %v702, 6
        %v1466 = vrot.slane %v703, 6
        %v1471 = vrot.slane %v745, 5
        %v1472 = vrot.slane %v746, 5
        %v1476 = vperm.slane %v782, 0
        %v1477 = vperm.slane %v782, 1
        %v1482 = vrot.slane %v814, 3
        %v1483 = vrot.slane %v815, 3
        %v1488 = vrot.slane %v857, 2
        %v1489 = vrot.slane %v858, 2
        %v1494 = vrot.slane %v900, 1
        %v1495 = vrot.slane %v901, 1
        %vm1498 = vcmask 1040384
        %v1499 = vsel %vm1498, %v634, %v1459
        %v1500 = vsel %vm1498, %v635, %v1460
        %vm1501 = vcmask 1041408
        %v1502 = vsel %vm1501, %v1499, %v1465
        %v1503 = vsel %vm1501, %v1500, %v1466
        %vm1504 = vcmask 1042432
        %v1505 = vsel %vm1504, %v1502, %v1471
        %v1506 = vsel %vm1504, %v1503, %v1472
        %vm1507 = vcmask 1043456
        %v1508 = vsel %vm1507, %v1505, %v1476
        %v1509 = vsel %vm1507, %v1506, %v1477
        %vm1510 = vcmask 1044480
        %v1511 = vsel %vm1510, %v1508, %v1482
        %v1512 = vsel %vm1510, %v1509, %v1483
        %vm1513 = vcmask 1045504
        %v1514 = vsel %vm1513, %v1511, %v1488
        %v1515 = vsel %vm1513, %v1512, %v1489
        %vm1516 = vcmask 1046528
        %v1517 = vsel %vm1516, %v1514, %v1494
        %v1518 = vsel %vm1516, %v1515, %v1495
        %v1519 = vsel %vm1498, %v935, 0.0
        %v1520 = vsel %vm1498, %v936, 0.0
        %v1521 = vld [vmem:[#allocation13] sm:$0xff]
        %v1522 = vld [vmem:[%s10] sm:$0xff]
        %1524 = vset.pattern.permute.xlu0 0
        %1525 = vperm.xlu0 %1524, %v1522
        %v1526 = vpop.permute.xlu0 %1525
        %vm1528 = vcmask 130048
        %v1530 = vsel %vm1528, %v1521, 0
        %1532 = vmatpush.msra.mxu0 0.0
        %1533 = vmatpush.msra.mxu0 0.0
        %1534 = vmatpush.msra.mxu0 0.0
        %1535 = vmatpush.msra.mxu0 0.0
        %1536 = vmatpush.msra.mxu0 0.0
        %1537 = vmatpush.msra.mxu0 0.0
        %1538 = vmatpush.msra.mxu0 0.0
        %1539 = vmatpush.msra.mxu0 0.0
        %1540 = vmatpush.msra.mxu0 0.0
        %1541 = vmatpush.msra.mxu0 0.0
        %1542 = vmatpush.msra.mxu0 0.0
        %1543 = vmatpush.msra.mxu0 0.0
        %1544 = vmatpush.msra.mxu0 0.0
        %1545 = vmatpush.msra.mxu0 0.0
        %1546 = vmatpush.msra.mxu0 %v1519
        %1547 = vmatpush.msra.mxu0 %v1517
        %1548 = vmatmul.f32.gmra.mxu0 %v1530
        %v1549 = vpop.f32.mrf.mxu0
        %v1550 = vadd.f32 %v1526, %v1549
        %1551 = vdwg.mxu0
        %1552 = vmatpush.msra.mxu0 0.0
        %1553 = vmatpush.msra.mxu0 0.0
        %1554 = vmatpush.msra.mxu0 0.0
        %1555 = vmatpush.msra.mxu0 0.0
        %1556 = vmatpush.msra.mxu0 0.0
        %1557 = vmatpush.msra.mxu0 0.0
        %1558 = vmatpush.msra.mxu0 0.0
        %1559 = vmatpush.msra.mxu0 0.0
        %1560 = vmatpush.msra.mxu0 0.0
        %1561 = vmatpush.msra.mxu0 0.0
        %1562 = vmatpush.msra.mxu0 0.0
        %1563 = vmatpush.msra.mxu0 0.0
        %1564 = vmatpush.msra.mxu0 0.0
        %1565 = vmatpush.msra.mxu0 0.0
        %1566 = vmatpush.msra.mxu0 %v1520
        %1567 = vmatpush.msra.mxu0 %v1518
        %1568 = vmatmul.f32.gmra.mxu0 %v1530
        %v1569 = vpop.f32.mrf.mxu0
        %v1570 = vadd.f32 %v1526, %v1569
        %1571 = vdwg.mxu0
        %vm1572 = vcmp.ge.f32.partialorder %v1550, 0.0
        %vm1573 = vcmp.ge.f32.partialorder %v1570, 0.0
        %v1574 = vld [vmem:[%s11] sm:$0xff]
        %1576 = vset.pattern.permute.xlu0 0
        %1577 = vperm.xlu0 %1576, %v1574
        %v1578 = vpop.permute.xlu0 %1577
        %v1580 = vmul.f32 %v1578, %v1550
        %v1581 = vmul.f32 %v1578, %v1570
        %v1582 = vsel %vm1572, %v1550, %v1580
        %v1583 = vsel %vm1573, %v1570, %v1581
        %1584 = vrot.lane.b32.xlu0 %v1582, 17
        %v1585 = vpop.permute.xlu0 %1584
        %1586 = vrot.lane.b32.xlu0 %v1583, 17
        %v1587 = vpop.permute.xlu0 %1586
        %v1588 = vsel %vm631, %v1585, %v1587
        %v1589 = vsel %vm631, %v1587, %v1585
        %v1590 = vperm.slane %v592, 0
        %v1591 = vperm.slane %v593, 0
        %v1592 = vmul.f32 %v1589, %v1590
        %v1593 = vmul.f32 %v1588, %v1591
        %1594 = vst [vmem:[#allocation2] sm:$0xff] %v1592
        %1595 = vst [vmem:[#allocation2 + $0x8] sm:$0xff] %v1593
        %1596 = vrot.lane.b32.xlu0 %v1582, 16
        %v1597 = vpop.permute.xlu0 %1596
        %1598 = vrot.lane.b32.xlu0 %v1583, 16
        %v1599 = vpop.permute.xlu0 %1598
        %v1600 = vsel %vm650, %v1597, %v1599
        %v1601 = vsel %vm650, %v1599, %v1597
        %v1602 = vperm.slane %v592, 1
        %v1603 = vperm.slane %v593, 1
        %v1604 = vmul.f32 %v1601, %v1602
        %v1605 = vmul.f32 %v1600, %v1603
        %1606 = vst [vmem:[#allocation2 + $0x10] sm:$0xff] %v1604
        %1607 = vst [vmem:[#allocation2 + $0x18] sm:$0xff] %v1605
        %1608 = vrot.lane.b32.xlu0 %v1582, 15
        %v1609 = vpop.permute.xlu0 %1608
        %1610 = vrot.lane.b32.xlu0 %v1583, 15
        %v1611 = vpop.permute.xlu0 %1610
        %v1612 = vsel %vm695, %v1609, %v1611
        %v1613 = vsel %vm695, %v1611, %v1609
        %v1614 = vperm.slane %v592, 2
        %v1615 = vperm.slane %v593, 2
        %v1616 = vmul.f32 %v1613, %v1614
        %v1617 = vmul.f32 %v1612, %v1615
        %1618 = vst [vmem:[#allocation2 + $0x20] sm:$0xff] %v1616
        %1619 = vst [vmem:[#allocation2 + $0x28] sm:$0xff] %v1617
        %1620 = vrot.lane.b32.xlu0 %v1582, 1
        %v1621 = vpop.permute.xlu0 %1620
        %1622 = vrot.lane.b32.xlu0 %v1583, 1
        %v1623 = vpop.permute.xlu0 %1622
        %v1624 = vsel %vm738, %v1621, %v1623
        %v1625 = vsel %vm738, %v1623, %v1621
        %v1626 = vperm.slane %v592, 3
        %v1627 = vperm.slane %v593, 3
        %v1628 = vmul.f32 %v1625, %v1626
        %v1629 = vmul.f32 %v1624, %v1627
        %1630 = vst [vmem:[#allocation2 + $0x30] sm:$0xff] %v1628
        %1631 = vst [vmem:[#allocation2 + $0x38] sm:$0xff] %v1629
        %v1632 = vperm.slane %v592, 4
        %v1633 = vperm.slane %v593, 4
        %v1634 = vmul.f32 %v1582, %v1632
        %v1635 = vmul.f32 %v1583, %v1633
        %1636 = vst [vmem:[#allocation2 + $0x40] sm:$0xff] %v1634
        %1637 = vst [vmem:[#allocation2 + $0x48] sm:$0xff] %v1635
        %1638 = vrot.lane.b32.xlu0 %v1582, 127
        %v1639 = vpop.permute.xlu0 %1638
        %1640 = vrot.lane.b32.xlu0 %v1583, 127
        %v1641 = vpop.permute.xlu0 %1640
        %v1642 = vsel %vm807, %v1639, %v1641
        %v1643 = vsel %vm807, %v1641, %v1639
        %v1644 = vperm.slane %v592, 5
        %v1645 = vperm.slane %v593, 5
        %v1646 = vmul.f32 %v1642, %v1644
        %v1647 = vmul.f32 %v1643, %v1645
        %1648 = vst [vmem:[#allocation2 + $0x50] sm:$0xff] %v1646
        %1649 = vst [vmem:[#allocation2 + $0x58] sm:$0xff] %v1647
        %1650 = vrot.lane.b32.xlu0 %v1582, 113
        %v1651 = vpop.permute.xlu0 %1650
        %1652 = vrot.lane.b32.xlu0 %v1583, 113
        %v1653 = vpop.permute.xlu0 %1652
        %v1654 = vsel %vm850, %v1651, %v1653
        %v1655 = vsel %vm850, %v1653, %v1651
        %v1656 = vperm.slane %v592, 6
        %v1657 = vperm.slane %v593, 6
        %v1658 = vmul.f32 %v1654, %v1656
        %v1659 = vmul.f32 %v1655, %v1657
        %1660 = vst [vmem:[#allocation2 + $0x60] sm:$0xff] %v1658
        %1661 = vst [vmem:[#allocation2 + $0x68] sm:$0xff] %v1659
        %1662 = vrot.lane.b32.xlu0 %v1582, 112
        %v1663 = vpop.permute.xlu0 %1662
        %1664 = vrot.lane.b32.xlu0 %v1583, 112
        %v1665 = vpop.permute.xlu0 %1664
        %v1666 = vsel %vm893, %v1663, %v1665
        %v1667 = vsel %vm893, %v1665, %v1663
        %v1668 = vperm.slane %v592, 7
        %v1669 = vperm.slane %v593, 7
        %v1670 = vmul.f32 %v1666, %v1668
        %v1671 = vmul.f32 %v1667, %v1669
        %1672 = vst [vmem:[#allocation2 + $0x70] sm:$0xff] %v1670
        %1673 = vst [vmem:[#allocation2 + $0x78] sm:$0xff] %v1671
        %1674 = vrot.lane.b32.xlu0 %v1582, 111
        %v1675 = vpop.permute.xlu0 %1674
        %1676 = vrot.lane.b32.xlu0 %v1583, 111
        %v1677 = vpop.permute.xlu0 %1676
        %v1678 = vsel %vm932, %v1675, %v1677
        %v1679 = vsel %vm932, %v1677, %v1675
        %v1680 = vperm.slane %v594, 0
        %v1681 = vperm.slane %v595, 0
        %v1682 = vmul.f32 %v1678, %v1680
        %v1683 = vmul.f32 %v1679, %v1681
        %1684 = vst [vmem:[#allocation2 + $0x80] sm:$0xff] %v1682
        %1685 = vst [vmem:[#allocation2 + $0x88] sm:$0xff] %v1683
        %v1686 = vld [vmem:[#allocation15] sm:$0xff]
        %v1687 = vld [vmem:[#allocation2] sm:$0xff]
        %v1688 = vld [vmem:[#allocation2 + $0x8] sm:$0xff]
        %v1689 = vld [vmem:[#allocation2 + $0x10] sm:$0xff]
        %v1690 = vld [vmem:[#allocation2 + $0x18] sm:$0xff]
        %v1691 = vld [vmem:[#allocation2 + $0x20] sm:$0xff]
        %v1692 = vld [vmem:[#allocation2 + $0x28] sm:$0xff]
        %v1693 = vld [vmem:[#allocation2 + $0x30] sm:$0xff]
        %v1694 = vld [vmem:[#allocation2 + $0x38] sm:$0xff]
        %v1695 = vld [vmem:[#allocation2 + $0x40] sm:$0xff]
        %v1696 = vld [vmem:[#allocation2 + $0x48] sm:$0xff]
        %v1697 = vld [vmem:[#allocation2 + $0x50] sm:$0xff]
        %v1698 = vld [vmem:[#allocation2 + $0x58] sm:$0xff]
        %v1699 = vld [vmem:[#allocation2 + $0x60] sm:$0xff]
        %v1700 = vld [vmem:[#allocation2 + $0x68] sm:$0xff]
        %v1701 = vld [vmem:[#allocation2 + $0x70] sm:$0xff]
        %v1702 = vld [vmem:[#allocation2 + $0x78] sm:$0xff]
        %v1703 = vld [vmem:[#allocation2 + $0x80] sm:$0xff]
        %v1704 = vld [vmem:[#allocation2 + $0x88] sm:$0xff]
        %s1705 = scalar_lea.vmem %s10, 8
        %v1706 = vld [vmem:[%s1705] sm:$0xff]
        %1708 = vset.pattern.permute.xlu0 0
        %1709 = vperm.xlu0 %1708, %v1706
        %v1710 = vpop.permute.xlu0 %1709
        %vm1712 = vcmask 588800
        %v1714 = vsel %vm1712, %v1686, 0
        %1716 = vmatpush.msra.mxu0 0.0
        %1717 = vmatpush.msra.mxu0 0.0
        %1718 = vmatpush.msra.mxu0 0.0
        %1719 = vmatpush.msra.mxu0 0.0
        %1720 = vmatpush.msra.mxu0 0.0
        %1721 = vmatpush.msra.mxu0 0.0
        %1722 = vmatpush.msra.mxu0 0.0
        %1723 = vmatpush.msra.mxu0 %v1703
        %1724 = vmatpush.msra.mxu0 %v1701
        %1725 = vmatpush.msra.mxu0 %v1699
        %1726 = vmatpush.msra.mxu0 %v1697
        %1727 = vmatpush.msra.mxu0 %v1695
        %1728 = vmatpush.msra.mxu0 %v1693
        %1729 = vmatpush.msra.mxu0 %v1691
        %1730 = vmatpush.msra.mxu0 %v1689
        %1731 = vmatpush.msra.mxu0 %v1687
        %1732 = vmatmul.f32.gmra.mxu0 %v1714
        %v1733 = vpop.f32.mrf.mxu0
        %v1734 = vadd.f32 %v1710, %v1733
        %1735 = vdwg.mxu0
        %1736 = vmatpush.msra.mxu0 0.0
        %1737 = vmatpush.msra.mxu0 0.0
        %1738 = vmatpush.msra.mxu0 0.0
        %1739 = vmatpush.msra.mxu0 0.0
        %1740 = vmatpush.msra.mxu0 0.0
        %1741 = vmatpush.msra.mxu0 0.0
        %1742 = vmatpush.msra.mxu0 0.0
        %1743 = vmatpush.msra.mxu0 %v1704
        %1744 = vmatpush.msra.mxu0 %v1702
        %1745 = vmatpush.msra.mxu0 %v1700
        %1746 = vmatpush.msra.mxu0 %v1698
        %1747 = vmatpush.msra.mxu0 %v1696
        %1748 = vmatpush.msra.mxu0 %v1694
        %1749 = vmatpush.msra.mxu0 %v1692
        %1750 = vmatpush.msra.mxu0 %v1690
        %1751 = vmatpush.msra.mxu0 %v1688
        %1752 = vmatmul.f32.gmra.mxu0 %v1714
        %v1753 = vpop.f32.mrf.mxu0
        %v1754 = vadd.f32 %v1710, %v1753
        %1755 = vdwg.mxu0
        %vm1756 = vcmp.ge.f32.partialorder %v1734, 0.0
        %vm1757 = vcmp.ge.f32.partialorder %v1754, 0.0
        %s1758 = scalar_lea.vmem %s11, 8
        %v1759 = vld [vmem:[%s1758] sm:$0xff]
        %1761 = vset.pattern.permute.xlu0 0
        %1762 = vperm.xlu0 %1761, %v1759
        %v1763 = vpop.permute.xlu0 %1762
        %v1765 = vmul.f32 %v1763, %v1734
        %v1766 = vmul.f32 %v1763, %v1754
        %v1767 = vsel %vm1756, %v1734, %v1765
        %v1768 = vsel %vm1757, %v1754, %v1766
        %1769 = vrot.lane.b32.xlu0 %v1767, 17
        %v1770 = vpop.permute.xlu0 %1769
        %1771 = vrot.lane.b32.xlu0 %v1768, 17
        %v1772 = vpop.permute.xlu0 %1771
        %v1773 = vsel %vm631, %v1770, %v1772
        %v1774 = vsel %vm631, %v1772, %v1770
        %v1775 = vmul.f32 %v1774, %v1590
        %v1776 = vmul.f32 %v1773, %v1591
        %1777 = vst [vmem:[#allocation2] sm:$0xff] %v1775
        %1778 = vst [vmem:[#allocation2 + $0x8] sm:$0xff] %v1776
        %1779 = vrot.lane.b32.xlu0 %v1767, 16
        %v1780 = vpop.permute.xlu0 %1779
        %1781 = vrot.lane.b32.xlu0 %v1768, 16
        %v1782 = vpop.permute.xlu0 %1781
        %v1783 = vsel %vm650, %v1780, %v1782
        %v1784 = vsel %vm650, %v1782, %v1780
        %v1785 = vmul.f32 %v1784, %v1602
        %v1786 = vmul.f32 %v1783, %v1603
        %1787 = vst [vmem:[#allocation2 + $0x10] sm:$0xff] %v1785
        %1788 = vst [vmem:[#allocation2 + $0x18] sm:$0xff] %v1786
        %1789 = vrot.lane.b32.xlu0 %v1767, 15
        %v1790 = vpop.permute.xlu0 %1789
        %1791 = vrot.lane.b32.xlu0 %v1768, 15
        %v1792 = vpop.permute.xlu0 %1791
        %v1793 = vsel %vm695, %v1790, %v1792
        %v1794 = vsel %vm695, %v1792, %v1790
        %v1795 = vmul.f32 %v1794, %v1614
        %v1796 = vmul.f32 %v1793, %v1615
        %1797 = vst [vmem:[#allocation2 + $0x20] sm:$0xff] %v1795
        %1798 = vst [vmem:[#allocation2 + $0x28] sm:$0xff] %v1796
        %1799 = vrot.lane.b32.xlu0 %v1767, 1
        %v1800 = vpop.permute.xlu0 %1799
        %1801 = vrot.lane.b32.xlu0 %v1768, 1
        %v1802 = vpop.permute.xlu0 %1801
        %v1803 = vsel %vm738, %v1800, %v1802
        %v1804 = vsel %vm738, %v1802, %v1800
        %v1805 = vmul.f32 %v1804, %v1626
        %v1806 = vmul.f32 %v1803, %v1627
        %1807 = vst [vmem:[#allocation2 + $0x30] sm:$0xff] %v1805
        %1808 = vst [vmem:[#allocation2 + $0x38] sm:$0xff] %v1806
        %v1809 = vmul.f32 %v1767, %v1632
        %v1810 = vmul.f32 %v1768, %v1633
        %1811 = vst [vmem:[#allocation2 + $0x40] sm:$0xff] %v1809
        %1812 = vst [vmem:[#allocation2 + $0x48] sm:$0xff] %v1810
        %1813 = vrot.lane.b32.xlu0 %v1767, 127
        %v1814 = vpop.permute.xlu0 %1813
        %1815 = vrot.lane.b32.xlu0 %v1768, 127
        %v1816 = vpop.permute.xlu0 %1815
        %v1817 = vsel %vm807, %v1814, %v1816
        %v1818 = vsel %vm807, %v1816, %v1814
        %v1819 = vmul.f32 %v1817, %v1644
        %v1820 = vmul.f32 %v1818, %v1645
        %1821 = vst [vmem:[#allocation2 + $0x50] sm:$0xff] %v1819
        %1822 = vst [vmem:[#allocation2 + $0x58] sm:$0xff] %v1820
        %1823 = vrot.lane.b32.xlu0 %v1767, 113
        %v1824 = vpop.permute.xlu0 %1823
        %1825 = vrot.lane.b32.xlu0 %v1768, 113
        %v1826 = vpop.permute.xlu0 %1825
        %v1827 = vsel %vm850, %v1824, %v1826
        %v1828 = vsel %vm850, %v1826, %v1824
        %v1829 = vmul.f32 %v1827, %v1656
        %v1830 = vmul.f32 %v1828, %v1657
        %1831 = vst [vmem:[#allocation2 + $0x60] sm:$0xff] %v1829
        %1832 = vst [vmem:[#allocation2 + $0x68] sm:$0xff] %v1830
        %1833 = vrot.lane.b32.xlu0 %v1767, 112
        %v1834 = vpop.permute.xlu0 %1833
        %1835 = vrot.lane.b32.xlu0 %v1768, 112
        %v1836 = vpop.permute.xlu0 %1835
        %v1837 = vsel %vm893, %v1834, %v1836
        %v1838 = vsel %vm893, %v1836, %v1834
        %v1839 = vmul.f32 %v1837, %v1668
        %v1840 = vmul.f32 %v1838, %v1669
        %1841 = vst [vmem:[#allocation2 + $0x70] sm:$0xff] %v1839
        %1842 = vst [vmem:[#allocation2 + $0x78] sm:$0xff] %v1840
        %1843 = vrot.lane.b32.xlu0 %v1767, 111
        %v1844 = vpop.permute.xlu0 %1843
        %1845 = vrot.lane.b32.xlu0 %v1768, 111
        %v1846 = vpop.permute.xlu0 %1845
        %v1847 = vsel %vm932, %v1844, %v1846
        %v1848 = vsel %vm932, %v1846, %v1844
        %v1849 = vmul.f32 %v1847, %v1680
        %v1850 = vmul.f32 %v1848, %v1681
        %1851 = vst [vmem:[#allocation2 + $0x80] sm:$0xff] %v1849
        %1852 = vst [vmem:[#allocation2 + $0x88] sm:$0xff] %v1850
        %s1853 = scalar_lea.vmem [#allocation15], 8
        %v1854 = vld [vmem:[%s1853] sm:$0xff]
        %v1855 = vld [vmem:[#allocation2] sm:$0xff]
        %v1856 = vld [vmem:[#allocation2 + $0x8] sm:$0xff]
        %v1857 = vld [vmem:[#allocation2 + $0x10] sm:$0xff]
        %v1858 = vld [vmem:[#allocation2 + $0x18] sm:$0xff]
        %v1859 = vld [vmem:[#allocation2 + $0x20] sm:$0xff]
        %v1860 = vld [vmem:[#allocation2 + $0x28] sm:$0xff]
        %v1861 = vld [vmem:[#allocation2 + $0x30] sm:$0xff]
        %v1862 = vld [vmem:[#allocation2 + $0x38] sm:$0xff]
        %v1863 = vld [vmem:[#allocation2 + $0x40] sm:$0xff]
        %v1864 = vld [vmem:[#allocation2 + $0x48] sm:$0xff]
        %v1865 = vld [vmem:[#allocation2 + $0x50] sm:$0xff]
        %v1866 = vld [vmem:[#allocation2 + $0x58] sm:$0xff]
        %v1867 = vld [vmem:[#allocation2 + $0x60] sm:$0xff]
        %v1868 = vld [vmem:[#allocation2 + $0x68] sm:$0xff]
        %v1869 = vld [vmem:[#allocation2 + $0x70] sm:$0xff]
        %v1870 = vld [vmem:[#allocation2 + $0x78] sm:$0xff]
        %v1871 = vld [vmem:[#allocation2 + $0x80] sm:$0xff]
        %v1872 = vld [vmem:[#allocation2 + $0x88] sm:$0xff]
        %s1873 = scalar_lea.vmem %s10, 16
        %v1874 = vld [vmem:[%s1873] sm:$0xff]
        %1876 = vset.pattern.permute.xlu0 0
        %1877 = vperm.xlu0 %1876, %v1874
        %v1878 = vpop.permute.xlu0 %1877
        %v1881 = vsel %vm1712, %v1854, 0
        %1883 = vmatpush.msra.mxu0 0.0
        %1884 = vmatpush.msra.mxu0 0.0
        %1885 = vmatpush.msra.mxu0 0.0
        %1886 = vmatpush.msra.mxu0 0.0
        %1887 = vmatpush.msra.mxu0 0.0
        %1888 = vmatpush.msra.mxu0 0.0
        %1889 = vmatpush.msra.mxu0 0.0
        %1890 = vmatpush.msra.mxu0 %v1871
        %1891 = vmatpush.msra.mxu0 %v1869
        %1892 = vmatpush.msra.mxu0 %v1867
        %1893 = vmatpush.msra.mxu0 %v1865
        %1894 = vmatpush.msra.mxu0 %v1863
        %1895 = vmatpush.msra.mxu0 %v1861
        %1896 = vmatpush.msra.mxu0 %v1859
        %1897 = vmatpush.msra.mxu0 %v1857
        %1898 = vmatpush.msra.mxu0 %v1855
        %1899 = vmatmul.f32.gmra.mxu0 %v1881
        %v1900 = vpop.f32.mrf.mxu0
        %v1901 = vadd.f32 %v1878, %v1900
        %1902 = vdwg.mxu0
        %1903 = vmatpush.msra.mxu0 0.0
        %1904 = vmatpush.msra.mxu0 0.0
        %1905 = vmatpush.msra.mxu0 0.0
        %1906 = vmatpush.msra.mxu0 0.0
        %1907 = vmatpush.msra.mxu0 0.0
        %1908 = vmatpush.msra.mxu0 0.0
        %1909 = vmatpush.msra.mxu0 0.0
        %1910 = vmatpush.msra.mxu0 %v1872
        %1911 = vmatpush.msra.mxu0 %v1870
        %1912 = vmatpush.msra.mxu0 %v1868
        %1913 = vmatpush.msra.mxu0 %v1866
        %1914 = vmatpush.msra.mxu0 %v1864
        %1915 = vmatpush.msra.mxu0 %v1862
        %1916 = vmatpush.msra.mxu0 %v1860
        %1917 = vmatpush.msra.mxu0 %v1858
        %1918 = vmatpush.msra.mxu0 %v1856
        %1919 = vmatmul.f32.gmra.mxu0 %v1881
        %v1920 = vpop.f32.mrf.mxu0
        %v1921 = vadd.f32 %v1878, %v1920
        %1922 = vdwg.mxu0
        %vm1923 = vcmp.ge.f32.partialorder %v1901, 0.0
        %vm1924 = vcmp.ge.f32.partialorder %v1921, 0.0
        %s1925 = scalar_lea.vmem %s11, 16
        %v1926 = vld [vmem:[%s1925] sm:$0xff]
        %1928 = vset.pattern.permute.xlu0 0
        %1929 = vperm.xlu0 %1928, %v1926
        %v1930 = vpop.permute.xlu0 %1929
        %v1932 = vmul.f32 %v1930, %v1901
        %v1933 = vmul.f32 %v1930, %v1921
        %v1934 = vsel %vm1923, %v1901, %v1932
        %v1935 = vsel %vm1924, %v1921, %v1933
        %1936 = vrot.lane.b32.xlu0 %v1934, 17
        %v1937 = vpop.permute.xlu0 %1936
        %1938 = vrot.lane.b32.xlu0 %v1935, 17
        %v1939 = vpop.permute.xlu0 %1938
        %v1940 = vsel %vm631, %v1937, %v1939
        %v1941 = vsel %vm631, %v1939, %v1937
        %v1942 = vmul.f32 %v1941, %v1590
        %v1943 = vmul.f32 %v1940, %v1591
        %1944 = vst [vmem:[#allocation2] sm:$0xff] %v1942
        %1945 = vst [vmem:[#allocation2 + $0x8] sm:$0xff] %v1943
        %1946 = vrot.lane.b32.xlu0 %v1934, 16
        %v1947 = vpop.permute.xlu0 %1946
        %1948 = vrot.lane.b32.xlu0 %v1935, 16
        %v1949 = vpop.permute.xlu0 %1948
        %v1950 = vsel %vm650, %v1947, %v1949
        %v1951 = vsel %vm650, %v1949, %v1947
        %v1952 = vmul.f32 %v1951, %v1602
        %v1953 = vmul.f32 %v1950, %v1603
        %1954 = vst [vmem:[#allocation2 + $0x10] sm:$0xff] %v1952
        %1955 = vst [vmem:[#allocation2 + $0x18] sm:$0xff] %v1953
        %1956 = vrot.lane.b32.xlu0 %v1934, 15
        %v1957 = vpop.permute.xlu0 %1956
        %1958 = vrot.lane.b32.xlu0 %v1935, 15
        %v1959 = vpop.permute.xlu0 %1958
        %v1960 = vsel %vm695, %v1957, %v1959
        %v1961 = vsel %vm695, %v1959, %v1957
        %v1962 = vmul.f32 %v1961, %v1614
        %v1963 = vmul.f32 %v1960, %v1615
        %1964 = vst [vmem:[#allocation2 + $0x20] sm:$0xff] %v1962
        %1965 = vst [vmem:[#allocation2 + $0x28] sm:$0xff] %v1963
        %1966 = vrot.lane.b32.xlu0 %v1934, 1
        %v1967 = vpop.permute.xlu0 %1966
        %1968 = vrot.lane.b32.xlu0 %v1935, 1
        %v1969 = vpop.permute.xlu0 %1968
        %v1970 = vsel %vm738, %v1967, %v1969
        %v1971 = vsel %vm738, %v1969, %v1967
        %v1972 = vmul.f32 %v1971, %v1626
        %v1973 = vmul.f32 %v1970, %v1627
        %1974 = vst [vmem:[#allocation2 + $0x30] sm:$0xff] %v1972
        %1975 = vst [vmem:[#allocation2 + $0x38] sm:$0xff] %v1973
        %v1976 = vmul.f32 %v1934, %v1632
        %v1977 = vmul.f32 %v1935, %v1633
        %1978 = vst [vmem:[#allocation2 + $0x40] sm:$0xff] %v1976
        %1979 = vst [vmem:[#allocation2 + $0x48] sm:$0xff] %v1977
        %1980 = vrot.lane.b32.xlu0 %v1934, 127
        %v1981 = vpop.permute.xlu0 %1980
        %1982 = vrot.lane.b32.xlu0 %v1935, 127
        %v1983 = vpop.permute.xlu0 %1982
        %v1984 = vsel %vm807, %v1981, %v1983
        %v1985 = vsel %vm807, %v1983, %v1981
        %v1986 = vmul.f32 %v1984, %v1644
        %v1987 = vmul.f32 %v1985, %v1645
        %1988 = vst [vmem:[#allocation2 + $0x50] sm:$0xff] %v1986
        %1989 = vst [vmem:[#allocation2 + $0x58] sm:$0xff] %v1987
        %1990 = vrot.lane.b32.xlu0 %v1934, 113
        %v1991 = vpop.permute.xlu0 %1990
        %1992 = vrot.lane.b32.xlu0 %v1935, 113
        %v1993 = vpop.permute.xlu0 %1992
        %v1994 = vsel %vm850, %v1991, %v1993
        %v1995 = vsel %vm850, %v1993, %v1991
        %v1996 = vmul.f32 %v1994, %v1656
        %v1997 = vmul.f32 %v1995, %v1657
        %1998 = vst [vmem:[#allocation2 + $0x60] sm:$0xff] %v1996
        %1999 = vst [vmem:[#allocation2 + $0x68] sm:$0xff] %v1997
        %2000 = vrot.lane.b32.xlu0 %v1934, 112
        %v2001 = vpop.permute.xlu0 %2000
        %2002 = vrot.lane.b32.xlu0 %v1935, 112
        %v2003 = vpop.permute.xlu0 %2002
        %v2004 = vsel %vm893, %v2001, %v2003
        %v2005 = vsel %vm893, %v2003, %v2001
        %v2006 = vmul.f32 %v2004, %v1668
        %v2007 = vmul.f32 %v2005, %v1669
        %2008 = vst [vmem:[#allocation2 + $0x70] sm:$0xff] %v2006
        %2009 = vst [vmem:[#allocation2 + $0x78] sm:$0xff] %v2007
        %2010 = vrot.lane.b32.xlu0 %v1934, 111
        %v2011 = vpop.permute.xlu0 %2010
        %2012 = vrot.lane.b32.xlu0 %v1935, 111
        %v2013 = vpop.permute.xlu0 %2012
        %v2014 = vsel %vm932, %v2011, %v2013
        %v2015 = vsel %vm932, %v2013, %v2011
        %v2016 = vmul.f32 %v2014, %v1680
        %v2017 = vmul.f32 %v2015, %v1681
        %2018 = vst [vmem:[#allocation2 + $0x80] sm:$0xff] %v2016
        %2019 = vst [vmem:[#allocation2 + $0x88] sm:$0xff] %v2017
        %s2020 = scalar_lea.vmem [#allocation15], 16
        %v2021 = vld [vmem:[%s2020] sm:$0xff]
        %v2022 = vld [vmem:[#allocation2] sm:$0xff]
        %v2023 = vld [vmem:[#allocation2 + $0x8] sm:$0xff]
        %v2024 = vld [vmem:[#allocation2 + $0x10] sm:$0xff]
        %v2025 = vld [vmem:[#allocation2 + $0x18] sm:$0xff]
        %v2026 = vld [vmem:[#allocation2 + $0x20] sm:$0xff]
        %v2027 = vld [vmem:[#allocation2 + $0x28] sm:$0xff]
        %v2028 = vld [vmem:[#allocation2 + $0x30] sm:$0xff]
        %v2029 = vld [vmem:[#allocation2 + $0x38] sm:$0xff]
        %v2030 = vld [vmem:[#allocation2 + $0x40] sm:$0xff]
        %v2031 = vld [vmem:[#allocation2 + $0x48] sm:$0xff]
        %v2032 = vld [vmem:[#allocation2 + $0x50] sm:$0xff]
        %v2033 = vld [vmem:[#allocation2 + $0x58] sm:$0xff]
        %v2034 = vld [vmem:[#allocation2 + $0x60] sm:$0xff]
        %v2035 = vld [vmem:[#allocation2 + $0x68] sm:$0xff]
        %v2036 = vld [vmem:[#allocation2 + $0x70] sm:$0xff]
        %v2037 = vld [vmem:[#allocation2 + $0x78] sm:$0xff]
        %v2038 = vld [vmem:[#allocation2 + $0x80] sm:$0xff]
        %v2039 = vld [vmem:[#allocation2 + $0x88] sm:$0xff]
        %s2040 = scalar_lea.vmem %s10, 24
        %v2041 = vld [vmem:[%s2040] sm:$0xff]
        %2043 = vset.pattern.permute.xlu0 0
        %2044 = vperm.xlu0 %2043, %v2041
        %v2045 = vpop.permute.xlu0 %2044
        %v2048 = vsel %vm1712, %v2021, 0
        %2050 = vmatpush.msra.mxu0 0.0
        %2051 = vmatpush.msra.mxu0 0.0
        %2052 = vmatpush.msra.mxu0 0.0
        %2053 = vmatpush.msra.mxu0 0.0
        %2054 = vmatpush.msra.mxu0 0.0
        %2055 = vmatpush.msra.mxu0 0.0
        %2056 = vmatpush.msra.mxu0 0.0
        %2057 = vmatpush.msra.mxu0 %v2038
        %2058 = vmatpush.msra.mxu0 %v2036
        %2059 = vmatpush.msra.mxu0 %v2034
        %2060 = vmatpush.msra.mxu0 %v2032
        %2061 = vmatpush.msra.mxu0 %v2030
        %2062 = vmatpush.msra.mxu0 %v2028
        %2063 = vmatpush.msra.mxu0 %v2026
        %2064 = vmatpush.msra.mxu0 %v2024
        %2065 = vmatpush.msra.mxu0 %v2022
        %2066 = vmatmul.f32.gmra.mxu0 %v2048
        %v2067 = vpop.f32.mrf.mxu0
        %v2068 = vadd.f32 %v2045, %v2067
        %2069 = vdwg.mxu0
        %2070 = vmatpush.msra.mxu0 0.0
        %2071 = vmatpush.msra.mxu0 0.0
        %2072 = vmatpush.msra.mxu0 0.0
        %2073 = vmatpush.msra.mxu0 0.0
        %2074 = vmatpush.msra.mxu0 0.0
        %2075 = vmatpush.msra.mxu0 0.0
        %2076 = vmatpush.msra.mxu0 0.0
        %2077 = vmatpush.msra.mxu0 %v2039
        %2078 = vmatpush.msra.mxu0 %v2037
        %2079 = vmatpush.msra.mxu0 %v2035
        %2080 = vmatpush.msra.mxu0 %v2033
        %2081 = vmatpush.msra.mxu0 %v2031
        %2082 = vmatpush.msra.mxu0 %v2029
        %2083 = vmatpush.msra.mxu0 %v2027
        %2084 = vmatpush.msra.mxu0 %v2025
        %2085 = vmatpush.msra.mxu0 %v2023
        %2086 = vmatmul.f32.gmra.mxu0 %v2048
        %v2087 = vpop.f32.mrf.mxu0
        %v2088 = vadd.f32 %v2045, %v2087
        %2089 = vdwg.mxu0
        %vm2090 = vcmp.ge.f32.partialorder %v2068, 0.0
        %vm2091 = vcmp.ge.f32.partialorder %v2088, 0.0
        %s2092 = scalar_lea.vmem %s11, 24
        %v2093 = vld [vmem:[%s2092] sm:$0xff]
        %2095 = vset.pattern.permute.xlu0 0
        %2096 = vperm.xlu0 %2095, %v2093
        %v2097 = vpop.permute.xlu0 %2096
        %v2099 = vmul.f32 %v2097, %v2068
        %v2100 = vmul.f32 %v2097, %v2088
        %v2101 = vsel %vm2090, %v2068, %v2099
        %v2102 = vsel %vm2091, %v2088, %v2100
        %2103 = vrot.lane.b32.xlu0 %v2101, 17
        %v2104 = vpop.permute.xlu0 %2103
        %2105 = vrot.lane.b32.xlu0 %v2102, 17
        %v2106 = vpop.permute.xlu0 %2105
        %v2107 = vsel %vm631, %v2104, %v2106
        %v2108 = vsel %vm631, %v2106, %v2104
        %v2109 = vmul.f32 %v2108, %v1590
        %v2110 = vmul.f32 %v2107, %v1591
        %2111 = vst [vmem:[#allocation2] sm:$0xff] %v2109
        %2112 = vst [vmem:[#allocation2 + $0x8] sm:$0xff] %v2110
        %2113 = vrot.lane.b32.xlu0 %v2101, 16
        %v2114 = vpop.permute.xlu0 %2113
        %2115 = vrot.lane.b32.xlu0 %v2102, 16
        %v2116 = vpop.permute.xlu0 %2115
        %v2117 = vsel %vm650, %v2114, %v2116
        %v2118 = vsel %vm650, %v2116, %v2114
        %v2119 = vmul.f32 %v2118, %v1602
        %v2120 = vmul.f32 %v2117, %v1603
        %2121 = vst [vmem:[#allocation2 + $0x10] sm:$0xff] %v2119
        %2122 = vst [vmem:[#allocation2 + $0x18] sm:$0xff] %v2120
        %2123 = vrot.lane.b32.xlu0 %v2101, 15
        %v2124 = vpop.permute.xlu0 %2123
        %2125 = vrot.lane.b32.xlu0 %v2102, 15
        %v2126 = vpop.permute.xlu0 %2125
        %v2127 = vsel %vm695, %v2124, %v2126
        %v2128 = vsel %vm695, %v2126, %v2124
        %v2129 = vmul.f32 %v2128, %v1614
        %v2130 = vmul.f32 %v2127, %v1615
        %2131 = vst [vmem:[#allocation2 + $0x20] sm:$0xff] %v2129
        %2132 = vst [vmem:[#allocation2 + $0x28] sm:$0xff] %v2130
        %2133 = vrot.lane.b32.xlu0 %v2101, 1
        %v2134 = vpop.permute.xlu0 %2133
        %2135 = vrot.lane.b32.xlu0 %v2102, 1
        %v2136 = vpop.permute.xlu0 %2135
        %v2137 = vsel %vm738, %v2134, %v2136
        %v2138 = vsel %vm738, %v2136, %v2134
        %v2139 = vmul.f32 %v2138, %v1626
        %v2140 = vmul.f32 %v2137, %v1627
        %2141 = vst [vmem:[#allocation2 + $0x30] sm:$0xff] %v2139
        %2142 = vst [vmem:[#allocation2 + $0x38] sm:$0xff] %v2140
        %v2143 = vmul.f32 %v2101, %v1632
        %v2144 = vmul.f32 %v2102, %v1633
        %2145 = vst [vmem:[#allocation2 + $0x40] sm:$0xff] %v2143
        %2146 = vst [vmem:[#allocation2 + $0x48] sm:$0xff] %v2144
        %2147 = vrot.lane.b32.xlu0 %v2101, 127
        %v2148 = vpop.permute.xlu0 %2147
        %2149 = vrot.lane.b32.xlu0 %v2102, 127
        %v2150 = vpop.permute.xlu0 %2149
        %v2151 = vsel %vm807, %v2148, %v2150
        %v2152 = vsel %vm807, %v2150, %v2148
        %v2153 = vmul.f32 %v2151, %v1644
        %v2154 = vmul.f32 %v2152, %v1645
        %2155 = vst [vmem:[#allocation2 + $0x50] sm:$0xff] %v2153
        %2156 = vst [vmem:[#allocation2 + $0x58] sm:$0xff] %v2154
        %2157 = vrot.lane.b32.xlu0 %v2101, 113
        %v2158 = vpop.permute.xlu0 %2157
        %2159 = vrot.lane.b32.xlu0 %v2102, 113
        %v2160 = vpop.permute.xlu0 %2159
        %v2161 = vsel %vm850, %v2158, %v2160
        %v2162 = vsel %vm850, %v2160, %v2158
        %v2163 = vmul.f32 %v2161, %v1656
        %v2164 = vmul.f32 %v2162, %v1657
        %2165 = vst [vmem:[#allocation2 + $0x60] sm:$0xff] %v2163
        %2166 = vst [vmem:[#allocation2 + $0x68] sm:$0xff] %v2164
        %2167 = vrot.lane.b32.xlu0 %v2101, 112
        %v2168 = vpop.permute.xlu0 %2167
        %2169 = vrot.lane.b32.xlu0 %v2102, 112
        %v2170 = vpop.permute.xlu0 %2169
        %v2171 = vsel %vm893, %v2168, %v2170
        %v2172 = vsel %vm893, %v2170, %v2168
        %v2173 = vmul.f32 %v2171, %v1668
        %v2174 = vmul.f32 %v2172, %v1669
        %2175 = vst [vmem:[#allocation2 + $0x70] sm:$0xff] %v2173
        %2176 = vst [vmem:[#allocation2 + $0x78] sm:$0xff] %v2174
        %2177 = vrot.lane.b32.xlu0 %v2101, 111
        %v2178 = vpop.permute.xlu0 %2177
        %2179 = vrot.lane.b32.xlu0 %v2102, 111
        %v2180 = vpop.permute.xlu0 %2179
        %v2181 = vsel %vm932, %v2178, %v2180
        %v2182 = vsel %vm932, %v2180, %v2178
        %v2183 = vmul.f32 %v2181, %v1680
        %v2184 = vmul.f32 %v2182, %v1681
        %2185 = vst [vmem:[#allocation2 + $0x80] sm:$0xff] %v2183
        %2186 = vst [vmem:[#allocation2 + $0x88] sm:$0xff] %v2184
        %s2187 = scalar_lea.vmem [#allocation15], 24
        %v2188 = vld [vmem:[%s2187] sm:$0xff]
        %v2189 = vld [vmem:[#allocation2] sm:$0xff]
        %v2190 = vld [vmem:[#allocation2 + $0x8] sm:$0xff]
        %v2191 = vld [vmem:[#allocation2 + $0x10] sm:$0xff]
        %v2192 = vld [vmem:[#allocation2 + $0x18] sm:$0xff]
        %v2193 = vld [vmem:[#allocation2 + $0x20] sm:$0xff]
        %v2194 = vld [vmem:[#allocation2 + $0x28] sm:$0xff]
        %v2195 = vld [vmem:[#allocation2 + $0x30] sm:$0xff]
        %v2196 = vld [vmem:[#allocation2 + $0x38] sm:$0xff]
        %v2197 = vld [vmem:[#allocation2 + $0x40] sm:$0xff]
        %v2198 = vld [vmem:[#allocation2 + $0x48] sm:$0xff]
        %v2199 = vld [vmem:[#allocation2 + $0x50] sm:$0xff]
        %v2200 = vld [vmem:[#allocation2 + $0x58] sm:$0xff]
        %v2201 = vld [vmem:[#allocation2 + $0x60] sm:$0xff]
        %v2202 = vld [vmem:[#allocation2 + $0x68] sm:$0xff]
        %v2203 = vld [vmem:[#allocation2 + $0x70] sm:$0xff]
        %v2204 = vld [vmem:[#allocation2 + $0x78] sm:$0xff]
        %v2205 = vld [vmem:[#allocation2 + $0x80] sm:$0xff]
        %v2206 = vld [vmem:[#allocation2 + $0x88] sm:$0xff]
        %s2207 = scalar_lea.vmem %s10, 32
        %v2208 = vld [vmem:[%s2207] sm:$0xff]
        %2210 = vset.pattern.permute.xlu0 0
        %2211 = vperm.xlu0 %2210, %v2208
        %v2212 = vpop.permute.xlu0 %2211
        %v2215 = vsel %vm1712, %v2188, 0
        %2217 = vmatpush.msra.mxu0 0.0
        %2218 = vmatpush.msra.mxu0 0.0
        %2219 = vmatpush.msra.mxu0 0.0
        %2220 = vmatpush.msra.mxu0 0.0
        %2221 = vmatpush.msra.mxu0 0.0
        %2222 = vmatpush.msra.mxu0 0.0
        %2223 = vmatpush.msra.mxu0 0.0
        %2224 = vmatpush.msra.mxu0 %v2205
        %2225 = vmatpush.msra.mxu0 %v2203
        %2226 = vmatpush.msra.mxu0 %v2201
        %2227 = vmatpush.msra.mxu0 %v2199
        %2228 = vmatpush.msra.mxu0 %v2197
        %2229 = vmatpush.msra.mxu0 %v2195
        %2230 = vmatpush.msra.mxu0 %v2193
        %2231 = vmatpush.msra.mxu0 %v2191
        %2232 = vmatpush.msra.mxu0 %v2189
        %2233 = vmatmul.f32.gmra.mxu0 %v2215
        %v2234 = vpop.f32.mrf.mxu0
        %v2235 = vadd.f32 %v2212, %v2234
        %2236 = vdwg.mxu0
        %2237 = vmatpush.msra.mxu0 0.0
        %2238 = vmatpush.msra.mxu0 0.0
        %2239 = vmatpush.msra.mxu0 0.0
        %2240 = vmatpush.msra.mxu0 0.0
        %2241 = vmatpush.msra.mxu0 0.0
        %2242 = vmatpush.msra.mxu0 0.0
        %2243 = vmatpush.msra.mxu0 0.0
        %2244 = vmatpush.msra.mxu0 %v2206
        %2245 = vmatpush.msra.mxu0 %v2204
        %2246 = vmatpush.msra.mxu0 %v2202
        %2247 = vmatpush.msra.mxu0 %v2200
        %2248 = vmatpush.msra.mxu0 %v2198
        %2249 = vmatpush.msra.mxu0 %v2196
        %2250 = vmatpush.msra.mxu0 %v2194
        %2251 = vmatpush.msra.mxu0 %v2192
        %2252 = vmatpush.msra.mxu0 %v2190
        %2253 = vmatmul.f32.gmra.mxu0 %v2215
        %v2254 = vpop.f32.mrf.mxu0
        %v2255 = vadd.f32 %v2212, %v2254
        %2256 = vdwg.mxu0
        %vm2257 = vcmp.ge.f32.partialorder %v2235, 0.0
        %vm2258 = vcmp.ge.f32.partialorder %v2255, 0.0
        %s2259 = scalar_lea.vmem %s11, 32
        %v2260 = vld [vmem:[%s2259] sm:$0xff]
        %2262 = vset.pattern.permute.xlu0 0
        %2263 = vperm.xlu0 %2262, %v2260
        %v2264 = vpop.permute.xlu0 %2263
        %v2266 = vmul.f32 %v2264, %v2235
        %v2267 = vmul.f32 %v2264, %v2255
        %v2268 = vsel %vm2257, %v2235, %v2266
        %v2269 = vsel %vm2258, %v2255, %v2267
        %2270 = vrot.lane.b32.xlu0 %v2268, 17
        %v2271 = vpop.permute.xlu0 %2270
        %2272 = vrot.lane.b32.xlu0 %v2269, 17
        %v2273 = vpop.permute.xlu0 %2272
        %v2274 = vsel %vm631, %v2271, %v2273
        %v2275 = vsel %vm631, %v2273, %v2271
        %v2276 = vmul.f32 %v2275, %v1590
        %v2277 = vmul.f32 %v2274, %v1591
        %2278 = vst [vmem:[#allocation2] sm:$0xff] %v2276
        %2279 = vst [vmem:[#allocation2 + $0x8] sm:$0xff] %v2277
        %2280 = vrot.lane.b32.xlu0 %v2268, 16
        %v2281 = vpop.permute.xlu0 %2280
        %2282 = vrot.lane.b32.xlu0 %v2269, 16
        %v2283 = vpop.permute.xlu0 %2282
        %v2284 = vsel %vm650, %v2281, %v2283
        %v2285 = vsel %vm650, %v2283, %v2281
        %v2286 = vmul.f32 %v2285, %v1602
        %v2287 = vmul.f32 %v2284, %v1603
        %2288 = vst [vmem:[#allocation2 + $0x10] sm:$0xff] %v2286
        %2289 = vst [vmem:[#allocation2 + $0x18] sm:$0xff] %v2287
        %2290 = vrot.lane.b32.xlu0 %v2268, 15
        %v2291 = vpop.permute.xlu0 %2290
        %2292 = vrot.lane.b32.xlu0 %v2269, 15
        %v2293 = vpop.permute.xlu0 %2292
        %v2294 = vsel %vm695, %v2291, %v2293
        %v2295 = vsel %vm695, %v2293, %v2291
        %v2296 = vmul.f32 %v2295, %v1614
        %v2297 = vmul.f32 %v2294, %v1615
        %2298 = vst [vmem:[#allocation2 + $0x20] sm:$0xff] %v2296
        %2299 = vst [vmem:[#allocation2 + $0x28] sm:$0xff] %v2297
        %2300 = vrot.lane.b32.xlu0 %v2268, 1
        %v2301 = vpop.permute.xlu0 %2300
        %2302 = vrot.lane.b32.xlu0 %v2269, 1
        %v2303 = vpop.permute.xlu0 %2302
        %v2304 = vsel %vm738, %v2301, %v2303
        %v2305 = vsel %vm738, %v2303, %v2301
        %v2306 = vmul.f32 %v2305, %v1626
        %v2307 = vmul.f32 %v2304, %v1627
        %2308 = vst [vmem:[#allocation2 + $0x30] sm:$0xff] %v2306
        %2309 = vst [vmem:[#allocation2 + $0x38] sm:$0xff] %v2307
        %v2310 = vmul.f32 %v2268, %v1632
        %v2311 = vmul.f32 %v2269, %v1633
        %2312 = vst [vmem:[#allocation2 + $0x40] sm:$0xff] %v2310
        %2313 = vst [vmem:[#allocation2 + $0x48] sm:$0xff] %v2311
        %2314 = vrot.lane.b32.xlu0 %v2268, 127
        %v2315 = vpop.permute.xlu0 %2314
        %2316 = vrot.lane.b32.xlu0 %v2269, 127
        %v2317 = vpop.permute.xlu0 %2316
        %v2318 = vsel %vm807, %v2315, %v2317
        %v2319 = vsel %vm807, %v2317, %v2315
        %v2320 = vmul.f32 %v2318, %v1644
        %v2321 = vmul.f32 %v2319, %v1645
        %2322 = vst [vmem:[#allocation2 + $0x50] sm:$0xff] %v2320
        %2323 = vst [vmem:[#allocation2 + $0x58] sm:$0xff] %v2321
        %2324 = vrot.lane.b32.xlu0 %v2268, 113
        %v2325 = vpop.permute.xlu0 %2324
        %2326 = vrot.lane.b32.xlu0 %v2269, 113
        %v2327 = vpop.permute.xlu0 %2326
        %v2328 = vsel %vm850, %v2325, %v2327
        %v2329 = vsel %vm850, %v2327, %v2325
        %v2330 = vmul.f32 %v2328, %v1656
        %v2331 = vmul.f32 %v2329, %v1657
        %2332 = vst [vmem:[#allocation2 + $0x60] sm:$0xff] %v2330
        %2333 = vst [vmem:[#allocation2 + $0x68] sm:$0xff] %v2331
        %2334 = vrot.lane.b32.xlu0 %v2268, 112
        %v2335 = vpop.permute.xlu0 %2334
        %2336 = vrot.lane.b32.xlu0 %v2269, 112
        %v2337 = vpop.permute.xlu0 %2336
        %v2338 = vsel %vm893, %v2335, %v2337
        %v2339 = vsel %vm893, %v2337, %v2335
        %v2340 = vmul.f32 %v2338, %v1668
        %v2341 = vmul.f32 %v2339, %v1669
        %2342 = vst [vmem:[#allocation2 + $0x70] sm:$0xff] %v2340
        %2343 = vst [vmem:[#allocation2 + $0x78] sm:$0xff] %v2341
        %2344 = vrot.lane.b32.xlu0 %v2268, 111
        %v2345 = vpop.permute.xlu0 %2344
        %2346 = vrot.lane.b32.xlu0 %v2269, 111
        %v2347 = vpop.permute.xlu0 %2346
        %v2348 = vsel %vm932, %v2345, %v2347
        %v2349 = vsel %vm932, %v2347, %v2345
        %v2350 = vmul.f32 %v2348, %v1680
        %v2351 = vmul.f32 %v2349, %v1681
        %2352 = vst [vmem:[#allocation2 + $0x80] sm:$0xff] %v2350
        %2353 = vst [vmem:[#allocation2 + $0x88] sm:$0xff] %v2351
        %s2354 = scalar_lea.vmem [#allocation15], 32
        %v2355 = vld [vmem:[%s2354] sm:$0xff]
        %v2356 = vld [vmem:[#allocation2] sm:$0xff]
        %v2357 = vld [vmem:[#allocation2 + $0x8] sm:$0xff]
        %v2358 = vld [vmem:[#allocation2 + $0x10] sm:$0xff]
        %v2359 = vld [vmem:[#allocation2 + $0x18] sm:$0xff]
        %v2360 = vld [vmem:[#allocation2 + $0x20] sm:$0xff]
        %v2361 = vld [vmem:[#allocation2 + $0x28] sm:$0xff]
        %v2362 = vld [vmem:[#allocation2 + $0x30] sm:$0xff]
        %v2363 = vld [vmem:[#allocation2 + $0x38] sm:$0xff]
        %v2364 = vld [vmem:[#allocation2 + $0x40] sm:$0xff]
        %v2365 = vld [vmem:[#allocation2 + $0x48] sm:$0xff]
        %v2366 = vld [vmem:[#allocation2 + $0x50] sm:$0xff]
        %v2367 = vld [vmem:[#allocation2 + $0x58] sm:$0xff]
        %v2368 = vld [vmem:[#allocation2 + $0x60] sm:$0xff]
        %v2369 = vld [vmem:[#allocation2 + $0x68] sm:$0xff]
        %v2370 = vld [vmem:[#allocation2 + $0x70] sm:$0xff]
        %v2371 = vld [vmem:[#allocation2 + $0x78] sm:$0xff]
        %v2372 = vld [vmem:[#allocation2 + $0x80] sm:$0xff]
        %v2373 = vld [vmem:[#allocation2 + $0x88] sm:$0xff]
        %s2374 = scalar_lea.vmem %s10, 40
        %v2375 = vld [vmem:[%s2374] sm:$0xff]
        %2377 = vset.pattern.permute.xlu0 0
        %2378 = vperm.xlu0 %2377, %v2375
        %v2379 = vpop.permute.xlu0 %2378
        %v2382 = vsel %vm1712, %v2355, 0
        %2384 = vmatpush.msra.mxu0 0.0
        %2385 = vmatpush.msra.mxu0 0.0
        %2386 = vmatpush.msra.mxu0 0.0
        %2387 = vmatpush.msra.mxu0 0.0
        %2388 = vmatpush.msra.mxu0 0.0
        %2389 = vmatpush.msra.mxu0 0.0
        %2390 = vmatpush.msra.mxu0 0.0
        %2391 = vmatpush.msra.mxu0 %v2372
        %2392 = vmatpush.msra.mxu0 %v2370
        %2393 = vmatpush.msra.mxu0 %v2368
        %2394 = vmatpush.msra.mxu0 %v2366
        %2395 = vmatpush.msra.mxu0 %v2364
        %2396 = vmatpush.msra.mxu0 %v2362
        %2397 = vmatpush.msra.mxu0 %v2360
        %2398 = vmatpush.msra.mxu0 %v2358
        %2399 = vmatpush.msra.mxu0 %v2356
        %2400 = vmatmul.f32.gmra.mxu0 %v2382
        %v2401 = vpop.f32.mrf.mxu0
        %v2402 = vadd.f32 %v2379, %v2401
        %2403 = vdwg.mxu0
        %2404 = vmatpush.msra.mxu0 0.0
        %2405 = vmatpush.msra.mxu0 0.0
        %2406 = vmatpush.msra.mxu0 0.0
        %2407 = vmatpush.msra.mxu0 0.0
        %2408 = vmatpush.msra.mxu0 0.0
        %2409 = vmatpush.msra.mxu0 0.0
        %2410 = vmatpush.msra.mxu0 0.0
        %2411 = vmatpush.msra.mxu0 %v2373
        %2412 = vmatpush.msra.mxu0 %v2371
        %2413 = vmatpush.msra.mxu0 %v2369
        %2414 = vmatpush.msra.mxu0 %v2367
        %2415 = vmatpush.msra.mxu0 %v2365
        %2416 = vmatpush.msra.mxu0 %v2363
        %2417 = vmatpush.msra.mxu0 %v2361
        %2418 = vmatpush.msra.mxu0 %v2359
        %2419 = vmatpush.msra.mxu0 %v2357
        %2420 = vmatmul.f32.gmra.mxu0 %v2382
        %v2421 = vpop.f32.mrf.mxu0
        %v2422 = vadd.f32 %v2379, %v2421
        %2423 = vdwg.mxu0
        %v2426 = vrot.slane %v2422, 7
        %v2427 = vsel %vm1498, %v2402, %v2426
        %v2429 = vadd.f32 %v590, %v2427
        %v2430 = vlaneseq
        %vm2431 = vcmp.ge.s32.totalorder %v2430, 0
        %vm2432 = vcmp.lt.s32.totalorder %v2430, 256
        %vm2433 = vmand %vm2431, %vm2432
        %2434 = vst.msk [vmem:[%s588] sm:$0x3] %vm2433, %v2429
        %v2436 = vperm.slane %v2429, 0
        %v2437 = vperm.slane %v2429, 1
        %2440 = vrot.lane.b32.xlu0 %v2436, 34
        %v2441 = vpop.permute.xlu0 %2440
        %2442 = vrot.lane.b32.xlu0 %v2437, 34
        %v2443 = vpop.permute.xlu0 %2442
        %vm2444 = vcmp.lt.s32.totalorder %v630, 34
        %v2445 = vsel %vm2444, %v2441, %v2443
        %v2446 = vsel %vm2444, %v2443, %v2441
        %v2447 = vmul.f32 %v596, %v2446
        %v2448 = vmul.f32 %v597, %v2445
        %2449 = vrot.lane.b32.xlu0 %v2436, 33
        %v2450 = vpop.permute.xlu0 %2449
        %2451 = vrot.lane.b32.xlu0 %v2437, 33
        %v2452 = vpop.permute.xlu0 %2451
        %vm2453 = vcmp.lt.s32.totalorder %v630, 33
        %v2454 = vsel %vm2453, %v2450, %v2452
        %v2455 = vsel %vm2453, %v2452, %v2450
        %v2458 = vrot.slane %v2455, 7
        %v2459 = vrot.slane %v2454, 7
        %v2462 = vmul.f32 %v596, %v2458
        %v2463 = vmul.f32 %v597, %v2459
        %v2466 = vrot.slane %v2462, 1
        %v2467 = vrot.slane %v2463, 1
        %v2470 = vadd.f32 %v2447, %v2466
        %v2471 = vadd.f32 %v2448, %v2467
        %2472 = vrot.lane.b32.xlu0 %v2436, 32
        %v2473 = vpop.permute.xlu0 %2472
        %2474 = vrot.lane.b32.xlu0 %v2437, 32
        %v2475 = vpop.permute.xlu0 %2474
        %vm2476 = vcmp.lt.s32.totalorder %v630, 32
        %v2477 = vsel %vm2476, %v2473, %v2475
        %v2478 = vsel %vm2476, %v2475, %v2473
        %v2481 = vrot.slane %v2478, 6
        %v2482 = vrot.slane %v2477, 6
        %v2485 = vmul.f32 %v596, %v2481
        %v2486 = vmul.f32 %v597, %v2482
        %v2489 = vrot.slane %v2485, 2
        %v2490 = vrot.slane %v2486, 2
        %v2493 = vadd.f32 %v2470, %v2489
        %v2494 = vadd.f32 %v2471, %v2490
        %2495 = vrot.lane.b32.xlu0 %v2436, 31
        %v2496 = vpop.permute.xlu0 %2495
        %2497 = vrot.lane.b32.xlu0 %v2437, 31
        %v2498 = vpop.permute.xlu0 %2497
        %vm2499 = vcmp.lt.s32.totalorder %v630, 31
        %v2500 = vsel %vm2499, %v2496, %v2498
        %v2501 = vsel %vm2499, %v2498, %v2496
        %v2504 = vrot.slane %v2501, 5
        %v2505 = vrot.slane %v2500, 5
        %v2508 = vmul.f32 %v596, %v2504
        %v2509 = vmul.f32 %v597, %v2505
        %v2512 = vrot.slane %v2508, 3
        %v2513 = vrot.slane %v2509, 3
        %v2516 = vadd.f32 %v2493, %v2512
        %v2517 = vadd.f32 %v2494, %v2513
        %2518 = vrot.lane.b32.xlu0 %v2436, 30
        %v2519 = vpop.permute.xlu0 %2518
        %2520 = vrot.lane.b32.xlu0 %v2437, 30
        %v2521 = vpop.permute.xlu0 %2520
        %vm2522 = vcmp.lt.s32.totalorder %v630, 30
        %v2523 = vsel %vm2522, %v2519, %v2521
        %v2524 = vsel %vm2522, %v2521, %v2519
        %v2527 = vrot.slane %v2524, 4
        %v2528 = vrot.slane %v2523, 4
        %v2531 = vmul.f32 %v596, %v2527
        %v2532 = vmul.f32 %v597, %v2528
        %v2535 = vrot.slane %v2531, 4
        %v2536 = vrot.slane %v2532, 4
        %v2539 = vadd.f32 %v2516, %v2535
        %v2540 = vadd.f32 %v2517, %v2536
        %2541 = vrot.lane.b32.xlu0 %v2436, 18
        %v2542 = vpop.permute.xlu0 %2541
        %2543 = vrot.lane.b32.xlu0 %v2437, 18
        %v2544 = vpop.permute.xlu0 %2543
        %vm2545 = vcmp.lt.s32.totalorder %v630, 18
        %v2546 = vsel %vm2545, %v2542, %v2544
        %v2547 = vsel %vm2545, %v2544, %v2542
        %v2550 = vrot.slane %v2547, 3
        %v2551 = vrot.slane %v2546, 3
        %v2554 = vmul.f32 %v596, %v2550
        %v2555 = vmul.f32 %v597, %v2551
        %v2558 = vrot.slane %v2554, 5
        %v2559 = vrot.slane %v2555, 5
        %v2562 = vadd.f32 %v2539, %v2558
        %v2563 = vadd.f32 %v2540, %v2559
        %2564 = vrot.lane.b32.xlu0 %v2436, 17
        %v2565 = vpop.permute.xlu0 %2564
        %2566 = vrot.lane.b32.xlu0 %v2437, 17
        %v2567 = vpop.permute.xlu0 %2566
        %v2568 = vsel %vm631, %v2565, %v2567
        %v2569 = vsel %vm631, %v2567, %v2565
        %v2572 = vrot.slane %v2569, 2
        %v2573 = vrot.slane %v2568, 2
        %v2576 = vmul.f32 %v596, %v2572
        %v2577 = vmul.f32 %v597, %v2573
        %v2580 = vrot.slane %v2576, 6
        %v2581 = vrot.slane %v2577, 6
        %v2584 = vadd.f32 %v2562, %v2580
        %v2585 = vadd.f32 %v2563, %v2581
        %2586 = vrot.lane.b32.xlu0 %v2436, 16
        %v2587 = vpop.permute.xlu0 %2586
        %2588 = vrot.lane.b32.xlu0 %v2437, 16
        %v2589 = vpop.permute.xlu0 %2588
        %v2590 = vsel %vm650, %v2587, %v2589
        %v2591 = vsel %vm650, %v2589, %v2587
        %v2594 = vrot.slane %v2591, 1
        %v2595 = vrot.slane %v2590, 1
        %v2598 = vmul.f32 %v596, %v2594
        %v2599 = vmul.f32 %v597, %v2595
        %v2602 = vrot.slane %v2598, 7
        %v2603 = vrot.slane %v2599, 7
        %v2606 = vadd.f32 %v2584, %v2602
        %v2607 = vadd.f32 %v2585, %v2603
        %2608 = vrot.lane.b32.xlu0 %v2436, 15
        %v2609 = vpop.permute.xlu0 %2608
        %2610 = vrot.lane.b32.xlu0 %v2437, 15
        %v2611 = vpop.permute.xlu0 %2610
        %v2612 = vsel %vm695, %v2609, %v2611
        %v2613 = vsel %vm695, %v2611, %v2609
        %v2614 = vmul.f32 %v598, %v2613
        %v2615 = vmul.f32 %v599, %v2612
        %v2616 = vadd.f32 %v2606, %v2614
        %v2617 = vadd.f32 %v2607, %v2615
        %2618 = vrot.lane.b32.xlu0 %v2436, 14
        %v2619 = vpop.permute.xlu0 %2618
        %2620 = vrot.lane.b32.xlu0 %v2437, 14
        %v2621 = vpop.permute.xlu0 %2620
        %vm2622 = vcmp.lt.s32.totalorder %v630, 14
        %v2623 = vsel %vm2622, %v2619, %v2621
        %v2624 = vsel %vm2622, %v2621, %v2619
        %v2627 = vrot.slane %v2624, 7
        %v2628 = vrot.slane %v2623, 7
        %v2631 = vmul.f32 %v598, %v2627
        %v2632 = vmul.f32 %v599, %v2628
        %v2635 = vrot.slane %v2631, 1
        %v2636 = vrot.slane %v2632, 1
        %v2639 = vadd.f32 %v2616, %v2635
        %v2640 = vadd.f32 %v2617, %v2636
        %2641 = vrot.lane.b32.xlu0 %v2436, 2
        %v2642 = vpop.permute.xlu0 %2641
        %2643 = vrot.lane.b32.xlu0 %v2437, 2
        %v2644 = vpop.permute.xlu0 %2643
        %vm2645 = vcmp.lt.s32.totalorder %v630, 2
        %v2646 = vsel %vm2645, %v2642, %v2644
        %v2647 = vsel %vm2645, %v2644, %v2642
        %v2650 = vrot.slane %v2647, 6
        %v2651 = vrot.slane %v2646, 6
        %v2654 = vmul.f32 %v598, %v2650
        %v2655 = vmul.f32 %v599, %v2651
        %v2658 = vrot.slane %v2654, 2
        %v2659 = vrot.slane %v2655, 2
        %v2662 = vadd.f32 %v2639, %v2658
        %v2663 = vadd.f32 %v2640, %v2659
        %2664 = vrot.lane.b32.xlu0 %v2436, 1
        %v2665 = vpop.permute.xlu0 %2664
        %2666 = vrot.lane.b32.xlu0 %v2437, 1
        %v2667 = vpop.permute.xlu0 %2666
        %v2668 = vsel %vm738, %v2665, %v2667
        %v2669 = vsel %vm738, %v2667, %v2665
        %v2672 = vrot.slane %v2669, 5
        %v2673 = vrot.slane %v2668, 5
        %v2676 = vmul.f32 %v598, %v2672
        %v2677 = vmul.f32 %v599, %v2673
        %v2680 = vrot.slane %v2676, 3
        %v2681 = vrot.slane %v2677, 3
        %v2684 = vadd.f32 %v2662, %v2680
        %v2685 = vadd.f32 %v2663, %v2681
        %v2686 = vmul.f32 %v598, %v2436
        %v2687 = vmul.f32 %v599, %v2437
        %v2690 = vrot.slane %v2686, 4
        %v2691 = vrot.slane %v2687, 4
        %v2694 = vadd.f32 %v2684, %v2690
        %v2695 = vadd.f32 %v2685, %v2691
        %2696 = vrot.lane.b32.xlu0 %v2436, 127
        %v2697 = vpop.permute.xlu0 %2696
        %2698 = vrot.lane.b32.xlu0 %v2437, 127
        %v2699 = vpop.permute.xlu0 %2698
        %v2700 = vsel %vm807, %v2697, %v2699
        %v2701 = vsel %vm807, %v2699, %v2697
        %v2704 = vrot.slane %v2700, 3
        %v2705 = vrot.slane %v2701, 3
        %v2708 = vmul.f32 %v598, %v2704
        %v2709 = vmul.f32 %v599, %v2705
        %v2712 = vrot.slane %v2708, 5
        %v2713 = vrot.slane %v2709, 5
        %v2716 = vadd.f32 %v2694, %v2712
        %v2717 = vadd.f32 %v2695, %v2713
        %2718 = vrot.lane.b32.xlu0 %v2436, 126
        %v2719 = vpop.permute.xlu0 %2718
        %2720 = vrot.lane.b32.xlu0 %v2437, 126
        %v2721 = vpop.permute.xlu0 %2720
        %vm2722 = vcmp.lt.s32.totalorder %v630, 126
        %v2723 = vsel %vm2722, %v2719, %v2721
        %v2724 = vsel %vm2722, %v2721, %v2719
        %v2727 = vrot.slane %v2723, 2
        %v2728 = vrot.slane %v2724, 2
        %v2731 = vmul.f32 %v598, %v2727
        %v2732 = vmul.f32 %v599, %v2728
        %v2735 = vrot.slane %v2731, 6
        %v2736 = vrot.slane %v2732, 6
        %v2739 = vadd.f32 %v2716, %v2735
        %v2740 = vadd.f32 %v2717, %v2736
        %2741 = vrot.lane.b32.xlu0 %v2436, 114
        %v2742 = vpop.permute.xlu0 %2741
        %2743 = vrot.lane.b32.xlu0 %v2437, 114
        %v2744 = vpop.permute.xlu0 %2743
        %vm2745 = vcmp.lt.s32.totalorder %v630, 114
        %v2746 = vsel %vm2745, %v2742, %v2744
        %v2747 = vsel %vm2745, %v2744, %v2742
        %v2750 = vrot.slane %v2746, 1
        %v2751 = vrot.slane %v2747, 1
        %v2754 = vmul.f32 %v598, %v2750
        %v2755 = vmul.f32 %v599, %v2751
        %v2758 = vrot.slane %v2754, 7
        %v2759 = vrot.slane %v2755, 7
        %v2762 = vadd.f32 %v2739, %v2758
        %v2763 = vadd.f32 %v2740, %v2759
        %2764 = vrot.lane.b32.xlu0 %v2436, 113
        %v2765 = vpop.permute.xlu0 %2764
        %2766 = vrot.lane.b32.xlu0 %v2437, 113
        %v2767 = vpop.permute.xlu0 %2766
        %v2768 = vsel %vm850, %v2765, %v2767
        %v2769 = vsel %vm850, %v2767, %v2765
        %v2770 = vmul.f32 %v600, %v2768
        %v2771 = vmul.f32 %v601, %v2769
        %v2772 = vadd.f32 %v2762, %v2770
        %v2773 = vadd.f32 %v2763, %v2771
        %2774 = vrot.lane.b32.xlu0 %v2436, 112
        %v2775 = vpop.permute.xlu0 %2774
        %2776 = vrot.lane.b32.xlu0 %v2437, 112
        %v2777 = vpop.permute.xlu0 %2776
        %v2778 = vsel %vm893, %v2775, %v2777
        %v2779 = vsel %vm893, %v2777, %v2775
        %v2782 = vrot.slane %v2778, 7
        %v2783 = vrot.slane %v2779, 7
        %v2786 = vmul.f32 %v600, %v2782
        %v2787 = vmul.f32 %v601, %v2783
        %v2790 = vrot.slane %v2786, 1
        %v2791 = vrot.slane %v2787, 1
        %v2794 = vadd.f32 %v2772, %v2790
        %v2795 = vadd.f32 %v2773, %v2791
        %2796 = vrot.lane.b32.xlu0 %v2436, 111
        %v2797 = vpop.permute.xlu0 %2796
        %2798 = vrot.lane.b32.xlu0 %v2437, 111
        %v2799 = vpop.permute.xlu0 %2798
        %v2800 = vsel %vm932, %v2797, %v2799
        %v2801 = vsel %vm932, %v2799, %v2797
        %v2804 = vrot.slane %v2800, 6
        %v2805 = vrot.slane %v2801, 6
        %v2808 = vmul.f32 %v600, %v2804
        %v2809 = vmul.f32 %v601, %v2805
        %v2812 = vrot.slane %v2808, 2
        %v2813 = vrot.slane %v2809, 2
        %v2816 = vadd.f32 %v2794, %v2812
        %v2817 = vadd.f32 %v2795, %v2813
        %2818 = vrot.lane.b32.xlu0 %v2436, 110
        %v2819 = vpop.permute.xlu0 %2818
        %2820 = vrot.lane.b32.xlu0 %v2437, 110
        %v2821 = vpop.permute.xlu0 %2820
        %vm2822 = vcmp.lt.s32.totalorder %v630, 110
        %v2823 = vsel %vm2822, %v2819, %v2821
        %v2824 = vsel %vm2822, %v2821, %v2819
        %v2827 = vrot.slane %v2823, 5
        %v2828 = vrot.slane %v2824, 5
        %v2831 = vmul.f32 %v600, %v2827
        %v2832 = vmul.f32 %v601, %v2828
        %v2835 = vrot.slane %v2831, 3
        %v2836 = vrot.slane %v2832, 3
        %v2839 = vadd.f32 %v2816, %v2835
        %v2840 = vadd.f32 %v2817, %v2836
        %2841 = vrot.lane.b32.xlu0 %v2436, 98
        %v2842 = vpop.permute.xlu0 %2841
        %2843 = vrot.lane.b32.xlu0 %v2437, 98
        %v2844 = vpop.permute.xlu0 %2843
        %vm2845 = vcmp.lt.s32.totalorder %v630, 98
        %v2846 = vsel %vm2845, %v2842, %v2844
        %v2847 = vsel %vm2845, %v2844, %v2842
        %v2850 = vrot.slane %v2846, 4
        %v2851 = vrot.slane %v2847, 4
        %v2854 = vmul.f32 %v600, %v2850
        %v2855 = vmul.f32 %v601, %v2851
        %v2858 = vrot.slane %v2854, 4
        %v2859 = vrot.slane %v2855, 4
        %v2862 = vadd.f32 %v2839, %v2858
        %v2863 = vadd.f32 %v2840, %v2859
        %2864 = vrot.lane.b32.xlu0 %v2436, 97
        %v2865 = vpop.permute.xlu0 %2864
        %2866 = vrot.lane.b32.xlu0 %v2437, 97
        %v2867 = vpop.permute.xlu0 %2866
        %vm2868 = vcmp.lt.s32.totalorder %v630, 97
        %v2869 = vsel %vm2868, %v2865, %v2867
        %v2870 = vsel %vm2868, %v2867, %v2865
        %v2873 = vrot.slane %v2869, 3
        %v2874 = vrot.slane %v2870, 3
        %v2877 = vmul.f32 %v600, %v2873
        %v2878 = vmul.f32 %v601, %v2874
        %v2881 = vrot.slane %v2877, 5
        %v2882 = vrot.slane %v2878, 5
        %v2885 = vadd.f32 %v2862, %v2881
        %v2886 = vadd.f32 %v2863, %v2882
        %2887 = vrot.lane.b32.xlu0 %v2436, 96
        %v2888 = vpop.permute.xlu0 %2887
        %2889 = vrot.lane.b32.xlu0 %v2437, 96
        %v2890 = vpop.permute.xlu0 %2889
        %vm2891 = vcmp.lt.s32.totalorder %v630, 96
        %v2892 = vsel %vm2891, %v2888, %v2890
        %v2893 = vsel %vm2891, %v2890, %v2888
        %v2896 = vrot.slane %v2892, 2
        %v2897 = vrot.slane %v2893, 2
        %v2900 = vmul.f32 %v600, %v2896
        %v2901 = vmul.f32 %v601, %v2897
        %v2904 = vrot.slane %v2900, 6
        %v2905 = vrot.slane %v2901, 6
        %v2908 = vadd.f32 %v2885, %v2904
        %v2909 = vadd.f32 %v2886, %v2905
        %2910 = vrot.lane.b32.xlu0 %v2436, 95
        %v2911 = vpop.permute.xlu0 %2910
        %2912 = vrot.lane.b32.xlu0 %v2437, 95
        %v2913 = vpop.permute.xlu0 %2912
        %vm2914 = vcmp.lt.s32.totalorder %v630, 95
        %v2915 = vsel %vm2914, %v2911, %v2913
        %v2916 = vsel %vm2914, %v2913, %v2911
        %v2919 = vrot.slane %v2915, 1
        %v2920 = vrot.slane %v2916, 1
        %v2923 = vmul.f32 %v600, %v2919
        %v2924 = vmul.f32 %v601, %v2920
        %v2927 = vrot.slane %v2923, 7
        %v2928 = vrot.slane %v2924, 7
        %v2931 = vadd.f32 %v2908, %v2927
        %v2932 = vadd.f32 %v2909, %v2928
        %2933 = vrot.lane.b32.xlu0 %v2436, 94
        %v2934 = vpop.permute.xlu0 %2933
        %2935 = vrot.lane.b32.xlu0 %v2437, 94
        %v2936 = vpop.permute.xlu0 %2935
        %vm2937 = vcmp.lt.s32.totalorder %v630, 94
        %v2938 = vsel %vm2937, %v2934, %v2936
        %v2939 = vsel %vm2937, %v2936, %v2934
        %v2940 = vmul.f32 %v602, %v2938
        %v2941 = vmul.f32 %v603, %v2939
        %v2942 = vadd.f32 %v2931, %v2940
        %v2943 = vadd.f32 %v2932, %v2941
        %v2944 = vsub.f32 %v2942, %v1455
        %v2945 = vsub.f32 %v2943, %v1456
        %v2946 = vsub.f32 0.0, %v2944
        %v2947 = vsub.f32 0.0, %v2945
        %v2948 = vmul.f32 %v2944, %v2944
        %v2949 = vmul.f32 %v2945, %v2945
        %v2950 = vsel %vm1498, %v2948, 0.0
        %v2951 = vsel %vm1498, %v2949, 0.0
        %v2952 = vadd.f32 %v2950, %v2951
        %2953 = vadd.xlane.f32.xlu0 %v2952
        %v2954 = vpop.xlane.xlu0 %2953
        %v2955 = vrot.slane %v2954, 4
        %v2956 = vadd.f32 %v2954, %v2955
        %v2957 = vrot.slane %v2956, 2
        %v2958 = vadd.f32 %v2956, %v2957
        %v2959 = vrot.slane %v2958, 1
        %v2960 = vadd.f32 %v2958, %v2959
        %s2961 = vtos %v2960
        %v2962 = vstv %s2961
        %2963 = vrot.lane.b32.xlu0 %v2946, 34
        %v2964 = vpop.permute.xlu0 %2963
        %2965 = vrot.lane.b32.xlu0 %v2947, 34
        %v2966 = vpop.permute.xlu0 %2965
        %v2967 = vsel %vm2444, %v2964, %v2966
        %v2968 = vsel %vm2444, %v2966, %v2964
        %v2969 = vmul.f32 %v596, %v2968
        %v2970 = vmul.f32 %v597, %v2967
        %2971 = vrot.lane.b32.xlu0 %v2946, 33
        %v2972 = vpop.permute.xlu0 %2971
        %2973 = vrot.lane.b32.xlu0 %v2947, 33
        %v2974 = vpop.permute.xlu0 %2973
        %v2975 = vsel %vm2453, %v2972, %v2974
        %v2976 = vsel %vm2453, %v2974, %v2972
        %v2979 = vrot.slane %v2976, 7
        %v2980 = vrot.slane %v2975, 7
        %v2983 = vmul.f32 %v596, %v2979
        %v2984 = vmul.f32 %v597, %v2980
        %v2987 = vrot.slane %v2983, 1
        %v2988 = vrot.slane %v2984, 1
        %v2991 = vadd.f32 %v2969, %v2987
        %v2992 = vadd.f32 %v2970, %v2988
        %2993 = vrot.lane.b32.xlu0 %v2946, 32
        %v2994 = vpop.permute.xlu0 %2993
        %2995 = vrot.lane.b32.xlu0 %v2947, 32
        %v2996 = vpop.permute.xlu0 %2995
        %v2997 = vsel %vm2476, %v2994, %v2996
        %v2998 = vsel %vm2476, %v2996, %v2994
        %v3001 = vrot.slane %v2998, 6
        %v3002 = vrot.slane %v2997, 6
        %v3005 = vmul.f32 %v596, %v3001
        %v3006 = vmul.f32 %v597, %v3002
        %v3009 = vrot.slane %v3005, 2
        %v3010 = vrot.slane %v3006, 2
        %v3013 = vadd.f32 %v2991, %v3009
        %v3014 = vadd.f32 %v2992, %v3010
        %3015 = vrot.lane.b32.xlu0 %v2946, 31
        %v3016 = vpop.permute.xlu0 %3015
        %3017 = vrot.lane.b32.xlu0 %v2947, 31
        %v3018 = vpop.permute.xlu0 %3017
        %v3019 = vsel %vm2499, %v3016, %v3018
        %v3020 = vsel %vm2499, %v3018, %v3016
        %v3023 = vrot.slane %v3020, 5
        %v3024 = vrot.slane %v3019, 5
        %v3027 = vmul.f32 %v596, %v3023
        %v3028 = vmul.f32 %v597, %v3024
        %v3031 = vrot.slane %v3027, 3
        %v3032 = vrot.slane %v3028, 3
        %v3035 = vadd.f32 %v3013, %v3031
        %v3036 = vadd.f32 %v3014, %v3032
        %3037 = vrot.lane.b32.xlu0 %v2946, 30
        %v3038 = vpop.permute.xlu0 %3037
        %3039 = vrot.lane.b32.xlu0 %v2947, 30
        %v3040 = vpop.permute.xlu0 %3039
        %v3041 = vsel %vm2522, %v3038, %v3040
        %v3042 = vsel %vm2522, %v3040, %v3038
        %v3045 = vrot.slane %v3042, 4
        %v3046 = vrot.slane %v3041, 4
        %v3049 = vmul.f32 %v596, %v3045
        %v3050 = vmul.f32 %v597, %v3046
        %v3053 = vrot.slane %v3049, 4
        %v3054 = vrot.slane %v3050, 4
        %v3057 = vadd.f32 %v3035, %v3053
        %v3058 = vadd.f32 %v3036, %v3054
        %3059 = vrot.lane.b32.xlu0 %v2946, 18
        %v3060 = vpop.permute.xlu0 %3059
        %3061 = vrot.lane.b32.xlu0 %v2947, 18
        %v3062 = vpop.permute.xlu0 %3061
        %v3063 = vsel %vm2545, %v3060, %v3062
        %v3064 = vsel %vm2545, %v3062, %v3060
        %v3067 = vrot.slane %v3064, 3
        %v3068 = vrot.slane %v3063, 3
        %v3071 = vmul.f32 %v596, %v3067
        %v3072 = vmul.f32 %v597, %v3068
        %v3075 = vrot.slane %v3071, 5
        %v3076 = vrot.slane %v3072, 5
        %v3079 = vadd.f32 %v3057, %v3075
        %v3080 = vadd.f32 %v3058, %v3076
        %3081 = vrot.lane.b32.xlu0 %v2946, 17
        %v3082 = vpop.permute.xlu0 %3081
        %3083 = vrot.lane.b32.xlu0 %v2947, 17
        %v3084 = vpop.permute.xlu0 %3083
        %v3085 = vsel %vm631, %v3082, %v3084
        %v3086 = vsel %vm631, %v3084, %v3082
        %v3089 = vrot.slane %v3086, 2
        %v3090 = vrot.slane %v3085, 2
        %v3093 = vmul.f32 %v596, %v3089
        %v3094 = vmul.f32 %v597, %v3090
        %v3097 = vrot.slane %v3093, 6
        %v3098 = vrot.slane %v3094, 6
        %v3101 = vadd.f32 %v3079, %v3097
        %v3102 = vadd.f32 %v3080, %v3098
        %3103 = vrot.lane.b32.xlu0 %v2946, 16
        %v3104 = vpop.permute.xlu0 %3103
        %3105 = vrot.lane.b32.xlu0 %v2947, 16
        %v3106 = vpop.permute.xlu0 %3105
        %v3107 = vsel %vm650, %v3104, %v3106
        %v3108 = vsel %vm650, %v3106, %v3104
        %v3111 = vrot.slane %v3108, 1
        %v3112 = vrot.slane %v3107, 1
        %v3115 = vmul.f32 %v596, %v3111
        %v3116 = vmul.f32 %v597, %v3112
        %v3119 = vrot.slane %v3115, 7
        %v3120 = vrot.slane %v3116, 7
        %v3123 = vadd.f32 %v3101, %v3119
        %v3124 = vadd.f32 %v3102, %v3120
        %3125 = vrot.lane.b32.xlu0 %v2946, 15
        %v3126 = vpop.permute.xlu0 %3125
        %3127 = vrot.lane.b32.xlu0 %v2947, 15
        %v3128 = vpop.permute.xlu0 %3127
        %v3129 = vsel %vm695, %v3126, %v3128
        %v3130 = vsel %vm695, %v3128, %v3126
        %v3131 = vmul.f32 %v598, %v3130
        %v3132 = vmul.f32 %v599, %v3129
        %v3133 = vadd.f32 %v3123, %v3131
        %v3134 = vadd.f32 %v3124, %v3132
        %3135 = vrot.lane.b32.xlu0 %v2946, 14
        %v3136 = vpop.permute.xlu0 %3135
        %3137 = vrot.lane.b32.xlu0 %v2947, 14
        %v3138 = vpop.permute.xlu0 %3137
        %v3139 = vsel %vm2622, %v3136, %v3138
        %v3140 = vsel %vm2622, %v3138, %v3136
        %v3143 = vrot.slane %v3140, 7
        %v3144 = vrot.slane %v3139, 7
        %v3147 = vmul.f32 %v598, %v3143
        %v3148 = vmul.f32 %v599, %v3144
        %v3151 = vrot.slane %v3147, 1
        %v3152 = vrot.slane %v3148, 1
        %v3155 = vadd.f32 %v3133, %v3151
        %v3156 = vadd.f32 %v3134, %v3152
        %3157 = vrot.lane.b32.xlu0 %v2946, 2
        %v3158 = vpop.permute.xlu0 %3157
        %3159 = vrot.lane.b32.xlu0 %v2947, 2
        %v3160 = vpop.permute.xlu0 %3159
        %v3161 = vsel %vm2645, %v3158, %v3160
        %v3162 = vsel %vm2645, %v3160, %v3158
        %v3165 = vrot.slane %v3162, 6
        %v3166 = vrot.slane %v3161, 6
        %v3169 = vmul.f32 %v598, %v3165
        %v3170 = vmul.f32 %v599, %v3166
        %v3173 = vrot.slane %v3169, 2
        %v3174 = vrot.slane %v3170, 2
        %v3177 = vadd.f32 %v3155, %v3173
        %v3178 = vadd.f32 %v3156, %v3174
        %3179 = vrot.lane.b32.xlu0 %v2946, 1
        %v3180 = vpop.permute.xlu0 %3179
        %3181 = vrot.lane.b32.xlu0 %v2947, 1
        %v3182 = vpop.permute.xlu0 %3181
        %v3183 = vsel %vm738, %v3180, %v3182
        %v3184 = vsel %vm738, %v3182, %v3180
        %v3187 = vrot.slane %v3184, 5
        %v3188 = vrot.slane %v3183, 5
        %v3191 = vmul.f32 %v598, %v3187
        %v3192 = vmul.f32 %v599, %v3188
        %v3195 = vrot.slane %v3191, 3
        %v3196 = vrot.slane %v3192, 3
        %v3199 = vadd.f32 %v3177, %v3195
        %v3200 = vadd.f32 %v3178, %v3196
        %v3203 = vrot.slane %v2946, 4
        %v3204 = vrot.slane %v2947, 4
        %v3207 = vmul.f32 %v598, %v3203
        %v3208 = vmul.f32 %v599, %v3204
        %v3211 = vrot.slane %v3207, 4
        %v3212 = vrot.slane %v3208, 4
        %v3215 = vadd.f32 %v3199, %v3211
        %v3216 = vadd.f32 %v3200, %v3212
        %3217 = vrot.lane.b32.xlu0 %v2946, 127
        %v3218 = vpop.permute.xlu0 %3217
        %3219 = vrot.lane.b32.xlu0 %v2947, 127
        %v3220 = vpop.permute.xlu0 %3219
        %v3221 = vsel %vm807, %v3218, %v3220
        %v3222 = vsel %vm807, %v3220, %v3218
        %v3225 = vrot.slane %v3221, 3
        %v3226 = vrot.slane %v3222, 3
        %v3229 = vmul.f32 %v598, %v3225
        %v3230 = vmul.f32 %v599, %v3226
        %v3233 = vrot.slane %v3229, 5
        %v3234 = vrot.slane %v3230, 5
        %v3237 = vadd.f32 %v3215, %v3233
        %v3238 = vadd.f32 %v3216, %v3234
        %3239 = vrot.lane.b32.xlu0 %v2946, 126
        %v3240 = vpop.permute.xlu0 %3239
        %3241 = vrot.lane.b32.xlu0 %v2947, 126
        %v3242 = vpop.permute.xlu0 %3241
        %v3243 = vsel %vm2722, %v3240, %v3242
        %v3244 = vsel %vm2722, %v3242, %v3240
        %v3247 = vrot.slane %v3243, 2
        %v3248 = vrot.slane %v3244, 2
        %v3251 = vmul.f32 %v598, %v3247
        %v3252 = vmul.f32 %v599, %v3248
        %v3255 = vrot.slane %v3251, 6
        %v3256 = vrot.slane %v3252, 6
        %v3259 = vadd.f32 %v3237, %v3255
        %v3260 = vadd.f32 %v3238, %v3256
        %3261 = vrot.lane.b32.xlu0 %v2946, 114
        %v3262 = vpop.permute.xlu0 %3261
        %3263 = vrot.lane.b32.xlu0 %v2947, 114
        %v3264 = vpop.permute.xlu0 %3263
        %v3265 = vsel %vm2745, %v3262, %v3264
        %v3266 = vsel %vm2745, %v3264, %v3262
        %v3269 = vrot.slane %v3265, 1
        %v3270 = vrot.slane %v3266, 1
        %v3273 = vmul.f32 %v598, %v3269
        %v3274 = vmul.f32 %v599, %v3270
        %v3277 = vrot.slane %v3273, 7
        %v3278 = vrot.slane %v3274, 7
        %v3281 = vadd.f32 %v3259, %v3277
        %v3282 = vadd.f32 %v3260, %v3278
        %3283 = vrot.lane.b32.xlu0 %v2946, 113
        %v3284 = vpop.permute.xlu0 %3283
        %3285 = vrot.lane.b32.xlu0 %v2947, 113
        %v3286 = vpop.permute.xlu0 %3285
        %v3287 = vsel %vm850, %v3284, %v3286
        %v3288 = vsel %vm850, %v3286, %v3284
        %v3289 = vmul.f32 %v600, %v3287
        %v3290 = vmul.f32 %v601, %v3288
        %v3291 = vadd.f32 %v3281, %v3289
        %v3292 = vadd.f32 %v3282, %v3290
        %3293 = vrot.lane.b32.xlu0 %v2946, 112
        %v3294 = vpop.permute.xlu0 %3293
        %3295 = vrot.lane.b32.xlu0 %v2947, 112
        %v3296 = vpop.permute.xlu0 %3295
        %v3297 = vsel %vm893, %v3294, %v3296
        %v3298 = vsel %vm893, %v3296, %v3294
        %v3301 = vrot.slane %v3297, 7
        %v3302 = vrot.slane %v3298, 7
        %v3305 = vmul.f32 %v600, %v3301
        %v3306 = vmul.f32 %v601, %v3302
        %v3309 = vrot.slane %v3305, 1
        %v3310 = vrot.slane %v3306, 1
        %v3313 = vadd.f32 %v3291, %v3309
        %v3314 = vadd.f32 %v3292, %v3310
        %3315 = vrot.lane.b32.xlu0 %v2946, 111
        %v3316 = vpop.permute.xlu0 %3315
        %3317 = vrot.lane.b32.xlu0 %v2947, 111
        %v3318 = vpop.permute.xlu0 %3317
        %v3319 = vsel %vm932, %v3316, %v3318
        %v3320 = vsel %vm932, %v3318, %v3316
        %v3323 = vrot.slane %v3319, 6
        %v3324 = vrot.slane %v3320, 6
        %v3327 = vmul.f32 %v600, %v3323
        %v3328 = vmul.f32 %v601, %v3324
        %v3331 = vrot.slane %v3327, 2
        %v3332 = vrot.slane %v3328, 2
        %v3335 = vadd.f32 %v3313, %v3331
        %v3336 = vadd.f32 %v3314, %v3332
        %3337 = vrot.lane.b32.xlu0 %v2946, 110
        %v3338 = vpop.permute.xlu0 %3337
        %3339 = vrot.lane.b32.xlu0 %v2947, 110
        %v3340 = vpop.permute.xlu0 %3339
        %v3341 = vsel %vm2822, %v3338, %v3340
        %v3342 = vsel %vm2822, %v3340, %v3338
        %v3345 = vrot.slane %v3341, 5
        %v3346 = vrot.slane %v3342, 5
        %v3349 = vmul.f32 %v600, %v3345
        %v3350 = vmul.f32 %v601, %v3346
        %v3353 = vrot.slane %v3349, 3
        %v3354 = vrot.slane %v3350, 3
        %v3357 = vadd.f32 %v3335, %v3353
        %v3358 = vadd.f32 %v3336, %v3354
        %3359 = vrot.lane.b32.xlu0 %v2946, 98
        %v3360 = vpop.permute.xlu0 %3359
        %3361 = vrot.lane.b32.xlu0 %v2947, 98
        %v3362 = vpop.permute.xlu0 %3361
        %v3363 = vsel %vm2845, %v3360, %v3362
        %v3364 = vsel %vm2845, %v3362, %v3360
        %v3367 = vrot.slane %v3363, 4
        %v3368 = vrot.slane %v3364, 4
        %v3371 = vmul.f32 %v600, %v3367
        %v3372 = vmul.f32 %v601, %v3368
        %v3375 = vrot.slane %v3371, 4
        %v3376 = vrot.slane %v3372, 4
        %v3379 = vadd.f32 %v3357, %v3375
        %v3380 = vadd.f32 %v3358, %v3376
        %3381 = vrot.lane.b32.xlu0 %v2946, 97
        %v3382 = vpop.permute.xlu0 %3381
        %3383 = vrot.lane.b32.xlu0 %v2947, 97
        %v3384 = vpop.permute.xlu0 %3383
        %v3385 = vsel %vm2868, %v3382, %v3384
        %v3386 = vsel %vm2868, %v3384, %v3382
        %v3389 = vrot.slane %v3385, 3
        %v3390 = vrot.slane %v3386, 3
        %v3393 = vmul.f32 %v600, %v3389
        %v3394 = vmul.f32 %v601, %v3390
        %v3397 = vrot.slane %v3393, 5
        %v3398 = vrot.slane %v3394, 5
        %v3401 = vadd.f32 %v3379, %v3397
        %v3402 = vadd.f32 %v3380, %v3398
        %3403 = vrot.lane.b32.xlu0 %v2946, 96
        %v3404 = vpop.permute.xlu0 %3403
        %3405 = vrot.lane.b32.xlu0 %v2947, 96
        %v3406 = vpop.permute.xlu0 %3405
        %v3407 = vsel %vm2891, %v3404, %v3406
        %v3408 = vsel %vm2891, %v3406, %v3404
        %v3411 = vrot.slane %v3407, 2
        %v3412 = vrot.slane %v3408, 2
        %v3415 = vmul.f32 %v600, %v3411
        %v3416 = vmul.f32 %v601, %v3412
        %v3419 = vrot.slane %v3415, 6
        %v3420 = vrot.slane %v3416, 6
        %v3423 = vadd.f32 %v3401, %v3419
        %v3424 = vadd.f32 %v3402, %v3420
        %3425 = vrot.lane.b32.xlu0 %v2946, 95
        %v3426 = vpop.permute.xlu0 %3425
        %3427 = vrot.lane.b32.xlu0 %v2947, 95
        %v3428 = vpop.permute.xlu0 %3427
        %v3429 = vsel %vm2914, %v3426, %v3428
        %v3430 = vsel %vm2914, %v3428, %v3426
        %v3433 = vrot.slane %v3429, 1
        %v3434 = vrot.slane %v3430, 1
        %v3437 = vmul.f32 %v600, %v3433
        %v3438 = vmul.f32 %v601, %v3434
        %v3441 = vrot.slane %v3437, 7
        %v3442 = vrot.slane %v3438, 7
        %v3445 = vadd.f32 %v3423, %v3441
        %v3446 = vadd.f32 %v3424, %v3442
        %3447 = vrot.lane.b32.xlu0 %v2946, 94
        %v3448 = vpop.permute.xlu0 %3447
        %3449 = vrot.lane.b32.xlu0 %v2947, 94
        %v3450 = vpop.permute.xlu0 %3449
        %v3451 = vsel %vm2937, %v3448, %v3450
        %v3452 = vsel %vm2937, %v3450, %v3448
        %v3453 = vmul.f32 %v602, %v3451
        %v3454 = vmul.f32 %v603, %v3452
        %v3455 = vadd.f32 %v3445, %v3453
        %v3456 = vadd.f32 %v3446, %v3454
        %v3457 = vmul.f32 %v2946, %v3455
        %v3458 = vmul.f32 %v2947, %v3456
        %v3459 = vsel %vm1498, %v3457, 0.0
        %v3460 = vsel %vm1498, %v3458, 0.0
        %v3461 = vadd.f32 %v3459, %v3460
        %3462 = vadd.xlane.f32.xlu0 %v3461
        %v3463 = vpop.xlane.xlu0 %3462
        %v3464 = vrot.slane %v3463, 4
        %v3465 = vadd.f32 %v3463, %v3464
        %v3466 = vrot.slane %v3465, 2
        %v3467 = vadd.f32 %v3465, %v3466
        %v3468 = vrot.slane %v3467, 1
        %v3469 = vadd.f32 %v3467, %v3468
        %s3470 = vtos %v3469
        %v3471 = vstv %s3470
        %v3472 = vrcp.pop %v3471
        %v3473 = vmul.f32 %v3471, %v3472
        %v3474 = vsub.f32 1.0, %v3473
        %v3475 = vmul.f32 %v3472, %v3474
        %v3476 = vadd.f32 %v3472, %v3475
        %vm3477 = vweird.f32 %v3471
        %vm3478 = vweird.f32 %v3472
        %vm3479 = vmor %vm3477, %vm3478
        %v3480 = vsel %vm3479, %v3472, %v3476
        %v3481 = vand.u32 2147483647, %v3471
        %vm3482 = vcmp.eq.f32.partialorder %v3481, 8.507059e+37
        %v3483 = vand.u32 %v3471, 2147483648
        %v3484 = vor.u32 1.1754944e-38, %v3483
        %v3485 = vsel %vm3482, %v3484, %v3480
        %v3486 = vmul.f32 %v2962, %v3485
        %v3487 = vmul.f32 %v3486, %v2946
        %v3488 = vmul.f32 %v3486, %v2947
        %v3491 = vrot.slane %v3488, 7
        %v3492 = vsel %vm1498, %v3487, %v3491
        %v3494 = vadd.f32 %v2429, %v3492
        %v3495 = vmul.f32 %v3486, %v3455
        %v3496 = vmul.f32 %v3486, %v3456
        %v3497 = vadd.f32 %v2944, %v3495
        %v3498 = vadd.f32 %v2945, %v3496
        %v3499 = vmul.f32 %v3497, %v3497
        %v3500 = vmul.f32 %v3498, %v3498
        %v3501 = vsel %vm1498, %v3499, 0.0
        %v3502 = vsel %vm1498, %v3500, 0.0
        %v3503 = vadd.f32 %v3501, %v3502
        %3504 = vadd.xlane.f32.xlu0 %v3503
        %v3505 = vpop.xlane.xlu0 %3504
        %v3506 = vrot.slane %v3505, 4
        %v3507 = vadd.f32 %v3505, %v3506
        %v3508 = vrot.slane %v3507, 2
        %v3509 = vadd.f32 %v3507, %v3508
        %v3510 = vrot.slane %v3509, 1
        %v3511 = vadd.f32 %v3509, %v3510
        %s3512 = vtos %v3511
        %v3513 = vstv %s3512
        %v3514 = vsub.f32 0.0, %v3497
        %v3515 = vsub.f32 0.0, %v3498
        %v3516 = vrcp.pop %v2962
        %v3517 = vmul.f32 %v2962, %v3516
        %v3518 = vsub.f32 1.0, %v3517
        %v3519 = vmul.f32 %v3516, %v3518
        %v3520 = vadd.f32 %v3516, %v3519
        %vm3521 = vweird.f32 %v2962
        %vm3522 = vweird.f32 %v3516
        %vm3523 = vmor %vm3521, %vm3522
        %v3524 = vsel %vm3523, %v3516, %v3520
        %v3525 = vand.u32 2147483647, %v2962
        %vm3526 = vcmp.eq.f32.partialorder %v3525, 8.507059e+37
        %v3527 = vand.u32 %v2962, 2147483648
        %v3528 = vor.u32 1.1754944e-38, %v3527
        %v3529 = vsel %vm3526, %v3528, %v3524
        %v3530 = vmul.f32 %v3513, %v3529
        %v3531 = vmul.f32 %v3530, %v2946
        %v3532 = vmul.f32 %v3530, %v2947
        %v3533 = vadd.f32 %v3514, %v3531
        %v3534 = vadd.f32 %v3515, %v3532
        %3535 = vrot.lane.b32.xlu0 %v3533, 34
        %v3536 = vpop.permute.xlu0 %3535
        %3537 = vrot.lane.b32.xlu0 %v3534, 34
        %v3538 = vpop.permute.xlu0 %3537
        %v3539 = vsel %vm2444, %v3536, %v3538
        %v3540 = vsel %vm2444, %v3538, %v3536
        %v3541 = vmul.f32 %v596, %v3540
        %v3542 = vmul.f32 %v597, %v3539
        %3543 = vrot.lane.b32.xlu0 %v3533, 33
        %v3544 = vpop.permute.xlu0 %3543
        %3545 = vrot.lane.b32.xlu0 %v3534, 33
        %v3546 = vpop.permute.xlu0 %3545
        %v3547 = vsel %vm2453, %v3544, %v3546
        %v3548 = vsel %vm2453, %v3546, %v3544
        %v3551 = vrot.slane %v3548, 7
        %v3552 = vrot.slane %v3547, 7
        %v3555 = vmul.f32 %v596, %v3551
        %v3556 = vmul.f32 %v597, %v3552
        %v3559 = vrot.slane %v3555, 1
        %v3560 = vrot.slane %v3556, 1
        %v3563 = vadd.f32 %v3541, %v3559
        %v3564 = vadd.f32 %v3542, %v3560
        %3565 = vrot.lane.b32.xlu0 %v3533, 32
        %v3566 = vpop.permute.xlu0 %3565
        %3567 = vrot.lane.b32.xlu0 %v3534, 32
        %v3568 = vpop.permute.xlu0 %3567
        %v3569 = vsel %vm2476, %v3566, %v3568
        %v3570 = vsel %vm2476, %v3568, %v3566
        %v3573 = vrot.slane %v3570, 6
        %v3574 = vrot.slane %v3569, 6
        %v3577 = vmul.f32 %v596, %v3573
        %v3578 = vmul.f32 %v597, %v3574
        %v3581 = vrot.slane %v3577, 2
        %v3582 = vrot.slane %v3578, 2
        %v3585 = vadd.f32 %v3563, %v3581
        %v3586 = vadd.f32 %v3564, %v3582
        %3587 = vrot.lane.b32.xlu0 %v3533, 31
        %v3588 = vpop.permute.xlu0 %3587
        %3589 = vrot.lane.b32.xlu0 %v3534, 31
        %v3590 = vpop.permute.xlu0 %3589
        %v3591 = vsel %vm2499, %v3588, %v3590
        %v3592 = vsel %vm2499, %v3590, %v3588
        %v3595 = vrot.slane %v3592, 5
        %v3596 = vrot.slane %v3591, 5
        %v3599 = vmul.f32 %v596, %v3595
        %v3600 = vmul.f32 %v597, %v3596
        %v3603 = vrot.slane %v3599, 3
        %v3604 = vrot.slane %v3600, 3
        %v3607 = vadd.f32 %v3585, %v3603
        %v3608 = vadd.f32 %v3586, %v3604
        %3609 = vrot.lane.b32.xlu0 %v3533, 30
        %v3610 = vpop.permute.xlu0 %3609
        %3611 = vrot.lane.b32.xlu0 %v3534, 30
        %v3612 = vpop.permute.xlu0 %3611
        %v3613 = vsel %vm2522, %v3610, %v3612
        %v3614 = vsel %vm2522, %v3612, %v3610
        %v3617 = vrot.slane %v3614, 4
        %v3618 = vrot.slane %v3613, 4
        %v3621 = vmul.f32 %v596, %v3617
        %v3622 = vmul.f32 %v597, %v3618
        %v3625 = vrot.slane %v3621, 4
        %v3626 = vrot.slane %v3622, 4
        %v3629 = vadd.f32 %v3607, %v3625
        %v3630 = vadd.f32 %v3608, %v3626
        %3631 = vrot.lane.b32.xlu0 %v3533, 18
        %v3632 = vpop.permute.xlu0 %3631
        %3633 = vrot.lane.b32.xlu0 %v3534, 18
        %v3634 = vpop.permute.xlu0 %3633
        %v3635 = vsel %vm2545, %v3632, %v3634
        %v3636 = vsel %vm2545, %v3634, %v3632
        %v3639 = vrot.slane %v3636, 3
        %v3640 = vrot.slane %v3635, 3
        %v3643 = vmul.f32 %v596, %v3639
        %v3644 = vmul.f32 %v597, %v3640
        %v3647 = vrot.slane %v3643, 5
        %v3648 = vrot.slane %v3644, 5
        %v3651 = vadd.f32 %v3629, %v3647
        %v3652 = vadd.f32 %v3630, %v3648
        %3653 = vrot.lane.b32.xlu0 %v3533, 17
        %v3654 = vpop.permute.xlu0 %3653
        %3655 = vrot.lane.b32.xlu0 %v3534, 17
        %v3656 = vpop.permute.xlu0 %3655
        %v3657 = vsel %vm631, %v3654, %v3656
        %v3658 = vsel %vm631, %v3656, %v3654
        %v3661 = vrot.slane %v3658, 2
        %v3662 = vrot.slane %v3657, 2
        %v3665 = vmul.f32 %v596, %v3661
        %v3666 = vmul.f32 %v597, %v3662
        %v3669 = vrot.slane %v3665, 6
        %v3670 = vrot.slane %v3666, 6
        %v3673 = vadd.f32 %v3651, %v3669
        %v3674 = vadd.f32 %v3652, %v3670
        %3675 = vrot.lane.b32.xlu0 %v3533, 16
        %v3676 = vpop.permute.xlu0 %3675
        %3677 = vrot.lane.b32.xlu0 %v3534, 16
        %v3678 = vpop.permute.xlu0 %3677
        %v3679 = vsel %vm650, %v3676, %v3678
        %v3680 = vsel %vm650, %v3678, %v3676
        %v3683 = vrot.slane %v3680, 1
        %v3684 = vrot.slane %v3679, 1
        %v3687 = vmul.f32 %v596, %v3683
        %v3688 = vmul.f32 %v597, %v3684
        %v3691 = vrot.slane %v3687, 7
        %v3692 = vrot.slane %v3688, 7
        %v3695 = vadd.f32 %v3673, %v3691
        %v3696 = vadd.f32 %v3674, %v3692
        %3697 = vrot.lane.b32.xlu0 %v3533, 15
        %v3698 = vpop.permute.xlu0 %3697
        %3699 = vrot.lane.b32.xlu0 %v3534, 15
        %v3700 = vpop.permute.xlu0 %3699
        %v3701 = vsel %vm695, %v3698, %v3700
        %v3702 = vsel %vm695, %v3700, %v3698
        %v3703 = vmul.f32 %v598, %v3702
        %v3704 = vmul.f32 %v599, %v3701
        %v3705 = vadd.f32 %v3695, %v3703
        %v3706 = vadd.f32 %v3696, %v3704
        %3707 = vrot.lane.b32.xlu0 %v3533, 14
        %v3708 = vpop.permute.xlu0 %3707
        %3709 = vrot.lane.b32.xlu0 %v3534, 14
        %v3710 = vpop.permute.xlu0 %3709
        %v3711 = vsel %vm2622, %v3708, %v3710
        %v3712 = vsel %vm2622, %v3710, %v3708
        %v3715 = vrot.slane %v3712, 7
        %v3716 = vrot.slane %v3711, 7
        %v3719 = vmul.f32 %v598, %v3715
        %v3720 = vmul.f32 %v599, %v3716
        %v3723 = vrot.slane %v3719, 1
        %v3724 = vrot.slane %v3720, 1
        %v3727 = vadd.f32 %v3705, %v3723
        %v3728 = vadd.f32 %v3706, %v3724
        %3729 = vrot.lane.b32.xlu0 %v3533, 2
        %v3730 = vpop.permute.xlu0 %3729
        %3731 = vrot.lane.b32.xlu0 %v3534, 2
        %v3732 = vpop.permute.xlu0 %3731
        %v3733 = vsel %vm2645, %v3730, %v3732
        %v3734 = vsel %vm2645, %v3732, %v3730
        %v3737 = vrot.slane %v3734, 6
        %v3738 = vrot.slane %v3733, 6
        %v3741 = vmul.f32 %v598, %v3737
        %v3742 = vmul.f32 %v599, %v3738
        %v3745 = vrot.slane %v3741, 2
        %v3746 = vrot.slane %v3742, 2
        %v3749 = vadd.f32 %v3727, %v3745
        %v3750 = vadd.f32 %v3728, %v3746
        %3751 = vrot.lane.b32.xlu0 %v3533, 1
        %v3752 = vpop.permute.xlu0 %3751
        %3753 = vrot.lane.b32.xlu0 %v3534, 1
        %v3754 = vpop.permute.xlu0 %3753
        %v3755 = vsel %vm738, %v3752, %v3754
        %v3756 = vsel %vm738, %v3754, %v3752
        %v3759 = vrot.slane %v3756, 5
        %v3760 = vrot.slane %v3755, 5
        %v3763 = vmul.f32 %v598, %v3759
        %v3764 = vmul.f32 %v599, %v3760
        %v3767 = vrot.slane %v3763, 3
        %v3768 = vrot.slane %v3764, 3
        %v3771 = vadd.f32 %v3749, %v3767
        %v3772 = vadd.f32 %v3750, %v3768
        %v3775 = vrot.slane %v3533, 4
        %v3776 = vrot.slane %v3534, 4
        %v3779 = vmul.f32 %v598, %v3775
        %v3780 = vmul.f32 %v599, %v3776
        %v3783 = vrot.slane %v3779, 4
        %v3784 = vrot.slane %v3780, 4
        %v3787 = vadd.f32 %v3771, %v3783
        %v3788 = vadd.f32 %v3772, %v3784
        %3789 = vrot.lane.b32.xlu0 %v3533, 127
        %v3790 = vpop.permute.xlu0 %3789
        %3791 = vrot.lane.b32.xlu0 %v3534, 127
        %v3792 = vpop.permute.xlu0 %3791
        %v3793 = vsel %vm807, %v3790, %v3792
        %v3794 = vsel %vm807, %v3792, %v3790
        %v3797 = vrot.slane %v3793, 3
        %v3798 = vrot.slane %v3794, 3
        %v3801 = vmul.f32 %v598, %v3797
        %v3802 = vmul.f32 %v599, %v3798
        %v3805 = vrot.slane %v3801, 5
        %v3806 = vrot.slane %v3802, 5
        %v3809 = vadd.f32 %v3787, %v3805
        %v3810 = vadd.f32 %v3788, %v3806
        %3811 = vrot.lane.b32.xlu0 %v3533, 126
        %v3812 = vpop.permute.xlu0 %3811
        %3813 = vrot.lane.b32.xlu0 %v3534, 126
        %v3814 = vpop.permute.xlu0 %3813
        %v3815 = vsel %vm2722, %v3812, %v3814
        %v3816 = vsel %vm2722, %v3814, %v3812
        %v3819 = vrot.slane %v3815, 2
        %v3820 = vrot.slane %v3816, 2
        %v3823 = vmul.f32 %v598, %v3819
        %v3824 = vmul.f32 %v599, %v3820
        %v3827 = vrot.slane %v3823, 6
        %v3828 = vrot.slane %v3824, 6
        %v3831 = vadd.f32 %v3809, %v3827
        %v3832 = vadd.f32 %v3810, %v3828
        %3833 = vrot.lane.b32.xlu0 %v3533, 114
        %v3834 = vpop.permute.xlu0 %3833
        %3835 = vrot.lane.b32.xlu0 %v3534, 114
        %v3836 = vpop.permute.xlu0 %3835
        %v3837 = vsel %vm2745, %v3834, %v3836
        %v3838 = vsel %vm2745, %v3836, %v3834
        %v3841 = vrot.slane %v3837, 1
        %v3842 = vrot.slane %v3838, 1
        %v3845 = vmul.f32 %v598, %v3841
        %v3846 = vmul.f32 %v599, %v3842
        %v3849 = vrot.slane %v3845, 7
        %v3850 = vrot.slane %v3846, 7
        %v3853 = vadd.f32 %v3831, %v3849
        %v3854 = vadd.f32 %v3832, %v3850
        %3855 = vrot.lane.b32.xlu0 %v3533, 113
        %v3856 = vpop.permute.xlu0 %3855
        %3857 = vrot.lane.b32.xlu0 %v3534, 113
        %v3858 = vpop.permute.xlu0 %3857
        %v3859 = vsel %vm850, %v3856, %v3858
        %v3860 = vsel %vm850, %v3858, %v3856
        %v3861 = vmul.f32 %v600, %v3859
        %v3862 = vmul.f32 %v601, %v3860
        %v3863 = vadd.f32 %v3853, %v3861
        %v3864 = vadd.f32 %v3854, %v3862
        %3865 = vrot.lane.b32.xlu0 %v3533, 112
        %v3866 = vpop.permute.xlu0 %3865
        %3867 = vrot.lane.b32.xlu0 %v3534, 112
        %v3868 = vpop.permute.xlu0 %3867
        %v3869 = vsel %vm893, %v3866, %v3868
        %v3870 = vsel %vm893, %v3868, %v3866
        %v3873 = vrot.slane %v3869, 7
        %v3874 = vrot.slane %v3870, 7
        %v3877 = vmul.f32 %v600, %v3873
        %v3878 = vmul.f32 %v601, %v3874
        %v3881 = vrot.slane %v3877, 1
        %v3882 = vrot.slane %v3878, 1
        %v3885 = vadd.f32 %v3863, %v3881
        %v3886 = vadd.f32 %v3864, %v3882
        %3887 = vrot.lane.b32.xlu0 %v3533, 111
        %v3888 = vpop.permute.xlu0 %3887
        %3889 = vrot.lane.b32.xlu0 %v3534, 111
        %v3890 = vpop.permute.xlu0 %3889
        %v3891 = vsel %vm932, %v3888, %v3890
        %v3892 = vsel %vm932, %v3890, %v3888
        %v3895 = vrot.slane %v3891, 6
        %v3896 = vrot.slane %v3892, 6
        %v3899 = vmul.f32 %v600, %v3895
        %v3900 = vmul.f32 %v601, %v3896
        %v3903 = vrot.slane %v3899, 2
        %v3904 = vrot.slane %v3900, 2
        %v3907 = vadd.f32 %v3885, %v3903
        %v3908 = vadd.f32 %v3886, %v3904
        %3909 = vrot.lane.b32.xlu0 %v3533, 110
        %v3910 = vpop.permute.xlu0 %3909
        %3911 = vrot.lane.b32.xlu0 %v3534, 110
        %v3912 = vpop.permute.xlu0 %3911
        %v3913 = vsel %vm2822, %v3910, %v3912
        %v3914 = vsel %vm2822, %v3912, %v3910
        %v3917 = vrot.slane %v3913, 5
        %v3918 = vrot.slane %v3914, 5
        %v3921 = vmul.f32 %v600, %v3917
        %v3922 = vmul.f32 %v601, %v3918
        %v3925 = vrot.slane %v3921, 3
        %v3926 = vrot.slane %v3922, 3
        %v3929 = vadd.f32 %v3907, %v3925
        %v3930 = vadd.f32 %v3908, %v3926
        %3931 = vrot.lane.b32.xlu0 %v3533, 98
        %v3932 = vpop.permute.xlu0 %3931
        %3933 = vrot.lane.b32.xlu0 %v3534, 98
        %v3934 = vpop.permute.xlu0 %3933
        %v3935 = vsel %vm2845, %v3932, %v3934
        %v3936 = vsel %vm2845, %v3934, %v3932
        %v3939 = vrot.slane %v3935, 4
        %v3940 = vrot.slane %v3936, 4
        %v3943 = vmul.f32 %v600, %v3939
        %v3944 = vmul.f32 %v601, %v3940
        %v3947 = vrot.slane %v3943, 4
        %v3948 = vrot.slane %v3944, 4
        %v3951 = vadd.f32 %v3929, %v3947
        %v3952 = vadd.f32 %v3930, %v3948
        %3953 = vrot.lane.b32.xlu0 %v3533, 97
        %v3954 = vpop.permute.xlu0 %3953
        %3955 = vrot.lane.b32.xlu0 %v3534, 97
        %v3956 = vpop.permute.xlu0 %3955
        %v3957 = vsel %vm2868, %v3954, %v3956
        %v3958 = vsel %vm2868, %v3956, %v3954
        %v3961 = vrot.slane %v3957, 3
        %v3962 = vrot.slane %v3958, 3
        %v3965 = vmul.f32 %v600, %v3961
        %v3966 = vmul.f32 %v601, %v3962
        %v3969 = vrot.slane %v3965, 5
        %v3970 = vrot.slane %v3966, 5
        %v3973 = vadd.f32 %v3951, %v3969
        %v3974 = vadd.f32 %v3952, %v3970
        %3975 = vrot.lane.b32.xlu0 %v3533, 96
        %v3976 = vpop.permute.xlu0 %3975
        %3977 = vrot.lane.b32.xlu0 %v3534, 96
        %v3978 = vpop.permute.xlu0 %3977
        %v3979 = vsel %vm2891, %v3976, %v3978
        %v3980 = vsel %vm2891, %v3978, %v3976
        %v3983 = vrot.slane %v3979, 2
        %v3984 = vrot.slane %v3980, 2
        %v3987 = vmul.f32 %v600, %v3983
        %v3988 = vmul.f32 %v601, %v3984
        %v3991 = vrot.slane %v3987, 6
        %v3992 = vrot.slane %v3988, 6
        %v3995 = vadd.f32 %v3973, %v3991
        %v3996 = vadd.f32 %v3974, %v3992
        %3997 = vrot.lane.b32.xlu0 %v3533, 95
        %v3998 = vpop.permute.xlu0 %3997
        %3999 = vrot.lane.b32.xlu0 %v3534, 95
        %v4000 = vpop.permute.xlu0 %3999
        %v4001 = vsel %vm2914, %v3998, %v4000
        %v4002 = vsel %vm2914, %v4000, %v3998
        %v4005 = vrot.slane %v4001, 1
        %v4006 = vrot.slane %v4002, 1
        %v4009 = vmul.f32 %v600, %v4005
        %v4010 = vmul.f32 %v601, %v4006
        %v4013 = vrot.slane %v4009, 7
        %v4014 = vrot.slane %v4010, 7
        %v4017 = vadd.f32 %v3995, %v4013
        %v4018 = vadd.f32 %v3996, %v4014
        %4019 = vrot.lane.b32.xlu0 %v3533, 94
        %v4020 = vpop.permute.xlu0 %4019
        %4021 = vrot.lane.b32.xlu0 %v3534, 94
        %v4022 = vpop.permute.xlu0 %4021
        %v4023 = vsel %vm2937, %v4020, %v4022
        %v4024 = vsel %vm2937, %v4022, %v4020
        %v4025 = vmul.f32 %v602, %v4023
        %v4026 = vmul.f32 %v603, %v4024
        %v4027 = vadd.f32 %v4017, %v4025
        %v4028 = vadd.f32 %v4018, %v4026
        %v4029 = vmul.f32 %v3533, %v4027
        %v4030 = vmul.f32 %v3534, %v4028
        %v4031 = vsel %vm1498, %v4029, 0.0
        %v4032 = vsel %vm1498, %v4030, 0.0
        %v4033 = vadd.f32 %v4031, %v4032
        %4034 = vadd.xlane.f32.xlu0 %v4033
        %v4035 = vpop.xlane.xlu0 %4034
        %v4036 = vrot.slane %v4035, 4
        %v4037 = vadd.f32 %v4035, %v4036
        %v4038 = vrot.slane %v4037, 2
        %v4039 = vadd.f32 %v4037, %v4038
        %v4040 = vrot.slane %v4039, 1
        %v4041 = vadd.f32 %v4039, %v4040
        %s4042 = vtos %v4041
        %v4043 = vstv %s4042
        %v4044 = vrcp.pop %v4043
        %v4045 = vmul.f32 %v4043, %v4044
        %v4046 = vsub.f32 1.0, %v4045
        %v4047 = vmul.f32 %v4044, %v4046
        %v4048 = vadd.f32 %v4044, %v4047
        %vm4049 = vweird.f32 %v4043
        %vm4050 = vweird.f32 %v4044
        %vm4051 = vmor %vm4049, %vm4050
        %v4052 = vsel %vm4051, %v4044, %v4048
        %v4053 = vand.u32 2147483647, %v4043
        %vm4054 = vcmp.eq.f32.partialorder %v4053, 8.507059e+37
        %v4055 = vand.u32 %v4043, 2147483648
        %v4056 = vor.u32 1.1754944e-38, %v4055
        %v4057 = vsel %vm4054, %v4056, %v4052
        %v4058 = vmul.f32 %v3513, %v4057
        %v4059 = vmul.f32 %v4058, %v3533
        %v4060 = vmul.f32 %v4058, %v3534
        %v4063 = vrot.slane %v4060, 7
        %v4064 = vsel %vm1498, %v4059, %v4063
        %v4066 = vadd.f32 %v3494, %v4064
        %v4067 = vmul.f32 %v4058, %v4027
        %v4068 = vmul.f32 %v4058, %v4028
        %v4069 = vadd.f32 %v3497, %v4067
        %v4070 = vadd.f32 %v3498, %v4068
        %v4071 = vmul.f32 %v4069, %v4069
        %v4072 = vmul.f32 %v4070, %v4070
        %v4073 = vsel %vm1498, %v4071, 0.0
        %v4074 = vsel %vm1498, %v4072, 0.0
        %v4075 = vadd.f32 %v4073, %v4074
        %4076 = vadd.xlane.f32.xlu0 %v4075
        %v4077 = vpop.xlane.xlu0 %4076
        %v4078 = vrot.slane %v4077, 4
        %v4079 = vadd.f32 %v4077, %v4078
        %v4080 = vrot.slane %v4079, 2
        %v4081 = vadd.f32 %v4079, %v4080
        %v4082 = vrot.slane %v4081, 1
        %v4083 = vadd.f32 %v4081, %v4082
        %s4084 = vtos %v4083
        %v4085 = vstv %s4084
        %v4086 = vsub.f32 0.0, %v4069
        %v4087 = vsub.f32 0.0, %v4070
        %v4088 = vrcp.pop %v3513
        %v4089 = vmul.f32 %v3513, %v4088
        %v4090 = vsub.f32 1.0, %v4089
        %v4091 = vmul.f32 %v4088, %v4090
        %v4092 = vadd.f32 %v4088, %v4091
        %vm4093 = vweird.f32 %v3513
        %vm4094 = vweird.f32 %v4088
        %vm4095 = vmor %vm4093, %vm4094
        %v4096 = vsel %vm4095, %v4088, %v4092
        %v4097 = vand.u32 2147483647, %v3513
        %vm4098 = vcmp.eq.f32.partialorder %v4097, 8.507059e+37
        %v4099 = vand.u32 %v3513, 2147483648
        %v4100 = vor.u32 1.1754944e-38, %v4099
        %v4101 = vsel %vm4098, %v4100, %v4096
        %v4102 = vmul.f32 %v4085, %v4101
        %v4103 = vmul.f32 %v4102, %v3533
        %v4104 = vmul.f32 %v4102, %v3534
        %v4105 = vadd.f32 %v4086, %v4103
        %v4106 = vadd.f32 %v4087, %v4104
        %4107 = vrot.lane.b32.xlu0 %v4105, 34
        %v4108 = vpop.permute.xlu0 %4107
        %4109 = vrot.lane.b32.xlu0 %v4106, 34
        %v4110 = vpop.permute.xlu0 %4109
        %v4111 = vsel %vm2444, %v4108, %v4110
        %v4112 = vsel %vm2444, %v4110, %v4108
        %v4113 = vmul.f32 %v596, %v4112
        %v4114 = vmul.f32 %v597, %v4111
        %4115 = vrot.lane.b32.xlu0 %v4105, 33
        %v4116 = vpop.permute.xlu0 %4115
        %4117 = vrot.lane.b32.xlu0 %v4106, 33
        %v4118 = vpop.permute.xlu0 %4117
        %v4119 = vsel %vm2453, %v4116, %v4118
        %v4120 = vsel %vm2453, %v4118, %v4116
        %v4123 = vrot.slane %v4120, 7
        %v4124 = vrot.slane %v4119, 7
        %v4127 = vmul.f32 %v596, %v4123
        %v4128 = vmul.f32 %v597, %v4124
        %v4131 = vrot.slane %v4127, 1
        %v4132 = vrot.slane %v4128, 1
        %v4135 = vadd.f32 %v4113, %v4131
        %v4136 = vadd.f32 %v4114, %v4132
        %4137 = vrot.lane.b32.xlu0 %v4105, 32
        %v4138 = vpop.permute.xlu0 %4137
        %4139 = vrot.lane.b32.xlu0 %v4106, 32
        %v4140 = vpop.permute.xlu0 %4139
        %v4141 = vsel %vm2476, %v4138, %v4140
        %v4142 = vsel %vm2476, %v4140, %v4138
        %v4145 = vrot.slane %v4142, 6
        %v4146 = vrot.slane %v4141, 6
        %v4149 = vmul.f32 %v596, %v4145
        %v4150 = vmul.f32 %v597, %v4146
        %v4153 = vrot.slane %v4149, 2
        %v4154 = vrot.slane %v4150, 2
        %v4157 = vadd.f32 %v4135, %v4153
        %v4158 = vadd.f32 %v4136, %v4154
        %4159 = vrot.lane.b32.xlu0 %v4105, 31
        %v4160 = vpop.permute.xlu0 %4159
        %4161 = vrot.lane.b32.xlu0 %v4106, 31
        %v4162 = vpop.permute.xlu0 %4161
        %v4163 = vsel %vm2499, %v4160, %v4162
        %v4164 = vsel %vm2499, %v4162, %v4160
        %v4167 = vrot.slane %v4164, 5
        %v4168 = vrot.slane %v4163, 5
        %v4171 = vmul.f32 %v596, %v4167
        %v4172 = vmul.f32 %v597, %v4168
        %v4175 = vrot.slane %v4171, 3
        %v4176 = vrot.slane %v4172, 3
        %v4179 = vadd.f32 %v4157, %v4175
        %v4180 = vadd.f32 %v4158, %v4176
        %4181 = vrot.lane.b32.xlu0 %v4105, 30
        %v4182 = vpop.permute.xlu0 %4181
        %4183 = vrot.lane.b32.xlu0 %v4106, 30
        %v4184 = vpop.permute.xlu0 %4183
        %v4185 = vsel %vm2522, %v4182, %v4184
        %v4186 = vsel %vm2522, %v4184, %v4182
        %v4189 = vrot.slane %v4186, 4
        %v4190 = vrot.slane %v4185, 4
        %v4193 = vmul.f32 %v596, %v4189
        %v4194 = vmul.f32 %v597, %v4190
        %v4197 = vrot.slane %v4193, 4
        %v4198 = vrot.slane %v4194, 4
        %v4201 = vadd.f32 %v4179, %v4197
        %v4202 = vadd.f32 %v4180, %v4198
        %4203 = vrot.lane.b32.xlu0 %v4105, 18
        %v4204 = vpop.permute.xlu0 %4203
        %4205 = vrot.lane.b32.xlu0 %v4106, 18
        %v4206 = vpop.permute.xlu0 %4205
        %v4207 = vsel %vm2545, %v4204, %v4206
        %v4208 = vsel %vm2545, %v4206, %v4204
        %v4211 = vrot.slane %v4208, 3
        %v4212 = vrot.slane %v4207, 3
        %v4215 = vmul.f32 %v596, %v4211
        %v4216 = vmul.f32 %v597, %v4212
        %v4219 = vrot.slane %v4215, 5
        %v4220 = vrot.slane %v4216, 5
        %v4223 = vadd.f32 %v4201, %v4219
        %v4224 = vadd.f32 %v4202, %v4220
        %4225 = vrot.lane.b32.xlu0 %v4105, 17
        %v4226 = vpop.permute.xlu0 %4225
        %4227 = vrot.lane.b32.xlu0 %v4106, 17
        %v4228 = vpop.permute.xlu0 %4227
        %v4229 = vsel %vm631, %v4226, %v4228
        %v4230 = vsel %vm631, %v4228, %v4226
        %v4233 = vrot.slane %v4230, 2
        %v4234 = vrot.slane %v4229, 2
        %v4237 = vmul.f32 %v596, %v4233
        %v4238 = vmul.f32 %v597, %v4234
        %v4241 = vrot.slane %v4237, 6
        %v4242 = vrot.slane %v4238, 6
        %v4245 = vadd.f32 %v4223, %v4241
        %v4246 = vadd.f32 %v4224, %v4242
        %4247 = vrot.lane.b32.xlu0 %v4105, 16
        %v4248 = vpop.permute.xlu0 %4247
        %4249 = vrot.lane.b32.xlu0 %v4106, 16
        %v4250 = vpop.permute.xlu0 %4249
        %v4251 = vsel %vm650, %v4248, %v4250
        %v4252 = vsel %vm650, %v4250, %v4248
        %v4255 = vrot.slane %v4252, 1
        %v4256 = vrot.slane %v4251, 1
        %v4259 = vmul.f32 %v596, %v4255
        %v4260 = vmul.f32 %v597, %v4256
        %v4263 = vrot.slane %v4259, 7
        %v4264 = vrot.slane %v4260, 7
        %v4267 = vadd.f32 %v4245, %v4263
        %v4268 = vadd.f32 %v4246, %v4264
        %4269 = vrot.lane.b32.xlu0 %v4105, 15
        %v4270 = vpop.permute.xlu0 %4269
        %4271 = vrot.lane.b32.xlu0 %v4106, 15
        %v4272 = vpop.permute.xlu0 %4271
        %v4273 = vsel %vm695, %v4270, %v4272
        %v4274 = vsel %vm695, %v4272, %v4270
        %v4275 = vmul.f32 %v598, %v4274
        %v4276 = vmul.f32 %v599, %v4273
        %v4277 = vadd.f32 %v4267, %v4275
        %v4278 = vadd.f32 %v4268, %v4276
        %4279 = vrot.lane.b32.xlu0 %v4105, 14
        %v4280 = vpop.permute.xlu0 %4279
        %4281 = vrot.lane.b32.xlu0 %v4106, 14
        %v4282 = vpop.permute.xlu0 %4281
        %v4283 = vsel %vm2622, %v4280, %v4282
        %v4284 = vsel %vm2622, %v4282, %v4280
        %v4287 = vrot.slane %v4284, 7
        %v4288 = vrot.slane %v4283, 7
        %v4291 = vmul.f32 %v598, %v4287
        %v4292 = vmul.f32 %v599, %v4288
        %v4295 = vrot.slane %v4291, 1
        %v4296 = vrot.slane %v4292, 1
        %v4299 = vadd.f32 %v4277, %v4295
        %v4300 = vadd.f32 %v4278, %v4296
        %4301 = vrot.lane.b32.xlu0 %v4105, 2
        %v4302 = vpop.permute.xlu0 %4301
        %4303 = vrot.lane.b32.xlu0 %v4106, 2
        %v4304 = vpop.permute.xlu0 %4303
        %v4305 = vsel %vm2645, %v4302, %v4304
        %v4306 = vsel %vm2645, %v4304, %v4302
        %v4309 = vrot.slane %v4306, 6
        %v4310 = vrot.slane %v4305, 6
        %v4313 = vmul.f32 %v598, %v4309
        %v4314 = vmul.f32 %v599, %v4310
        %v4317 = vrot.slane %v4313, 2
        %v4318 = vrot.slane %v4314, 2
        %v4321 = vadd.f32 %v4299, %v4317
        %v4322 = vadd.f32 %v4300, %v4318
        %4323 = vrot.lane.b32.xlu0 %v4105, 1
        %v4324 = vpop.permute.xlu0 %4323
        %4325 = vrot.lane.b32.xlu0 %v4106, 1
        %v4326 = vpop.permute.xlu0 %4325
        %v4327 = vsel %vm738, %v4324, %v4326
        %v4328 = vsel %vm738, %v4326, %v4324
        %v4331 = vrot.slane %v4328, 5
        %v4332 = vrot.slane %v4327, 5
        %v4335 = vmul.f32 %v598, %v4331
        %v4336 = vmul.f32 %v599, %v4332
        %v4339 = vrot.slane %v4335, 3
        %v4340 = vrot.slane %v4336, 3
        %v4343 = vadd.f32 %v4321, %v4339
        %v4344 = vadd.f32 %v4322, %v4340
        %v4347 = vrot.slane %v4105, 4
        %v4348 = vrot.slane %v4106, 4
        %v4351 = vmul.f32 %v598, %v4347
        %v4352 = vmul.f32 %v599, %v4348
        %v4355 = vrot.slane %v4351, 4
        %v4356 = vrot.slane %v4352, 4
        %v4359 = vadd.f32 %v4343, %v4355
        %v4360 = vadd.f32 %v4344, %v4356
        %4361 = vrot.lane.b32.xlu0 %v4105, 127
        %v4362 = vpop.permute.xlu0 %4361
        %4363 = vrot.lane.b32.xlu0 %v4106, 127
        %v4364 = vpop.permute.xlu0 %4363
        %v4365 = vsel %vm807, %v4362, %v4364
        %v4366 = vsel %vm807, %v4364, %v4362
        %v4369 = vrot.slane %v4365, 3
        %v4370 = vrot.slane %v4366, 3
        %v4373 = vmul.f32 %v598, %v4369
        %v4374 = vmul.f32 %v599, %v4370
        %v4377 = vrot.slane %v4373, 5
        %v4378 = vrot.slane %v4374, 5
        %v4381 = vadd.f32 %v4359, %v4377
        %v4382 = vadd.f32 %v4360, %v4378
        %4383 = vrot.lane.b32.xlu0 %v4105, 126
        %v4384 = vpop.permute.xlu0 %4383
        %4385 = vrot.lane.b32.xlu0 %v4106, 126
        %v4386 = vpop.permute.xlu0 %4385
        %v4387 = vsel %vm2722, %v4384, %v4386
        %v4388 = vsel %vm2722, %v4386, %v4384
        %v4391 = vrot.slane %v4387, 2
        %v4392 = vrot.slane %v4388, 2
        %v4395 = vmul.f32 %v598, %v4391
        %v4396 = vmul.f32 %v599, %v4392
        %v4399 = vrot.slane %v4395, 6
        %v4400 = vrot.slane %v4396, 6
        %v4403 = vadd.f32 %v4381, %v4399
        %v4404 = vadd.f32 %v4382, %v4400
        %4405 = vrot.lane.b32.xlu0 %v4105, 114
        %v4406 = vpop.permute.xlu0 %4405
        %4407 = vrot.lane.b32.xlu0 %v4106, 114
        %v4408 = vpop.permute.xlu0 %4407
        %v4409 = vsel %vm2745, %v4406, %v4408
        %v4410 = vsel %vm2745, %v4408, %v4406
        %v4413 = vrot.slane %v4409, 1
        %v4414 = vrot.slane %v4410, 1
        %v4417 = vmul.f32 %v598, %v4413
        %v4418 = vmul.f32 %v599, %v4414
        %v4421 = vrot.slane %v4417, 7
        %v4422 = vrot.slane %v4418, 7
        %v4425 = vadd.f32 %v4403, %v4421
        %v4426 = vadd.f32 %v4404, %v4422
        %4427 = vrot.lane.b32.xlu0 %v4105, 113
        %v4428 = vpop.permute.xlu0 %4427
        %4429 = vrot.lane.b32.xlu0 %v4106, 113
        %v4430 = vpop.permute.xlu0 %4429
        %v4431 = vsel %vm850, %v4428, %v4430
        %v4432 = vsel %vm850, %v4430, %v4428
        %v4433 = vmul.f32 %v600, %v4431
        %v4434 = vmul.f32 %v601, %v4432
        %v4435 = vadd.f32 %v4425, %v4433
        %v4436 = vadd.f32 %v4426, %v4434
        %4437 = vrot.lane.b32.xlu0 %v4105, 112
        %v4438 = vpop.permute.xlu0 %4437
        %4439 = vrot.lane.b32.xlu0 %v4106, 112
        %v4440 = vpop.permute.xlu0 %4439
        %v4441 = vsel %vm893, %v4438, %v4440
        %v4442 = vsel %vm893, %v4440, %v4438
        %v4445 = vrot.slane %v4441, 7
        %v4446 = vrot.slane %v4442, 7
        %v4449 = vmul.f32 %v600, %v4445
        %v4450 = vmul.f32 %v601, %v4446
        %v4453 = vrot.slane %v4449, 1
        %v4454 = vrot.slane %v4450, 1
        %v4457 = vadd.f32 %v4435, %v4453
        %v4458 = vadd.f32 %v4436, %v4454
        %4459 = vrot.lane.b32.xlu0 %v4105, 111
        %v4460 = vpop.permute.xlu0 %4459
        %4461 = vrot.lane.b32.xlu0 %v4106, 111
        %v4462 = vpop.permute.xlu0 %4461
        %v4463 = vsel %vm932, %v4460, %v4462
        %v4464 = vsel %vm932, %v4462, %v4460
        %v4467 = vrot.slane %v4463, 6
        %v4468 = vrot.slane %v4464, 6
        %v4471 = vmul.f32 %v600, %v4467
        %v4472 = vmul.f32 %v601, %v4468
        %v4475 = vrot.slane %v4471, 2
        %v4476 = vrot.slane %v4472, 2
        %v4479 = vadd.f32 %v4457, %v4475
        %v4480 = vadd.f32 %v4458, %v4476
        %4481 = vrot.lane.b32.xlu0 %v4105, 110
        %v4482 = vpop.permute.xlu0 %4481
        %4483 = vrot.lane.b32.xlu0 %v4106, 110
        %v4484 = vpop.permute.xlu0 %4483
        %v4485 = vsel %vm2822, %v4482, %v4484
        %v4486 = vsel %vm2822, %v4484, %v4482
        %v4489 = vrot.slane %v4485, 5
        %v4490 = vrot.slane %v4486, 5
        %v4493 = vmul.f32 %v600, %v4489
        %v4494 = vmul.f32 %v601, %v4490
        %v4497 = vrot.slane %v4493, 3
        %v4498 = vrot.slane %v4494, 3
        %v4501 = vadd.f32 %v4479, %v4497
        %v4502 = vadd.f32 %v4480, %v4498
        %4503 = vrot.lane.b32.xlu0 %v4105, 98
        %v4504 = vpop.permute.xlu0 %4503
        %4505 = vrot.lane.b32.xlu0 %v4106, 98
        %v4506 = vpop.permute.xlu0 %4505
        %v4507 = vsel %vm2845, %v4504, %v4506
        %v4508 = vsel %vm2845, %v4506, %v4504
        %v4511 = vrot.slane %v4507, 4
        %v4512 = vrot.slane %v4508, 4
        %v4515 = vmul.f32 %v600, %v4511
        %v4516 = vmul.f32 %v601, %v4512
        %v4519 = vrot.slane %v4515, 4
        %v4520 = vrot.slane %v4516, 4
        %v4523 = vadd.f32 %v4501, %v4519
        %v4524 = vadd.f32 %v4502, %v4520
        %4525 = vrot.lane.b32.xlu0 %v4105, 97
        %v4526 = vpop.permute.xlu0 %4525
        %4527 = vrot.lane.b32.xlu0 %v4106, 97
        %v4528 = vpop.permute.xlu0 %4527
        %v4529 = vsel %vm2868, %v4526, %v4528
        %v4530 = vsel %vm2868, %v4528, %v4526
        %v4533 = vrot.slane %v4529, 3
        %v4534 = vrot.slane %v4530, 3
        %v4537 = vmul.f32 %v600, %v4533
        %v4538 = vmul.f32 %v601, %v4534
        %v4541 = vrot.slane %v4537, 5
        %v4542 = vrot.slane %v4538, 5
        %v4545 = vadd.f32 %v4523, %v4541
        %v4546 = vadd.f32 %v4524, %v4542
        %4547 = vrot.lane.b32.xlu0 %v4105, 96
        %v4548 = vpop.permute.xlu0 %4547
        %4549 = vrot.lane.b32.xlu0 %v4106, 96
        %v4550 = vpop.permute.xlu0 %4549
        %v4551 = vsel %vm2891, %v4548, %v4550
        %v4552 = vsel %vm2891, %v4550, %v4548
        %v4555 = vrot.slane %v4551, 2
        %v4556 = vrot.slane %v4552, 2
        %v4559 = vmul.f32 %v600, %v4555
        %v4560 = vmul.f32 %v601, %v4556
        %v4563 = vrot.slane %v4559, 6
        %v4564 = vrot.slane %v4560, 6
        %v4567 = vadd.f32 %v4545, %v4563
        %v4568 = vadd.f32 %v4546, %v4564
        %4569 = vrot.lane.b32.xlu0 %v4105, 95
        %v4570 = vpop.permute.xlu0 %4569
        %4571 = vrot.lane.b32.xlu0 %v4106, 95
        %v4572 = vpop.permute.xlu0 %4571
        %v4573 = vsel %vm2914, %v4570, %v4572
        %v4574 = vsel %vm2914, %v4572, %v4570
        %v4577 = vrot.slane %v4573, 1
        %v4578 = vrot.slane %v4574, 1
        %v4581 = vmul.f32 %v600, %v4577
        %v4582 = vmul.f32 %v601, %v4578
        %v4585 = vrot.slane %v4581, 7
        %v4586 = vrot.slane %v4582, 7
        %v4589 = vadd.f32 %v4567, %v4585
        %v4590 = vadd.f32 %v4568, %v4586
        %4591 = vrot.lane.b32.xlu0 %v4105, 94
        %v4592 = vpop.permute.xlu0 %4591
        %4593 = vrot.lane.b32.xlu0 %v4106, 94
        %v4594 = vpop.permute.xlu0 %4593
        %v4595 = vsel %vm2937, %v4592, %v4594
        %v4596 = vsel %vm2937, %v4594, %v4592
        %v4597 = vmul.f32 %v602, %v4595
        %v4598 = vmul.f32 %v603, %v4596
        %v4599 = vadd.f32 %v4589, %v4597
        %v4600 = vadd.f32 %v4590, %v4598
        %v4601 = vmul.f32 %v4105, %v4599
        %v4602 = vmul.f32 %v4106, %v4600
        %v4603 = vsel %vm1498, %v4601, 0.0
        %v4604 = vsel %vm1498, %v4602, 0.0
        %v4605 = vadd.f32 %v4603, %v4604
        %4606 = vadd.xlane.f32.xlu0 %v4605
        %v4607 = vpop.xlane.xlu0 %4606
        %v4608 = vrot.slane %v4607, 4
        %v4609 = vadd.f32 %v4607, %v4608
        %v4610 = vrot.slane %v4609, 2
        %v4611 = vadd.f32 %v4609, %v4610
        %v4612 = vrot.slane %v4611, 1
        %v4613 = vadd.f32 %v4611, %v4612
        %s4614 = vtos %v4613
        %v4615 = vstv %s4614
        %v4616 = vrcp.pop %v4615
        %v4617 = vmul.f32 %v4615, %v4616
        %v4618 = vsub.f32 1.0, %v4617
        %v4619 = vmul.f32 %v4616, %v4618
        %v4620 = vadd.f32 %v4616, %v4619
        %vm4621 = vweird.f32 %v4615
        %vm4622 = vweird.f32 %v4616
        %vm4623 = vmor %vm4621, %vm4622
        %v4624 = vsel %vm4623, %v4616, %v4620
        %v4625 = vand.u32 2147483647, %v4615
        %vm4626 = vcmp.eq.f32.partialorder %v4625, 8.507059e+37
        %v4627 = vand.u32 %v4615, 2147483648
        %v4628 = vor.u32 1.1754944e-38, %v4627
        %v4629 = vsel %vm4626, %v4628, %v4624
        %v4630 = vmul.f32 %v4085, %v4629
        %v4631 = vmul.f32 %v4630, %v4105
        %v4632 = vmul.f32 %v4630, %v4106
        %v4635 = vrot.slane %v4632, 7
        %v4636 = vsel %vm1498, %v4631, %v4635
        %v4638 = vadd.f32 %v4066, %v4636
        %v4639 = vmul.f32 %v4630, %v4599
        %v4640 = vmul.f32 %v4630, %v4600
        %v4641 = vadd.f32 %v4069, %v4639
        %v4642 = vadd.f32 %v4070, %v4640
        %v4643 = vmul.f32 %v4641, %v4641
        %v4644 = vmul.f32 %v4642, %v4642
        %v4645 = vsel %vm1498, %v4643, 0.0
        %v4646 = vsel %vm1498, %v4644, 0.0
        %v4647 = vadd.f32 %v4645, %v4646
        %4648 = vadd.xlane.f32.xlu0 %v4647
        %v4649 = vpop.xlane.xlu0 %4648
        %v4650 = vrot.slane %v4649, 4
        %v4651 = vadd.f32 %v4649, %v4650
        %v4652 = vrot.slane %v4651, 2
        %v4653 = vadd.f32 %v4651, %v4652
        %v4654 = vrot.slane %v4653, 1
        %v4655 = vadd.f32 %v4653, %v4654
        %s4656 = vtos %v4655
        %v4657 = vstv %s4656
        %v4658 = vsub.f32 0.0, %v4641
        %v4659 = vsub.f32 0.0, %v4642
        %v4660 = vrcp.pop %v4085
        %v4661 = vmul.f32 %v4085, %v4660
        %v4662 = vsub.f32 1.0, %v4661
        %v4663 = vmul.f32 %v4660, %v4662
        %v4664 = vadd.f32 %v4660, %v4663
        %vm4665 = vweird.f32 %v4085
        %vm4666 = vweird.f32 %v4660
        %vm4667 = vmor %vm4665, %vm4666
        %v4668 = vsel %vm4667, %v4660, %v4664
        %v4669 = vand.u32 2147483647, %v4085
        %vm4670 = vcmp.eq.f32.partialorder %v4669, 8.507059e+37
        %v4671 = vand.u32 %v4085, 2147483648
        %v4672 = vor.u32 1.1754944e-38, %v4671
        %v4673 = vsel %vm4670, %v4672, %v4668
        %v4674 = vmul.f32 %v4657, %v4673
        %v4675 = vmul.f32 %v4674, %v4105
        %v4676 = vmul.f32 %v4674, %v4106
        %v4677 = vadd.f32 %v4658, %v4675
        %v4678 = vadd.f32 %v4659, %v4676
        %4679 = vrot.lane.b32.xlu0 %v4677, 34
        %v4680 = vpop.permute.xlu0 %4679
        %4681 = vrot.lane.b32.xlu0 %v4678, 34
        %v4682 = vpop.permute.xlu0 %4681
        %v4683 = vsel %vm2444, %v4680, %v4682
        %v4684 = vsel %vm2444, %v4682, %v4680
        %v4685 = vmul.f32 %v596, %v4684
        %v4686 = vmul.f32 %v597, %v4683
        %4687 = vrot.lane.b32.xlu0 %v4677, 33
        %v4688 = vpop.permute.xlu0 %4687
        %4689 = vrot.lane.b32.xlu0 %v4678, 33
        %v4690 = vpop.permute.xlu0 %4689
        %v4691 = vsel %vm2453, %v4688, %v4690
        %v4692 = vsel %vm2453, %v4690, %v4688
        %v4695 = vrot.slane %v4692, 7
        %v4696 = vrot.slane %v4691, 7
        %v4699 = vmul.f32 %v596, %v4695
        %v4700 = vmul.f32 %v597, %v4696
        %v4703 = vrot.slane %v4699, 1
        %v4704 = vrot.slane %v4700, 1
        %v4707 = vadd.f32 %v4685, %v4703
        %v4708 = vadd.f32 %v4686, %v4704
        %4709 = vrot.lane.b32.xlu0 %v4677, 32
        %v4710 = vpop.permute.xlu0 %4709
        %4711 = vrot.lane.b32.xlu0 %v4678, 32
        %v4712 = vpop.permute.xlu0 %4711
        %v4713 = vsel %vm2476, %v4710, %v4712
        %v4714 = vsel %vm2476, %v4712, %v4710
        %v4717 = vrot.slane %v4714, 6
        %v4718 = vrot.slane %v4713, 6
        %v4721 = vmul.f32 %v596, %v4717
        %v4722 = vmul.f32 %v597, %v4718
        %v4725 = vrot.slane %v4721, 2
        %v4726 = vrot.slane %v4722, 2
        %v4729 = vadd.f32 %v4707, %v4725
        %v4730 = vadd.f32 %v4708, %v4726
        %4731 = vrot.lane.b32.xlu0 %v4677, 31
        %v4732 = vpop.permute.xlu0 %4731
        %4733 = vrot.lane.b32.xlu0 %v4678, 31
        %v4734 = vpop.permute.xlu0 %4733
        %v4735 = vsel %vm2499, %v4732, %v4734
        %v4736 = vsel %vm2499, %v4734, %v4732
        %v4739 = vrot.slane %v4736, 5
        %v4740 = vrot.slane %v4735, 5
        %v4743 = vmul.f32 %v596, %v4739
        %v4744 = vmul.f32 %v597, %v4740
        %v4747 = vrot.slane %v4743, 3
        %v4748 = vrot.slane %v4744, 3
        %v4751 = vadd.f32 %v4729, %v4747
        %v4752 = vadd.f32 %v4730, %v4748
        %4753 = vrot.lane.b32.xlu0 %v4677, 30
        %v4754 = vpop.permute.xlu0 %4753
        %4755 = vrot.lane.b32.xlu0 %v4678, 30
        %v4756 = vpop.permute.xlu0 %4755
        %v4757 = vsel %vm2522, %v4754, %v4756
        %v4758 = vsel %vm2522, %v4756, %v4754
        %v4761 = vrot.slane %v4758, 4
        %v4762 = vrot.slane %v4757, 4
        %v4765 = vmul.f32 %v596, %v4761
        %v4766 = vmul.f32 %v597, %v4762
        %v4769 = vrot.slane %v4765, 4
        %v4770 = vrot.slane %v4766, 4
        %v4773 = vadd.f32 %v4751, %v4769
        %v4774 = vadd.f32 %v4752, %v4770
        %4775 = vrot.lane.b32.xlu0 %v4677, 18
        %v4776 = vpop.permute.xlu0 %4775
        %4777 = vrot.lane.b32.xlu0 %v4678, 18
        %v4778 = vpop.permute.xlu0 %4777
        %v4779 = vsel %vm2545, %v4776, %v4778
        %v4780 = vsel %vm2545, %v4778, %v4776
        %v4783 = vrot.slane %v4780, 3
        %v4784 = vrot.slane %v4779, 3
        %v4787 = vmul.f32 %v596, %v4783
        %v4788 = vmul.f32 %v597, %v4784
        %v4791 = vrot.slane %v4787, 5
        %v4792 = vrot.slane %v4788, 5
        %v4795 = vadd.f32 %v4773, %v4791
        %v4796 = vadd.f32 %v4774, %v4792
        %4797 = vrot.lane.b32.xlu0 %v4677, 17
        %v4798 = vpop.permute.xlu0 %4797
        %4799 = vrot.lane.b32.xlu0 %v4678, 17
        %v4800 = vpop.permute.xlu0 %4799
        %v4801 = vsel %vm631, %v4798, %v4800
        %v4802 = vsel %vm631, %v4800, %v4798
        %v4805 = vrot.slane %v4802, 2
        %v4806 = vrot.slane %v4801, 2
        %v4809 = vmul.f32 %v596, %v4805
        %v4810 = vmul.f32 %v597, %v4806
        %v4813 = vrot.slane %v4809, 6
        %v4814 = vrot.slane %v4810, 6
        %v4817 = vadd.f32 %v4795, %v4813
        %v4818 = vadd.f32 %v4796, %v4814
        %4819 = vrot.lane.b32.xlu0 %v4677, 16
        %v4820 = vpop.permute.xlu0 %4819
        %4821 = vrot.lane.b32.xlu0 %v4678, 16
        %v4822 = vpop.permute.xlu0 %4821
        %v4823 = vsel %vm650, %v4820, %v4822
        %v4824 = vsel %vm650, %v4822, %v4820
        %v4827 = vrot.slane %v4824, 1
        %v4828 = vrot.slane %v4823, 1
        %v4831 = vmul.f32 %v596, %v4827
        %v4832 = vmul.f32 %v597, %v4828
        %v4835 = vrot.slane %v4831, 7
        %v4836 = vrot.slane %v4832, 7
        %v4839 = vadd.f32 %v4817, %v4835
        %v4840 = vadd.f32 %v4818, %v4836
        %4841 = vrot.lane.b32.xlu0 %v4677, 15
        %v4842 = vpop.permute.xlu0 %4841
        %4843 = vrot.lane.b32.xlu0 %v4678, 15
        %v4844 = vpop.permute.xlu0 %4843
        %v4845 = vsel %vm695, %v4842, %v4844
        %v4846 = vsel %vm695, %v4844, %v4842
        %v4847 = vmul.f32 %v598, %v4846
        %v4848 = vmul.f32 %v599, %v4845
        %v4849 = vadd.f32 %v4839, %v4847
        %v4850 = vadd.f32 %v4840, %v4848
        %4851 = vrot.lane.b32.xlu0 %v4677, 14
        %v4852 = vpop.permute.xlu0 %4851
        %4853 = vrot.lane.b32.xlu0 %v4678, 14
        %v4854 = vpop.permute.xlu0 %4853
        %v4855 = vsel %vm2622, %v4852, %v4854
        %v4856 = vsel %vm2622, %v4854, %v4852
        %v4859 = vrot.slane %v4856, 7
        %v4860 = vrot.slane %v4855, 7
        %v4863 = vmul.f32 %v598, %v4859
        %v4864 = vmul.f32 %v599, %v4860
        %v4867 = vrot.slane %v4863, 1
        %v4868 = vrot.slane %v4864, 1
        %v4871 = vadd.f32 %v4849, %v4867
        %v4872 = vadd.f32 %v4850, %v4868
        %4873 = vrot.lane.b32.xlu0 %v4677, 2
        %v4874 = vpop.permute.xlu0 %4873
        %4875 = vrot.lane.b32.xlu0 %v4678, 2
        %v4876 = vpop.permute.xlu0 %4875
        %v4877 = vsel %vm2645, %v4874, %v4876
        %v4878 = vsel %vm2645, %v4876, %v4874
        %v4881 = vrot.slane %v4878, 6
        %v4882 = vrot.slane %v4877, 6
        %v4885 = vmul.f32 %v598, %v4881
        %v4886 = vmul.f32 %v599, %v4882
        %v4889 = vrot.slane %v4885, 2
        %v4890 = vrot.slane %v4886, 2
        %v4893 = vadd.f32 %v4871, %v4889
        %v4894 = vadd.f32 %v4872, %v4890
        %4895 = vrot.lane.b32.xlu0 %v4677, 1
        %v4896 = vpop.permute.xlu0 %4895
        %4897 = vrot.lane.b32.xlu0 %v4678, 1
        %v4898 = vpop.permute.xlu0 %4897
        %v4899 = vsel %vm738, %v4896, %v4898
        %v4900 = vsel %vm738, %v4898, %v4896
        %v4903 = vrot.slane %v4900, 5
        %v4904 = vrot.slane %v4899, 5
        %v4907 = vmul.f32 %v598, %v4903
        %v4908 = vmul.f32 %v599, %v4904
        %v4911 = vrot.slane %v4907, 3
        %v4912 = vrot.slane %v4908, 3
        %v4915 = vadd.f32 %v4893, %v4911
        %v4916 = vadd.f32 %v4894, %v4912
        %v4919 = vrot.slane %v4677, 4
        %v4920 = vrot.slane %v4678, 4
        %v4923 = vmul.f32 %v598, %v4919
        %v4924 = vmul.f32 %v599, %v4920
        %v4927 = vrot.slane %v4923, 4
        %v4928 = vrot.slane %v4924, 4
        %v4931 = vadd.f32 %v4915, %v4927
        %v4932 = vadd.f32 %v4916, %v4928
        %4933 = vrot.lane.b32.xlu0 %v4677, 127
        %v4934 = vpop.permute.xlu0 %4933
        %4935 = vrot.lane.b32.xlu0 %v4678, 127
        %v4936 = vpop.permute.xlu0 %4935
        %v4937 = vsel %vm807, %v4934, %v4936
        %v4938 = vsel %vm807, %v4936, %v4934
        %v4941 = vrot.slane %v4937, 3
        %v4942 = vrot.slane %v4938, 3
        %v4945 = vmul.f32 %v598, %v4941
        %v4946 = vmul.f32 %v599, %v4942
        %v4949 = vrot.slane %v4945, 5
        %v4950 = vrot.slane %v4946, 5
        %v4953 = vadd.f32 %v4931, %v4949
        %v4954 = vadd.f32 %v4932, %v4950
        %4955 = vrot.lane.b32.xlu0 %v4677, 126
        %v4956 = vpop.permute.xlu0 %4955
        %4957 = vrot.lane.b32.xlu0 %v4678, 126
        %v4958 = vpop.permute.xlu0 %4957
        %v4959 = vsel %vm2722, %v4956, %v4958
        %v4960 = vsel %vm2722, %v4958, %v4956
        %v4963 = vrot.slane %v4959, 2
        %v4964 = vrot.slane %v4960, 2
        %v4967 = vmul.f32 %v598, %v4963
        %v4968 = vmul.f32 %v599, %v4964
        %v4971 = vrot.slane %v4967, 6
        %v4972 = vrot.slane %v4968, 6
        %v4975 = vadd.f32 %v4953, %v4971
        %v4976 = vadd.f32 %v4954, %v4972
        %4977 = vrot.lane.b32.xlu0 %v4677, 114
        %v4978 = vpop.permute.xlu0 %4977
        %4979 = vrot.lane.b32.xlu0 %v4678, 114
        %v4980 = vpop.permute.xlu0 %4979
        %v4981 = vsel %vm2745, %v4978, %v4980
        %v4982 = vsel %vm2745, %v4980, %v4978
        %v4985 = vrot.slane %v4981, 1
        %v4986 = vrot.slane %v4982, 1
        %v4989 = vmul.f32 %v598, %v4985
        %v4990 = vmul.f32 %v599, %v4986
        %v4993 = vrot.slane %v4989, 7
        %v4994 = vrot.slane %v4990, 7
        %v4997 = vadd.f32 %v4975, %v4993
        %v4998 = vadd.f32 %v4976, %v4994
        %4999 = vrot.lane.b32.xlu0 %v4677, 113
        %v5000 = vpop.permute.xlu0 %4999
        %5001 = vrot.lane.b32.xlu0 %v4678, 113
        %v5002 = vpop.permute.xlu0 %5001
        %v5003 = vsel %vm850, %v5000, %v5002
        %v5004 = vsel %vm850, %v5002, %v5000
        %v5005 = vmul.f32 %v600, %v5003
        %v5006 = vmul.f32 %v601, %v5004
        %v5007 = vadd.f32 %v4997, %v5005
        %v5008 = vadd.f32 %v4998, %v5006
        %5009 = vrot.lane.b32.xlu0 %v4677, 112
        %v5010 = vpop.permute.xlu0 %5009
        %5011 = vrot.lane.b32.xlu0 %v4678, 112
        %v5012 = vpop.permute.xlu0 %5011
        %v5013 = vsel %vm893, %v5010, %v5012
        %v5014 = vsel %vm893, %v5012, %v5010
        %v5017 = vrot.slane %v5013, 7
        %v5018 = vrot.slane %v5014, 7
        %v5021 = vmul.f32 %v600, %v5017
        %v5022 = vmul.f32 %v601, %v5018
        %v5025 = vrot.slane %v5021, 1
        %v5026 = vrot.slane %v5022, 1
        %v5029 = vadd.f32 %v5007, %v5025
        %v5030 = vadd.f32 %v5008, %v5026
        %5031 = vrot.lane.b32.xlu0 %v4677, 111
        %v5032 = vpop.permute.xlu0 %5031
        %5033 = vrot.lane.b32.xlu0 %v4678, 111
        %v5034 = vpop.permute.xlu0 %5033
        %v5035 = vsel %vm932, %v5032, %v5034
        %v5036 = vsel %vm932, %v5034, %v5032
        %v5039 = vrot.slane %v5035, 6
        %v5040 = vrot.slane %v5036, 6
        %v5043 = vmul.f32 %v600, %v5039
        %v5044 = vmul.f32 %v601, %v5040
        %v5047 = vrot.slane %v5043, 2
        %v5048 = vrot.slane %v5044, 2
        %v5051 = vadd.f32 %v5029, %v5047
        %v5052 = vadd.f32 %v5030, %v5048
        %5053 = vrot.lane.b32.xlu0 %v4677, 110
        %v5054 = vpop.permute.xlu0 %5053
        %5055 = vrot.lane.b32.xlu0 %v4678, 110
        %v5056 = vpop.permute.xlu0 %5055
        %v5057 = vsel %vm2822, %v5054, %v5056
        %v5058 = vsel %vm2822, %v5056, %v5054
        %v5061 = vrot.slane %v5057, 5
        %v5062 = vrot.slane %v5058, 5
        %v5065 = vmul.f32 %v600, %v5061
        %v5066 = vmul.f32 %v601, %v5062
        %v5069 = vrot.slane %v5065, 3
        %v5070 = vrot.slane %v5066, 3
        %v5073 = vadd.f32 %v5051, %v5069
        %v5074 = vadd.f32 %v5052, %v5070
        %5075 = vrot.lane.b32.xlu0 %v4677, 98
        %v5076 = vpop.permute.xlu0 %5075
        %5077 = vrot.lane.b32.xlu0 %v4678, 98
        %v5078 = vpop.permute.xlu0 %5077
        %v5079 = vsel %vm2845, %v5076, %v5078
        %v5080 = vsel %vm2845, %v5078, %v5076
        %v5083 = vrot.slane %v5079, 4
        %v5084 = vrot.slane %v5080, 4
        %v5087 = vmul.f32 %v600, %v5083
        %v5088 = vmul.f32 %v601, %v5084
        %v5091 = vrot.slane %v5087, 4
        %v5092 = vrot.slane %v5088, 4
        %v5095 = vadd.f32 %v5073, %v5091
        %v5096 = vadd.f32 %v5074, %v5092
        %5097 = vrot.lane.b32.xlu0 %v4677, 97
        %v5098 = vpop.permute.xlu0 %5097
        %5099 = vrot.lane.b32.xlu0 %v4678, 97
        %v5100 = vpop.permute.xlu0 %5099
        %v5101 = vsel %vm2868, %v5098, %v5100
        %v5102 = vsel %vm2868, %v5100, %v5098
        %v5105 = vrot.slane %v5101, 3
        %v5106 = vrot.slane %v5102, 3
        %v5109 = vmul.f32 %v600, %v5105
        %v5110 = vmul.f32 %v601, %v5106
        %v5113 = vrot.slane %v5109, 5
        %v5114 = vrot.slane %v5110, 5
        %v5117 = vadd.f32 %v5095, %v5113
        %v5118 = vadd.f32 %v5096, %v5114
        %5119 = vrot.lane.b32.xlu0 %v4677, 96
        %v5120 = vpop.permute.xlu0 %5119
        %5121 = vrot.lane.b32.xlu0 %v4678, 96
        %v5122 = vpop.permute.xlu0 %5121
        %v5123 = vsel %vm2891, %v5120, %v5122
        %v5124 = vsel %vm2891, %v5122, %v5120
        %v5127 = vrot.slane %v5123, 2
        %v5128 = vrot.slane %v5124, 2
        %v5131 = vmul.f32 %v600, %v5127
        %v5132 = vmul.f32 %v601, %v5128
        %v5135 = vrot.slane %v5131, 6
        %v5136 = vrot.slane %v5132, 6
        %v5139 = vadd.f32 %v5117, %v5135
        %v5140 = vadd.f32 %v5118, %v5136
        %5141 = vrot.lane.b32.xlu0 %v4677, 95
        %v5142 = vpop.permute.xlu0 %5141
        %5143 = vrot.lane.b32.xlu0 %v4678, 95
        %v5144 = vpop.permute.xlu0 %5143
        %v5145 = vsel %vm2914, %v5142, %v5144
        %v5146 = vsel %vm2914, %v5144, %v5142
        %v5149 = vrot.slane %v5145, 1
        %v5150 = vrot.slane %v5146, 1
        %v5153 = vmul.f32 %v600, %v5149
        %v5154 = vmul.f32 %v601, %v5150
        %v5157 = vrot.slane %v5153, 7
        %v5158 = vrot.slane %v5154, 7
        %v5161 = vadd.f32 %v5139, %v5157
        %v5162 = vadd.f32 %v5140, %v5158
        %5163 = vrot.lane.b32.xlu0 %v4677, 94
        %v5164 = vpop.permute.xlu0 %5163
        %5165 = vrot.lane.b32.xlu0 %v4678, 94
        %v5166 = vpop.permute.xlu0 %5165
        %v5167 = vsel %vm2937, %v5164, %v5166
        %v5168 = vsel %vm2937, %v5166, %v5164
        %v5169 = vmul.f32 %v602, %v5167
        %v5170 = vmul.f32 %v603, %v5168
        %v5171 = vadd.f32 %v5161, %v5169
        %v5172 = vadd.f32 %v5162, %v5170
        %v5173 = vmul.f32 %v4677, %v5171
        %v5174 = vmul.f32 %v4678, %v5172
        %v5175 = vsel %vm1498, %v5173, 0.0
        %v5176 = vsel %vm1498, %v5174, 0.0
        %v5177 = vadd.f32 %v5175, %v5176
        %5178 = vadd.xlane.f32.xlu0 %v5177
        %v5179 = vpop.xlane.xlu0 %5178
        %v5180 = vrot.slane %v5179, 4
        %v5181 = vadd.f32 %v5179, %v5180
        %v5182 = vrot.slane %v5181, 2
        %v5183 = vadd.f32 %v5181, %v5182
        %v5184 = vrot.slane %v5183, 1
        %v5185 = vadd.f32 %v5183, %v5184
        %s5186 = vtos %v5185
        %v5187 = vstv %s5186
        %v5188 = vrcp.pop %v5187
        %v5189 = vmul.f32 %v5187, %v5188
        %v5190 = vsub.f32 1.0, %v5189
        %v5191 = vmul.f32 %v5188, %v5190
        %v5192 = vadd.f32 %v5188, %v5191
        %vm5193 = vweird.f32 %v5187
        %vm5194 = vweird.f32 %v5188
        %vm5195 = vmor %vm5193, %vm5194
        %v5196 = vsel %vm5195, %v5188, %v5192
        %v5197 = vand.u32 2147483647, %v5187
        %vm5198 = vcmp.eq.f32.partialorder %v5197, 8.507059e+37
        %v5199 = vand.u32 %v5187, 2147483648
        %v5200 = vor.u32 1.1754944e-38, %v5199
        %v5201 = vsel %vm5198, %v5200, %v5196
        %v5202 = vmul.f32 %v4657, %v5201
        %v5203 = vmul.f32 %v5202, %v4677
        %v5204 = vmul.f32 %v5202, %v4678
        %v5207 = vrot.slane %v5204, 7
        %v5208 = vsel %vm1498, %v5203, %v5207
        %v5210 = vadd.f32 %v4638, %v5208
        %v5211 = vmul.f32 %v5202, %v5171
        %v5212 = vmul.f32 %v5202, %v5172
        %v5213 = vadd.f32 %v4641, %v5211
        %v5214 = vadd.f32 %v4642, %v5212
        %v5215 = vmul.f32 %v5213, %v5213
        %v5216 = vmul.f32 %v5214, %v5214
        %v5217 = vsel %vm1498, %v5215, 0.0
        %v5218 = vsel %vm1498, %v5216, 0.0
        %v5219 = vadd.f32 %v5217, %v5218
        %5220 = vadd.xlane.f32.xlu0 %v5219
        %v5221 = vpop.xlane.xlu0 %5220
        %v5222 = vrot.slane %v5221, 4
        %v5223 = vadd.f32 %v5221, %v5222
        %v5224 = vrot.slane %v5223, 2
        %v5225 = vadd.f32 %v5223, %v5224
        %v5226 = vrot.slane %v5225, 1
        %v5227 = vadd.f32 %v5225, %v5226
        %s5228 = vtos %v5227
        %v5229 = vstv %s5228
        %v5230 = vsub.f32 0.0, %v5213
        %v5231 = vsub.f32 0.0, %v5214
        %v5232 = vrcp.pop %v4657
        %v5233 = vmul.f32 %v4657, %v5232
        %v5234 = vsub.f32 1.0, %v5233
        %v5235 = vmul.f32 %v5232, %v5234
        %v5236 = vadd.f32 %v5232, %v5235
        %vm5237 = vweird.f32 %v4657
        %vm5238 = vweird.f32 %v5232
        %vm5239 = vmor %vm5237, %vm5238
        %v5240 = vsel %vm5239, %v5232, %v5236
        %v5241 = vand.u32 2147483647, %v4657
        %vm5242 = vcmp.eq.f32.partialorder %v5241, 8.507059e+37
        %v5243 = vand.u32 %v4657, 2147483648
        %v5244 = vor.u32 1.1754944e-38, %v5243
        %v5245 = vsel %vm5242, %v5244, %v5240
        %v5246 = vmul.f32 %v5229, %v5245
        %v5247 = vmul.f32 %v5246, %v4677
        %v5248 = vmul.f32 %v5246, %v4678
        %v5249 = vadd.f32 %v5230, %v5247
        %v5250 = vadd.f32 %v5231, %v5248
        %5251 = vrot.lane.b32.xlu0 %v5249, 34
        %v5252 = vpop.permute.xlu0 %5251
        %5253 = vrot.lane.b32.xlu0 %v5250, 34
        %v5254 = vpop.permute.xlu0 %5253
        %v5255 = vsel %vm2444, %v5252, %v5254
        %v5256 = vsel %vm2444, %v5254, %v5252
        %v5257 = vmul.f32 %v596, %v5256
        %v5258 = vmul.f32 %v597, %v5255
        %5259 = vrot.lane.b32.xlu0 %v5249, 33
        %v5260 = vpop.permute.xlu0 %5259
        %5261 = vrot.lane.b32.xlu0 %v5250, 33
        %v5262 = vpop.permute.xlu0 %5261
        %v5263 = vsel %vm2453, %v5260, %v5262
        %v5264 = vsel %vm2453, %v5262, %v5260
        %v5267 = vrot.slane %v5264, 7
        %v5268 = vrot.slane %v5263, 7
        %v5271 = vmul.f32 %v596, %v5267
        %v5272 = vmul.f32 %v597, %v5268
        %v5275 = vrot.slane %v5271, 1
        %v5276 = vrot.slane %v5272, 1
        %v5279 = vadd.f32 %v5257, %v5275
        %v5280 = vadd.f32 %v5258, %v5276
        %5281 = vrot.lane.b32.xlu0 %v5249, 32
        %v5282 = vpop.permute.xlu0 %5281
        %5283 = vrot.lane.b32.xlu0 %v5250, 32
        %v5284 = vpop.permute.xlu0 %5283
        %v5285 = vsel %vm2476, %v5282, %v5284
        %v5286 = vsel %vm2476, %v5284, %v5282
        %v5289 = vrot.slane %v5286, 6
        %v5290 = vrot.slane %v5285, 6
        %v5293 = vmul.f32 %v596, %v5289
        %v5294 = vmul.f32 %v597, %v5290
        %v5297 = vrot.slane %v5293, 2
        %v5298 = vrot.slane %v5294, 2
        %v5301 = vadd.f32 %v5279, %v5297
        %v5302 = vadd.f32 %v5280, %v5298
        %5303 = vrot.lane.b32.xlu0 %v5249, 31
        %v5304 = vpop.permute.xlu0 %5303
        %5305 = vrot.lane.b32.xlu0 %v5250, 31
        %v5306 = vpop.permute.xlu0 %5305
        %v5307 = vsel %vm2499, %v5304, %v5306
        %v5308 = vsel %vm2499, %v5306, %v5304
        %v5311 = vrot.slane %v5308, 5
        %v5312 = vrot.slane %v5307, 5
        %v5315 = vmul.f32 %v596, %v5311
        %v5316 = vmul.f32 %v597, %v5312
        %v5319 = vrot.slane %v5315, 3
        %v5320 = vrot.slane %v5316, 3
        %v5323 = vadd.f32 %v5301, %v5319
        %v5324 = vadd.f32 %v5302, %v5320
        %5325 = vrot.lane.b32.xlu0 %v5249, 30
        %v5326 = vpop.permute.xlu0 %5325
        %5327 = vrot.lane.b32.xlu0 %v5250, 30
        %v5328 = vpop.permute.xlu0 %5327
        %v5329 = vsel %vm2522, %v5326, %v5328
        %v5330 = vsel %vm2522, %v5328, %v5326
        %v5333 = vrot.slane %v5330, 4
        %v5334 = vrot.slane %v5329, 4
        %v5337 = vmul.f32 %v596, %v5333
        %v5338 = vmul.f32 %v597, %v5334
        %v5341 = vrot.slane %v5337, 4
        %v5342 = vrot.slane %v5338, 4
        %v5345 = vadd.f32 %v5323, %v5341
        %v5346 = vadd.f32 %v5324, %v5342
        %5347 = vrot.lane.b32.xlu0 %v5249, 18
        %v5348 = vpop.permute.xlu0 %5347
        %5349 = vrot.lane.b32.xlu0 %v5250, 18
        %v5350 = vpop.permute.xlu0 %5349
        %v5351 = vsel %vm2545, %v5348, %v5350
        %v5352 = vsel %vm2545, %v5350, %v5348
        %v5355 = vrot.slane %v5352, 3
        %v5356 = vrot.slane %v5351, 3
        %v5359 = vmul.f32 %v596, %v5355
        %v5360 = vmul.f32 %v597, %v5356
        %v5363 = vrot.slane %v5359, 5
        %v5364 = vrot.slane %v5360, 5
        %v5367 = vadd.f32 %v5345, %v5363
        %v5368 = vadd.f32 %v5346, %v5364
        %5369 = vrot.lane.b32.xlu0 %v5249, 17
        %v5370 = vpop.permute.xlu0 %5369
        %5371 = vrot.lane.b32.xlu0 %v5250, 17
        %v5372 = vpop.permute.xlu0 %5371
        %v5373 = vsel %vm631, %v5370, %v5372
        %v5374 = vsel %vm631, %v5372, %v5370
        %v5377 = vrot.slane %v5374, 2
        %v5378 = vrot.slane %v5373, 2
        %v5381 = vmul.f32 %v596, %v5377
        %v5382 = vmul.f32 %v597, %v5378
        %v5385 = vrot.slane %v5381, 6
        %v5386 = vrot.slane %v5382, 6
        %v5389 = vadd.f32 %v5367, %v5385
        %v5390 = vadd.f32 %v5368, %v5386
        %5391 = vrot.lane.b32.xlu0 %v5249, 16
        %v5392 = vpop.permute.xlu0 %5391
        %5393 = vrot.lane.b32.xlu0 %v5250, 16
        %v5394 = vpop.permute.xlu0 %5393
        %v5395 = vsel %vm650, %v5392, %v5394
        %v5396 = vsel %vm650, %v5394, %v5392
        %v5399 = vrot.slane %v5396, 1
        %v5400 = vrot.slane %v5395, 1
        %v5403 = vmul.f32 %v596, %v5399
        %v5404 = vmul.f32 %v597, %v5400
        %v5407 = vrot.slane %v5403, 7
        %v5408 = vrot.slane %v5404, 7
        %v5411 = vadd.f32 %v5389, %v5407
        %v5412 = vadd.f32 %v5390, %v5408
        %5413 = vrot.lane.b32.xlu0 %v5249, 15
        %v5414 = vpop.permute.xlu0 %5413
        %5415 = vrot.lane.b32.xlu0 %v5250, 15
        %v5416 = vpop.permute.xlu0 %5415
        %v5417 = vsel %vm695, %v5414, %v5416
        %v5418 = vsel %vm695, %v5416, %v5414
        %v5419 = vmul.f32 %v598, %v5418
        %v5420 = vmul.f32 %v599, %v5417
        %v5421 = vadd.f32 %v5411, %v5419
        %v5422 = vadd.f32 %v5412, %v5420
        %5423 = vrot.lane.b32.xlu0 %v5249, 14
        %v5424 = vpop.permute.xlu0 %5423
        %5425 = vrot.lane.b32.xlu0 %v5250, 14
        %v5426 = vpop.permute.xlu0 %5425
        %v5427 = vsel %vm2622, %v5424, %v5426
        %v5428 = vsel %vm2622, %v5426, %v5424
        %v5431 = vrot.slane %v5428, 7
        %v5432 = vrot.slane %v5427, 7
        %v5435 = vmul.f32 %v598, %v5431
        %v5436 = vmul.f32 %v599, %v5432
        %v5439 = vrot.slane %v5435, 1
        %v5440 = vrot.slane %v5436, 1
        %v5443 = vadd.f32 %v5421, %v5439
        %v5444 = vadd.f32 %v5422, %v5440
        %5445 = vrot.lane.b32.xlu0 %v5249, 2
        %v5446 = vpop.permute.xlu0 %5445
        %5447 = vrot.lane.b32.xlu0 %v5250, 2
        %v5448 = vpop.permute.xlu0 %5447
        %v5449 = vsel %vm2645, %v5446, %v5448
        %v5450 = vsel %vm2645, %v5448, %v5446
        %v5453 = vrot.slane %v5450, 6
        %v5454 = vrot.slane %v5449, 6
        %v5457 = vmul.f32 %v598, %v5453
        %v5458 = vmul.f32 %v599, %v5454
        %v5461 = vrot.slane %v5457, 2
        %v5462 = vrot.slane %v5458, 2
        %v5465 = vadd.f32 %v5443, %v5461
        %v5466 = vadd.f32 %v5444, %v5462
        %5467 = vrot.lane.b32.xlu0 %v5249, 1
        %v5468 = vpop.permute.xlu0 %5467
        %5469 = vrot.lane.b32.xlu0 %v5250, 1
        %v5470 = vpop.permute.xlu0 %5469
        %v5471 = vsel %vm738, %v5468, %v5470
        %v5472 = vsel %vm738, %v5470, %v5468
        %v5475 = vrot.slane %v5472, 5
        %v5476 = vrot.slane %v5471, 5
        %v5479 = vmul.f32 %v598, %v5475
        %v5480 = vmul.f32 %v599, %v5476
        %v5483 = vrot.slane %v5479, 3
        %v5484 = vrot.slane %v5480, 3
        %v5487 = vadd.f32 %v5465, %v5483
        %v5488 = vadd.f32 %v5466, %v5484
        %v5491 = vrot.slane %v5249, 4
        %v5492 = vrot.slane %v5250, 4
        %v5495 = vmul.f32 %v598, %v5491
        %v5496 = vmul.f32 %v599, %v5492
        %v5499 = vrot.slane %v5495, 4
        %v5500 = vrot.slane %v5496, 4
        %v5503 = vadd.f32 %v5487, %v5499
        %v5504 = vadd.f32 %v5488, %v5500
        %5505 = vrot.lane.b32.xlu0 %v5249, 127
        %v5506 = vpop.permute.xlu0 %5505
        %5507 = vrot.lane.b32.xlu0 %v5250, 127
        %v5508 = vpop.permute.xlu0 %5507
        %v5509 = vsel %vm807, %v5506, %v5508
        %v5510 = vsel %vm807, %v5508, %v5506
        %v5513 = vrot.slane %v5509, 3
        %v5514 = vrot.slane %v5510, 3
        %v5517 = vmul.f32 %v598, %v5513
        %v5518 = vmul.f32 %v599, %v5514
        %v5521 = vrot.slane %v5517, 5
        %v5522 = vrot.slane %v5518, 5
        %v5525 = vadd.f32 %v5503, %v5521
        %v5526 = vadd.f32 %v5504, %v5522
        %5527 = vrot.lane.b32.xlu0 %v5249, 126
        %v5528 = vpop.permute.xlu0 %5527
        %5529 = vrot.lane.b32.xlu0 %v5250, 126
        %v5530 = vpop.permute.xlu0 %5529
        %v5531 = vsel %vm2722, %v5528, %v5530
        %v5532 = vsel %vm2722, %v5530, %v5528
        %v5535 = vrot.slane %v5531, 2
        %v5536 = vrot.slane %v5532, 2
        %v5539 = vmul.f32 %v598, %v5535
        %v5540 = vmul.f32 %v599, %v5536
        %v5543 = vrot.slane %v5539, 6
        %v5544 = vrot.slane %v5540, 6
        %v5547 = vadd.f32 %v5525, %v5543
        %v5548 = vadd.f32 %v5526, %v5544
        %5549 = vrot.lane.b32.xlu0 %v5249, 114
        %v5550 = vpop.permute.xlu0 %5549
        %5551 = vrot.lane.b32.xlu0 %v5250, 114
        %v5552 = vpop.permute.xlu0 %5551
        %v5553 = vsel %vm2745, %v5550, %v5552
        %v5554 = vsel %vm2745, %v5552, %v5550
        %v5557 = vrot.slane %v5553, 1
        %v5558 = vrot.slane %v5554, 1
        %v5561 = vmul.f32 %v598, %v5557
        %v5562 = vmul.f32 %v599, %v5558
        %v5565 = vrot.slane %v5561, 7
        %v5566 = vrot.slane %v5562, 7
        %v5569 = vadd.f32 %v5547, %v5565
        %v5570 = vadd.f32 %v5548, %v5566
        %5571 = vrot.lane.b32.xlu0 %v5249, 113
        %v5572 = vpop.permute.xlu0 %5571
        %5573 = vrot.lane.b32.xlu0 %v5250, 113
        %v5574 = vpop.permute.xlu0 %5573
        %v5575 = vsel %vm850, %v5572, %v5574
        %v5576 = vsel %vm850, %v5574, %v5572
        %v5577 = vmul.f32 %v600, %v5575
        %v5578 = vmul.f32 %v601, %v5576
        %v5579 = vadd.f32 %v5569, %v5577
        %v5580 = vadd.f32 %v5570, %v5578
        %5581 = vrot.lane.b32.xlu0 %v5249, 112
        %v5582 = vpop.permute.xlu0 %5581
        %5583 = vrot.lane.b32.xlu0 %v5250, 112
        %v5584 = vpop.permute.xlu0 %5583
        %v5585 = vsel %vm893, %v5582, %v5584
        %v5586 = vsel %vm893, %v5584, %v5582
        %v5589 = vrot.slane %v5585, 7
        %v5590 = vrot.slane %v5586, 7
        %v5593 = vmul.f32 %v600, %v5589
        %v5594 = vmul.f32 %v601, %v5590
        %v5597 = vrot.slane %v5593, 1
        %v5598 = vrot.slane %v5594, 1
        %v5601 = vadd.f32 %v5579, %v5597
        %v5602 = vadd.f32 %v5580, %v5598
        %5603 = vrot.lane.b32.xlu0 %v5249, 111
        %v5604 = vpop.permute.xlu0 %5603
        %5605 = vrot.lane.b32.xlu0 %v5250, 111
        %v5606 = vpop.permute.xlu0 %5605
        %v5607 = vsel %vm932, %v5604, %v5606
        %v5608 = vsel %vm932, %v5606, %v5604
        %v5611 = vrot.slane %v5607, 6
        %v5612 = vrot.slane %v5608, 6
        %v5615 = vmul.f32 %v600, %v5611
        %v5616 = vmul.f32 %v601, %v5612
        %v5619 = vrot.slane %v5615, 2
        %v5620 = vrot.slane %v5616, 2
        %v5623 = vadd.f32 %v5601, %v5619
        %v5624 = vadd.f32 %v5602, %v5620
        %5625 = vrot.lane.b32.xlu0 %v5249, 110
        %v5626 = vpop.permute.xlu0 %5625
        %5627 = vrot.lane.b32.xlu0 %v5250, 110
        %v5628 = vpop.permute.xlu0 %5627
        %v5629 = vsel %vm2822, %v5626, %v5628
        %v5630 = vsel %vm2822, %v5628, %v5626
        %v5633 = vrot.slane %v5629, 5
        %v5634 = vrot.slane %v5630, 5
        %v5637 = vmul.f32 %v600, %v5633
        %v5638 = vmul.f32 %v601, %v5634
        %v5641 = vrot.slane %v5637, 3
        %v5642 = vrot.slane %v5638, 3
        %v5645 = vadd.f32 %v5623, %v5641
        %v5646 = vadd.f32 %v5624, %v5642
        %5647 = vrot.lane.b32.xlu0 %v5249, 98
        %v5648 = vpop.permute.xlu0 %5647
        %5649 = vrot.lane.b32.xlu0 %v5250, 98
        %v5650 = vpop.permute.xlu0 %5649
        %v5651 = vsel %vm2845, %v5648, %v5650
        %v5652 = vsel %vm2845, %v5650, %v5648
        %v5655 = vrot.slane %v5651, 4
        %v5656 = vrot.slane %v5652, 4
        %v5659 = vmul.f32 %v600, %v5655
        %v5660 = vmul.f32 %v601, %v5656
        %v5663 = vrot.slane %v5659, 4
        %v5664 = vrot.slane %v5660, 4
        %v5667 = vadd.f32 %v5645, %v5663
        %v5668 = vadd.f32 %v5646, %v5664
        %5669 = vrot.lane.b32.xlu0 %v5249, 97
        %v5670 = vpop.permute.xlu0 %5669
        %5671 = vrot.lane.b32.xlu0 %v5250, 97
        %v5672 = vpop.permute.xlu0 %5671
        %v5673 = vsel %vm2868, %v5670, %v5672
        %v5674 = vsel %vm2868, %v5672, %v5670
        %v5677 = vrot.slane %v5673, 3
        %v5678 = vrot.slane %v5674, 3
        %v5681 = vmul.f32 %v600, %v5677
        %v5682 = vmul.f32 %v601, %v5678
        %v5685 = vrot.slane %v5681, 5
        %v5686 = vrot.slane %v5682, 5
        %v5689 = vadd.f32 %v5667, %v5685
        %v5690 = vadd.f32 %v5668, %v5686
        %5691 = vrot.lane.b32.xlu0 %v5249, 96
        %v5692 = vpop.permute.xlu0 %5691
        %5693 = vrot.lane.b32.xlu0 %v5250, 96
        %v5694 = vpop.permute.xlu0 %5693
        %v5695 = vsel %vm2891, %v5692, %v5694
        %v5696 = vsel %vm2891, %v5694, %v5692
        %v5699 = vrot.slane %v5695, 2
        %v5700 = vrot.slane %v5696, 2
        %v5703 = vmul.f32 %v600, %v5699
        %v5704 = vmul.f32 %v601, %v5700
        %v5707 = vrot.slane %v5703, 6
        %v5708 = vrot.slane %v5704, 6
        %v5711 = vadd.f32 %v5689, %v5707
        %v5712 = vadd.f32 %v5690, %v5708
        %5713 = vrot.lane.b32.xlu0 %v5249, 95
        %v5714 = vpop.permute.xlu0 %5713
        %5715 = vrot.lane.b32.xlu0 %v5250, 95
        %v5716 = vpop.permute.xlu0 %5715
        %v5717 = vsel %vm2914, %v5714, %v5716
        %v5718 = vsel %vm2914, %v5716, %v5714
        %v5721 = vrot.slane %v5717, 1
        %v5722 = vrot.slane %v5718, 1
        %v5725 = vmul.f32 %v600, %v5721
        %v5726 = vmul.f32 %v601, %v5722
        %v5729 = vrot.slane %v5725, 7
        %v5730 = vrot.slane %v5726, 7
        %v5733 = vadd.f32 %v5711, %v5729
        %v5734 = vadd.f32 %v5712, %v5730
        %5735 = vrot.lane.b32.xlu0 %v5249, 94
        %v5736 = vpop.permute.xlu0 %5735
        %5737 = vrot.lane.b32.xlu0 %v5250, 94
        %v5738 = vpop.permute.xlu0 %5737
        %v5739 = vsel %vm2937, %v5736, %v5738
        %v5740 = vsel %vm2937, %v5738, %v5736
        %v5741 = vmul.f32 %v602, %v5739
        %v5742 = vmul.f32 %v603, %v5740
        %v5743 = vadd.f32 %v5733, %v5741
        %v5744 = vadd.f32 %v5734, %v5742
        %v5745 = vmul.f32 %v5249, %v5743
        %v5746 = vmul.f32 %v5250, %v5744
        %v5747 = vsel %vm1498, %v5745, 0.0
        %v5748 = vsel %vm1498, %v5746, 0.0
        %v5749 = vadd.f32 %v5747, %v5748
        %5750 = vadd.xlane.f32.xlu0 %v5749
        %v5751 = vpop.xlane.xlu0 %5750
        %v5752 = vrot.slane %v5751, 4
        %v5753 = vadd.f32 %v5751, %v5752
        %v5754 = vrot.slane %v5753, 2
        %v5755 = vadd.f32 %v5753, %v5754
        %v5756 = vrot.slane %v5755, 1
        %v5757 = vadd.f32 %v5755, %v5756
        %s5758 = vtos %v5757
        %v5759 = vstv %s5758
        %v5760 = vrcp.pop %v5759
        %v5761 = vmul.f32 %v5759, %v5760
        %v5762 = vsub.f32 1.0, %v5761
        %v5763 = vmul.f32 %v5760, %v5762
        %v5764 = vadd.f32 %v5760, %v5763
        %vm5765 = vweird.f32 %v5759
        %vm5766 = vweird.f32 %v5760
        %vm5767 = vmor %vm5765, %vm5766
        %v5768 = vsel %vm5767, %v5760, %v5764
        %v5769 = vand.u32 2147483647, %v5759
        %vm5770 = vcmp.eq.f32.partialorder %v5769, 8.507059e+37
        %v5771 = vand.u32 %v5759, 2147483648
        %v5772 = vor.u32 1.1754944e-38, %v5771
        %v5773 = vsel %vm5770, %v5772, %v5768
        %v5774 = vmul.f32 %v5229, %v5773
        %v5775 = vmul.f32 %v5774, %v5249
        %v5776 = vmul.f32 %v5774, %v5250
        %v5779 = vrot.slane %v5776, 7
        %v5780 = vsel %vm1498, %v5775, %v5779
        %v5782 = vadd.f32 %v5210, %v5780
        %v5783 = vmul.f32 %v5774, %v5743
        %v5784 = vmul.f32 %v5774, %v5744
        %v5785 = vadd.f32 %v5213, %v5783
        %v5786 = vadd.f32 %v5214, %v5784
        %v5787 = vmul.f32 %v5785, %v5785
        %v5788 = vmul.f32 %v5786, %v5786
        %v5789 = vsel %vm1498, %v5787, 0.0
        %v5790 = vsel %vm1498, %v5788, 0.0
        %v5791 = vadd.f32 %v5789, %v5790
        %5792 = vadd.xlane.f32.xlu0 %v5791
        %v5793 = vpop.xlane.xlu0 %5792
        %v5794 = vrot.slane %v5793, 4
        %v5795 = vadd.f32 %v5793, %v5794
        %v5796 = vrot.slane %v5795, 2
        %v5797 = vadd.f32 %v5795, %v5796
        %v5798 = vrot.slane %v5797, 1
        %v5799 = vadd.f32 %v5797, %v5798
        %s5800 = vtos %v5799
        %v5801 = vstv %s5800
        %v5802 = vsub.f32 0.0, %v5785
        %v5803 = vsub.f32 0.0, %v5786
        %v5804 = vrcp.pop %v5229
        %v5805 = vmul.f32 %v5229, %v5804
        %v5806 = vsub.f32 1.0, %v5805
        %v5807 = vmul.f32 %v5804, %v5806
        %v5808 = vadd.f32 %v5804, %v5807
        %vm5809 = vweird.f32 %v5229
        %vm5810 = vweird.f32 %v5804
        %vm5811 = vmor %vm5809, %vm5810
        %v5812 = vsel %vm5811, %v5804, %v5808
        %v5813 = vand.u32 2147483647, %v5229
        %vm5814 = vcmp.eq.f32.partialorder %v5813, 8.507059e+37
        %v5815 = vand.u32 %v5229, 2147483648
        %v5816 = vor.u32 1.1754944e-38, %v5815
        %v5817 = vsel %vm5814, %v5816, %v5812
        %v5818 = vmul.f32 %v5801, %v5817
        %v5819 = vmul.f32 %v5818, %v5249
        %v5820 = vmul.f32 %v5818, %v5250
        %v5821 = vadd.f32 %v5802, %v5819
        %v5822 = vadd.f32 %v5803, %v5820
        %5823 = vrot.lane.b32.xlu0 %v5821, 34
        %v5824 = vpop.permute.xlu0 %5823
        %5825 = vrot.lane.b32.xlu0 %v5822, 34
        %v5826 = vpop.permute.xlu0 %5825
        %v5827 = vsel %vm2444, %v5824, %v5826
        %v5828 = vsel %vm2444, %v5826, %v5824
        %v5829 = vmul.f32 %v596, %v5828
        %v5830 = vmul.f32 %v597, %v5827
        %5831 = vrot.lane.b32.xlu0 %v5821, 33
        %v5832 = vpop.permute.xlu0 %5831
        %5833 = vrot.lane.b32.xlu0 %v5822, 33
        %v5834 = vpop.permute.xlu0 %5833
        %v5835 = vsel %vm2453, %v5832, %v5834
        %v5836 = vsel %vm2453, %v5834, %v5832
        %v5839 = vrot.slane %v5836, 7
        %v5840 = vrot.slane %v5835, 7
        %v5843 = vmul.f32 %v596, %v5839
        %v5844 = vmul.f32 %v597, %v5840
        %v5847 = vrot.slane %v5843, 1
        %v5848 = vrot.slane %v5844, 1
        %v5851 = vadd.f32 %v5829, %v5847
        %v5852 = vadd.f32 %v5830, %v5848
        %5853 = vrot.lane.b32.xlu0 %v5821, 32
        %v5854 = vpop.permute.xlu0 %5853
        %5855 = vrot.lane.b32.xlu0 %v5822, 32
        %v5856 = vpop.permute.xlu0 %5855
        %v5857 = vsel %vm2476, %v5854, %v5856
        %v5858 = vsel %vm2476, %v5856, %v5854
        %v5861 = vrot.slane %v5858, 6
        %v5862 = vrot.slane %v5857, 6
        %v5865 = vmul.f32 %v596, %v5861
        %v5866 = vmul.f32 %v597, %v5862
        %v5869 = vrot.slane %v5865, 2
        %v5870 = vrot.slane %v5866, 2
        %v5873 = vadd.f32 %v5851, %v5869
        %v5874 = vadd.f32 %v5852, %v5870
        %5875 = vrot.lane.b32.xlu0 %v5821, 31
        %v5876 = vpop.permute.xlu0 %5875
        %5877 = vrot.lane.b32.xlu0 %v5822, 31
        %v5878 = vpop.permute.xlu0 %5877
        %v5879 = vsel %vm2499, %v5876, %v5878
        %v5880 = vsel %vm2499, %v5878, %v5876
        %v5883 = vrot.slane %v5880, 5
        %v5884 = vrot.slane %v5879, 5
        %v5887 = vmul.f32 %v596, %v5883
        %v5888 = vmul.f32 %v597, %v5884
        %v5891 = vrot.slane %v5887, 3
        %v5892 = vrot.slane %v5888, 3
        %v5895 = vadd.f32 %v5873, %v5891
        %v5896 = vadd.f32 %v5874, %v5892
        %5897 = vrot.lane.b32.xlu0 %v5821, 30
        %v5898 = vpop.permute.xlu0 %5897
        %5899 = vrot.lane.b32.xlu0 %v5822, 30
        %v5900 = vpop.permute.xlu0 %5899
        %v5901 = vsel %vm2522, %v5898, %v5900
        %v5902 = vsel %vm2522, %v5900, %v5898
        %v5905 = vrot.slane %v5902, 4
        %v5906 = vrot.slane %v5901, 4
        %v5909 = vmul.f32 %v596, %v5905
        %v5910 = vmul.f32 %v597, %v5906
        %v5913 = vrot.slane %v5909, 4
        %v5914 = vrot.slane %v5910, 4
        %v5917 = vadd.f32 %v5895, %v5913
        %v5918 = vadd.f32 %v5896, %v5914
        %5919 = vrot.lane.b32.xlu0 %v5821, 18
        %v5920 = vpop.permute.xlu0 %5919
        %5921 = vrot.lane.b32.xlu0 %v5822, 18
        %v5922 = vpop.permute.xlu0 %5921
        %v5923 = vsel %vm2545, %v5920, %v5922
        %v5924 = vsel %vm2545, %v5922, %v5920
        %v5927 = vrot.slane %v5924, 3
        %v5928 = vrot.slane %v5923, 3
        %v5931 = vmul.f32 %v596, %v5927
        %v5932 = vmul.f32 %v597, %v5928
        %v5935 = vrot.slane %v5931, 5
        %v5936 = vrot.slane %v5932, 5
        %v5939 = vadd.f32 %v5917, %v5935
        %v5940 = vadd.f32 %v5918, %v5936
        %5941 = vrot.lane.b32.xlu0 %v5821, 17
        %v5942 = vpop.permute.xlu0 %5941
        %5943 = vrot.lane.b32.xlu0 %v5822, 17
        %v5944 = vpop.permute.xlu0 %5943
        %v5945 = vsel %vm631, %v5942, %v5944
        %v5946 = vsel %vm631, %v5944, %v5942
        %v5949 = vrot.slane %v5946, 2
        %v5950 = vrot.slane %v5945, 2
        %v5953 = vmul.f32 %v596, %v5949
        %v5954 = vmul.f32 %v597, %v5950
        %v5957 = vrot.slane %v5953, 6
        %v5958 = vrot.slane %v5954, 6
        %v5961 = vadd.f32 %v5939, %v5957
        %v5962 = vadd.f32 %v5940, %v5958
        %5963 = vrot.lane.b32.xlu0 %v5821, 16
        %v5964 = vpop.permute.xlu0 %5963
        %5965 = vrot.lane.b32.xlu0 %v5822, 16
        %v5966 = vpop.permute.xlu0 %5965
        %v5967 = vsel %vm650, %v5964, %v5966
        %v5968 = vsel %vm650, %v5966, %v5964
        %v5971 = vrot.slane %v5968, 1
        %v5972 = vrot.slane %v5967, 1
        %v5975 = vmul.f32 %v596, %v5971
        %v5976 = vmul.f32 %v597, %v5972
        %v5979 = vrot.slane %v5975, 7
        %v5980 = vrot.slane %v5976, 7
        %v5983 = vadd.f32 %v5961, %v5979
        %v5984 = vadd.f32 %v5962, %v5980
        %5985 = vrot.lane.b32.xlu0 %v5821, 15
        %v5986 = vpop.permute.xlu0 %5985
        %5987 = vrot.lane.b32.xlu0 %v5822, 15
        %v5988 = vpop.permute.xlu0 %5987
        %v5989 = vsel %vm695, %v5986, %v5988
        %v5990 = vsel %vm695, %v5988, %v5986
        %v5991 = vmul.f32 %v598, %v5990
        %v5992 = vmul.f32 %v599, %v5989
        %v5993 = vadd.f32 %v5983, %v5991
        %v5994 = vadd.f32 %v5984, %v5992
        %5995 = vrot.lane.b32.xlu0 %v5821, 14
        %v5996 = vpop.permute.xlu0 %5995
        %5997 = vrot.lane.b32.xlu0 %v5822, 14
        %v5998 = vpop.permute.xlu0 %5997
        %v5999 = vsel %vm2622, %v5996, %v5998
        %v6000 = vsel %vm2622, %v5998, %v5996
        %v6003 = vrot.slane %v6000, 7
        %v6004 = vrot.slane %v5999, 7
        %v6007 = vmul.f32 %v598, %v6003
        %v6008 = vmul.f32 %v599, %v6004
        %v6011 = vrot.slane %v6007, 1
        %v6012 = vrot.slane %v6008, 1
        %v6015 = vadd.f32 %v5993, %v6011
        %v6016 = vadd.f32 %v5994, %v6012
        %6017 = vrot.lane.b32.xlu0 %v5821, 2
        %v6018 = vpop.permute.xlu0 %6017
        %6019 = vrot.lane.b32.xlu0 %v5822, 2
        %v6020 = vpop.permute.xlu0 %6019
        %v6021 = vsel %vm2645, %v6018, %v6020
        %v6022 = vsel %vm2645, %v6020, %v6018
        %v6025 = vrot.slane %v6022, 6
        %v6026 = vrot.slane %v6021, 6
        %v6029 = vmul.f32 %v598, %v6025
        %v6030 = vmul.f32 %v599, %v6026
        %v6033 = vrot.slane %v6029, 2
        %v6034 = vrot.slane %v6030, 2
        %v6037 = vadd.f32 %v6015, %v6033
        %v6038 = vadd.f32 %v6016, %v6034
        %6039 = vrot.lane.b32.xlu0 %v5821, 1
        %v6040 = vpop.permute.xlu0 %6039
        %6041 = vrot.lane.b32.xlu0 %v5822, 1
        %v6042 = vpop.permute.xlu0 %6041
        %v6043 = vsel %vm738, %v6040, %v6042
        %v6044 = vsel %vm738, %v6042, %v6040
        %v6047 = vrot.slane %v6044, 5
        %v6048 = vrot.slane %v6043, 5
        %v6051 = vmul.f32 %v598, %v6047
        %v6052 = vmul.f32 %v599, %v6048
        %v6055 = vrot.slane %v6051, 3
        %v6056 = vrot.slane %v6052, 3
        %v6059 = vadd.f32 %v6037, %v6055
        %v6060 = vadd.f32 %v6038, %v6056
        %v6063 = vrot.slane %v5821, 4
        %v6064 = vrot.slane %v5822, 4
        %v6067 = vmul.f32 %v598, %v6063
        %v6068 = vmul.f32 %v599, %v6064
        %v6071 = vrot.slane %v6067, 4
        %v6072 = vrot.slane %v6068, 4
        %v6075 = vadd.f32 %v6059, %v6071
        %v6076 = vadd.f32 %v6060, %v6072
        %6077 = vrot.lane.b32.xlu0 %v5821, 127
        %v6078 = vpop.permute.xlu0 %6077
        %6079 = vrot.lane.b32.xlu0 %v5822, 127
        %v6080 = vpop.permute.xlu0 %6079
        %v6081 = vsel %vm807, %v6078, %v6080
        %v6082 = vsel %vm807, %v6080, %v6078
        %v6085 = vrot.slane %v6081, 3
        %v6086 = vrot.slane %v6082, 3
        %v6089 = vmul.f32 %v598, %v6085
        %v6090 = vmul.f32 %v599, %v6086
        %v6093 = vrot.slane %v6089, 5
        %v6094 = vrot.slane %v6090, 5
        %v6097 = vadd.f32 %v6075, %v6093
        %v6098 = vadd.f32 %v6076, %v6094
        %6099 = vrot.lane.b32.xlu0 %v5821, 126
        %v6100 = vpop.permute.xlu0 %6099
        %6101 = vrot.lane.b32.xlu0 %v5822, 126
        %v6102 = vpop.permute.xlu0 %6101
        %v6103 = vsel %vm2722, %v6100, %v6102
        %v6104 = vsel %vm2722, %v6102, %v6100
        %v6107 = vrot.slane %v6103, 2
        %v6108 = vrot.slane %v6104, 2
        %v6111 = vmul.f32 %v598, %v6107
        %v6112 = vmul.f32 %v599, %v6108
        %v6115 = vrot.slane %v6111, 6
        %v6116 = vrot.slane %v6112, 6
        %v6119 = vadd.f32 %v6097, %v6115
        %v6120 = vadd.f32 %v6098, %v6116
        %6121 = vrot.lane.b32.xlu0 %v5821, 114
        %v6122 = vpop.permute.xlu0 %6121
        %6123 = vrot.lane.b32.xlu0 %v5822, 114
        %v6124 = vpop.permute.xlu0 %6123
        %v6125 = vsel %vm2745, %v6122, %v6124
        %v6126 = vsel %vm2745, %v6124, %v6122
        %v6129 = vrot.slane %v6125, 1
        %v6130 = vrot.slane %v6126, 1
        %v6133 = vmul.f32 %v598, %v6129
        %v6134 = vmul.f32 %v599, %v6130
        %v6137 = vrot.slane %v6133, 7
        %v6138 = vrot.slane %v6134, 7
        %v6141 = vadd.f32 %v6119, %v6137
        %v6142 = vadd.f32 %v6120, %v6138
        %6143 = vrot.lane.b32.xlu0 %v5821, 113
        %v6144 = vpop.permute.xlu0 %6143
        %6145 = vrot.lane.b32.xlu0 %v5822, 113
        %v6146 = vpop.permute.xlu0 %6145
        %v6147 = vsel %vm850, %v6144, %v6146
        %v6148 = vsel %vm850, %v6146, %v6144
        %v6149 = vmul.f32 %v600, %v6147
        %v6150 = vmul.f32 %v601, %v6148
        %v6151 = vadd.f32 %v6141, %v6149
        %v6152 = vadd.f32 %v6142, %v6150
        %6153 = vrot.lane.b32.xlu0 %v5821, 112
        %v6154 = vpop.permute.xlu0 %6153
        %6155 = vrot.lane.b32.xlu0 %v5822, 112
        %v6156 = vpop.permute.xlu0 %6155
        %v6157 = vsel %vm893, %v6154, %v6156
        %v6158 = vsel %vm893, %v6156, %v6154
        %v6161 = vrot.slane %v6157, 7
        %v6162 = vrot.slane %v6158, 7
        %v6165 = vmul.f32 %v600, %v6161
        %v6166 = vmul.f32 %v601, %v6162
        %v6169 = vrot.slane %v6165, 1
        %v6170 = vrot.slane %v6166, 1
        %v6173 = vadd.f32 %v6151, %v6169
        %v6174 = vadd.f32 %v6152, %v6170
        %6175 = vrot.lane.b32.xlu0 %v5821, 111
        %v6176 = vpop.permute.xlu0 %6175
        %6177 = vrot.lane.b32.xlu0 %v5822, 111
        %v6178 = vpop.permute.xlu0 %6177
        %v6179 = vsel %vm932, %v6176, %v6178
        %v6180 = vsel %vm932, %v6178, %v6176
        %v6183 = vrot.slane %v6179, 6
        %v6184 = vrot.slane %v6180, 6
        %v6187 = vmul.f32 %v600, %v6183
        %v6188 = vmul.f32 %v601, %v6184
        %v6191 = vrot.slane %v6187, 2
        %v6192 = vrot.slane %v6188, 2
        %v6195 = vadd.f32 %v6173, %v6191
        %v6196 = vadd.f32 %v6174, %v6192
        %6197 = vrot.lane.b32.xlu0 %v5821, 110
        %v6198 = vpop.permute.xlu0 %6197
        %6199 = vrot.lane.b32.xlu0 %v5822, 110
        %v6200 = vpop.permute.xlu0 %6199
        %v6201 = vsel %vm2822, %v6198, %v6200
        %v6202 = vsel %vm2822, %v6200, %v6198
        %v6205 = vrot.slane %v6201, 5
        %v6206 = vrot.slane %v6202, 5
        %v6209 = vmul.f32 %v600, %v6205
        %v6210 = vmul.f32 %v601, %v6206
        %v6213 = vrot.slane %v6209, 3
        %v6214 = vrot.slane %v6210, 3
        %v6217 = vadd.f32 %v6195, %v6213
        %v6218 = vadd.f32 %v6196, %v6214
        %6219 = vrot.lane.b32.xlu0 %v5821, 98
        %v6220 = vpop.permute.xlu0 %6219
        %6221 = vrot.lane.b32.xlu0 %v5822, 98
        %v6222 = vpop.permute.xlu0 %6221
        %v6223 = vsel %vm2845, %v6220, %v6222
        %v6224 = vsel %vm2845, %v6222, %v6220
        %v6227 = vrot.slane %v6223, 4
        %v6228 = vrot.slane %v6224, 4
        %v6231 = vmul.f32 %v600, %v6227
        %v6232 = vmul.f32 %v601, %v6228
        %v6235 = vrot.slane %v6231, 4
        %v6236 = vrot.slane %v6232, 4
        %v6239 = vadd.f32 %v6217, %v6235
        %v6240 = vadd.f32 %v6218, %v6236
        %6241 = vrot.lane.b32.xlu0 %v5821, 97
        %v6242 = vpop.permute.xlu0 %6241
        %6243 = vrot.lane.b32.xlu0 %v5822, 97
        %v6244 = vpop.permute.xlu0 %6243
        %v6245 = vsel %vm2868, %v6242, %v6244
        %v6246 = vsel %vm2868, %v6244, %v6242
        %v6249 = vrot.slane %v6245, 3
        %v6250 = vrot.slane %v6246, 3
        %v6253 = vmul.f32 %v600, %v6249
        %v6254 = vmul.f32 %v601, %v6250
        %v6257 = vrot.slane %v6253, 5
        %v6258 = vrot.slane %v6254, 5
        %v6261 = vadd.f32 %v6239, %v6257
        %v6262 = vadd.f32 %v6240, %v6258
        %6263 = vrot.lane.b32.xlu0 %v5821, 96
        %v6264 = vpop.permute.xlu0 %6263
        %6265 = vrot.lane.b32.xlu0 %v5822, 96
        %v6266 = vpop.permute.xlu0 %6265
        %v6267 = vsel %vm2891, %v6264, %v6266
        %v6268 = vsel %vm2891, %v6266, %v6264
        %v6271 = vrot.slane %v6267, 2
        %v6272 = vrot.slane %v6268, 2
        %v6275 = vmul.f32 %v600, %v6271
        %v6276 = vmul.f32 %v601, %v6272
        %v6279 = vrot.slane %v6275, 6
        %v6280 = vrot.slane %v6276, 6
        %v6283 = vadd.f32 %v6261, %v6279
        %v6284 = vadd.f32 %v6262, %v6280
        %6285 = vrot.lane.b32.xlu0 %v5821, 95
        %v6286 = vpop.permute.xlu0 %6285
        %6287 = vrot.lane.b32.xlu0 %v5822, 95
        %v6288 = vpop.permute.xlu0 %6287
        %v6289 = vsel %vm2914, %v6286, %v6288
        %v6290 = vsel %vm2914, %v6288, %v6286
        %v6293 = vrot.slane %v6289, 1
        %v6294 = vrot.slane %v6290, 1
        %v6297 = vmul.f32 %v600, %v6293
        %v6298 = vmul.f32 %v601, %v6294
        %v6301 = vrot.slane %v6297, 7
        %v6302 = vrot.slane %v6298, 7
        %v6305 = vadd.f32 %v6283, %v6301
        %v6306 = vadd.f32 %v6284, %v6302
        %6307 = vrot.lane.b32.xlu0 %v5821, 94
        %v6308 = vpop.permute.xlu0 %6307
        %6309 = vrot.lane.b32.xlu0 %v5822, 94
        %v6310 = vpop.permute.xlu0 %6309
        %v6311 = vsel %vm2937, %v6308, %v6310
        %v6312 = vsel %vm2937, %v6310, %v6308
        %v6313 = vmul.f32 %v602, %v6311
        %v6314 = vmul.f32 %v603, %v6312
        %v6315 = vadd.f32 %v6305, %v6313
        %v6316 = vadd.f32 %v6306, %v6314
        %v6317 = vmul.f32 %v5821, %v6315
        %v6318 = vmul.f32 %v5822, %v6316
        %v6319 = vsel %vm1498, %v6317, 0.0
        %v6320 = vsel %vm1498, %v6318, 0.0
        %v6321 = vadd.f32 %v6319, %v6320
        %6322 = vadd.xlane.f32.xlu0 %v6321
        %v6323 = vpop.xlane.xlu0 %6322
        %v6324 = vrot.slane %v6323, 4
        %v6325 = vadd.f32 %v6323, %v6324
        %v6326 = vrot.slane %v6325, 2
        %v6327 = vadd.f32 %v6325, %v6326
        %v6328 = vrot.slane %v6327, 1
        %v6329 = vadd.f32 %v6327, %v6328
        %s6330 = vtos %v6329
        %v6331 = vstv %s6330
        %v6332 = vrcp.pop %v6331
        %v6333 = vmul.f32 %v6331, %v6332
        %v6334 = vsub.f32 1.0, %v6333
        %v6335 = vmul.f32 %v6332, %v6334
        %v6336 = vadd.f32 %v6332, %v6335
        %vm6337 = vweird.f32 %v6331
        %vm6338 = vweird.f32 %v6332
        %vm6339 = vmor %vm6337, %vm6338
        %v6340 = vsel %vm6339, %v6332, %v6336
        %v6341 = vand.u32 2147483647, %v6331
        %vm6342 = vcmp.eq.f32.partialorder %v6341, 8.507059e+37
        %v6343 = vand.u32 %v6331, 2147483648
        %v6344 = vor.u32 1.1754944e-38, %v6343
        %v6345 = vsel %vm6342, %v6344, %v6340
        %v6346 = vmul.f32 %v5801, %v6345
        %v6347 = vmul.f32 %v6346, %v5821
        %v6348 = vmul.f32 %v6346, %v5822
        %v6351 = vrot.slane %v6348, 7
        %v6352 = vsel %vm1498, %v6347, %v6351
        %v6354 = vadd.f32 %v5782, %v6352
        %6355 = vst.msk [vmem:[%s581] sm:$0x3] %vm2433, %v6354
        %s6356 = sand.u32 %s310, 1
        %s6357 = scalar_lea.sflag [#allocation6], %s6356
        %s6358 = sand.u32 %s310, 1
        %s6359 = smul.addr %s6358, 2
        %s6360 = scalar_lea.vmem [#allocation16], %s6359
        %s6361 = sand.u32 %s336, 1
        %s6362 = scalar_lea.sflag [#allocation18], %s6361
        %s6363 = sand.u32 %s336, 1
        %s6364 = smul.addr %s6363, 2
        %s6365 = scalar_lea.vmem [#allocation17], %s6364
        // Predicated region
        $region97: #{tpu_custom_call.1} parent=67 // pred_check
          %p6366 = pneg %p320
        $region98: #{tpu_custom_call.1} parent=67 // pred_check_branch
          %6368 = sbr.rel (%p6366) target = $region100
        $region99: #{tpu_custom_call.1} parent=67 // pred_region
          %6370 = vsyncadd %s6357, 0
          %s6371 = smul.addr %s40, 2
          %s6372 = scalar_lea.hbm %s12, %s6371
          %s6374 = sshll.u32 %s6360, 4
          %s6375 = int_to_ptr.vmem [resolvable:$true] %s6374
          %s6376 = sshll.u32 %s6372, 4
          %s6377 = int_to_ptr.hbm [resolvable:$true] %s6376
          %6379 = dma.vmem_to_hbm [thread:$0]  %s6375, 32, %s6377, %s6357
        $region100: #{tpu_custom_call.1} parent=67 // pred_fallthru
          _
        // Predicated region
        $region101: #{tpu_custom_call.1} parent=67 // pred_check
          %p6380 = pneg %p346
        $region102: #{tpu_custom_call.1} parent=67 // pred_check_branch
          %6382 = sbr.rel (%p6380) target = $region104
        $region103: #{tpu_custom_call.1} parent=67 // pred_region
          %6384 = vsyncadd %s6362, 0
          %s6385 = smul.addr %s40, 2
          %s6386 = scalar_lea.hbm %s13, %s6385
          %s6388 = sshll.u32 %s6365, 4
          %s6389 = int_to_ptr.vmem [resolvable:$true] %s6388
          %s6390 = sshll.u32 %s6386, 4
          %s6391 = int_to_ptr.hbm [resolvable:$true] %s6390
          %6393 = dma.vmem_to_hbm [thread:$0]  %s6389, 32, %s6391, %s6362
        $region104: #{tpu_custom_call.1} parent=67 // pred_fallthru
          _
      $region68: #{tpu_custom_call.1} parent=5 // pred_fallthru
        _
      %p6394 = scmp.le.s32.totalorder 2, %s35
      // Predicated region
      $region105: #{tpu_custom_call.1} parent=5 // pred_check
        %p6395 = pneg %p6394
      $region106: #{tpu_custom_call.1} parent=5 // pred_check_branch
        %6397 = sbr.rel (%p6395) target = $region108
      $region107: #{tpu_custom_call.1} parent=5 // pred_region
        %s6398 = ssub.s32 %s35, 2
        // Predicated region
        $region109: #{tpu_custom_call.1} parent=107 // pred_check
          %p6399 = pneg %p326
        $region110: #{tpu_custom_call.1} parent=107 // pred_check_branch
          %6401 = sbr.rel (%p6399) target = $region112
        $region111: #{tpu_custom_call.1} parent=107 // pred_region
          %s6402 = sand.u32 %s311, 1
          %s6403 = scalar_lea.sflag [#allocation6], %s6402
          %s6404 = sand.u32 %s311, 1
          %s6405 = smul.addr %s6404, 2
          %s6406 = scalar_lea.vmem [#allocation16], %s6405
          %6408 = dma.done %s6403, 32
        $region112: #{tpu_custom_call.1} parent=107 // pred_fallthru
          _
        // Predicated region
        $region113: #{tpu_custom_call.1} parent=107 // pred_check
          %p6409 = pneg %p352
        $region114: #{tpu_custom_call.1} parent=107 // pred_check_branch
          %6411 = sbr.rel (%p6409) target = $region116
        $region115: #{tpu_custom_call.1} parent=107 // pred_region
          %s6412 = sand.u32 %s337, 1
          %s6413 = scalar_lea.sflag [#allocation18], %s6412
          %s6414 = sand.u32 %s337, 1
          %s6415 = smul.addr %s6414, 2
          %s6416 = scalar_lea.vmem [#allocation17], %s6415
          %6418 = dma.done %s6413, 32
        $region116: #{tpu_custom_call.1} parent=107 // pred_fallthru
          _
      $region108: #{tpu_custom_call.1} parent=5 // pred_fallthru
        _
    $region6: #{tpu_custom_call.1} parent=1 // loop_footer
      %s39 = sadd.s32 1, %s35
    $region7: #{tpu_custom_call.1} parent=1 // loop_footer_branch
      %34 = sbr.rel target = $region3
    $region8: #{tpu_custom_call.1} parent=1 // loop_exit
      _
    %6419 = vsyncpa [#allocation5], 1
    %s6420 = scalar_lea.sflag [#allocation5], 1
    %6421 = vsyncpa %s6420, 1
    %6422 = vsyncpa [#allocation8], 1
    %s6423 = scalar_lea.sflag [#allocation8], 1
    %6424 = vsyncpa %s6423, 1
    %6425 = vsyncpa [#allocation11], 1
    %6426 = vsyncpa [#allocation14], 1
    %6427 = vsyncpa [#allocation6], 1
    %s6428 = scalar_lea.sflag [#allocation6], 1
    %6429 = vsyncpa %s6428, 1
    %6430 = vsyncpa [#allocation18], 1
    %s6431 = scalar_lea.sflag [#allocation18], 1
    %6432 = vsyncpa %s6431, 1

</llo_original>
